<compile_context>
chip_gen: v7x
topology: tpu7x:2x2x1
jax: 0.10.0
libtpu: 0.0.40
codegen_flags: <defaults>
</compile_context>

<pallas_src>
import functools

import jax
import jax.numpy as jnp
import numpy as np
from jax.experimental import pallas as pl
from jax.experimental.pallas import tpu as pltpu


def _round_up(x, m):
    return ((x + m - 1) // m) * m


# ------------------------------ fused kernel ---------------------------------
def _make_fused_lstm_kernel(num_layers, seq_len, batch_pad, hidden):
    """Ref order: x, (w_ih, w_hh, b) * num_layers, w_out, b_out | out | scratch.

    Per-layer weights are stacked per gate:
        w_ih: (4, Din_l, H)   w_hh: (4, H, H)   b: (4, 1, H)
    Gate order matches PyTorch: 0=i, 1=f, 2=g(cell), 3=o.
    """
    S, Bp, H = seq_len, batch_pad, hidden

    def kernel(*refs):
        n_in = 1 + 3 * num_layers + 2
        x_ref = refs[0]
        w_out_ref = refs[n_in - 2]
        b_out_ref = refs[n_in - 1]
        out_ref = refs[n_in]
        gx_i, gx_f, gx_g, gx_o, hseq_scr = refs[n_in + 1:]
        gx = (gx_i, gx_f, gx_g, gx_o)

        # Layer-0 input: time-major rows (S*Bp, Din); row = t*Bp + b.
        cur = x_ref[...]

        for layer in range(num_layers):
            wih_ref = refs[1 + 3 * layer + 0]   # (4, Din_l, H)
            whh_ref = refs[1 + 3 * layer + 1]   # (4, H,     H)
            b_ref = refs[1 + 3 * layer + 2]     # (4, 1,     H)

            # Hoisted per-gate input projection + bias for ALL timesteps:
            # outside the recurrence, one GEMM per gate (bias folded in once).
            for g in range(4):
                gx[g][...] = (
                    jnp.dot(cur, wih_ref[g], preferred_element_type=jnp.float32)
                    + b_ref[g]
                )

            # Load the recurrent weights once per layer; the fully unrolled
            # time loop lets the compiler keep them resident in vregs.
            whh = [whh_ref[g] for g in range(4)]

            # h/c carried as values (vregs), not VMEM scratch.
            h = jnp.zeros((Bp, H), jnp.float32)
            c = jnp.zeros((Bp, H), jnp.float32)

            # Fully unrolled recurrence (S is small & static): equivalent to
            # lax.fori_loop(0, S, body, (h, c), unroll=True), with static
            # sublane-aligned row offsets.
            for t in range(S):
                r = t * Bp
                # Four independent tiny dots (pipeline through the MXU);
                # every operand/result sits at lane offset 0.
                i_t = jax.nn.sigmoid(
                    gx_i[r:r + Bp, :]
                    + jnp.dot(h, whh[0], preferred_element_type=jnp.float32))
                f_t = jax.nn.sigmoid(
                    gx_f[r:r + Bp, :]
                    + jnp.dot(h, whh[1], preferred_element_type=jnp.float32))
                g_t = jnp.tanh(
                    gx_g[r:r + Bp, :]
                    + jnp.dot(h, whh[2], preferred_element_type=jnp.float32))
                o_t = jax.nn.sigmoid(
                    gx_o[r:r + Bp, :]
                    + jnp.dot(h, whh[3], preferred_element_type=jnp.float32))
                c = f_t * c + i_t * g_t
                h = o_t * jnp.tanh(c)
                hseq_scr[r:r + Bp, :] = h          # only store on the chain

            cur = hseq_scr[...]                    # (S*Bp, H): next layer/head

        # Fused linear head; Op is a multiple of 128 -> lane-dense store.
        out_ref[...] = (
            jnp.dot(cur, w_out_ref[...], preferred_element_type=jnp.float32)
            + b_out_ref[...]
        ).astype(out_ref.dtype)

    return kernel


# ------------------------------- Full model -----------------------------------
@functools.partial(jax.jit, static_argnames=("output_size",))
def lstm_model_forward(x, kparams, *, output_size):
    """x: (B, S, input_size) batch-first -> (B, S, output_size)."""
    B, S, Din = x.shape
    layers = kparams["layers"]
    num_layers = len(layers)
    H = layers[0][1].shape[-1]           # hidden width (unpadded)
    Op = kparams["w_out_T"].shape[1]     # lane-padded output width
    Bp = _round_up(B, 8)                 # sublane-aligned batch

    # Time-major, batch-padded, flattened to 2D rows (tiny host-side reorder;
    # fuses into the surrounding XLA program at this size).
    x_tm = jnp.transpose(x, (1, 0, 2))                       # (S, B, Din)
    x_tm = jnp.pad(x_tm, ((0, 0), (0, Bp - B), (0, 0)))      # (S, Bp, Din)
    x2d = x_tm.reshape(S * Bp, Din)

    flat_args = [x2d]
    for (wih, whh, b) in layers:
        flat_args += [wih, whh, b]
    flat_args += [kparams["w_out_T"], kparams["b_out"]]

    kernel = _make_fused_lstm_kernel(num_layers, S, Bp, H)
    y2d = pl.pallas_call(
        kernel,
        out_shape=jax.ShapeDtypeStruct((S * Bp, Op), jnp.float32),
        scratch_shapes=[
            pltpu.VMEM((S * Bp, H), jnp.float32),   # gx_i (hoisted x-proj, gate i)
            pltpu.VMEM((S * Bp, H), jnp.float32),   # gx_f
            pltpu.VMEM((S * Bp, H), jnp.float32),   # gx_g
            pltpu.VMEM((S * Bp, H), jnp.float32),   # gx_o
            pltpu.VMEM((S * Bp, H), jnp.float32),   # per-layer hidden sequence
        ],
    )(*flat_args)

    y = y2d.reshape(S, Bp, Op)[:, :B, :output_size]      # drop padding
    return jnp.transpose(y, (1, 0, 2))                    # back to (B, S, O)


# --------------------------- Parameter construction ---------------------------
def init_torch_params(key, input_size, hidden_size, num_layers, output_size):
    """nn.LSTM / nn.Linear shaped parameters (uniform(-k, k), like PyTorch)."""
    k_lstm = 1.0 / np.sqrt(hidden_size)
    layers = []
    for l in range(num_layers):
        din = input_size if l == 0 else hidden_size
        key, k1, k2, k3, k4 = jax.random.split(key, 5)
        w_ih = jax.random.uniform(k1, (4 * hidden_size, din), jnp.float32,
                                  -k_lstm, k_lstm)
        w_hh = jax.random.uniform(k2, (4 * hidden_size, hidden_size), jnp.float32,
                                  -k_lstm, k_lstm)
        b_ih = jax.random.uniform(k3, (4 * hidden_size,), jnp.float32,
                                  -k_lstm, k_lstm)
        b_hh = jax.random.uniform(k4, (4 * hidden_size,), jnp.float32,
                                  -k_lstm, k_lstm)
        layers.append((w_ih, w_hh, b_ih, b_hh))
    key, k1, k2 = jax.random.split(key, 3)
    w_out = jax.random.uniform(k1, (output_size, hidden_size), jnp.float32,
                               -k_lstm, k_lstm)
    b_out = jax.random.uniform(k2, (output_size,), jnp.float32, -k_lstm, k_lstm)
    return {"layers": layers, "w_out": w_out, "b_out": b_out}


def prepare_kernel_params(torch_params, hidden_size):
    """Split PyTorch-layout LSTM parameters per gate (no 4x lane padding).

    PyTorch packs gates row-wise as [i; f; g; o] blocks of H.  We transpose
    and stack them along a leading gate axis so the kernel indexes one
    (Din, H) / (H, H) matrix per gate at lane offset 0.
    """
    H = hidden_size
    layers = []
    for (w_ih, w_hh, b_ih, b_hh) in torch_params["layers"]:
        wih_g = jnp.stack([w_ih[g * H:(g + 1) * H, :].T for g in range(4)])
        whh_g = jnp.stack([w_hh[g * H:(g + 1) * H, :].T for g in range(4)])
        b = b_ih + b_hh
        b_g = jnp.stack([b[g * H:(g + 1) * H][None, :] for g in range(4)])
        layers.append((wih_g, whh_g, b_g))
    O = torch_params["w_out"].shape[0]
    Op = _round_up(O, 128)                                     # lane-dense head
    w_out_T = jnp.pad(torch_params["w_out"].T, ((0, 0), (0, Op - O)))  # (H, Op)
    b_out = jnp.pad(torch_params["b_out"], (0, Op - O))[None, :]       # (1, Op)
    return {"layers": layers, "w_out_T": w_out_T, "b_out": b_out}


# ------------------------------ Pure-JAX reference -----------------------------
def ref_forward(x, torch_params):
    """Matches nn.LSTM(batch_first=True, num_layers) + nn.Linear in f32."""
    B = x.shape[0]
    h_in = x
    for (w_ih, w_hh, b_ih, b_hh) in torch_params["layers"]:
        H = w_hh.shape[1]
        wih_T, whh_T = w_ih.T, w_hh.T
        b = (b_ih + b_hh)[None, :]

        def step(carry, x_t, wih_T=wih_T, whh_T=whh_T, b=b, H=H):
            h, c = carry
            gates = x_t @ wih_T + h @ whh_T + b
            i = jax.nn.sigmoid(gates[:, 0 * H:1 * H])
            f = jax.nn.sigmoid(gates[:, 1 * H:2 * H])
            g = jnp.tanh(gates[:, 2 * H:3 * H])
            o = jax.nn.sigmoid(gates[:, 3 * H:4 * H])
            c = f * c + i * g
            h = o * jnp.tanh(c)
            return (h, c), h

        x_tm = jnp.transpose(h_in, (1, 0, 2))
        init = (jnp.zeros((B, H), jnp.float32), jnp.zeros((B, H), jnp.float32))
        _, hs = jax.lax.scan(step, init, x_tm)
        h_in = jnp.transpose(hs, (1, 0, 2))
    return h_in @ torch_params["w_out"].T + torch_params["b_out"]


if __name__ == "__main__":
    # Small shapes consistent with the module: batch=2, seq=8, input=16,
    # hidden=32, num_layers=2, output=8.
    B, S, INPUT, HIDDEN, LAYERS, OUTPUT = 2, 8, 16, 32, 2, 8

    key = jax.random.PRNGKey(0)
    key, kx = jax.random.split(key)
    x = jax.random.normal(kx, (B, S, INPUT), jnp.float32)

    torch_params = init_torch_params(key, INPUT, HIDDEN, LAYERS, OUTPUT)
    kernel_params = prepare_kernel_params(torch_params, HIDDEN)

    y = lstm_model_forward(x, kernel_params, output_size=OUTPUT)
    y = jax.block_until_ready(y)

    y_ref = jax.block_until_ready(ref_forward(x, torch_params))
    assert y.shape == (B, S, OUTPUT), y.shape
    np.testing.assert_allclose(np.asarray(y), np.asarray(y_ref),
                               atol=1e-3, rtol=1e-3)
    print("KERNEL_OK")
</pallas_src>

<mosaic_0001>
module attributes {stable_mosaic.version = 11 : i64} {
  func.func @kernel(%arg0: memref<64x16xf32, #tpu.memory_space<vmem>>, %arg1: memref<4x16x32xf32, #tpu.memory_space<vmem>>, %arg2: memref<4x32x32xf32, #tpu.memory_space<vmem>>, %arg3: memref<4x1x32xf32, #tpu.memory_space<vmem>>, %arg4: memref<4x32x32xf32, #tpu.memory_space<vmem>>, %arg5: memref<4x32x32xf32, #tpu.memory_space<vmem>>, %arg6: memref<4x1x32xf32, #tpu.memory_space<vmem>>, %arg7: memref<32x128xf32, #tpu.memory_space<vmem>>, %arg8: memref<1x128xf32, #tpu.memory_space<vmem>>, %arg9: memref<64x128xf32, #tpu.memory_space<vmem>>, %arg10: memref<64x32xf32, #tpu.memory_space<vmem>>, %arg11: memref<64x32xf32, #tpu.memory_space<vmem>>, %arg12: memref<64x32xf32, #tpu.memory_space<vmem>>, %arg13: memref<64x32xf32, #tpu.memory_space<vmem>>, %arg14: memref<64x32xf32, #tpu.memory_space<vmem>>) attributes {dimension_semantics = [], scalar_prefetch = 0 : i64, scratch_operands = 5 : i64, tpu.core_type = #tpu.core_type<tc>} {
    %c0 = arith.constant 0 : index
    %c0_0 = arith.constant 0 : index
    %0 = vector.load %arg0[%c0, %c0_0] : memref<64x16xf32, #tpu.memory_space<vmem>>, vector<64x16xf32>
    %c0_1 = arith.constant 0 : index
    %c0_2 = arith.constant 0 : index
    %c0_3 = arith.constant 0 : index
    %1 = vector.load %arg1[%c0_1, %c0_2, %c0_3] : memref<4x16x32xf32, #tpu.memory_space<vmem>>, vector<1x16x32xf32>
    %2 = vector.shape_cast %1 : vector<1x16x32xf32> to vector<16x32xf32>
    %cst = arith.constant dense<0.000000e+00> : vector<64x32xf32>
    %3 = tpu.matmul %0, %2, %cst {dimension_numbers = #tpu.dot_dimension_numbers<[1], [0], [0], [1], [0, 0, 1, 1], [], []>} : vector<64x16xf32>, vector<16x32xf32>, vector<64x32xf32> -> vector<64x32xf32>
    %c0_4 = arith.constant 0 : index
    %c0_5 = arith.constant 0 : index
    %c0_6 = arith.constant 0 : index
    %4 = vector.load %arg3[%c0_4, %c0_5, %c0_6] : memref<4x1x32xf32, #tpu.memory_space<vmem>>, vector<1x1x32xf32>
    %5 = vector.shape_cast %4 : vector<1x1x32xf32> to vector<1x32xf32>
    %6 = vector.broadcast %5 : vector<1x32xf32> to vector<64x32xf32>
    %7 = arith.addf %3, %6 : vector<64x32xf32>
    %c0_7 = arith.constant 0 : index
    %c0_8 = arith.constant 0 : index
    %8 = vector.load %arg10[%c0_7, %c0_8] : memref<64x32xf32, #tpu.memory_space<vmem>>, vector<64x32xf32>
    tpu.vector_store %arg10[%c0_7, %c0_8], %7 {strides = array<i32>} : memref<64x32xf32, #tpu.memory_space<vmem>>, vector<64x32xf32>,
    %c1 = arith.constant 1 : index
    %c0_9 = arith.constant 0 : index
    %c0_10 = arith.constant 0 : index
    %9 = vector.load %arg1[%c1, %c0_9, %c0_10] : memref<4x16x32xf32, #tpu.memory_space<vmem>>, vector<1x16x32xf32>
    %10 = vector.shape_cast %9 : vector<1x16x32xf32> to vector<16x32xf32>
    %cst_11 = arith.constant dense<0.000000e+00> : vector<64x32xf32>
    %11 = tpu.matmul %0, %10, %cst_11 {dimension_numbers = #tpu.dot_dimension_numbers<[1], [0], [0], [1], [0, 0, 1, 1], [], []>} : vector<64x16xf32>, vector<16x32xf32>, vector<64x32xf32> -> vector<64x32xf32>
    %c1_12 = arith.constant 1 : index
    %c0_13 = arith.constant 0 : index
    %c0_14 = arith.constant 0 : index
    %12 = vector.load %arg3[%c1_12, %c0_13, %c0_14] : memref<4x1x32xf32, #tpu.memory_space<vmem>>, vector<1x1x32xf32>
    %13 = vector.shape_cast %12 : vector<1x1x32xf32> to vector<1x32xf32>
    %14 = vector.broadcast %13 : vector<1x32xf32> to vector<64x32xf32>
    %15 = arith.addf %11, %14 : vector<64x32xf32>
    %c0_15 = arith.constant 0 : index
    %c0_16 = arith.constant 0 : index
    %16 = vector.load %arg11[%c0_15, %c0_16] : memref<64x32xf32, #tpu.memory_space<vmem>>, vector<64x32xf32>
    tpu.vector_store %arg11[%c0_15, %c0_16], %15 {strides = array<i32>} : memref<64x32xf32, #tpu.memory_space<vmem>>, vector<64x32xf32>,
    %c2 = arith.constant 2 : index
    %c0_17 = arith.constant 0 : index
    %c0_18 = arith.constant 0 : index
    %17 = vector.load %arg1[%c2, %c0_17, %c0_18] : memref<4x16x32xf32, #tpu.memory_space<vmem>>, vector<1x16x32xf32>
    %18 = vector.shape_cast %17 : vector<1x16x32xf32> to vector<16x32xf32>
    %cst_19 = arith.constant dense<0.000000e+00> : vector<64x32xf32>
    %19 = tpu.matmul %0, %18, %cst_19 {dimension_numbers = #tpu.dot_dimension_numbers<[1], [0], [0], [1], [0, 0, 1, 1], [], []>} : vector<64x16xf32>, vector<16x32xf32>, vector<64x32xf32> -> vector<64x32xf32>
    %c2_20 = arith.constant 2 : index
    %c0_21 = arith.constant 0 : index
    %c0_22 = arith.constant 0 : index
    %20 = vector.load %arg3[%c2_20, %c0_21, %c0_22] : memref<4x1x32xf32, #tpu.memory_space<vmem>>, vector<1x1x32xf32>
    %21 = vector.shape_cast %20 : vector<1x1x32xf32> to vector<1x32xf32>
    %22 = vector.broadcast %21 : vector<1x32xf32> to vector<64x32xf32>
    %23 = arith.addf %19, %22 : vector<64x32xf32>
    %c0_23 = arith.constant 0 : index
    %c0_24 = arith.constant 0 : index
    %24 = vector.load %arg12[%c0_23, %c0_24] : memref<64x32xf32, #tpu.memory_space<vmem>>, vector<64x32xf32>
    tpu.vector_store %arg12[%c0_23, %c0_24], %23 {strides = array<i32>} : memref<64x32xf32, #tpu.memory_space<vmem>>, vector<64x32xf32>,
    %c3 = arith.constant 3 : index
    %c0_25 = arith.constant 0 : index
    %c0_26 = arith.constant 0 : index
    %25 = vector.load %arg1[%c3, %c0_25, %c0_26] : memref<4x16x32xf32, #tpu.memory_space<vmem>>, vector<1x16x32xf32>
    %26 = vector.shape_cast %25 : vector<1x16x32xf32> to vector<16x32xf32>
    %cst_27 = arith.constant dense<0.000000e+00> : vector<64x32xf32>
    %27 = tpu.matmul %0, %26, %cst_27 {dimension_numbers = #tpu.dot_dimension_numbers<[1], [0], [0], [1], [0, 0, 1, 1], [], []>} : vector<64x16xf32>, vector<16x32xf32>, vector<64x32xf32> -> vector<64x32xf32>
    %c3_28 = arith.constant 3 : index
    %c0_29 = arith.constant 0 : index
    %c0_30 = arith.constant 0 : index
    %28 = vector.load %arg3[%c3_28, %c0_29, %c0_30] : memref<4x1x32xf32, #tpu.memory_space<vmem>>, vector<1x1x32xf32>
    %29 = vector.shape_cast %28 : vector<1x1x32xf32> to vector<1x32xf32>
    %30 = vector.broadcast %29 : vector<1x32xf32> to vector<64x32xf32>
    %31 = arith.addf %27, %30 : vector<64x32xf32>
    %c0_31 = arith.constant 0 : index
    %c0_32 = arith.constant 0 : index
    %32 = vector.load %arg13[%c0_31, %c0_32] : memref<64x32xf32, #tpu.memory_space<vmem>>, vector<64x32xf32>
    tpu.vector_store %arg13[%c0_31, %c0_32], %31 {strides = array<i32>} : memref<64x32xf32, #tpu.memory_space<vmem>>, vector<64x32xf32>,
    %c0_33 = arith.constant 0 : index
    %c0_34 = arith.constant 0 : index
    %c0_35 = arith.constant 0 : index
    %33 = vector.load %arg2[%c0_33, %c0_34, %c0_35] : memref<4x32x32xf32, #tpu.memory_space<vmem>>, vector<1x32x32xf32>
    %34 = vector.shape_cast %33 : vector<1x32x32xf32> to vector<32x32xf32>
    %c1_36 = arith.constant 1 : index
    %c0_37 = arith.constant 0 : index
    %c0_38 = arith.constant 0 : index
    %35 = vector.load %arg2[%c1_36, %c0_37, %c0_38] : memref<4x32x32xf32, #tpu.memory_space<vmem>>, vector<1x32x32xf32>
    %36 = vector.shape_cast %35 : vector<1x32x32xf32> to vector<32x32xf32>
    %c2_39 = arith.constant 2 : index
    %c0_40 = arith.constant 0 : index
    %c0_41 = arith.constant 0 : index
    %37 = vector.load %arg2[%c2_39, %c0_40, %c0_41] : memref<4x32x32xf32, #tpu.memory_space<vmem>>, vector<1x32x32xf32>
    %38 = vector.shape_cast %37 : vector<1x32x32xf32> to vector<32x32xf32>
    %c3_42 = arith.constant 3 : index
    %c0_43 = arith.constant 0 : index
    %c0_44 = arith.constant 0 : index
    %39 = vector.load %arg2[%c3_42, %c0_43, %c0_44] : memref<4x32x32xf32, #tpu.memory_space<vmem>>, vector<1x32x32xf32>
    %40 = vector.shape_cast %39 : vector<1x32x32xf32> to vector<32x32xf32>
    %cst_45 = arith.constant 0.000000e+00 : f32
    %41 = vector.broadcast %cst_45 : f32 to vector<8x32xf32>
    %cst_46 = arith.constant 0.000000e+00 : f32
    %42 = vector.broadcast %cst_46 : f32 to vector<8x32xf32>
    %c0_47 = arith.constant 0 : index
    %c0_48 = arith.constant 0 : index
    %43 = vector.load %arg10[%c0_47, %c0_48] : memref<64x32xf32, #tpu.memory_space<vmem>>, vector<8x32xf32>
    %cst_49 = arith.constant dense<0.000000e+00> : vector<8x32xf32>
    %44 = tpu.matmul %41, %34, %cst_49 {dimension_numbers = #tpu.dot_dimension_numbers<[1], [0], [0], [1], [0, 0, 1, 1], [], []>} : vector<8x32xf32>, vector<32x32xf32>, vector<8x32xf32> -> vector<8x32xf32>
    %45 = arith.addf %43, %44 : vector<8x32xf32>
    %46 = arith.negf %45 : vector<8x32xf32>
    %47 = math.exp %46 : vector<8x32xf32>
    %cst_50 = arith.constant 1.000000e+00 : f32
    %48 = vector.broadcast %cst_50 : f32 to vector<8x32xf32>
    %49 = arith.addf %48, %47 : vector<8x32xf32>
    %50 = arith.divf %48, %49 : vector<8x32xf32>
    %c0_51 = arith.constant 0 : index
    %c0_52 = arith.constant 0 : index
    %51 = vector.load %arg11[%c0_51, %c0_52] : memref<64x32xf32, #tpu.memory_space<vmem>>, vector<8x32xf32>
    %cst_53 = arith.constant dense<0.000000e+00> : vector<8x32xf32>
    %52 = tpu.matmul %41, %36, %cst_53 {dimension_numbers = #tpu.dot_dimension_numbers<[1], [0], [0], [1], [0, 0, 1, 1], [], []>} : vector<8x32xf32>, vector<32x32xf32>, vector<8x32xf32> -> vector<8x32xf32>
    %53 = arith.addf %51, %52 : vector<8x32xf32>
    %54 = arith.negf %53 : vector<8x32xf32>
    %55 = math.exp %54 : vector<8x32xf32>
    %cst_54 = arith.constant 1.000000e+00 : f32
    %56 = vector.broadcast %cst_54 : f32 to vector<8x32xf32>
    %57 = arith.addf %56, %55 : vector<8x32xf32>
    %58 = arith.divf %56, %57 : vector<8x32xf32>
    %c0_55 = arith.constant 0 : index
    %c0_56 = arith.constant 0 : index
    %59 = vector.load %arg12[%c0_55, %c0_56] : memref<64x32xf32, #tpu.memory_space<vmem>>, vector<8x32xf32>
    %cst_57 = arith.constant dense<0.000000e+00> : vector<8x32xf32>
    %60 = tpu.matmul %41, %38, %cst_57 {dimension_numbers = #tpu.dot_dimension_numbers<[1], [0], [0], [1], [0, 0, 1, 1], [], []>} : vector<8x32xf32>, vector<32x32xf32>, vector<8x32xf32> -> vector<8x32xf32>
    %61 = arith.addf %59, %60 : vector<8x32xf32>
    %62 = math.tanh %61 : vector<8x32xf32>
    %c0_58 = arith.constant 0 : index
    %c0_59 = arith.constant 0 : index
    %63 = vector.load %arg13[%c0_58, %c0_59] : memref<64x32xf32, #tpu.memory_space<vmem>>, vector<8x32xf32>
    %cst_60 = arith.constant dense<0.000000e+00> : vector<8x32xf32>
    %64 = tpu.matmul %41, %40, %cst_60 {dimension_numbers = #tpu.dot_dimension_numbers<[1], [0], [0], [1], [0, 0, 1, 1], [], []>} : vector<8x32xf32>, vector<32x32xf32>, vector<8x32xf32> -> vector<8x32xf32>
    %65 = arith.addf %63, %64 : vector<8x32xf32>
    %66 = arith.negf %65 : vector<8x32xf32>
    %67 = math.exp %66 : vector<8x32xf32>
    %cst_61 = arith.constant 1.000000e+00 : f32
    %68 = vector.broadcast %cst_61 : f32 to vector<8x32xf32>
    %69 = arith.addf %68, %67 : vector<8x32xf32>
    %70 = arith.divf %68, %69 : vector<8x32xf32>
    %71 = arith.mulf %58, %42 : vector<8x32xf32>
    %72 = arith.mulf %50, %62 : vector<8x32xf32>
    %73 = arith.addf %71, %72 : vector<8x32xf32>
    %74 = math.tanh %73 : vector<8x32xf32>
    %75 = arith.mulf %70, %74 : vector<8x32xf32>
    %c0_62 = arith.constant 0 : index
    %c0_63 = arith.constant 0 : index
    %76 = vector.load %arg14[%c0_62, %c0_63] : memref<64x32xf32, #tpu.memory_space<vmem>>, vector<8x32xf32>
    tpu.vector_store %arg14[%c0_62, %c0_63], %75 {strides = array<i32>} : memref<64x32xf32, #tpu.memory_space<vmem>>, vector<8x32xf32>,
    %c8 = arith.constant 8 : index
    %c0_64 = arith.constant 0 : index
    %77 = vector.load %arg10[%c8, %c0_64] : memref<64x32xf32, #tpu.memory_space<vmem>>, vector<8x32xf32>
    %cst_65 = arith.constant dense<0.000000e+00> : vector<8x32xf32>
    %78 = tpu.matmul %75, %34, %cst_65 {dimension_numbers = #tpu.dot_dimension_numbers<[1], [0], [0], [1], [0, 0, 1, 1], [], []>} : vector<8x32xf32>, vector<32x32xf32>, vector<8x32xf32> -> vector<8x32xf32>
    %79 = arith.addf %77, %78 : vector<8x32xf32>
    %80 = arith.negf %79 : vector<8x32xf32>
    %81 = math.exp %80 : vector<8x32xf32>
    %cst_66 = arith.constant 1.000000e+00 : f32
    %82 = vector.broadcast %cst_66 : f32 to vector<8x32xf32>
    %83 = arith.addf %82, %81 : vector<8x32xf32>
    %84 = arith.divf %82, %83 : vector<8x32xf32>
    %c8_67 = arith.constant 8 : index
    %c0_68 = arith.constant 0 : index
    %85 = vector.load %arg11[%c8_67, %c0_68] : memref<64x32xf32, #tpu.memory_space<vmem>>, vector<8x32xf32>
    %cst_69 = arith.constant dense<0.000000e+00> : vector<8x32xf32>
    %86 = tpu.matmul %75, %36, %cst_69 {dimension_numbers = #tpu.dot_dimension_numbers<[1], [0], [0], [1], [0, 0, 1, 1], [], []>} : vector<8x32xf32>, vector<32x32xf32>, vector<8x32xf32> -> vector<8x32xf32>
    %87 = arith.addf %85, %86 : vector<8x32xf32>
    %88 = arith.negf %87 : vector<8x32xf32>
    %89 = math.exp %88 : vector<8x32xf32>
    %cst_70 = arith.constant 1.000000e+00 : f32
    %90 = vector.broadcast %cst_70 : f32 to vector<8x32xf32>
    %91 = arith.addf %90, %89 : vector<8x32xf32>
    %92 = arith.divf %90, %91 : vector<8x32xf32>
    %c8_71 = arith.constant 8 : index
    %c0_72 = arith.constant 0 : index
    %93 = vector.load %arg12[%c8_71, %c0_72] : memref<64x32xf32, #tpu.memory_space<vmem>>, vector<8x32xf32>
    %cst_73 = arith.constant dense<0.000000e+00> : vector<8x32xf32>
    %94 = tpu.matmul %75, %38, %cst_73 {dimension_numbers = #tpu.dot_dimension_numbers<[1], [0], [0], [1], [0, 0, 1, 1], [], []>} : vector<8x32xf32>, vector<32x32xf32>, vector<8x32xf32> -> vector<8x32xf32>
    %95 = arith.addf %93, %94 : vector<8x32xf32>
    %96 = math.tanh %95 : vector<8x32xf32>
    %c8_74 = arith.constant 8 : index
    %c0_75 = arith.constant 0 : index
    %97 = vector.load %arg13[%c8_74, %c0_75] : memref<64x32xf32, #tpu.memory_space<vmem>>, vector<8x32xf32>
    %cst_76 = arith.constant dense<0.000000e+00> : vector<8x32xf32>
    %98 = tpu.matmul %75, %40, %cst_76 {dimension_numbers = #tpu.dot_dimension_numbers<[1], [0], [0], [1], [0, 0, 1, 1], [], []>} : vector<8x32xf32>, vector<32x32xf32>, vector<8x32xf32> -> vector<8x32xf32>
    %99 = arith.addf %97, %98 : vector<8x32xf32>
    %100 = arith.negf %99 : vector<8x32xf32>
    %101 = math.exp %100 : vector<8x32xf32>
    %cst_77 = arith.constant 1.000000e+00 : f32
    %102 = vector.broadcast %cst_77 : f32 to vector<8x32xf32>
    %103 = arith.addf %102, %101 : vector<8x32xf32>
    %104 = arith.divf %102, %103 : vector<8x32xf32>
    %105 = arith.mulf %92, %73 : vector<8x32xf32>
    %106 = arith.mulf %84, %96 : vector<8x32xf32>
    %107 = arith.addf %105, %106 : vector<8x32xf32>
    %108 = math.tanh %107 : vector<8x32xf32>
    %109 = arith.mulf %104, %108 : vector<8x32xf32>
    %c8_78 = arith.constant 8 : index
    %c0_79 = arith.constant 0 : index
    %110 = vector.load %arg14[%c8_78, %c0_79] : memref<64x32xf32, #tpu.memory_space<vmem>>, vector<8x32xf32>
    tpu.vector_store %arg14[%c8_78, %c0_79], %109 {strides = array<i32>} : memref<64x32xf32, #tpu.memory_space<vmem>>, vector<8x32xf32>,
    %c16 = arith.constant 16 : index
    %c0_80 = arith.constant 0 : index
    %111 = vector.load %arg10[%c16, %c0_80] : memref<64x32xf32, #tpu.memory_space<vmem>>, vector<8x32xf32>
    %cst_81 = arith.constant dense<0.000000e+00> : vector<8x32xf32>
    %112 = tpu.matmul %109, %34, %cst_81 {dimension_numbers = #tpu.dot_dimension_numbers<[1], [0], [0], [1], [0, 0, 1, 1], [], []>} : vector<8x32xf32>, vector<32x32xf32>, vector<8x32xf32> -> vector<8x32xf32>
    %113 = arith.addf %111, %112 : vector<8x32xf32>
    %114 = arith.negf %113 : vector<8x32xf32>
    %115 = math.exp %114 : vector<8x32xf32>
    %cst_82 = arith.constant 1.000000e+00 : f32
    %116 = vector.broadcast %cst_82 : f32 to vector<8x32xf32>
    %117 = arith.addf %116, %115 : vector<8x32xf32>
    %118 = arith.divf %116, %117 : vector<8x32xf32>
    %c16_83 = arith.constant 16 : index
    %c0_84 = arith.constant 0 : index
    %119 = vector.load %arg11[%c16_83, %c0_84] : memref<64x32xf32, #tpu.memory_space<vmem>>, vector<8x32xf32>
    %cst_85 = arith.constant dense<0.000000e+00> : vector<8x32xf32>
    %120 = tpu.matmul %109, %36, %cst_85 {dimension_numbers = #tpu.dot_dimension_numbers<[1], [0], [0], [1], [0, 0, 1, 1], [], []>} : vector<8x32xf32>, vector<32x32xf32>, vector<8x32xf32> -> vector<8x32xf32>
    %121 = arith.addf %119, %120 : vector<8x32xf32>
    %122 = arith.negf %121 : vector<8x32xf32>
    %123 = math.exp %122 : vector<8x32xf32>
    %cst_86 = arith.constant 1.000000e+00 : f32
    %124 = vector.broadcast %cst_86 : f32 to vector<8x32xf32>
    %125 = arith.addf %124, %123 : vector<8x32xf32>
    %126 = arith.divf %124, %125 : vector<8x32xf32>
    %c16_87 = arith.constant 16 : index
    %c0_88 = arith.constant 0 : index
    %127 = vector.load %arg12[%c16_87, %c0_88] : memref<64x32xf32, #tpu.memory_space<vmem>>, vector<8x32xf32>
    %cst_89 = arith.constant dense<0.000000e+00> : vector<8x32xf32>
    %128 = tpu.matmul %109, %38, %cst_89 {dimension_numbers = #tpu.dot_dimension_numbers<[1], [0], [0], [1], [0, 0, 1, 1], [], []>} : vector<8x32xf32>, vector<32x32xf32>, vector<8x32xf32> -> vector<8x32xf32>
    %129 = arith.addf %127, %128 : vector<8x32xf32>
    %130 = math.tanh %129 : vector<8x32xf32>
    %c16_90 = arith.constant 16 : index
    %c0_91 = arith.constant 0 : index
    %131 = vector.load %arg13[%c16_90, %c0_91] : memref<64x32xf32, #tpu.memory_space<vmem>>, vector<8x32xf32>
    %cst_92 = arith.constant dense<0.000000e+00> : vector<8x32xf32>
    %132 = tpu.matmul %109, %40, %cst_92 {dimension_numbers = #tpu.dot_dimension_numbers<[1], [0], [0], [1], [0, 0, 1, 1], [], []>} : vector<8x32xf32>, vector<32x32xf32>, vector<8x32xf32> -> vector<8x32xf32>
    %133 = arith.addf %131, %132 : vector<8x32xf32>
    %134 = arith.negf %133 : vector<8x32xf32>
    %135 = math.exp %134 : vector<8x32xf32>
    %cst_93 = arith.constant 1.000000e+00 : f32
    %136 = vector.broadcast %cst_93 : f32 to vector<8x32xf32>
    %137 = arith.addf %136, %135 : vector<8x32xf32>
    %138 = arith.divf %136, %137 : vector<8x32xf32>
    %139 = arith.mulf %126, %107 : vector<8x32xf32>
    %140 = arith.mulf %118, %130 : vector<8x32xf32>
    %141 = arith.addf %139, %140 : vector<8x32xf32>
    %142 = math.tanh %141 : vector<8x32xf32>
    %143 = arith.mulf %138, %142 : vector<8x32xf32>
    %c16_94 = arith.constant 16 : index
    %c0_95 = arith.constant 0 : index
    %144 = vector.load %arg14[%c16_94, %c0_95] : memref<64x32xf32, #tpu.memory_space<vmem>>, vector<8x32xf32>
    tpu.vector_store %arg14[%c16_94, %c0_95], %143 {strides = array<i32>} : memref<64x32xf32, #tpu.memory_space<vmem>>, vector<8x32xf32>,
    %c24 = arith.constant 24 : index
    %c0_96 = arith.constant 0 : index
    %145 = vector.load %arg10[%c24, %c0_96] : memref<64x32xf32, #tpu.memory_space<vmem>>, vector<8x32xf32>
    %cst_97 = arith.constant dense<0.000000e+00> : vector<8x32xf32>
    %146 = tpu.matmul %143, %34, %cst_97 {dimension_numbers = #tpu.dot_dimension_numbers<[1], [0], [0], [1], [0, 0, 1, 1], [], []>} : vector<8x32xf32>, vector<32x32xf32>, vector<8x32xf32> -> vector<8x32xf32>
    %147 = arith.addf %145, %146 : vector<8x32xf32>
    %148 = arith.negf %147 : vector<8x32xf32>
    %149 = math.exp %148 : vector<8x32xf32>
    %cst_98 = arith.constant 1.000000e+00 : f32
    %150 = vector.broadcast %cst_98 : f32 to vector<8x32xf32>
    %151 = arith.addf %150, %149 : vector<8x32xf32>
    %152 = arith.divf %150, %151 : vector<8x32xf32>
    %c24_99 = arith.constant 24 : index
    %c0_100 = arith.constant 0 : index
    %153 = vector.load %arg11[%c24_99, %c0_100] : memref<64x32xf32, #tpu.memory_space<vmem>>, vector<8x32xf32>
    %cst_101 = arith.constant dense<0.000000e+00> : vector<8x32xf32>
    %154 = tpu.matmul %143, %36, %cst_101 {dimension_numbers = #tpu.dot_dimension_numbers<[1], [0], [0], [1], [0, 0, 1, 1], [], []>} : vector<8x32xf32>, vector<32x32xf32>, vector<8x32xf32> -> vector<8x32xf32>
    %155 = arith.addf %153, %154 : vector<8x32xf32>
    %156 = arith.negf %155 : vector<8x32xf32>
    %157 = math.exp %156 : vector<8x32xf32>
    %cst_102 = arith.constant 1.000000e+00 : f32
    %158 = vector.broadcast %cst_102 : f32 to vector<8x32xf32>
    %159 = arith.addf %158, %157 : vector<8x32xf32>
    %160 = arith.divf %158, %159 : vector<8x32xf32>
    %c24_103 = arith.constant 24 : index
    %c0_104 = arith.constant 0 : index
    %161 = vector.load %arg12[%c24_103, %c0_104] : memref<64x32xf32, #tpu.memory_space<vmem>>, vector<8x32xf32>
    %cst_105 = arith.constant dense<0.000000e+00> : vector<8x32xf32>
    %162 = tpu.matmul %143, %38, %cst_105 {dimension_numbers = #tpu.dot_dimension_numbers<[1], [0], [0], [1], [0, 0, 1, 1], [], []>} : vector<8x32xf32>, vector<32x32xf32>, vector<8x32xf32> -> vector<8x32xf32>
    %163 = arith.addf %161, %162 : vector<8x32xf32>
    %164 = math.tanh %163 : vector<8x32xf32>
    %c24_106 = arith.constant 24 : index
    %c0_107 = arith.constant 0 : index
    %165 = vector.load %arg13[%c24_106, %c0_107] : memref<64x32xf32, #tpu.memory_space<vmem>>, vector<8x32xf32>
    %cst_108 = arith.constant dense<0.000000e+00> : vector<8x32xf32>
    %166 = tpu.matmul %143, %40, %cst_108 {dimension_numbers = #tpu.dot_dimension_numbers<[1], [0], [0], [1], [0, 0, 1, 1], [], []>} : vector<8x32xf32>, vector<32x32xf32>, vector<8x32xf32> -> vector<8x32xf32>
    %167 = arith.addf %165, %166 : vector<8x32xf32>
    %168 = arith.negf %167 : vector<8x32xf32>
    %169 = math.exp %168 : vector<8x32xf32>
    %cst_109 = arith.constant 1.000000e+00 : f32
    %170 = vector.broadcast %cst_109 : f32 to vector<8x32xf32>
    %171 = arith.addf %170, %169 : vector<8x32xf32>
    %172 = arith.divf %170, %171 : vector<8x32xf32>
    %173 = arith.mulf %160, %141 : vector<8x32xf32>
    %174 = arith.mulf %152, %164 : vector<8x32xf32>
    %175 = arith.addf %173, %174 : vector<8x32xf32>
    %176 = math.tanh %175 : vector<8x32xf32>
    %177 = arith.mulf %172, %176 : vector<8x32xf32>
    %c24_110 = arith.constant 24 : index
    %c0_111 = arith.constant 0 : index
    %178 = vector.load %arg14[%c24_110, %c0_111] : memref<64x32xf32, #tpu.memory_space<vmem>>, vector<8x32xf32>
    tpu.vector_store %arg14[%c24_110, %c0_111], %177 {strides = array<i32>} : memref<64x32xf32, #tpu.memory_space<vmem>>, vector<8x32xf32>,
    %c32 = arith.constant 32 : index
    %c0_112 = arith.constant 0 : index
    %179 = vector.load %arg10[%c32, %c0_112] : memref<64x32xf32, #tpu.memory_space<vmem>>, vector<8x32xf32>
    %cst_113 = arith.constant dense<0.000000e+00> : vector<8x32xf32>
    %180 = tpu.matmul %177, %34, %cst_113 {dimension_numbers = #tpu.dot_dimension_numbers<[1], [0], [0], [1], [0, 0, 1, 1], [], []>} : vector<8x32xf32>, vector<32x32xf32>, vector<8x32xf32> -> vector<8x32xf32>
    %181 = arith.addf %179, %180 : vector<8x32xf32>
    %182 = arith.negf %181 : vector<8x32xf32>
    %183 = math.exp %182 : vector<8x32xf32>
    %cst_114 = arith.constant 1.000000e+00 : f32
    %184 = vector.broadcast %cst_114 : f32 to vector<8x32xf32>
    %185 = arith.addf %184, %183 : vector<8x32xf32>
    %186 = arith.divf %184, %185 : vector<8x32xf32>
    %c32_115 = arith.constant 32 : index
    %c0_116 = arith.constant 0 : index
    %187 = vector.load %arg11[%c32_115, %c0_116] : memref<64x32xf32, #tpu.memory_space<vmem>>, vector<8x32xf32>
    %cst_117 = arith.constant dense<0.000000e+00> : vector<8x32xf32>
    %188 = tpu.matmul %177, %36, %cst_117 {dimension_numbers = #tpu.dot_dimension_numbers<[1], [0], [0], [1], [0, 0, 1, 1], [], []>} : vector<8x32xf32>, vector<32x32xf32>, vector<8x32xf32> -> vector<8x32xf32>
    %189 = arith.addf %187, %188 : vector<8x32xf32>
    %190 = arith.negf %189 : vector<8x32xf32>
    %191 = math.exp %190 : vector<8x32xf32>
    %cst_118 = arith.constant 1.000000e+00 : f32
    %192 = vector.broadcast %cst_118 : f32 to vector<8x32xf32>
    %193 = arith.addf %192, %191 : vector<8x32xf32>
    %194 = arith.divf %192, %193 : vector<8x32xf32>
    %c32_119 = arith.constant 32 : index
    %c0_120 = arith.constant 0 : index
    %195 = vector.load %arg12[%c32_119, %c0_120] : memref<64x32xf32, #tpu.memory_space<vmem>>, vector<8x32xf32>
    %cst_121 = arith.constant dense<0.000000e+00> : vector<8x32xf32>
    %196 = tpu.matmul %177, %38, %cst_121 {dimension_numbers = #tpu.dot_dimension_numbers<[1], [0], [0], [1], [0, 0, 1, 1], [], []>} : vector<8x32xf32>, vector<32x32xf32>, vector<8x32xf32> -> vector<8x32xf32>
    %197 = arith.addf %195, %196 : vector<8x32xf32>
    %198 = math.tanh %197 : vector<8x32xf32>
    %c32_122 = arith.constant 32 : index
    %c0_123 = arith.constant 0 : index
    %199 = vector.load %arg13[%c32_122, %c0_123] : memref<64x32xf32, #tpu.memory_space<vmem>>, vector<8x32xf32>
    %cst_124 = arith.constant dense<0.000000e+00> : vector<8x32xf32>
    %200 = tpu.matmul %177, %40, %cst_124 {dimension_numbers = #tpu.dot_dimension_numbers<[1], [0], [0], [1], [0, 0, 1, 1], [], []>} : vector<8x32xf32>, vector<32x32xf32>, vector<8x32xf32> -> vector<8x32xf32>
    %201 = arith.addf %199, %200 : vector<8x32xf32>
    %202 = arith.negf %201 : vector<8x32xf32>
    %203 = math.exp %202 : vector<8x32xf32>
    %cst_125 = arith.constant 1.000000e+00 : f32
    %204 = vector.broadcast %cst_125 : f32 to vector<8x32xf32>
    %205 = arith.addf %204, %203 : vector<8x32xf32>
    %206 = arith.divf %204, %205 : vector<8x32xf32>
    %207 = arith.mulf %194, %175 : vector<8x32xf32>
    %208 = arith.mulf %186, %198 : vector<8x32xf32>
    %209 = arith.addf %207, %208 : vector<8x32xf32>
    %210 = math.tanh %209 : vector<8x32xf32>
    %211 = arith.mulf %206, %210 : vector<8x32xf32>
    %c32_126 = arith.constant 32 : index
    %c0_127 = arith.constant 0 : index
    %212 = vector.load %arg14[%c32_126, %c0_127] : memref<64x32xf32, #tpu.memory_space<vmem>>, vector<8x32xf32>
    tpu.vector_store %arg14[%c32_126, %c0_127], %211 {strides = array<i32>} : memref<64x32xf32, #tpu.memory_space<vmem>>, vector<8x32xf32>,
    %c40 = arith.constant 40 : index
    %c0_128 = arith.constant 0 : index
    %213 = vector.load %arg10[%c40, %c0_128] : memref<64x32xf32, #tpu.memory_space<vmem>>, vector<8x32xf32>
    %cst_129 = arith.constant dense<0.000000e+00> : vector<8x32xf32>
    %214 = tpu.matmul %211, %34, %cst_129 {dimension_numbers = #tpu.dot_dimension_numbers<[1], [0], [0], [1], [0, 0, 1, 1], [], []>} : vector<8x32xf32>, vector<32x32xf32>, vector<8x32xf32> -> vector<8x32xf32>
    %215 = arith.addf %213, %214 : vector<8x32xf32>
    %216 = arith.negf %215 : vector<8x32xf32>
    %217 = math.exp %216 : vector<8x32xf32>
    %cst_130 = arith.constant 1.000000e+00 : f32
    %218 = vector.broadcast %cst_130 : f32 to vector<8x32xf32>
    %219 = arith.addf %218, %217 : vector<8x32xf32>
    %220 = arith.divf %218, %219 : vector<8x32xf32>
    %c40_131 = arith.constant 40 : index
    %c0_132 = arith.constant 0 : index
    %221 = vector.load %arg11[%c40_131, %c0_132] : memref<64x32xf32, #tpu.memory_space<vmem>>, vector<8x32xf32>
    %cst_133 = arith.constant dense<0.000000e+00> : vector<8x32xf32>
    %222 = tpu.matmul %211, %36, %cst_133 {dimension_numbers = #tpu.dot_dimension_numbers<[1], [0], [0], [1], [0, 0, 1, 1], [], []>} : vector<8x32xf32>, vector<32x32xf32>, vector<8x32xf32> -> vector<8x32xf32>
    %223 = arith.addf %221, %222 : vector<8x32xf32>
    %224 = arith.negf %223 : vector<8x32xf32>
    %225 = math.exp %224 : vector<8x32xf32>
    %cst_134 = arith.constant 1.000000e+00 : f32
    %226 = vector.broadcast %cst_134 : f32 to vector<8x32xf32>
    %227 = arith.addf %226, %225 : vector<8x32xf32>
    %228 = arith.divf %226, %227 : vector<8x32xf32>
    %c40_135 = arith.constant 40 : index
    %c0_136 = arith.constant 0 : index
    %229 = vector.load %arg12[%c40_135, %c0_136] : memref<64x32xf32, #tpu.memory_space<vmem>>, vector<8x32xf32>
    %cst_137 = arith.constant dense<0.000000e+00> : vector<8x32xf32>
    %230 = tpu.matmul %211, %38, %cst_137 {dimension_numbers = #tpu.dot_dimension_numbers<[1], [0], [0], [1], [0, 0, 1, 1], [], []>} : vector<8x32xf32>, vector<32x32xf32>, vector<8x32xf32> -> vector<8x32xf32>
    %231 = arith.addf %229, %230 : vector<8x32xf32>
    %232 = math.tanh %231 : vector<8x32xf32>
    %c40_138 = arith.constant 40 : index
    %c0_139 = arith.constant 0 : index
    %233 = vector.load %arg13[%c40_138, %c0_139] : memref<64x32xf32, #tpu.memory_space<vmem>>, vector<8x32xf32>
    %cst_140 = arith.constant dense<0.000000e+00> : vector<8x32xf32>
    %234 = tpu.matmul %211, %40, %cst_140 {dimension_numbers = #tpu.dot_dimension_numbers<[1], [0], [0], [1], [0, 0, 1, 1], [], []>} : vector<8x32xf32>, vector<32x32xf32>, vector<8x32xf32> -> vector<8x32xf32>
    %235 = arith.addf %233, %234 : vector<8x32xf32>
    %236 = arith.negf %235 : vector<8x32xf32>
    %237 = math.exp %236 : vector<8x32xf32>
    %cst_141 = arith.constant 1.000000e+00 : f32
    %238 = vector.broadcast %cst_141 : f32 to vector<8x32xf32>
    %239 = arith.addf %238, %237 : vector<8x32xf32>
    %240 = arith.divf %238, %239 : vector<8x32xf32>
    %241 = arith.mulf %228, %209 : vector<8x32xf32>
    %242 = arith.mulf %220, %232 : vector<8x32xf32>
    %243 = arith.addf %241, %242 : vector<8x32xf32>
    %244 = math.tanh %243 : vector<8x32xf32>
    %245 = arith.mulf %240, %244 : vector<8x32xf32>
    %c40_142 = arith.constant 40 : index
    %c0_143 = arith.constant 0 : index
    %246 = vector.load %arg14[%c40_142, %c0_143] : memref<64x32xf32, #tpu.memory_space<vmem>>, vector<8x32xf32>
    tpu.vector_store %arg14[%c40_142, %c0_143], %245 {strides = array<i32>} : memref<64x32xf32, #tpu.memory_space<vmem>>, vector<8x32xf32>,
    %c48 = arith.constant 48 : index
    %c0_144 = arith.constant 0 : index
    %247 = vector.load %arg10[%c48, %c0_144] : memref<64x32xf32, #tpu.memory_space<vmem>>, vector<8x32xf32>
    %cst_145 = arith.constant dense<0.000000e+00> : vector<8x32xf32>
    %248 = tpu.matmul %245, %34, %cst_145 {dimension_numbers = #tpu.dot_dimension_numbers<[1], [0], [0], [1], [0, 0, 1, 1], [], []>} : vector<8x32xf32>, vector<32x32xf32>, vector<8x32xf32> -> vector<8x32xf32>
    %249 = arith.addf %247, %248 : vector<8x32xf32>
    %250 = arith.negf %249 : vector<8x32xf32>
    %251 = math.exp %250 : vector<8x32xf32>
    %cst_146 = arith.constant 1.000000e+00 : f32
    %252 = vector.broadcast %cst_146 : f32 to vector<8x32xf32>
    %253 = arith.addf %252, %251 : vector<8x32xf32>
    %254 = arith.divf %252, %253 : vector<8x32xf32>
    %c48_147 = arith.constant 48 : index
    %c0_148 = arith.constant 0 : index
    %255 = vector.load %arg11[%c48_147, %c0_148] : memref<64x32xf32, #tpu.memory_space<vmem>>, vector<8x32xf32>
    %cst_149 = arith.constant dense<0.000000e+00> : vector<8x32xf32>
    %256 = tpu.matmul %245, %36, %cst_149 {dimension_numbers = #tpu.dot_dimension_numbers<[1], [0], [0], [1], [0, 0, 1, 1], [], []>} : vector<8x32xf32>, vector<32x32xf32>, vector<8x32xf32> -> vector<8x32xf32>
    %257 = arith.addf %255, %256 : vector<8x32xf32>
    %258 = arith.negf %257 : vector<8x32xf32>
    %259 = math.exp %258 : vector<8x32xf32>
    %cst_150 = arith.constant 1.000000e+00 : f32
    %260 = vector.broadcast %cst_150 : f32 to vector<8x32xf32>
    %261 = arith.addf %260, %259 : vector<8x32xf32>
    %262 = arith.divf %260, %261 : vector<8x32xf32>
    %c48_151 = arith.constant 48 : index
    %c0_152 = arith.constant 0 : index
    %263 = vector.load %arg12[%c48_151, %c0_152] : memref<64x32xf32, #tpu.memory_space<vmem>>, vector<8x32xf32>
    %cst_153 = arith.constant dense<0.000000e+00> : vector<8x32xf32>
    %264 = tpu.matmul %245, %38, %cst_153 {dimension_numbers = #tpu.dot_dimension_numbers<[1], [0], [0], [1], [0, 0, 1, 1], [], []>} : vector<8x32xf32>, vector<32x32xf32>, vector<8x32xf32> -> vector<8x32xf32>
    %265 = arith.addf %263, %264 : vector<8x32xf32>
    %266 = math.tanh %265 : vector<8x32xf32>
    %c48_154 = arith.constant 48 : index
    %c0_155 = arith.constant 0 : index
    %267 = vector.load %arg13[%c48_154, %c0_155] : memref<64x32xf32, #tpu.memory_space<vmem>>, vector<8x32xf32>
    %cst_156 = arith.constant dense<0.000000e+00> : vector<8x32xf32>
    %268 = tpu.matmul %245, %40, %cst_156 {dimension_numbers = #tpu.dot_dimension_numbers<[1], [0], [0], [1], [0, 0, 1, 1], [], []>} : vector<8x32xf32>, vector<32x32xf32>, vector<8x32xf32> -> vector<8x32xf32>
    %269 = arith.addf %267, %268 : vector<8x32xf32>
    %270 = arith.negf %269 : vector<8x32xf32>
    %271 = math.exp %270 : vector<8x32xf32>
    %cst_157 = arith.constant 1.000000e+00 : f32
    %272 = vector.broadcast %cst_157 : f32 to vector<8x32xf32>
    %273 = arith.addf %272, %271 : vector<8x32xf32>
    %274 = arith.divf %272, %273 : vector<8x32xf32>
    %275 = arith.mulf %262, %243 : vector<8x32xf32>
    %276 = arith.mulf %254, %266 : vector<8x32xf32>
    %277 = arith.addf %275, %276 : vector<8x32xf32>
    %278 = math.tanh %277 : vector<8x32xf32>
    %279 = arith.mulf %274, %278 : vector<8x32xf32>
    %c48_158 = arith.constant 48 : index
    %c0_159 = arith.constant 0 : index
    %280 = vector.load %arg14[%c48_158, %c0_159] : memref<64x32xf32, #tpu.memory_space<vmem>>, vector<8x32xf32>
    tpu.vector_store %arg14[%c48_158, %c0_159], %279 {strides = array<i32>} : memref<64x32xf32, #tpu.memory_space<vmem>>, vector<8x32xf32>,
    %c56 = arith.constant 56 : index
    %c0_160 = arith.constant 0 : index
    %281 = vector.load %arg10[%c56, %c0_160] : memref<64x32xf32, #tpu.memory_space<vmem>>, vector<8x32xf32>
    %cst_161 = arith.constant dense<0.000000e+00> : vector<8x32xf32>
    %282 = tpu.matmul %279, %34, %cst_161 {dimension_numbers = #tpu.dot_dimension_numbers<[1], [0], [0], [1], [0, 0, 1, 1], [], []>} : vector<8x32xf32>, vector<32x32xf32>, vector<8x32xf32> -> vector<8x32xf32>
    %283 = arith.addf %281, %282 : vector<8x32xf32>
    %284 = arith.negf %283 : vector<8x32xf32>
    %285 = math.exp %284 : vector<8x32xf32>
    %cst_162 = arith.constant 1.000000e+00 : f32
    %286 = vector.broadcast %cst_162 : f32 to vector<8x32xf32>
    %287 = arith.addf %286, %285 : vector<8x32xf32>
    %288 = arith.divf %286, %287 : vector<8x32xf32>
    %c56_163 = arith.constant 56 : index
    %c0_164 = arith.constant 0 : index
    %289 = vector.load %arg11[%c56_163, %c0_164] : memref<64x32xf32, #tpu.memory_space<vmem>>, vector<8x32xf32>
    %cst_165 = arith.constant dense<0.000000e+00> : vector<8x32xf32>
    %290 = tpu.matmul %279, %36, %cst_165 {dimension_numbers = #tpu.dot_dimension_numbers<[1], [0], [0], [1], [0, 0, 1, 1], [], []>} : vector<8x32xf32>, vector<32x32xf32>, vector<8x32xf32> -> vector<8x32xf32>
    %291 = arith.addf %289, %290 : vector<8x32xf32>
    %292 = arith.negf %291 : vector<8x32xf32>
    %293 = math.exp %292 : vector<8x32xf32>
    %cst_166 = arith.constant 1.000000e+00 : f32
    %294 = vector.broadcast %cst_166 : f32 to vector<8x32xf32>
    %295 = arith.addf %294, %293 : vector<8x32xf32>
    %296 = arith.divf %294, %295 : vector<8x32xf32>
    %c56_167 = arith.constant 56 : index
    %c0_168 = arith.constant 0 : index
    %297 = vector.load %arg12[%c56_167, %c0_168] : memref<64x32xf32, #tpu.memory_space<vmem>>, vector<8x32xf32>
    %cst_169 = arith.constant dense<0.000000e+00> : vector<8x32xf32>
    %298 = tpu.matmul %279, %38, %cst_169 {dimension_numbers = #tpu.dot_dimension_numbers<[1], [0], [0], [1], [0, 0, 1, 1], [], []>} : vector<8x32xf32>, vector<32x32xf32>, vector<8x32xf32> -> vector<8x32xf32>
    %299 = arith.addf %297, %298 : vector<8x32xf32>
    %300 = math.tanh %299 : vector<8x32xf32>
    %c56_170 = arith.constant 56 : index
    %c0_171 = arith.constant 0 : index
    %301 = vector.load %arg13[%c56_170, %c0_171] : memref<64x32xf32, #tpu.memory_space<vmem>>, vector<8x32xf32>
    %cst_172 = arith.constant dense<0.000000e+00> : vector<8x32xf32>
    %302 = tpu.matmul %279, %40, %cst_172 {dimension_numbers = #tpu.dot_dimension_numbers<[1], [0], [0], [1], [0, 0, 1, 1], [], []>} : vector<8x32xf32>, vector<32x32xf32>, vector<8x32xf32> -> vector<8x32xf32>
    %303 = arith.addf %301, %302 : vector<8x32xf32>
    %304 = arith.negf %303 : vector<8x32xf32>
    %305 = math.exp %304 : vector<8x32xf32>
    %cst_173 = arith.constant 1.000000e+00 : f32
    %306 = vector.broadcast %cst_173 : f32 to vector<8x32xf32>
    %307 = arith.addf %306, %305 : vector<8x32xf32>
    %308 = arith.divf %306, %307 : vector<8x32xf32>
    %309 = arith.mulf %296, %277 : vector<8x32xf32>
    %310 = arith.mulf %288, %300 : vector<8x32xf32>
    %311 = arith.addf %309, %310 : vector<8x32xf32>
    %312 = math.tanh %311 : vector<8x32xf32>
    %313 = arith.mulf %308, %312 : vector<8x32xf32>
    %c56_174 = arith.constant 56 : index
    %c0_175 = arith.constant 0 : index
    %314 = vector.load %arg14[%c56_174, %c0_175] : memref<64x32xf32, #tpu.memory_space<vmem>>, vector<8x32xf32>
    tpu.vector_store %arg14[%c56_174, %c0_175], %313 {strides = array<i32>} : memref<64x32xf32, #tpu.memory_space<vmem>>, vector<8x32xf32>,
    %c0_176 = arith.constant 0 : index
    %c0_177 = arith.constant 0 : index
    %315 = vector.load %arg14[%c0_176, %c0_177] : memref<64x32xf32, #tpu.memory_space<vmem>>, vector<64x32xf32>
    %c0_178 = arith.constant 0 : index
    %c0_179 = arith.constant 0 : index
    %c0_180 = arith.constant 0 : index
    %316 = vector.load %arg4[%c0_178, %c0_179, %c0_180] : memref<4x32x32xf32, #tpu.memory_space<vmem>>, vector<1x32x32xf32>
    %317 = vector.shape_cast %316 : vector<1x32x32xf32> to vector<32x32xf32>
    %cst_181 = arith.constant dense<0.000000e+00> : vector<64x32xf32>
    %318 = tpu.matmul %315, %317, %cst_181 {dimension_numbers = #tpu.dot_dimension_numbers<[1], [0], [0], [1], [0, 0, 1, 1], [], []>} : vector<64x32xf32>, vector<32x32xf32>, vector<64x32xf32> -> vector<64x32xf32>
    %c0_182 = arith.constant 0 : index
    %c0_183 = arith.constant 0 : index
    %c0_184 = arith.constant 0 : index
    %319 = vector.load %arg6[%c0_182, %c0_183, %c0_184] : memref<4x1x32xf32, #tpu.memory_space<vmem>>, vector<1x1x32xf32>
    %320 = vector.shape_cast %319 : vector<1x1x32xf32> to vector<1x32xf32>
    %321 = vector.broadcast %320 : vector<1x32xf32> to vector<64x32xf32>
    %322 = arith.addf %318, %321 : vector<64x32xf32>
    %c0_185 = arith.constant 0 : index
    %c0_186 = arith.constant 0 : index
    %323 = vector.load %arg10[%c0_185, %c0_186] : memref<64x32xf32, #tpu.memory_space<vmem>>, vector<64x32xf32>
    tpu.vector_store %arg10[%c0_185, %c0_186], %322 {strides = array<i32>} : memref<64x32xf32, #tpu.memory_space<vmem>>, vector<64x32xf32>,
    %c1_187 = arith.constant 1 : index
    %c0_188 = arith.constant 0 : index
    %c0_189 = arith.constant 0 : index
    %324 = vector.load %arg4[%c1_187, %c0_188, %c0_189] : memref<4x32x32xf32, #tpu.memory_space<vmem>>, vector<1x32x32xf32>
    %325 = vector.shape_cast %324 : vector<1x32x32xf32> to vector<32x32xf32>
    %cst_190 = arith.constant dense<0.000000e+00> : vector<64x32xf32>
    %326 = tpu.matmul %315, %325, %cst_190 {dimension_numbers = #tpu.dot_dimension_numbers<[1], [0], [0], [1], [0, 0, 1, 1], [], []>} : vector<64x32xf32>, vector<32x32xf32>, vector<64x32xf32> -> vector<64x32xf32>
    %c1_191 = arith.constant 1 : index
    %c0_192 = arith.constant 0 : index
    %c0_193 = arith.constant 0 : index
    %327 = vector.load %arg6[%c1_191, %c0_192, %c0_193] : memref<4x1x32xf32, #tpu.memory_space<vmem>>, vector<1x1x32xf32>
    %328 = vector.shape_cast %327 : vector<1x1x32xf32> to vector<1x32xf32>
    %329 = vector.broadcast %328 : vector<1x32xf32> to vector<64x32xf32>
    %330 = arith.addf %326, %329 : vector<64x32xf32>
    %c0_194 = arith.constant 0 : index
    %c0_195 = arith.constant 0 : index
    %331 = vector.load %arg11[%c0_194, %c0_195] : memref<64x32xf32, #tpu.memory_space<vmem>>, vector<64x32xf32>
    tpu.vector_store %arg11[%c0_194, %c0_195], %330 {strides = array<i32>} : memref<64x32xf32, #tpu.memory_space<vmem>>, vector<64x32xf32>,
    %c2_196 = arith.constant 2 : index
    %c0_197 = arith.constant 0 : index
    %c0_198 = arith.constant 0 : index
    %332 = vector.load %arg4[%c2_196, %c0_197, %c0_198] : memref<4x32x32xf32, #tpu.memory_space<vmem>>, vector<1x32x32xf32>
    %333 = vector.shape_cast %332 : vector<1x32x32xf32> to vector<32x32xf32>
    %cst_199 = arith.constant dense<0.000000e+00> : vector<64x32xf32>
    %334 = tpu.matmul %315, %333, %cst_199 {dimension_numbers = #tpu.dot_dimension_numbers<[1], [0], [0], [1], [0, 0, 1, 1], [], []>} : vector<64x32xf32>, vector<32x32xf32>, vector<64x32xf32> -> vector<64x32xf32>
    %c2_200 = arith.constant 2 : index
    %c0_201 = arith.constant 0 : index
    %c0_202 = arith.constant 0 : index
    %335 = vector.load %arg6[%c2_200, %c0_201, %c0_202] : memref<4x1x32xf32, #tpu.memory_space<vmem>>, vector<1x1x32xf32>
    %336 = vector.shape_cast %335 : vector<1x1x32xf32> to vector<1x32xf32>
    %337 = vector.broadcast %336 : vector<1x32xf32> to vector<64x32xf32>
    %338 = arith.addf %334, %337 : vector<64x32xf32>
    %c0_203 = arith.constant 0 : index
    %c0_204 = arith.constant 0 : index
    %339 = vector.load %arg12[%c0_203, %c0_204] : memref<64x32xf32, #tpu.memory_space<vmem>>, vector<64x32xf32>
    tpu.vector_store %arg12[%c0_203, %c0_204], %338 {strides = array<i32>} : memref<64x32xf32, #tpu.memory_space<vmem>>, vector<64x32xf32>,
    %c3_205 = arith.constant 3 : index
    %c0_206 = arith.constant 0 : index
    %c0_207 = arith.constant 0 : index
    %340 = vector.load %arg4[%c3_205, %c0_206, %c0_207] : memref<4x32x32xf32, #tpu.memory_space<vmem>>, vector<1x32x32xf32>
    %341 = vector.shape_cast %340 : vector<1x32x32xf32> to vector<32x32xf32>
    %cst_208 = arith.constant dense<0.000000e+00> : vector<64x32xf32>
    %342 = tpu.matmul %315, %341, %cst_208 {dimension_numbers = #tpu.dot_dimension_numbers<[1], [0], [0], [1], [0, 0, 1, 1], [], []>} : vector<64x32xf32>, vector<32x32xf32>, vector<64x32xf32> -> vector<64x32xf32>
    %c3_209 = arith.constant 3 : index
    %c0_210 = arith.constant 0 : index
    %c0_211 = arith.constant 0 : index
    %343 = vector.load %arg6[%c3_209, %c0_210, %c0_211] : memref<4x1x32xf32, #tpu.memory_space<vmem>>, vector<1x1x32xf32>
    %344 = vector.shape_cast %343 : vector<1x1x32xf32> to vector<1x32xf32>
    %345 = vector.broadcast %344 : vector<1x32xf32> to vector<64x32xf32>
    %346 = arith.addf %342, %345 : vector<64x32xf32>
    %c0_212 = arith.constant 0 : index
    %c0_213 = arith.constant 0 : index
    %347 = vector.load %arg13[%c0_212, %c0_213] : memref<64x32xf32, #tpu.memory_space<vmem>>, vector<64x32xf32>
    tpu.vector_store %arg13[%c0_212, %c0_213], %346 {strides = array<i32>} : memref<64x32xf32, #tpu.memory_space<vmem>>, vector<64x32xf32>,
    %c0_214 = arith.constant 0 : index
    %c0_215 = arith.constant 0 : index
    %c0_216 = arith.constant 0 : index
    %348 = vector.load %arg5[%c0_214, %c0_215, %c0_216] : memref<4x32x32xf32, #tpu.memory_space<vmem>>, vector<1x32x32xf32>
    %349 = vector.shape_cast %348 : vector<1x32x32xf32> to vector<32x32xf32>
    %c1_217 = arith.constant 1 : index
    %c0_218 = arith.constant 0 : index
    %c0_219 = arith.constant 0 : index
    %350 = vector.load %arg5[%c1_217, %c0_218, %c0_219] : memref<4x32x32xf32, #tpu.memory_space<vmem>>, vector<1x32x32xf32>
    %351 = vector.shape_cast %350 : vector<1x32x32xf32> to vector<32x32xf32>
    %c2_220 = arith.constant 2 : index
    %c0_221 = arith.constant 0 : index
    %c0_222 = arith.constant 0 : index
    %352 = vector.load %arg5[%c2_220, %c0_221, %c0_222] : memref<4x32x32xf32, #tpu.memory_space<vmem>>, vector<1x32x32xf32>
    %353 = vector.shape_cast %352 : vector<1x32x32xf32> to vector<32x32xf32>
    %c3_223 = arith.constant 3 : index
    %c0_224 = arith.constant 0 : index
    %c0_225 = arith.constant 0 : index
    %354 = vector.load %arg5[%c3_223, %c0_224, %c0_225] : memref<4x32x32xf32, #tpu.memory_space<vmem>>, vector<1x32x32xf32>
    %355 = vector.shape_cast %354 : vector<1x32x32xf32> to vector<32x32xf32>
    %cst_226 = arith.constant 0.000000e+00 : f32
    %356 = vector.broadcast %cst_226 : f32 to vector<8x32xf32>
    %cst_227 = arith.constant 0.000000e+00 : f32
    %357 = vector.broadcast %cst_227 : f32 to vector<8x32xf32>
    %c0_228 = arith.constant 0 : index
    %c0_229 = arith.constant 0 : index
    %358 = vector.load %arg10[%c0_228, %c0_229] : memref<64x32xf32, #tpu.memory_space<vmem>>, vector<8x32xf32>
    %cst_230 = arith.constant dense<0.000000e+00> : vector<8x32xf32>
    %359 = tpu.matmul %356, %349, %cst_230 {dimension_numbers = #tpu.dot_dimension_numbers<[1], [0], [0], [1], [0, 0, 1, 1], [], []>} : vector<8x32xf32>, vector<32x32xf32>, vector<8x32xf32> -> vector<8x32xf32>
    %360 = arith.addf %358, %359 : vector<8x32xf32>
    %361 = arith.negf %360 : vector<8x32xf32>
    %362 = math.exp %361 : vector<8x32xf32>
    %cst_231 = arith.constant 1.000000e+00 : f32
    %363 = vector.broadcast %cst_231 : f32 to vector<8x32xf32>
    %364 = arith.addf %363, %362 : vector<8x32xf32>
    %365 = arith.divf %363, %364 : vector<8x32xf32>
    %c0_232 = arith.constant 0 : index
    %c0_233 = arith.constant 0 : index
    %366 = vector.load %arg11[%c0_232, %c0_233] : memref<64x32xf32, #tpu.memory_space<vmem>>, vector<8x32xf32>
    %cst_234 = arith.constant dense<0.000000e+00> : vector<8x32xf32>
    %367 = tpu.matmul %356, %351, %cst_234 {dimension_numbers = #tpu.dot_dimension_numbers<[1], [0], [0], [1], [0, 0, 1, 1], [], []>} : vector<8x32xf32>, vector<32x32xf32>, vector<8x32xf32> -> vector<8x32xf32>
    %368 = arith.addf %366, %367 : vector<8x32xf32>
    %369 = arith.negf %368 : vector<8x32xf32>
    %370 = math.exp %369 : vector<8x32xf32>
    %cst_235 = arith.constant 1.000000e+00 : f32
    %371 = vector.broadcast %cst_235 : f32 to vector<8x32xf32>
    %372 = arith.addf %371, %370 : vector<8x32xf32>
    %373 = arith.divf %371, %372 : vector<8x32xf32>
    %c0_236 = arith.constant 0 : index
    %c0_237 = arith.constant 0 : index
    %374 = vector.load %arg12[%c0_236, %c0_237] : memref<64x32xf32, #tpu.memory_space<vmem>>, vector<8x32xf32>
    %cst_238 = arith.constant dense<0.000000e+00> : vector<8x32xf32>
    %375 = tpu.matmul %356, %353, %cst_238 {dimension_numbers = #tpu.dot_dimension_numbers<[1], [0], [0], [1], [0, 0, 1, 1], [], []>} : vector<8x32xf32>, vector<32x32xf32>, vector<8x32xf32> -> vector<8x32xf32>
    %376 = arith.addf %374, %375 : vector<8x32xf32>
    %377 = math.tanh %376 : vector<8x32xf32>
    %c0_239 = arith.constant 0 : index
    %c0_240 = arith.constant 0 : index
    %378 = vector.load %arg13[%c0_239, %c0_240] : memref<64x32xf32, #tpu.memory_space<vmem>>, vector<8x32xf32>
    %cst_241 = arith.constant dense<0.000000e+00> : vector<8x32xf32>
    %379 = tpu.matmul %356, %355, %cst_241 {dimension_numbers = #tpu.dot_dimension_numbers<[1], [0], [0], [1], [0, 0, 1, 1], [], []>} : vector<8x32xf32>, vector<32x32xf32>, vector<8x32xf32> -> vector<8x32xf32>
    %380 = arith.addf %378, %379 : vector<8x32xf32>
    %381 = arith.negf %380 : vector<8x32xf32>
    %382 = math.exp %381 : vector<8x32xf32>
    %cst_242 = arith.constant 1.000000e+00 : f32
    %383 = vector.broadcast %cst_242 : f32 to vector<8x32xf32>
    %384 = arith.addf %383, %382 : vector<8x32xf32>
    %385 = arith.divf %383, %384 : vector<8x32xf32>
    %386 = arith.mulf %373, %357 : vector<8x32xf32>
    %387 = arith.mulf %365, %377 : vector<8x32xf32>
    %388 = arith.addf %386, %387 : vector<8x32xf32>
    %389 = math.tanh %388 : vector<8x32xf32>
    %390 = arith.mulf %385, %389 : vector<8x32xf32>
    %c0_243 = arith.constant 0 : index
    %c0_244 = arith.constant 0 : index
    %391 = vector.load %arg14[%c0_243, %c0_244] : memref<64x32xf32, #tpu.memory_space<vmem>>, vector<8x32xf32>
    tpu.vector_store %arg14[%c0_243, %c0_244], %390 {strides = array<i32>} : memref<64x32xf32, #tpu.memory_space<vmem>>, vector<8x32xf32>,
    %c8_245 = arith.constant 8 : index
    %c0_246 = arith.constant 0 : index
    %392 = vector.load %arg10[%c8_245, %c0_246] : memref<64x32xf32, #tpu.memory_space<vmem>>, vector<8x32xf32>
    %cst_247 = arith.constant dense<0.000000e+00> : vector<8x32xf32>
    %393 = tpu.matmul %390, %349, %cst_247 {dimension_numbers = #tpu.dot_dimension_numbers<[1], [0], [0], [1], [0, 0, 1, 1], [], []>} : vector<8x32xf32>, vector<32x32xf32>, vector<8x32xf32> -> vector<8x32xf32>
    %394 = arith.addf %392, %393 : vector<8x32xf32>
    %395 = arith.negf %394 : vector<8x32xf32>
    %396 = math.exp %395 : vector<8x32xf32>
    %cst_248 = arith.constant 1.000000e+00 : f32
    %397 = vector.broadcast %cst_248 : f32 to vector<8x32xf32>
    %398 = arith.addf %397, %396 : vector<8x32xf32>
    %399 = arith.divf %397, %398 : vector<8x32xf32>
    %c8_249 = arith.constant 8 : index
    %c0_250 = arith.constant 0 : index
    %400 = vector.load %arg11[%c8_249, %c0_250] : memref<64x32xf32, #tpu.memory_space<vmem>>, vector<8x32xf32>
    %cst_251 = arith.constant dense<0.000000e+00> : vector<8x32xf32>
    %401 = tpu.matmul %390, %351, %cst_251 {dimension_numbers = #tpu.dot_dimension_numbers<[1], [0], [0], [1], [0, 0, 1, 1], [], []>} : vector<8x32xf32>, vector<32x32xf32>, vector<8x32xf32> -> vector<8x32xf32>
    %402 = arith.addf %400, %401 : vector<8x32xf32>
    %403 = arith.negf %402 : vector<8x32xf32>
    %404 = math.exp %403 : vector<8x32xf32>
    %cst_252 = arith.constant 1.000000e+00 : f32
    %405 = vector.broadcast %cst_252 : f32 to vector<8x32xf32>
    %406 = arith.addf %405, %404 : vector<8x32xf32>
    %407 = arith.divf %405, %406 : vector<8x32xf32>
    %c8_253 = arith.constant 8 : index
    %c0_254 = arith.constant 0 : index
    %408 = vector.load %arg12[%c8_253, %c0_254] : memref<64x32xf32, #tpu.memory_space<vmem>>, vector<8x32xf32>
    %cst_255 = arith.constant dense<0.000000e+00> : vector<8x32xf32>
    %409 = tpu.matmul %390, %353, %cst_255 {dimension_numbers = #tpu.dot_dimension_numbers<[1], [0], [0], [1], [0, 0, 1, 1], [], []>} : vector<8x32xf32>, vector<32x32xf32>, vector<8x32xf32> -> vector<8x32xf32>
    %410 = arith.addf %408, %409 : vector<8x32xf32>
    %411 = math.tanh %410 : vector<8x32xf32>
    %c8_256 = arith.constant 8 : index
    %c0_257 = arith.constant 0 : index
    %412 = vector.load %arg13[%c8_256, %c0_257] : memref<64x32xf32, #tpu.memory_space<vmem>>, vector<8x32xf32>
    %cst_258 = arith.constant dense<0.000000e+00> : vector<8x32xf32>
    %413 = tpu.matmul %390, %355, %cst_258 {dimension_numbers = #tpu.dot_dimension_numbers<[1], [0], [0], [1], [0, 0, 1, 1], [], []>} : vector<8x32xf32>, vector<32x32xf32>, vector<8x32xf32> -> vector<8x32xf32>
    %414 = arith.addf %412, %413 : vector<8x32xf32>
    %415 = arith.negf %414 : vector<8x32xf32>
    %416 = math.exp %415 : vector<8x32xf32>
    %cst_259 = arith.constant 1.000000e+00 : f32
    %417 = vector.broadcast %cst_259 : f32 to vector<8x32xf32>
    %418 = arith.addf %417, %416 : vector<8x32xf32>
    %419 = arith.divf %417, %418 : vector<8x32xf32>
    %420 = arith.mulf %407, %388 : vector<8x32xf32>
    %421 = arith.mulf %399, %411 : vector<8x32xf32>
    %422 = arith.addf %420, %421 : vector<8x32xf32>
    %423 = math.tanh %422 : vector<8x32xf32>
    %424 = arith.mulf %419, %423 : vector<8x32xf32>
    %c8_260 = arith.constant 8 : index
    %c0_261 = arith.constant 0 : index
    %425 = vector.load %arg14[%c8_260, %c0_261] : memref<64x32xf32, #tpu.memory_space<vmem>>, vector<8x32xf32>
    tpu.vector_store %arg14[%c8_260, %c0_261], %424 {strides = array<i32>} : memref<64x32xf32, #tpu.memory_space<vmem>>, vector<8x32xf32>,
    %c16_262 = arith.constant 16 : index
    %c0_263 = arith.constant 0 : index
    %426 = vector.load %arg10[%c16_262, %c0_263] : memref<64x32xf32, #tpu.memory_space<vmem>>, vector<8x32xf32>
    %cst_264 = arith.constant dense<0.000000e+00> : vector<8x32xf32>
    %427 = tpu.matmul %424, %349, %cst_264 {dimension_numbers = #tpu.dot_dimension_numbers<[1], [0], [0], [1], [0, 0, 1, 1], [], []>} : vector<8x32xf32>, vector<32x32xf32>, vector<8x32xf32> -> vector<8x32xf32>
    %428 = arith.addf %426, %427 : vector<8x32xf32>
    %429 = arith.negf %428 : vector<8x32xf32>
    %430 = math.exp %429 : vector<8x32xf32>
    %cst_265 = arith.constant 1.000000e+00 : f32
    %431 = vector.broadcast %cst_265 : f32 to vector<8x32xf32>
    %432 = arith.addf %431, %430 : vector<8x32xf32>
    %433 = arith.divf %431, %432 : vector<8x32xf32>
    %c16_266 = arith.constant 16 : index
    %c0_267 = arith.constant 0 : index
    %434 = vector.load %arg11[%c16_266, %c0_267] : memref<64x32xf32, #tpu.memory_space<vmem>>, vector<8x32xf32>
    %cst_268 = arith.constant dense<0.000000e+00> : vector<8x32xf32>
    %435 = tpu.matmul %424, %351, %cst_268 {dimension_numbers = #tpu.dot_dimension_numbers<[1], [0], [0], [1], [0, 0, 1, 1], [], []>} : vector<8x32xf32>, vector<32x32xf32>, vector<8x32xf32> -> vector<8x32xf32>
    %436 = arith.addf %434, %435 : vector<8x32xf32>
    %437 = arith.negf %436 : vector<8x32xf32>
    %438 = math.exp %437 : vector<8x32xf32>
    %cst_269 = arith.constant 1.000000e+00 : f32
    %439 = vector.broadcast %cst_269 : f32 to vector<8x32xf32>
    %440 = arith.addf %439, %438 : vector<8x32xf32>
    %441 = arith.divf %439, %440 : vector<8x32xf32>
    %c16_270 = arith.constant 16 : index
    %c0_271 = arith.constant 0 : index
    %442 = vector.load %arg12[%c16_270, %c0_271] : memref<64x32xf32, #tpu.memory_space<vmem>>, vector<8x32xf32>
    %cst_272 = arith.constant dense<0.000000e+00> : vector<8x32xf32>
    %443 = tpu.matmul %424, %353, %cst_272 {dimension_numbers = #tpu.dot_dimension_numbers<[1], [0], [0], [1], [0, 0, 1, 1], [], []>} : vector<8x32xf32>, vector<32x32xf32>, vector<8x32xf32> -> vector<8x32xf32>
    %444 = arith.addf %442, %443 : vector<8x32xf32>
    %445 = math.tanh %444 : vector<8x32xf32>
    %c16_273 = arith.constant 16 : index
    %c0_274 = arith.constant 0 : index
    %446 = vector.load %arg13[%c16_273, %c0_274] : memref<64x32xf32, #tpu.memory_space<vmem>>, vector<8x32xf32>
    %cst_275 = arith.constant dense<0.000000e+00> : vector<8x32xf32>
    %447 = tpu.matmul %424, %355, %cst_275 {dimension_numbers = #tpu.dot_dimension_numbers<[1], [0], [0], [1], [0, 0, 1, 1], [], []>} : vector<8x32xf32>, vector<32x32xf32>, vector<8x32xf32> -> vector<8x32xf32>
    %448 = arith.addf %446, %447 : vector<8x32xf32>
    %449 = arith.negf %448 : vector<8x32xf32>
    %450 = math.exp %449 : vector<8x32xf32>
    %cst_276 = arith.constant 1.000000e+00 : f32
    %451 = vector.broadcast %cst_276 : f32 to vector<8x32xf32>
    %452 = arith.addf %451, %450 : vector<8x32xf32>
    %453 = arith.divf %451, %452 : vector<8x32xf32>
    %454 = arith.mulf %441, %422 : vector<8x32xf32>
    %455 = arith.mulf %433, %445 : vector<8x32xf32>
    %456 = arith.addf %454, %455 : vector<8x32xf32>
    %457 = math.tanh %456 : vector<8x32xf32>
    %458 = arith.mulf %453, %457 : vector<8x32xf32>
    %c16_277 = arith.constant 16 : index
    %c0_278 = arith.constant 0 : index
    %459 = vector.load %arg14[%c16_277, %c0_278] : memref<64x32xf32, #tpu.memory_space<vmem>>, vector<8x32xf32>
    tpu.vector_store %arg14[%c16_277, %c0_278], %458 {strides = array<i32>} : memref<64x32xf32, #tpu.memory_space<vmem>>, vector<8x32xf32>,
    %c24_279 = arith.constant 24 : index
    %c0_280 = arith.constant 0 : index
    %460 = vector.load %arg10[%c24_279, %c0_280] : memref<64x32xf32, #tpu.memory_space<vmem>>, vector<8x32xf32>
    %cst_281 = arith.constant dense<0.000000e+00> : vector<8x32xf32>
    %461 = tpu.matmul %458, %349, %cst_281 {dimension_numbers = #tpu.dot_dimension_numbers<[1], [0], [0], [1], [0, 0, 1, 1], [], []>} : vector<8x32xf32>, vector<32x32xf32>, vector<8x32xf32> -> vector<8x32xf32>
    %462 = arith.addf %460, %461 : vector<8x32xf32>
    %463 = arith.negf %462 : vector<8x32xf32>
    %464 = math.exp %463 : vector<8x32xf32>
    %cst_282 = arith.constant 1.000000e+00 : f32
    %465 = vector.broadcast %cst_282 : f32 to vector<8x32xf32>
    %466 = arith.addf %465, %464 : vector<8x32xf32>
    %467 = arith.divf %465, %466 : vector<8x32xf32>
    %c24_283 = arith.constant 24 : index
    %c0_284 = arith.constant 0 : index
    %468 = vector.load %arg11[%c24_283, %c0_284] : memref<64x32xf32, #tpu.memory_space<vmem>>, vector<8x32xf32>
    %cst_285 = arith.constant dense<0.000000e+00> : vector<8x32xf32>
    %469 = tpu.matmul %458, %351, %cst_285 {dimension_numbers = #tpu.dot_dimension_numbers<[1], [0], [0], [1], [0, 0, 1, 1], [], []>} : vector<8x32xf32>, vector<32x32xf32>, vector<8x32xf32> -> vector<8x32xf32>
    %470 = arith.addf %468, %469 : vector<8x32xf32>
    %471 = arith.negf %470 : vector<8x32xf32>
    %472 = math.exp %471 : vector<8x32xf32>
    %cst_286 = arith.constant 1.000000e+00 : f32
    %473 = vector.broadcast %cst_286 : f32 to vector<8x32xf32>
    %474 = arith.addf %473, %472 : vector<8x32xf32>
    %475 = arith.divf %473, %474 : vector<8x32xf32>
    %c24_287 = arith.constant 24 : index
    %c0_288 = arith.constant 0 : index
    %476 = vector.load %arg12[%c24_287, %c0_288] : memref<64x32xf32, #tpu.memory_space<vmem>>, vector<8x32xf32>
    %cst_289 = arith.constant dense<0.000000e+00> : vector<8x32xf32>
    %477 = tpu.matmul %458, %353, %cst_289 {dimension_numbers = #tpu.dot_dimension_numbers<[1], [0], [0], [1], [0, 0, 1, 1], [], []>} : vector<8x32xf32>, vector<32x32xf32>, vector<8x32xf32> -> vector<8x32xf32>
    %478 = arith.addf %476, %477 : vector<8x32xf32>
    %479 = math.tanh %478 : vector<8x32xf32>
    %c24_290 = arith.constant 24 : index
    %c0_291 = arith.constant 0 : index
    %480 = vector.load %arg13[%c24_290, %c0_291] : memref<64x32xf32, #tpu.memory_space<vmem>>, vector<8x32xf32>
    %cst_292 = arith.constant dense<0.000000e+00> : vector<8x32xf32>
    %481 = tpu.matmul %458, %355, %cst_292 {dimension_numbers = #tpu.dot_dimension_numbers<[1], [0], [0], [1], [0, 0, 1, 1], [], []>} : vector<8x32xf32>, vector<32x32xf32>, vector<8x32xf32> -> vector<8x32xf32>
    %482 = arith.addf %480, %481 : vector<8x32xf32>
    %483 = arith.negf %482 : vector<8x32xf32>
    %484 = math.exp %483 : vector<8x32xf32>
    %cst_293 = arith.constant 1.000000e+00 : f32
    %485 = vector.broadcast %cst_293 : f32 to vector<8x32xf32>
    %486 = arith.addf %485, %484 : vector<8x32xf32>
    %487 = arith.divf %485, %486 : vector<8x32xf32>
    %488 = arith.mulf %475, %456 : vector<8x32xf32>
    %489 = arith.mulf %467, %479 : vector<8x32xf32>
    %490 = arith.addf %488, %489 : vector<8x32xf32>
    %491 = math.tanh %490 : vector<8x32xf32>
    %492 = arith.mulf %487, %491 : vector<8x32xf32>
    %c24_294 = arith.constant 24 : index
    %c0_295 = arith.constant 0 : index
    %493 = vector.load %arg14[%c24_294, %c0_295] : memref<64x32xf32, #tpu.memory_space<vmem>>, vector<8x32xf32>
    tpu.vector_store %arg14[%c24_294, %c0_295], %492 {strides = array<i32>} : memref<64x32xf32, #tpu.memory_space<vmem>>, vector<8x32xf32>,
    %c32_296 = arith.constant 32 : index
    %c0_297 = arith.constant 0 : index
    %494 = vector.load %arg10[%c32_296, %c0_297] : memref<64x32xf32, #tpu.memory_space<vmem>>, vector<8x32xf32>
    %cst_298 = arith.constant dense<0.000000e+00> : vector<8x32xf32>
    %495 = tpu.matmul %492, %349, %cst_298 {dimension_numbers = #tpu.dot_dimension_numbers<[1], [0], [0], [1], [0, 0, 1, 1], [], []>} : vector<8x32xf32>, vector<32x32xf32>, vector<8x32xf32> -> vector<8x32xf32>
    %496 = arith.addf %494, %495 : vector<8x32xf32>
    %497 = arith.negf %496 : vector<8x32xf32>
    %498 = math.exp %497 : vector<8x32xf32>
    %cst_299 = arith.constant 1.000000e+00 : f32
    %499 = vector.broadcast %cst_299 : f32 to vector<8x32xf32>
    %500 = arith.addf %499, %498 : vector<8x32xf32>
    %501 = arith.divf %499, %500 : vector<8x32xf32>
    %c32_300 = arith.constant 32 : index
    %c0_301 = arith.constant 0 : index
    %502 = vector.load %arg11[%c32_300, %c0_301] : memref<64x32xf32, #tpu.memory_space<vmem>>, vector<8x32xf32>
    %cst_302 = arith.constant dense<0.000000e+00> : vector<8x32xf32>
    %503 = tpu.matmul %492, %351, %cst_302 {dimension_numbers = #tpu.dot_dimension_numbers<[1], [0], [0], [1], [0, 0, 1, 1], [], []>} : vector<8x32xf32>, vector<32x32xf32>, vector<8x32xf32> -> vector<8x32xf32>
    %504 = arith.addf %502, %503 : vector<8x32xf32>
    %505 = arith.negf %504 : vector<8x32xf32>
    %506 = math.exp %505 : vector<8x32xf32>
    %cst_303 = arith.constant 1.000000e+00 : f32
    %507 = vector.broadcast %cst_303 : f32 to vector<8x32xf32>
    %508 = arith.addf %507, %506 : vector<8x32xf32>
    %509 = arith.divf %507, %508 : vector<8x32xf32>
    %c32_304 = arith.constant 32 : index
    %c0_305 = arith.constant 0 : index
    %510 = vector.load %arg12[%c32_304, %c0_305] : memref<64x32xf32, #tpu.memory_space<vmem>>, vector<8x32xf32>
    %cst_306 = arith.constant dense<0.000000e+00> : vector<8x32xf32>
    %511 = tpu.matmul %492, %353, %cst_306 {dimension_numbers = #tpu.dot_dimension_numbers<[1], [0], [0], [1], [0, 0, 1, 1], [], []>} : vector<8x32xf32>, vector<32x32xf32>, vector<8x32xf32> -> vector<8x32xf32>
    %512 = arith.addf %510, %511 : vector<8x32xf32>
    %513 = math.tanh %512 : vector<8x32xf32>
    %c32_307 = arith.constant 32 : index
    %c0_308 = arith.constant 0 : index
    %514 = vector.load %arg13[%c32_307, %c0_308] : memref<64x32xf32, #tpu.memory_space<vmem>>, vector<8x32xf32>
    %cst_309 = arith.constant dense<0.000000e+00> : vector<8x32xf32>
    %515 = tpu.matmul %492, %355, %cst_309 {dimension_numbers = #tpu.dot_dimension_numbers<[1], [0], [0], [1], [0, 0, 1, 1], [], []>} : vector<8x32xf32>, vector<32x32xf32>, vector<8x32xf32> -> vector<8x32xf32>
    %516 = arith.addf %514, %515 : vector<8x32xf32>
    %517 = arith.negf %516 : vector<8x32xf32>
    %518 = math.exp %517 : vector<8x32xf32>
    %cst_310 = arith.constant 1.000000e+00 : f32
    %519 = vector.broadcast %cst_310 : f32 to vector<8x32xf32>
    %520 = arith.addf %519, %518 : vector<8x32xf32>
    %521 = arith.divf %519, %520 : vector<8x32xf32>
    %522 = arith.mulf %509, %490 : vector<8x32xf32>
    %523 = arith.mulf %501, %513 : vector<8x32xf32>
    %524 = arith.addf %522, %523 : vector<8x32xf32>
    %525 = math.tanh %524 : vector<8x32xf32>
    %526 = arith.mulf %521, %525 : vector<8x32xf32>
    %c32_311 = arith.constant 32 : index
    %c0_312 = arith.constant 0 : index
    %527 = vector.load %arg14[%c32_311, %c0_312] : memref<64x32xf32, #tpu.memory_space<vmem>>, vector<8x32xf32>
    tpu.vector_store %arg14[%c32_311, %c0_312], %526 {strides = array<i32>} : memref<64x32xf32, #tpu.memory_space<vmem>>, vector<8x32xf32>,
    %c40_313 = arith.constant 40 : index
    %c0_314 = arith.constant 0 : index
    %528 = vector.load %arg10[%c40_313, %c0_314] : memref<64x32xf32, #tpu.memory_space<vmem>>, vector<8x32xf32>
    %cst_315 = arith.constant dense<0.000000e+00> : vector<8x32xf32>
    %529 = tpu.matmul %526, %349, %cst_315 {dimension_numbers = #tpu.dot_dimension_numbers<[1], [0], [0], [1], [0, 0, 1, 1], [], []>} : vector<8x32xf32>, vector<32x32xf32>, vector<8x32xf32> -> vector<8x32xf32>
    %530 = arith.addf %528, %529 : vector<8x32xf32>
    %531 = arith.negf %530 : vector<8x32xf32>
    %532 = math.exp %531 : vector<8x32xf32>
    %cst_316 = arith.constant 1.000000e+00 : f32
    %533 = vector.broadcast %cst_316 : f32 to vector<8x32xf32>
    %534 = arith.addf %533, %532 : vector<8x32xf32>
    %535 = arith.divf %533, %534 : vector<8x32xf32>
    %c40_317 = arith.constant 40 : index
    %c0_318 = arith.constant 0 : index
    %536 = vector.load %arg11[%c40_317, %c0_318] : memref<64x32xf32, #tpu.memory_space<vmem>>, vector<8x32xf32>
    %cst_319 = arith.constant dense<0.000000e+00> : vector<8x32xf32>
    %537 = tpu.matmul %526, %351, %cst_319 {dimension_numbers = #tpu.dot_dimension_numbers<[1], [0], [0], [1], [0, 0, 1, 1], [], []>} : vector<8x32xf32>, vector<32x32xf32>, vector<8x32xf32> -> vector<8x32xf32>
    %538 = arith.addf %536, %537 : vector<8x32xf32>
    %539 = arith.negf %538 : vector<8x32xf32>
    %540 = math.exp %539 : vector<8x32xf32>
    %cst_320 = arith.constant 1.000000e+00 : f32
    %541 = vector.broadcast %cst_320 : f32 to vector<8x32xf32>
    %542 = arith.addf %541, %540 : vector<8x32xf32>
    %543 = arith.divf %541, %542 : vector<8x32xf32>
    %c40_321 = arith.constant 40 : index
    %c0_322 = arith.constant 0 : index
    %544 = vector.load %arg12[%c40_321, %c0_322] : memref<64x32xf32, #tpu.memory_space<vmem>>, vector<8x32xf32>
    %cst_323 = arith.constant dense<0.000000e+00> : vector<8x32xf32>
    %545 = tpu.matmul %526, %353, %cst_323 {dimension_numbers = #tpu.dot_dimension_numbers<[1], [0], [0], [1], [0, 0, 1, 1], [], []>} : vector<8x32xf32>, vector<32x32xf32>, vector<8x32xf32> -> vector<8x32xf32>
    %546 = arith.addf %544, %545 : vector<8x32xf32>
    %547 = math.tanh %546 : vector<8x32xf32>
    %c40_324 = arith.constant 40 : index
    %c0_325 = arith.constant 0 : index
    %548 = vector.load %arg13[%c40_324, %c0_325] : memref<64x32xf32, #tpu.memory_space<vmem>>, vector<8x32xf32>
    %cst_326 = arith.constant dense<0.000000e+00> : vector<8x32xf32>
    %549 = tpu.matmul %526, %355, %cst_326 {dimension_numbers = #tpu.dot_dimension_numbers<[1], [0], [0], [1], [0, 0, 1, 1], [], []>} : vector<8x32xf32>, vector<32x32xf32>, vector<8x32xf32> -> vector<8x32xf32>
    %550 = arith.addf %548, %549 : vector<8x32xf32>
    %551 = arith.negf %550 : vector<8x32xf32>
    %552 = math.exp %551 : vector<8x32xf32>
    %cst_327 = arith.constant 1.000000e+00 : f32
    %553 = vector.broadcast %cst_327 : f32 to vector<8x32xf32>
    %554 = arith.addf %553, %552 : vector<8x32xf32>
    %555 = arith.divf %553, %554 : vector<8x32xf32>
    %556 = arith.mulf %543, %524 : vector<8x32xf32>
    %557 = arith.mulf %535, %547 : vector<8x32xf32>
    %558 = arith.addf %556, %557 : vector<8x32xf32>
    %559 = math.tanh %558 : vector<8x32xf32>
    %560 = arith.mulf %555, %559 : vector<8x32xf32>
    %c40_328 = arith.constant 40 : index
    %c0_329 = arith.constant 0 : index
    %561 = vector.load %arg14[%c40_328, %c0_329] : memref<64x32xf32, #tpu.memory_space<vmem>>, vector<8x32xf32>
    tpu.vector_store %arg14[%c40_328, %c0_329], %560 {strides = array<i32>} : memref<64x32xf32, #tpu.memory_space<vmem>>, vector<8x32xf32>,
    %c48_330 = arith.constant 48 : index
    %c0_331 = arith.constant 0 : index
    %562 = vector.load %arg10[%c48_330, %c0_331] : memref<64x32xf32, #tpu.memory_space<vmem>>, vector<8x32xf32>
    %cst_332 = arith.constant dense<0.000000e+00> : vector<8x32xf32>
    %563 = tpu.matmul %560, %349, %cst_332 {dimension_numbers = #tpu.dot_dimension_numbers<[1], [0], [0], [1], [0, 0, 1, 1], [], []>} : vector<8x32xf32>, vector<32x32xf32>, vector<8x32xf32> -> vector<8x32xf32>
    %564 = arith.addf %562, %563 : vector<8x32xf32>
    %565 = arith.negf %564 : vector<8x32xf32>
    %566 = math.exp %565 : vector<8x32xf32>
    %cst_333 = arith.constant 1.000000e+00 : f32
    %567 = vector.broadcast %cst_333 : f32 to vector<8x32xf32>
    %568 = arith.addf %567, %566 : vector<8x32xf32>
    %569 = arith.divf %567, %568 : vector<8x32xf32>
    %c48_334 = arith.constant 48 : index
    %c0_335 = arith.constant 0 : index
    %570 = vector.load %arg11[%c48_334, %c0_335] : memref<64x32xf32, #tpu.memory_space<vmem>>, vector<8x32xf32>
    %cst_336 = arith.constant dense<0.000000e+00> : vector<8x32xf32>
    %571 = tpu.matmul %560, %351, %cst_336 {dimension_numbers = #tpu.dot_dimension_numbers<[1], [0], [0], [1], [0, 0, 1, 1], [], []>} : vector<8x32xf32>, vector<32x32xf32>, vector<8x32xf32> -> vector<8x32xf32>
    %572 = arith.addf %570, %571 : vector<8x32xf32>
    %573 = arith.negf %572 : vector<8x32xf32>
    %574 = math.exp %573 : vector<8x32xf32>
    %cst_337 = arith.constant 1.000000e+00 : f32
    %575 = vector.broadcast %cst_337 : f32 to vector<8x32xf32>
    %576 = arith.addf %575, %574 : vector<8x32xf32>
    %577 = arith.divf %575, %576 : vector<8x32xf32>
    %c48_338 = arith.constant 48 : index
    %c0_339 = arith.constant 0 : index
    %578 = vector.load %arg12[%c48_338, %c0_339] : memref<64x32xf32, #tpu.memory_space<vmem>>, vector<8x32xf32>
    %cst_340 = arith.constant dense<0.000000e+00> : vector<8x32xf32>
    %579 = tpu.matmul %560, %353, %cst_340 {dimension_numbers = #tpu.dot_dimension_numbers<[1], [0], [0], [1], [0, 0, 1, 1], [], []>} : vector<8x32xf32>, vector<32x32xf32>, vector<8x32xf32> -> vector<8x32xf32>
    %580 = arith.addf %578, %579 : vector<8x32xf32>
    %581 = math.tanh %580 : vector<8x32xf32>
    %c48_341 = arith.constant 48 : index
    %c0_342 = arith.constant 0 : index
    %582 = vector.load %arg13[%c48_341, %c0_342] : memref<64x32xf32, #tpu.memory_space<vmem>>, vector<8x32xf32>
    %cst_343 = arith.constant dense<0.000000e+00> : vector<8x32xf32>
    %583 = tpu.matmul %560, %355, %cst_343 {dimension_numbers = #tpu.dot_dimension_numbers<[1], [0], [0], [1], [0, 0, 1, 1], [], []>} : vector<8x32xf32>, vector<32x32xf32>, vector<8x32xf32> -> vector<8x32xf32>
    %584 = arith.addf %582, %583 : vector<8x32xf32>
    %585 = arith.negf %584 : vector<8x32xf32>
    %586 = math.exp %585 : vector<8x32xf32>
    %cst_344 = arith.constant 1.000000e+00 : f32
    %587 = vector.broadcast %cst_344 : f32 to vector<8x32xf32>
    %588 = arith.addf %587, %586 : vector<8x32xf32>
    %589 = arith.divf %587, %588 : vector<8x32xf32>
    %590 = arith.mulf %577, %558 : vector<8x32xf32>
    %591 = arith.mulf %569, %581 : vector<8x32xf32>
    %592 = arith.addf %590, %591 : vector<8x32xf32>
    %593 = math.tanh %592 : vector<8x32xf32>
    %594 = arith.mulf %589, %593 : vector<8x32xf32>
    %c48_345 = arith.constant 48 : index
    %c0_346 = arith.constant 0 : index
    %595 = vector.load %arg14[%c48_345, %c0_346] : memref<64x32xf32, #tpu.memory_space<vmem>>, vector<8x32xf32>
    tpu.vector_store %arg14[%c48_345, %c0_346], %594 {strides = array<i32>} : memref<64x32xf32, #tpu.memory_space<vmem>>, vector<8x32xf32>,
    %c56_347 = arith.constant 56 : index
    %c0_348 = arith.constant 0 : index
    %596 = vector.load %arg10[%c56_347, %c0_348] : memref<64x32xf32, #tpu.memory_space<vmem>>, vector<8x32xf32>
    %cst_349 = arith.constant dense<0.000000e+00> : vector<8x32xf32>
    %597 = tpu.matmul %594, %349, %cst_349 {dimension_numbers = #tpu.dot_dimension_numbers<[1], [0], [0], [1], [0, 0, 1, 1], [], []>} : vector<8x32xf32>, vector<32x32xf32>, vector<8x32xf32> -> vector<8x32xf32>
    %598 = arith.addf %596, %597 : vector<8x32xf32>
    %599 = arith.negf %598 : vector<8x32xf32>
    %600 = math.exp %599 : vector<8x32xf32>
    %cst_350 = arith.constant 1.000000e+00 : f32
    %601 = vector.broadcast %cst_350 : f32 to vector<8x32xf32>
    %602 = arith.addf %601, %600 : vector<8x32xf32>
    %603 = arith.divf %601, %602 : vector<8x32xf32>
    %c56_351 = arith.constant 56 : index
    %c0_352 = arith.constant 0 : index
    %604 = vector.load %arg11[%c56_351, %c0_352] : memref<64x32xf32, #tpu.memory_space<vmem>>, vector<8x32xf32>
    %cst_353 = arith.constant dense<0.000000e+00> : vector<8x32xf32>
    %605 = tpu.matmul %594, %351, %cst_353 {dimension_numbers = #tpu.dot_dimension_numbers<[1], [0], [0], [1], [0, 0, 1, 1], [], []>} : vector<8x32xf32>, vector<32x32xf32>, vector<8x32xf32> -> vector<8x32xf32>
    %606 = arith.addf %604, %605 : vector<8x32xf32>
    %607 = arith.negf %606 : vector<8x32xf32>
    %608 = math.exp %607 : vector<8x32xf32>
    %cst_354 = arith.constant 1.000000e+00 : f32
    %609 = vector.broadcast %cst_354 : f32 to vector<8x32xf32>
    %610 = arith.addf %609, %608 : vector<8x32xf32>
    %611 = arith.divf %609, %610 : vector<8x32xf32>
    %c56_355 = arith.constant 56 : index
    %c0_356 = arith.constant 0 : index
    %612 = vector.load %arg12[%c56_355, %c0_356] : memref<64x32xf32, #tpu.memory_space<vmem>>, vector<8x32xf32>
    %cst_357 = arith.constant dense<0.000000e+00> : vector<8x32xf32>
    %613 = tpu.matmul %594, %353, %cst_357 {dimension_numbers = #tpu.dot_dimension_numbers<[1], [0], [0], [1], [0, 0, 1, 1], [], []>} : vector<8x32xf32>, vector<32x32xf32>, vector<8x32xf32> -> vector<8x32xf32>
    %614 = arith.addf %612, %613 : vector<8x32xf32>
    %615 = math.tanh %614 : vector<8x32xf32>
    %c56_358 = arith.constant 56 : index
    %c0_359 = arith.constant 0 : index
    %616 = vector.load %arg13[%c56_358, %c0_359] : memref<64x32xf32, #tpu.memory_space<vmem>>, vector<8x32xf32>
    %cst_360 = arith.constant dense<0.000000e+00> : vector<8x32xf32>
    %617 = tpu.matmul %594, %355, %cst_360 {dimension_numbers = #tpu.dot_dimension_numbers<[1], [0], [0], [1], [0, 0, 1, 1], [], []>} : vector<8x32xf32>, vector<32x32xf32>, vector<8x32xf32> -> vector<8x32xf32>
    %618 = arith.addf %616, %617 : vector<8x32xf32>
    %619 = arith.negf %618 : vector<8x32xf32>
    %620 = math.exp %619 : vector<8x32xf32>
    %cst_361 = arith.constant 1.000000e+00 : f32
    %621 = vector.broadcast %cst_361 : f32 to vector<8x32xf32>
    %622 = arith.addf %621, %620 : vector<8x32xf32>
    %623 = arith.divf %621, %622 : vector<8x32xf32>
    %624 = arith.mulf %611, %592 : vector<8x32xf32>
    %625 = arith.mulf %603, %615 : vector<8x32xf32>
    %626 = arith.addf %624, %625 : vector<8x32xf32>
    %627 = math.tanh %626 : vector<8x32xf32>
    %628 = arith.mulf %623, %627 : vector<8x32xf32>
    %c56_362 = arith.constant 56 : index
    %c0_363 = arith.constant 0 : index
    %629 = vector.load %arg14[%c56_362, %c0_363] : memref<64x32xf32, #tpu.memory_space<vmem>>, vector<8x32xf32>
    tpu.vector_store %arg14[%c56_362, %c0_363], %628 {strides = array<i32>} : memref<64x32xf32, #tpu.memory_space<vmem>>, vector<8x32xf32>,
    %c0_364 = arith.constant 0 : index
    %c0_365 = arith.constant 0 : index
    %630 = vector.load %arg14[%c0_364, %c0_365] : memref<64x32xf32, #tpu.memory_space<vmem>>, vector<64x32xf32>
    %c0_366 = arith.constant 0 : index
    %c0_367 = arith.constant 0 : index
    %631 = vector.load %arg7[%c0_366, %c0_367] : memref<32x128xf32, #tpu.memory_space<vmem>>, vector<32x128xf32>
    %cst_368 = arith.constant dense<0.000000e+00> : vector<64x128xf32>
    %632 = tpu.matmul %630, %631, %cst_368 {dimension_numbers = #tpu.dot_dimension_numbers<[1], [0], [0], [1], [0, 0, 1, 1], [], []>} : vector<64x32xf32>, vector<32x128xf32>, vector<64x128xf32> -> vector<64x128xf32>
    %c0_369 = arith.constant 0 : index
    %c0_370 = arith.constant 0 : index
    %633 = vector.load %arg8[%c0_369, %c0_370] : memref<1x128xf32, #tpu.memory_space<vmem>>, vector<1x128xf32>
    %634 = vector.broadcast %633 : vector<1x128xf32> to vector<64x128xf32>
    %635 = arith.addf %632, %634 : vector<64x128xf32>
    %c0_371 = arith.constant 0 : index
    %c0_372 = arith.constant 0 : index
    %636 = vector.load %arg9[%c0_371, %c0_372] : memref<64x128xf32, #tpu.memory_space<vmem>>, vector<64x128xf32>
    tpu.vector_store %arg9[%c0_371, %c0_372], %635 {strides = array<i32>} : memref<64x128xf32, #tpu.memory_space<vmem>>, vector<64x128xf32>,
    return
  }
}

</mosaic_0001>

<llo_original>
// kernel: lstm_model_forward.1
$region0: #{lstm_model_forward.1}
  #allocation0 [shape = 'u32[]', space=smem, size = 0x4, offset = 0x4, fixed_abs, tag = 'smem constant byte address 0x4 - core index']
  #allocation1 [shape = 'u32[144,128]{1,0:T(1,128)}', space=vmem, size = 0x12000, scoped, tag = 'internal scratch']
  #allocation2 [shape = 'f32[64,32]{1,0:T(8,128)}', space=vmem, size = 0x8000, scoped, tag = 'scratch operand']
  #allocation3 [shape = 'f32[64,32]{1,0:T(8,128)}', space=vmem, size = 0x8000, scoped, tag = 'scratch operand']
  #allocation4 [shape = 'f32[64,32]{1,0:T(8,128)}', space=vmem, size = 0x8000, scoped, tag = 'scratch operand']
  #allocation5 [shape = 'f32[64,32]{1,0:T(8,128)}', space=vmem, size = 0x8000, scoped, tag = 'scratch operand']
  #allocation6 [shape = 'f32[64,32]{1,0:T(8,128)}', space=vmem, size = 0x8000, scoped, tag = 'scratch operand']
  %s0 = inlined_call_operand.vmem [shape: f32[64,16], index: 0, kind: input, shape index: {}]
  %s1 = inlined_call_operand.hbm [shape: f32[4,16,32], index: 1, kind: input, shape index: {}]
  %s2 = inlined_call_operand.hbm [shape: f32[4,32,32], index: 2, kind: input, shape index: {}]
  %s3 = inlined_call_operand.vmem [shape: f32[4,1,32], index: 3, kind: input, shape index: {}]
  %s4 = inlined_call_operand.vmem [shape: f32[4,32,32], index: 4, kind: input, shape index: {}]
  %s5 = inlined_call_operand.hbm [shape: f32[4,32,32], index: 5, kind: input, shape index: {}]
  %s6 = inlined_call_operand.vmem [shape: f32[4,1,32], index: 6, kind: input, shape index: {}]
  %s7 = inlined_call_operand.hbm [shape: f32[32,128], index: 7, kind: input, shape index: {}]
  %s8 = inlined_call_operand.vmem [shape: f32[1,128], index: 8, kind: input, shape index: {}]
  %s9 = inlined_call_operand.vmem [shape: f32[64,128], index: 9, kind: output, shape index: {}]
  %s10 = sld [smem:[#allocation0]]
  $region62: #{lstm_model_forward.1} parent=0
    _
  %s12 = ssub.s32 1, %s10
  %s13 = scalar_select 0, %s12, %s10
  $region1: #{lstm_model_forward.1} parent=0
    #allocation7 [shape = 'u8[32768]{0}', space=vmem, size = 0x8000, scoped, tag = 'input window, operand 1, single buffered']
    #allocation8 [shape = 's32[1]{0}', space=sflag, size = 0x4, scoped, tag = 'scoped memory for lstm_model_forward.1']
    #allocation9 [shape = 'u8[65536]{0}', space=vmem, size = 0x10000, scoped, tag = 'input window, operand 2, single buffered']
    #allocation10 [shape = 's32[1]{0}', space=sflag, size = 0x4, scoped, tag = 'scoped memory for lstm_model_forward.1']
    #allocation11 [shape = 'u8[65536]{0}', space=vmem, size = 0x10000, scoped, tag = 'input window, operand 5, single buffered']
    #allocation12 [shape = 'u8[16384]{0}', space=vmem, size = 0x4000, scoped, tag = 'input window, operand 7, single buffered']
    #allocation13 [shape = 's32[1]{0}', space=sflag, size = 0x4, scoped, tag = 'scoped memory for lstm_model_forward.1']
    %14 = vsyncpa [#allocation8], 0
    %15 = vsyncpa [#allocation10], 0
    %16 = vsyncpa [#allocation13], 0
    // Predicated region
    $region2: #{lstm_model_forward.1} parent=1 // pred_check
      _
    $region3: #{lstm_model_forward.1} parent=1 // pred_check_branch
      %18 = sbr.rel (0) target = $region5
    $region4: #{lstm_model_forward.1} parent=1 // pred_region
      _
    $region5: #{lstm_model_forward.1} parent=1 // pred_fallthru
      _
    // Predicated region
    $region6: #{lstm_model_forward.1} parent=1 // pred_check
      _
    $region7: #{lstm_model_forward.1} parent=1 // pred_check_branch
      %20 = sbr.rel (0) target = $region9
    $region8: #{lstm_model_forward.1} parent=1 // pred_region
      %s22 = ssub.s32 1024, 1024
      %23 = vsyncadd [#allocation8], %s22
      %s24 = sshll.u32 [#allocation7], 4
      %s25 = int_to_ptr.vmem [resolvable:$true] %s24
      %30 = dma.hbm_to_vmem [thread:$0]  %s1, 1024, %s25, [#allocation8], 128, 128, 8
    $region9: #{lstm_model_forward.1} parent=1 // pred_fallthru
      _
    // Predicated region
    $region10: #{lstm_model_forward.1} parent=1 // pred_check
      _
    $region11: #{lstm_model_forward.1} parent=1 // pred_check_branch
      %32 = sbr.rel (0) target = $region13
    $region12: #{lstm_model_forward.1} parent=1 // pred_region
      %s34 = ssub.s32 2048, 2048
      %35 = vsyncadd [#allocation10], %s34
      %s36 = sshll.u32 [#allocation9], 4
      %s37 = int_to_ptr.vmem [resolvable:$true] %s36
      %42 = dma.hbm_to_vmem [thread:$0]  %s2, 2048, %s37, [#allocation10], 128, 128, 8
    $region13: #{lstm_model_forward.1} parent=1 // pred_fallthru
      _
    // Predicated region
    $region14: #{lstm_model_forward.1} parent=1 // pred_check
      _
    $region15: #{lstm_model_forward.1} parent=1 // pred_check_branch
      %44 = sbr.rel (0) target = $region17
    $region16: #{lstm_model_forward.1} parent=1 // pred_region
      _
    $region17: #{lstm_model_forward.1} parent=1 // pred_fallthru
      _
    // Predicated region
    $region18: #{lstm_model_forward.1} parent=1 // pred_check
      _
    $region19: #{lstm_model_forward.1} parent=1 // pred_check_branch
      %46 = sbr.rel (0) target = $region21
    $region20: #{lstm_model_forward.1} parent=1 // pred_region
      _
    $region21: #{lstm_model_forward.1} parent=1 // pred_fallthru
      _
    // Predicated region
    $region22: #{lstm_model_forward.1} parent=1 // pred_check
      _
    $region23: #{lstm_model_forward.1} parent=1 // pred_check_branch
      %48 = sbr.rel (0) target = $region25
    $region24: #{lstm_model_forward.1} parent=1 // pred_region
      %s50 = ssub.s32 2048, 2048
      %51 = vsyncadd [#allocation10], %s50
      %s52 = sshll.u32 [#allocation11], 4
      %s53 = int_to_ptr.vmem [resolvable:$true] %s52
      %58 = dma.hbm_to_vmem [thread:$0]  %s5, 2048, %s53, [#allocation10], 128, 128, 8
    $region25: #{lstm_model_forward.1} parent=1 // pred_fallthru
      _
    // Predicated region
    $region26: #{lstm_model_forward.1} parent=1 // pred_check
      _
    $region27: #{lstm_model_forward.1} parent=1 // pred_check_branch
      %60 = sbr.rel (0) target = $region29
    $region28: #{lstm_model_forward.1} parent=1 // pred_region
      _
    $region29: #{lstm_model_forward.1} parent=1 // pred_fallthru
      _
    // Predicated region
    $region30: #{lstm_model_forward.1} parent=1 // pred_check
      _
    $region31: #{lstm_model_forward.1} parent=1 // pred_check_branch
      %62 = sbr.rel (0) target = $region33
    $region32: #{lstm_model_forward.1} parent=1 // pred_region
      %s64 = ssub.s32 512, 512
      %65 = vsyncadd [#allocation13], %s64
      %s66 = sshll.u32 [#allocation12], 4
      %s67 = int_to_ptr.vmem [resolvable:$true] %s66
      %72 = dma.hbm_to_vmem [thread:$0]  %s7, 512, %s67, [#allocation13], 128, 128, 8
    $region33: #{lstm_model_forward.1} parent=1 // pred_fallthru
      _
    // Predicated region
    $region34: #{lstm_model_forward.1} parent=1 // pred_check
      _
    $region35: #{lstm_model_forward.1} parent=1 // pred_check_branch
      %74 = sbr.rel (0) target = $region37
    $region36: #{lstm_model_forward.1} parent=1 // pred_region
      _
    $region37: #{lstm_model_forward.1} parent=1 // pred_fallthru
      _
    // Predicated region
    $region38: #{lstm_model_forward.1} parent=1 // pred_check
      _
    $region39: #{lstm_model_forward.1} parent=1 // pred_check_branch
      %76 = sbr.rel (0) target = $region41
    $region40: #{lstm_model_forward.1} parent=1 // pred_region
      %77 = dma.done [#allocation8], 1024
    $region41: #{lstm_model_forward.1} parent=1 // pred_fallthru
      _
    // Predicated region
    $region42: #{lstm_model_forward.1} parent=1 // pred_check
      _
    $region43: #{lstm_model_forward.1} parent=1 // pred_check_branch
      %79 = sbr.rel (0) target = $region45
    $region44: #{lstm_model_forward.1} parent=1 // pred_region
      %80 = dma.done [#allocation10], 2048
    $region45: #{lstm_model_forward.1} parent=1 // pred_fallthru
      _
    // Predicated region
    $region46: #{lstm_model_forward.1} parent=1 // pred_check
      _
    $region47: #{lstm_model_forward.1} parent=1 // pred_check_branch
      %82 = sbr.rel (0) target = $region49
    $region48: #{lstm_model_forward.1} parent=1 // pred_region
      %83 = dma.done [#allocation10], 2048
    $region49: #{lstm_model_forward.1} parent=1 // pred_fallthru
      _
    // Predicated region
    $region50: #{lstm_model_forward.1} parent=1 // pred_check
      _
    $region51: #{lstm_model_forward.1} parent=1 // pred_check_branch
      %85 = sbr.rel (0) target = $region53
    $region52: #{lstm_model_forward.1} parent=1 // pred_region
      %86 = dma.done [#allocation13], 512
    $region53: #{lstm_model_forward.1} parent=1 // pred_fallthru
      _
    %v87 = vld [vmem:[%s0] sm:$0xff]
    %v88 = vld [vmem:[%s0 + $0x8] sm:$0xff]
    %v89 = vld [vmem:[%s0 + $0x10] sm:$0xff]
    %v90 = vld [vmem:[%s0 + $0x18] sm:$0xff]
    %v91 = vld [vmem:[%s0 + $0x20] sm:$0xff]
    %v92 = vld [vmem:[%s0 + $0x28] sm:$0xff]
    %v93 = vld [vmem:[%s0 + $0x30] sm:$0xff]
    %v94 = vld [vmem:[%s0 + $0x38] sm:$0xff]
    %v95 = vld [vmem:[#allocation7] sm:$0xff]
    %v96 = vld [vmem:[#allocation7 + $0x8] sm:$0xff]
    %v97 = vld [vmem:[%s3] sm:$0x1]
    %v99 = vlaneseq
    %v100 = vshrl.u32 %v99, 7
    %v101 = vsub.s32 0, %v100
    %v102 = vrot.slane %v97, %v101
    %vm104 = vcmask 130048
    %v106 = vsel %vm104, %v87, 0
    %v109 = vsel %vm104, %v88, 0
    %v112 = vsel %vm104, %v89, 0
    %v115 = vsel %vm104, %v90, 0
    %v118 = vsel %vm104, %v91, 0
    %v121 = vsel %vm104, %v92, 0
    %v124 = vsel %vm104, %v93, 0
    %v127 = vsel %vm104, %v94, 0
    %129 = vmatprep.subr.mxu0 0.0
    %130 = vmatpush1.msra.mxu0 %v95
    %131 = vmatprep.subr.mxu0 0.0
    %132 = vmatpush1.msra.mxu0 %v96
    %133 = vmatprep.subr.mxu0 0.0
    %134 = vmatpush1.msra.mxu0 0.0
    %135 = vmatprep.subr.mxu0 0.0
    %136 = vmatpush1.msra.mxu0 0.0
    %137 = vmatprep.subr.mxu0 0.0
    %138 = vmatpush1.msra.mxu0 0.0
    %139 = vmatprep.subr.mxu0 0.0
    %140 = vmatpush1.msra.mxu0 0.0
    %141 = vmatprep.subr.mxu0 0.0
    %142 = vmatpush1.msra.mxu0 0.0
    %143 = vmatprep.subr.mxu0 0.0
    %144 = vmatpush1.msra.mxu0 0.0
    %145 = vmatprep.subr.mxu0 0.0
    %146 = vmatpush1.msra.mxu0 0.0
    %147 = vmatprep.subr.mxu0 0.0
    %148 = vmatpush1.msra.mxu0 0.0
    %149 = vmatprep.subr.mxu0 0.0
    %150 = vmatpush1.msra.mxu0 0.0
    %151 = vmatprep.subr.mxu0 0.0
    %152 = vmatpush1.msra.mxu0 0.0
    %153 = vmatprep.subr.mxu0 0.0
    %154 = vmatpush1.msra.mxu0 0.0
    %155 = vmatprep.subr.mxu0 0.0
    %156 = vmatpush1.msra.mxu0 0.0
    %157 = vmatprep.subr.mxu0 0.0
    %158 = vmatpush1.msra.mxu0 0.0
    %159 = vmatprep.subr.mxu0 0.0
    %160 = vmatpush1.msra.mxu0 0.0
    %161 = vmatprep.subr.mxu0 0.0
    %162 = vmatpush1.msra.mxu0 0.0
    %163 = vmatprep.subr.mxu0 0.0
    %164 = vmatpush1.msra.mxu0 0.0
    %165 = vmatprep.subr.mxu0 0.0
    %166 = vmatpush1.msra.mxu0 0.0
    %167 = vmatprep.subr.mxu0 0.0
    %168 = vmatpush1.msra.mxu0 0.0
    %169 = vmatprep.subr.mxu0 0.0
    %170 = vmatpush1.msra.mxu0 0.0
    %171 = vmatprep.subr.mxu0 0.0
    %172 = vmatpush1.msra.mxu0 0.0
    %173 = vmatprep.subr.mxu0 0.0
    %174 = vmatpush1.msra.mxu0 0.0
    %175 = vmatprep.subr.mxu0 0.0
    %176 = vmatpush1.msra.mxu0 0.0
    %177 = vmatprep.subr.mxu0 0.0
    %178 = vmatpush1.msra.mxu0 0.0
    %179 = vmatprep.subr.mxu0 0.0
    %180 = vmatpush1.msra.mxu0 0.0
    %181 = vmatprep.subr.mxu0 0.0
    %182 = vmatpush1.msra.mxu0 0.0
    %183 = vmatprep.subr.mxu0 0.0
    %184 = vmatpush1.msra.mxu0 0.0
    %185 = vmatprep.subr.mxu0 0.0
    %186 = vmatpush1.msra.mxu0 0.0
    %187 = vmatprep.subr.mxu0 0.0
    %188 = vmatpush1.msra.mxu0 0.0
    %189 = vmatprep.subr.mxu0 0.0
    %190 = vmatpush1.msra.mxu0 0.0
    %191 = vmatprep.subr.mxu0 0.0
    %192 = vmatpush1.msra.mxu0 0.0
    %193 = vmatprep.mubr.f32.mxu0 0.0
    %194 = vmatmul.mubr.f32.gmra.mrb[0].mxu0 %v106
    %v195 = vpop.f32.mrb[0].mxu0
    %v196 = vadd.f32 %v102, %v195
    %v197 = vpop.f32.mrb[0].mxu0
    %198 = vmatprep.mubr.f32.mxu0 0.0
    %199 = vmatmul.mubr.f32.gmra.mrb[0].mxu0 %v109
    %v200 = vpop.f32.mrb[0].mxu0
    %v201 = vadd.f32 %v102, %v200
    %v202 = vpop.f32.mrb[0].mxu0
    %203 = vmatprep.mubr.f32.mxu0 0.0
    %204 = vmatmul.mubr.f32.gmra.mrb[0].mxu0 %v112
    %v205 = vpop.f32.mrb[0].mxu0
    %v206 = vadd.f32 %v102, %v205
    %v207 = vpop.f32.mrb[0].mxu0
    %208 = vmatprep.mubr.f32.mxu0 0.0
    %209 = vmatmul.mubr.f32.gmra.mrb[0].mxu0 %v115
    %v210 = vpop.f32.mrb[0].mxu0
    %v211 = vadd.f32 %v102, %v210
    %v212 = vpop.f32.mrb[0].mxu0
    %213 = vmatprep.mubr.f32.mxu0 0.0
    %214 = vmatmul.mubr.f32.gmra.mrb[0].mxu0 %v118
    %v215 = vpop.f32.mrb[0].mxu0
    %v216 = vadd.f32 %v102, %v215
    %v217 = vpop.f32.mrb[0].mxu0
    %218 = vmatprep.mubr.f32.mxu0 0.0
    %219 = vmatmul.mubr.f32.gmra.mrb[0].mxu0 %v121
    %v220 = vpop.f32.mrb[0].mxu0
    %v221 = vadd.f32 %v102, %v220
    %v222 = vpop.f32.mrb[0].mxu0
    %223 = vmatprep.mubr.f32.mxu0 0.0
    %224 = vmatmul.mubr.f32.gmra.mrb[0].mxu0 %v124
    %v225 = vpop.f32.mrb[0].mxu0
    %v226 = vadd.f32 %v102, %v225
    %v227 = vpop.f32.mrb[0].mxu0
    %228 = vmatprep.mubr.f32.mxu0 0.0
    %229 = vmatmul.mubr.f32.gmra.mrb[0].mxu0 %v127
    %v230 = vpop.f32.mrb[0].mxu0
    %v231 = vadd.f32 %v102, %v230
    %v232 = vpop.f32.mrb[0].mxu0
    %233 = vdwg.mxu0
    %vm234 = vcmask 261120
    %235 = vst.msk [vmem:[#allocation2] sm:$0xff] %vm234, %v196
    %236 = vst.msk [vmem:[#allocation2 + $0x8] sm:$0xff] %vm234, %v201
    %237 = vst.msk [vmem:[#allocation2 + $0x10] sm:$0xff] %vm234, %v206
    %238 = vst.msk [vmem:[#allocation2 + $0x18] sm:$0xff] %vm234, %v211
    %239 = vst.msk [vmem:[#allocation2 + $0x20] sm:$0xff] %vm234, %v216
    %240 = vst.msk [vmem:[#allocation2 + $0x28] sm:$0xff] %vm234, %v221
    %241 = vst.msk [vmem:[#allocation2 + $0x30] sm:$0xff] %vm234, %v226
    %242 = vst.msk [vmem:[#allocation2 + $0x38] sm:$0xff] %vm234, %v231
    %s243 = scalar_lea.vmem [#allocation7], 16
    %v244 = vld [vmem:[%s243] sm:$0xff]
    %v245 = vld [vmem:[%s243 + $0x8] sm:$0xff]
    %s246 = scalar_lea.vmem %s3, 1
    %v247 = vld [vmem:[%s246] sm:$0x1]
    %v249 = vlaneseq
    %v250 = vshrl.u32 %v249, 7
    %v251 = vsub.s32 0, %v250
    %v252 = vrot.slane %v247, %v251
    %254 = vmatprep.subr.mxu0 0.0
    %255 = vmatpush1.msra.mxu0 %v244
    %256 = vmatprep.subr.mxu0 0.0
    %257 = vmatpush1.msra.mxu0 %v245
    %258 = vmatprep.subr.mxu0 0.0
    %259 = vmatpush1.msra.mxu0 0.0
    %260 = vmatprep.subr.mxu0 0.0
    %261 = vmatpush1.msra.mxu0 0.0
    %262 = vmatprep.subr.mxu0 0.0
    %263 = vmatpush1.msra.mxu0 0.0
    %264 = vmatprep.subr.mxu0 0.0
    %265 = vmatpush1.msra.mxu0 0.0
    %266 = vmatprep.subr.mxu0 0.0
    %267 = vmatpush1.msra.mxu0 0.0
    %268 = vmatprep.subr.mxu0 0.0
    %269 = vmatpush1.msra.mxu0 0.0
    %270 = vmatprep.subr.mxu0 0.0
    %271 = vmatpush1.msra.mxu0 0.0
    %272 = vmatprep.subr.mxu0 0.0
    %273 = vmatpush1.msra.mxu0 0.0
    %274 = vmatprep.subr.mxu0 0.0
    %275 = vmatpush1.msra.mxu0 0.0
    %276 = vmatprep.subr.mxu0 0.0
    %277 = vmatpush1.msra.mxu0 0.0
    %278 = vmatprep.subr.mxu0 0.0
    %279 = vmatpush1.msra.mxu0 0.0
    %280 = vmatprep.subr.mxu0 0.0
    %281 = vmatpush1.msra.mxu0 0.0
    %282 = vmatprep.subr.mxu0 0.0
    %283 = vmatpush1.msra.mxu0 0.0
    %284 = vmatprep.subr.mxu0 0.0
    %285 = vmatpush1.msra.mxu0 0.0
    %286 = vmatprep.subr.mxu0 0.0
    %287 = vmatpush1.msra.mxu0 0.0
    %288 = vmatprep.subr.mxu0 0.0
    %289 = vmatpush1.msra.mxu0 0.0
    %290 = vmatprep.subr.mxu0 0.0
    %291 = vmatpush1.msra.mxu0 0.0
    %292 = vmatprep.subr.mxu0 0.0
    %293 = vmatpush1.msra.mxu0 0.0
    %294 = vmatprep.subr.mxu0 0.0
    %295 = vmatpush1.msra.mxu0 0.0
    %296 = vmatprep.subr.mxu0 0.0
    %297 = vmatpush1.msra.mxu0 0.0
    %298 = vmatprep.subr.mxu0 0.0
    %299 = vmatpush1.msra.mxu0 0.0
    %300 = vmatprep.subr.mxu0 0.0
    %301 = vmatpush1.msra.mxu0 0.0
    %302 = vmatprep.subr.mxu0 0.0
    %303 = vmatpush1.msra.mxu0 0.0
    %304 = vmatprep.subr.mxu0 0.0
    %305 = vmatpush1.msra.mxu0 0.0
    %306 = vmatprep.subr.mxu0 0.0
    %307 = vmatpush1.msra.mxu0 0.0
    %308 = vmatprep.subr.mxu0 0.0
    %309 = vmatpush1.msra.mxu0 0.0
    %310 = vmatprep.subr.mxu0 0.0
    %311 = vmatpush1.msra.mxu0 0.0
    %312 = vmatprep.subr.mxu0 0.0
    %313 = vmatpush1.msra.mxu0 0.0
    %314 = vmatprep.subr.mxu0 0.0
    %315 = vmatpush1.msra.mxu0 0.0
    %316 = vmatprep.subr.mxu0 0.0
    %317 = vmatpush1.msra.mxu0 0.0
    %318 = vmatprep.mubr.f32.mxu0 0.0
    %319 = vmatmul.mubr.f32.gmra.mrb[0].mxu0 %v106
    %v320 = vpop.f32.mrb[0].mxu0
    %v321 = vadd.f32 %v252, %v320
    %v322 = vpop.f32.mrb[0].mxu0
    %323 = vmatprep.mubr.f32.mxu0 0.0
    %324 = vmatmul.mubr.f32.gmra.mrb[0].mxu0 %v109
    %v325 = vpop.f32.mrb[0].mxu0
    %v326 = vadd.f32 %v252, %v325
    %v327 = vpop.f32.mrb[0].mxu0
    %328 = vmatprep.mubr.f32.mxu0 0.0
    %329 = vmatmul.mubr.f32.gmra.mrb[0].mxu0 %v112
    %v330 = vpop.f32.mrb[0].mxu0
    %v331 = vadd.f32 %v252, %v330
    %v332 = vpop.f32.mrb[0].mxu0
    %333 = vmatprep.mubr.f32.mxu0 0.0
    %334 = vmatmul.mubr.f32.gmra.mrb[0].mxu0 %v115
    %v335 = vpop.f32.mrb[0].mxu0
    %v336 = vadd.f32 %v252, %v335
    %v337 = vpop.f32.mrb[0].mxu0
    %338 = vmatprep.mubr.f32.mxu0 0.0
    %339 = vmatmul.mubr.f32.gmra.mrb[0].mxu0 %v118
    %v340 = vpop.f32.mrb[0].mxu0
    %v341 = vadd.f32 %v252, %v340
    %v342 = vpop.f32.mrb[0].mxu0
    %343 = vmatprep.mubr.f32.mxu0 0.0
    %344 = vmatmul.mubr.f32.gmra.mrb[0].mxu0 %v121
    %v345 = vpop.f32.mrb[0].mxu0
    %v346 = vadd.f32 %v252, %v345
    %v347 = vpop.f32.mrb[0].mxu0
    %348 = vmatprep.mubr.f32.mxu0 0.0
    %349 = vmatmul.mubr.f32.gmra.mrb[0].mxu0 %v124
    %v350 = vpop.f32.mrb[0].mxu0
    %v351 = vadd.f32 %v252, %v350
    %v352 = vpop.f32.mrb[0].mxu0
    %353 = vmatprep.mubr.f32.mxu0 0.0
    %354 = vmatmul.mubr.f32.gmra.mrb[0].mxu0 %v127
    %v355 = vpop.f32.mrb[0].mxu0
    %v356 = vadd.f32 %v252, %v355
    %v357 = vpop.f32.mrb[0].mxu0
    %358 = vdwg.mxu0
    %359 = vst.msk [vmem:[#allocation3] sm:$0xff] %vm234, %v321
    %360 = vst.msk [vmem:[#allocation3 + $0x8] sm:$0xff] %vm234, %v326
    %361 = vst.msk [vmem:[#allocation3 + $0x10] sm:$0xff] %vm234, %v331
    %362 = vst.msk [vmem:[#allocation3 + $0x18] sm:$0xff] %vm234, %v336
    %363 = vst.msk [vmem:[#allocation3 + $0x20] sm:$0xff] %vm234, %v341
    %364 = vst.msk [vmem:[#allocation3 + $0x28] sm:$0xff] %vm234, %v346
    %365 = vst.msk [vmem:[#allocation3 + $0x30] sm:$0xff] %vm234, %v351
    %366 = vst.msk [vmem:[#allocation3 + $0x38] sm:$0xff] %vm234, %v356
    %s367 = scalar_lea.vmem [#allocation7], 32
    %v368 = vld [vmem:[%s367] sm:$0xff]
    %v369 = vld [vmem:[%s367 + $0x8] sm:$0xff]
    %s370 = scalar_lea.vmem %s3, 2
    %v371 = vld [vmem:[%s370] sm:$0x1]
    %v373 = vlaneseq
    %v374 = vshrl.u32 %v373, 7
    %v375 = vsub.s32 0, %v374
    %v376 = vrot.slane %v371, %v375
    %378 = vmatprep.subr.mxu0 0.0
    %379 = vmatpush1.msra.mxu0 %v368
    %380 = vmatprep.subr.mxu0 0.0
    %381 = vmatpush1.msra.mxu0 %v369
    %382 = vmatprep.subr.mxu0 0.0
    %383 = vmatpush1.msra.mxu0 0.0
    %384 = vmatprep.subr.mxu0 0.0
    %385 = vmatpush1.msra.mxu0 0.0
    %386 = vmatprep.subr.mxu0 0.0
    %387 = vmatpush1.msra.mxu0 0.0
    %388 = vmatprep.subr.mxu0 0.0
    %389 = vmatpush1.msra.mxu0 0.0
    %390 = vmatprep.subr.mxu0 0.0
    %391 = vmatpush1.msra.mxu0 0.0
    %392 = vmatprep.subr.mxu0 0.0
    %393 = vmatpush1.msra.mxu0 0.0
    %394 = vmatprep.subr.mxu0 0.0
    %395 = vmatpush1.msra.mxu0 0.0
    %396 = vmatprep.subr.mxu0 0.0
    %397 = vmatpush1.msra.mxu0 0.0
    %398 = vmatprep.subr.mxu0 0.0
    %399 = vmatpush1.msra.mxu0 0.0
    %400 = vmatprep.subr.mxu0 0.0
    %401 = vmatpush1.msra.mxu0 0.0
    %402 = vmatprep.subr.mxu0 0.0
    %403 = vmatpush1.msra.mxu0 0.0
    %404 = vmatprep.subr.mxu0 0.0
    %405 = vmatpush1.msra.mxu0 0.0
    %406 = vmatprep.subr.mxu0 0.0
    %407 = vmatpush1.msra.mxu0 0.0
    %408 = vmatprep.subr.mxu0 0.0
    %409 = vmatpush1.msra.mxu0 0.0
    %410 = vmatprep.subr.mxu0 0.0
    %411 = vmatpush1.msra.mxu0 0.0
    %412 = vmatprep.subr.mxu0 0.0
    %413 = vmatpush1.msra.mxu0 0.0
    %414 = vmatprep.subr.mxu0 0.0
    %415 = vmatpush1.msra.mxu0 0.0
    %416 = vmatprep.subr.mxu0 0.0
    %417 = vmatpush1.msra.mxu0 0.0
    %418 = vmatprep.subr.mxu0 0.0
    %419 = vmatpush1.msra.mxu0 0.0
    %420 = vmatprep.subr.mxu0 0.0
    %421 = vmatpush1.msra.mxu0 0.0
    %422 = vmatprep.subr.mxu0 0.0
    %423 = vmatpush1.msra.mxu0 0.0
    %424 = vmatprep.subr.mxu0 0.0
    %425 = vmatpush1.msra.mxu0 0.0
    %426 = vmatprep.subr.mxu0 0.0
    %427 = vmatpush1.msra.mxu0 0.0
    %428 = vmatprep.subr.mxu0 0.0
    %429 = vmatpush1.msra.mxu0 0.0
    %430 = vmatprep.subr.mxu0 0.0
    %431 = vmatpush1.msra.mxu0 0.0
    %432 = vmatprep.subr.mxu0 0.0
    %433 = vmatpush1.msra.mxu0 0.0
    %434 = vmatprep.subr.mxu0 0.0
    %435 = vmatpush1.msra.mxu0 0.0
    %436 = vmatprep.subr.mxu0 0.0
    %437 = vmatpush1.msra.mxu0 0.0
    %438 = vmatprep.subr.mxu0 0.0
    %439 = vmatpush1.msra.mxu0 0.0
    %440 = vmatprep.subr.mxu0 0.0
    %441 = vmatpush1.msra.mxu0 0.0
    %442 = vmatprep.mubr.f32.mxu0 0.0
    %443 = vmatmul.mubr.f32.gmra.mrb[0].mxu0 %v106
    %v444 = vpop.f32.mrb[0].mxu0
    %v445 = vadd.f32 %v376, %v444
    %v446 = vpop.f32.mrb[0].mxu0
    %447 = vmatprep.mubr.f32.mxu0 0.0
    %448 = vmatmul.mubr.f32.gmra.mrb[0].mxu0 %v109
    %v449 = vpop.f32.mrb[0].mxu0
    %v450 = vadd.f32 %v376, %v449
    %v451 = vpop.f32.mrb[0].mxu0
    %452 = vmatprep.mubr.f32.mxu0 0.0
    %453 = vmatmul.mubr.f32.gmra.mrb[0].mxu0 %v112
    %v454 = vpop.f32.mrb[0].mxu0
    %v455 = vadd.f32 %v376, %v454
    %v456 = vpop.f32.mrb[0].mxu0
    %457 = vmatprep.mubr.f32.mxu0 0.0
    %458 = vmatmul.mubr.f32.gmra.mrb[0].mxu0 %v115
    %v459 = vpop.f32.mrb[0].mxu0
    %v460 = vadd.f32 %v376, %v459
    %v461 = vpop.f32.mrb[0].mxu0
    %462 = vmatprep.mubr.f32.mxu0 0.0
    %463 = vmatmul.mubr.f32.gmra.mrb[0].mxu0 %v118
    %v464 = vpop.f32.mrb[0].mxu0
    %v465 = vadd.f32 %v376, %v464
    %v466 = vpop.f32.mrb[0].mxu0
    %467 = vmatprep.mubr.f32.mxu0 0.0
    %468 = vmatmul.mubr.f32.gmra.mrb[0].mxu0 %v121
    %v469 = vpop.f32.mrb[0].mxu0
    %v470 = vadd.f32 %v376, %v469
    %v471 = vpop.f32.mrb[0].mxu0
    %472 = vmatprep.mubr.f32.mxu0 0.0
    %473 = vmatmul.mubr.f32.gmra.mrb[0].mxu0 %v124
    %v474 = vpop.f32.mrb[0].mxu0
    %v475 = vadd.f32 %v376, %v474
    %v476 = vpop.f32.mrb[0].mxu0
    %477 = vmatprep.mubr.f32.mxu0 0.0
    %478 = vmatmul.mubr.f32.gmra.mrb[0].mxu0 %v127
    %v479 = vpop.f32.mrb[0].mxu0
    %v480 = vadd.f32 %v376, %v479
    %v481 = vpop.f32.mrb[0].mxu0
    %482 = vdwg.mxu0
    %483 = vst.msk [vmem:[#allocation4] sm:$0xff] %vm234, %v445
    %484 = vst.msk [vmem:[#allocation4 + $0x8] sm:$0xff] %vm234, %v450
    %485 = vst.msk [vmem:[#allocation4 + $0x10] sm:$0xff] %vm234, %v455
    %486 = vst.msk [vmem:[#allocation4 + $0x18] sm:$0xff] %vm234, %v460
    %487 = vst.msk [vmem:[#allocation4 + $0x20] sm:$0xff] %vm234, %v465
    %488 = vst.msk [vmem:[#allocation4 + $0x28] sm:$0xff] %vm234, %v470
    %489 = vst.msk [vmem:[#allocation4 + $0x30] sm:$0xff] %vm234, %v475
    %490 = vst.msk [vmem:[#allocation4 + $0x38] sm:$0xff] %vm234, %v480
    %s491 = scalar_lea.vmem [#allocation7], 48
    %v492 = vld [vmem:[%s491] sm:$0xff]
    %v493 = vld [vmem:[%s491 + $0x8] sm:$0xff]
    %s494 = scalar_lea.vmem %s3, 3
    %v495 = vld [vmem:[%s494] sm:$0x1]
    %v497 = vlaneseq
    %v498 = vshrl.u32 %v497, 7
    %v499 = vsub.s32 0, %v498
    %v500 = vrot.slane %v495, %v499
    %502 = vmatprep.subr.mxu0 0.0
    %503 = vmatpush1.msra.mxu0 %v492
    %504 = vmatprep.subr.mxu0 0.0
    %505 = vmatpush1.msra.mxu0 %v493
    %506 = vmatprep.subr.mxu0 0.0
    %507 = vmatpush1.msra.mxu0 0.0
    %508 = vmatprep.subr.mxu0 0.0
    %509 = vmatpush1.msra.mxu0 0.0
    %510 = vmatprep.subr.mxu0 0.0
    %511 = vmatpush1.msra.mxu0 0.0
    %512 = vmatprep.subr.mxu0 0.0
    %513 = vmatpush1.msra.mxu0 0.0
    %514 = vmatprep.subr.mxu0 0.0
    %515 = vmatpush1.msra.mxu0 0.0
    %516 = vmatprep.subr.mxu0 0.0
    %517 = vmatpush1.msra.mxu0 0.0
    %518 = vmatprep.subr.mxu0 0.0
    %519 = vmatpush1.msra.mxu0 0.0
    %520 = vmatprep.subr.mxu0 0.0
    %521 = vmatpush1.msra.mxu0 0.0
    %522 = vmatprep.subr.mxu0 0.0
    %523 = vmatpush1.msra.mxu0 0.0
    %524 = vmatprep.subr.mxu0 0.0
    %525 = vmatpush1.msra.mxu0 0.0
    %526 = vmatprep.subr.mxu0 0.0
    %527 = vmatpush1.msra.mxu0 0.0
    %528 = vmatprep.subr.mxu0 0.0
    %529 = vmatpush1.msra.mxu0 0.0
    %530 = vmatprep.subr.mxu0 0.0
    %531 = vmatpush1.msra.mxu0 0.0
    %532 = vmatprep.subr.mxu0 0.0
    %533 = vmatpush1.msra.mxu0 0.0
    %534 = vmatprep.subr.mxu0 0.0
    %535 = vmatpush1.msra.mxu0 0.0
    %536 = vmatprep.subr.mxu0 0.0
    %537 = vmatpush1.msra.mxu0 0.0
    %538 = vmatprep.subr.mxu0 0.0
    %539 = vmatpush1.msra.mxu0 0.0
    %540 = vmatprep.subr.mxu0 0.0
    %541 = vmatpush1.msra.mxu0 0.0
    %542 = vmatprep.subr.mxu0 0.0
    %543 = vmatpush1.msra.mxu0 0.0
    %544 = vmatprep.subr.mxu0 0.0
    %545 = vmatpush1.msra.mxu0 0.0
    %546 = vmatprep.subr.mxu0 0.0
    %547 = vmatpush1.msra.mxu0 0.0
    %548 = vmatprep.subr.mxu0 0.0
    %549 = vmatpush1.msra.mxu0 0.0
    %550 = vmatprep.subr.mxu0 0.0
    %551 = vmatpush1.msra.mxu0 0.0
    %552 = vmatprep.subr.mxu0 0.0
    %553 = vmatpush1.msra.mxu0 0.0
    %554 = vmatprep.subr.mxu0 0.0
    %555 = vmatpush1.msra.mxu0 0.0
    %556 = vmatprep.subr.mxu0 0.0
    %557 = vmatpush1.msra.mxu0 0.0
    %558 = vmatprep.subr.mxu0 0.0
    %559 = vmatpush1.msra.mxu0 0.0
    %560 = vmatprep.subr.mxu0 0.0
    %561 = vmatpush1.msra.mxu0 0.0
    %562 = vmatprep.subr.mxu0 0.0
    %563 = vmatpush1.msra.mxu0 0.0
    %564 = vmatprep.subr.mxu0 0.0
    %565 = vmatpush1.msra.mxu0 0.0
    %566 = vmatprep.mubr.f32.mxu0 0.0
    %567 = vmatmul.mubr.f32.gmra.mrb[0].mxu0 %v106
    %v568 = vpop.f32.mrb[0].mxu0
    %v569 = vadd.f32 %v500, %v568
    %v570 = vpop.f32.mrb[0].mxu0
    %571 = vmatprep.mubr.f32.mxu0 0.0
    %572 = vmatmul.mubr.f32.gmra.mrb[0].mxu0 %v109
    %v573 = vpop.f32.mrb[0].mxu0
    %v574 = vadd.f32 %v500, %v573
    %v575 = vpop.f32.mrb[0].mxu0
    %576 = vmatprep.mubr.f32.mxu0 0.0
    %577 = vmatmul.mubr.f32.gmra.mrb[0].mxu0 %v112
    %v578 = vpop.f32.mrb[0].mxu0
    %v579 = vadd.f32 %v500, %v578
    %v580 = vpop.f32.mrb[0].mxu0
    %581 = vmatprep.mubr.f32.mxu0 0.0
    %582 = vmatmul.mubr.f32.gmra.mrb[0].mxu0 %v115
    %v583 = vpop.f32.mrb[0].mxu0
    %v584 = vadd.f32 %v500, %v583
    %v585 = vpop.f32.mrb[0].mxu0
    %586 = vmatprep.mubr.f32.mxu0 0.0
    %587 = vmatmul.mubr.f32.gmra.mrb[0].mxu0 %v118
    %v588 = vpop.f32.mrb[0].mxu0
    %v589 = vadd.f32 %v500, %v588
    %v590 = vpop.f32.mrb[0].mxu0
    %591 = vmatprep.mubr.f32.mxu0 0.0
    %592 = vmatmul.mubr.f32.gmra.mrb[0].mxu0 %v121
    %v593 = vpop.f32.mrb[0].mxu0
    %v594 = vadd.f32 %v500, %v593
    %v595 = vpop.f32.mrb[0].mxu0
    %596 = vmatprep.mubr.f32.mxu0 0.0
    %597 = vmatmul.mubr.f32.gmra.mrb[0].mxu0 %v124
    %v598 = vpop.f32.mrb[0].mxu0
    %v599 = vadd.f32 %v500, %v598
    %v600 = vpop.f32.mrb[0].mxu0
    %601 = vmatprep.mubr.f32.mxu0 0.0
    %602 = vmatmul.mubr.f32.gmra.mrb[0].mxu0 %v127
    %v603 = vpop.f32.mrb[0].mxu0
    %v604 = vadd.f32 %v500, %v603
    %v605 = vpop.f32.mrb[0].mxu0
    %606 = vdwg.mxu0
    %607 = vst.msk [vmem:[#allocation5] sm:$0xff] %vm234, %v569
    %608 = vst.msk [vmem:[#allocation5 + $0x8] sm:$0xff] %vm234, %v574
    %609 = vst.msk [vmem:[#allocation5 + $0x10] sm:$0xff] %vm234, %v579
    %610 = vst.msk [vmem:[#allocation5 + $0x18] sm:$0xff] %vm234, %v584
    %611 = vst.msk [vmem:[#allocation5 + $0x20] sm:$0xff] %vm234, %v589
    %612 = vst.msk [vmem:[#allocation5 + $0x28] sm:$0xff] %vm234, %v594
    %613 = vst.msk [vmem:[#allocation5 + $0x30] sm:$0xff] %vm234, %v599
    %614 = vst.msk [vmem:[#allocation5 + $0x38] sm:$0xff] %vm234, %v604
    %v615 = vld [vmem:[#allocation9] sm:$0xff]
    %v616 = vld [vmem:[#allocation9 + $0x8] sm:$0xff]
    %v617 = vld [vmem:[#allocation9 + $0x10] sm:$0xff]
    %v618 = vld [vmem:[#allocation9 + $0x18] sm:$0xff]
    %s619 = scalar_lea.vmem [#allocation9], 32
    %v620 = vld [vmem:[%s619] sm:$0xff]
    %v621 = vld [vmem:[%s619 + $0x8] sm:$0xff]
    %v622 = vld [vmem:[%s619 + $0x10] sm:$0xff]
    %v623 = vld [vmem:[%s619 + $0x18] sm:$0xff]
    %s624 = scalar_lea.vmem [#allocation9], 64
    %v625 = vld [vmem:[%s624] sm:$0xff]
    %v626 = vld [vmem:[%s624 + $0x8] sm:$0xff]
    %v627 = vld [vmem:[%s624 + $0x10] sm:$0xff]
    %v628 = vld [vmem:[%s624 + $0x18] sm:$0xff]
    %s629 = scalar_lea.vmem [#allocation9], 96
    %v630 = vld [vmem:[%s629] sm:$0xff]
    %v631 = vld [vmem:[%s629 + $0x8] sm:$0xff]
    %v632 = vld [vmem:[%s629 + $0x10] sm:$0xff]
    %v633 = vld [vmem:[%s629 + $0x18] sm:$0xff]
    %v634 = vld [vmem:[#allocation2] sm:$0xff]
    %v636 = vsel %vm234, 0.0, 0
    %638 = vmatprep.subr.mxu0 0.0
    %639 = vmatpush1.msra.mxu0 %v615
    %640 = vmatprep.subr.mxu0 0.0
    %641 = vmatpush1.msra.mxu0 %v616
    %642 = vmatprep.subr.mxu0 0.0
    %643 = vmatpush1.msra.mxu0 %v617
    %644 = vmatprep.subr.mxu0 0.0
    %645 = vmatpush1.msra.mxu0 %v618
    %646 = vmatprep.subr.mxu0 0.0
    %647 = vmatpush1.msra.mxu0 0.0
    %648 = vmatprep.subr.mxu0 0.0
    %649 = vmatpush1.msra.mxu0 0.0
    %650 = vmatprep.subr.mxu0 0.0
    %651 = vmatpush1.msra.mxu0 0.0
    %652 = vmatprep.subr.mxu0 0.0
    %653 = vmatpush1.msra.mxu0 0.0
    %654 = vmatprep.subr.mxu0 0.0
    %655 = vmatpush1.msra.mxu0 0.0
    %656 = vmatprep.subr.mxu0 0.0
    %657 = vmatpush1.msra.mxu0 0.0
    %658 = vmatprep.subr.mxu0 0.0
    %659 = vmatpush1.msra.mxu0 0.0
    %660 = vmatprep.subr.mxu0 0.0
    %661 = vmatpush1.msra.mxu0 0.0
    %662 = vmatprep.subr.mxu0 0.0
    %663 = vmatpush1.msra.mxu0 0.0
    %664 = vmatprep.subr.mxu0 0.0
    %665 = vmatpush1.msra.mxu0 0.0
    %666 = vmatprep.subr.mxu0 0.0
    %667 = vmatpush1.msra.mxu0 0.0
    %668 = vmatprep.subr.mxu0 0.0
    %669 = vmatpush1.msra.mxu0 0.0
    %670 = vmatprep.subr.mxu0 0.0
    %671 = vmatpush1.msra.mxu0 0.0
    %672 = vmatprep.subr.mxu0 0.0
    %673 = vmatpush1.msra.mxu0 0.0
    %674 = vmatprep.subr.mxu0 0.0
    %675 = vmatpush1.msra.mxu0 0.0
    %676 = vmatprep.subr.mxu0 0.0
    %677 = vmatpush1.msra.mxu0 0.0
    %678 = vmatprep.subr.mxu0 0.0
    %679 = vmatpush1.msra.mxu0 0.0
    %680 = vmatprep.subr.mxu0 0.0
    %681 = vmatpush1.msra.mxu0 0.0
    %682 = vmatprep.subr.mxu0 0.0
    %683 = vmatpush1.msra.mxu0 0.0
    %684 = vmatprep.subr.mxu0 0.0
    %685 = vmatpush1.msra.mxu0 0.0
    %686 = vmatprep.subr.mxu0 0.0
    %687 = vmatpush1.msra.mxu0 0.0
    %688 = vmatprep.subr.mxu0 0.0
    %689 = vmatpush1.msra.mxu0 0.0
    %690 = vmatprep.subr.mxu0 0.0
    %691 = vmatpush1.msra.mxu0 0.0
    %692 = vmatprep.subr.mxu0 0.0
    %693 = vmatpush1.msra.mxu0 0.0
    %694 = vmatprep.subr.mxu0 0.0
    %695 = vmatpush1.msra.mxu0 0.0
    %696 = vmatprep.subr.mxu0 0.0
    %697 = vmatpush1.msra.mxu0 0.0
    %698 = vmatprep.subr.mxu0 0.0
    %699 = vmatpush1.msra.mxu0 0.0
    %700 = vmatprep.subr.mxu0 0.0
    %701 = vmatpush1.msra.mxu0 0.0
    %702 = vmatprep.mubr.f32.mxu0 0.0
    %703 = vmatmul.mubr.f32.gmra.mrb[0].mxu0 %v636
    %v704 = vpop.f32.mrb[0].mxu0
    %v705 = vadd.f32 0.0, %v704
    %v706 = vpop.f32.mrb[0].mxu0
    %707 = vdwg.mxu0
    %v708 = vadd.f32 %v634, %v705
    %v709 = vxor.u32 %v708, 2147483648
    %v710 = vmul.f32 %v709, 1.442695
    %v711 = vpow.pop %v710
    %v712 = vadd.f32 %v711, 1.0
    %v713 = vrcp.pop %v712
    %v714 = vmul.f32 1.0, %v713
    %v715 = vld [vmem:[#allocation3] sm:$0xff]
    %716 = vmatprep.subr.mxu0 0.0
    %717 = vmatpush1.msra.mxu0 %v620
    %718 = vmatprep.subr.mxu0 0.0
    %719 = vmatpush1.msra.mxu0 %v621
    %720 = vmatprep.subr.mxu0 0.0
    %721 = vmatpush1.msra.mxu0 %v622
    %722 = vmatprep.subr.mxu0 0.0
    %723 = vmatpush1.msra.mxu0 %v623
    %724 = vmatprep.subr.mxu0 0.0
    %725 = vmatpush1.msra.mxu0 0.0
    %726 = vmatprep.subr.mxu0 0.0
    %727 = vmatpush1.msra.mxu0 0.0
    %728 = vmatprep.subr.mxu0 0.0
    %729 = vmatpush1.msra.mxu0 0.0
    %730 = vmatprep.subr.mxu0 0.0
    %731 = vmatpush1.msra.mxu0 0.0
    %732 = vmatprep.subr.mxu0 0.0
    %733 = vmatpush1.msra.mxu0 0.0
    %734 = vmatprep.subr.mxu0 0.0
    %735 = vmatpush1.msra.mxu0 0.0
    %736 = vmatprep.subr.mxu0 0.0
    %737 = vmatpush1.msra.mxu0 0.0
    %738 = vmatprep.subr.mxu0 0.0
    %739 = vmatpush1.msra.mxu0 0.0
    %740 = vmatprep.subr.mxu0 0.0
    %741 = vmatpush1.msra.mxu0 0.0
    %742 = vmatprep.subr.mxu0 0.0
    %743 = vmatpush1.msra.mxu0 0.0
    %744 = vmatprep.subr.mxu0 0.0
    %745 = vmatpush1.msra.mxu0 0.0
    %746 = vmatprep.subr.mxu0 0.0
    %747 = vmatpush1.msra.mxu0 0.0
    %748 = vmatprep.subr.mxu0 0.0
    %749 = vmatpush1.msra.mxu0 0.0
    %750 = vmatprep.subr.mxu0 0.0
    %751 = vmatpush1.msra.mxu0 0.0
    %752 = vmatprep.subr.mxu0 0.0
    %753 = vmatpush1.msra.mxu0 0.0
    %754 = vmatprep.subr.mxu0 0.0
    %755 = vmatpush1.msra.mxu0 0.0
    %756 = vmatprep.subr.mxu0 0.0
    %757 = vmatpush1.msra.mxu0 0.0
    %758 = vmatprep.subr.mxu0 0.0
    %759 = vmatpush1.msra.mxu0 0.0
    %760 = vmatprep.subr.mxu0 0.0
    %761 = vmatpush1.msra.mxu0 0.0
    %762 = vmatprep.subr.mxu0 0.0
    %763 = vmatpush1.msra.mxu0 0.0
    %764 = vmatprep.subr.mxu0 0.0
    %765 = vmatpush1.msra.mxu0 0.0
    %766 = vmatprep.subr.mxu0 0.0
    %767 = vmatpush1.msra.mxu0 0.0
    %768 = vmatprep.subr.mxu0 0.0
    %769 = vmatpush1.msra.mxu0 0.0
    %770 = vmatprep.subr.mxu0 0.0
    %771 = vmatpush1.msra.mxu0 0.0
    %772 = vmatprep.subr.mxu0 0.0
    %773 = vmatpush1.msra.mxu0 0.0
    %774 = vmatprep.subr.mxu0 0.0
    %775 = vmatpush1.msra.mxu0 0.0
    %776 = vmatprep.subr.mxu0 0.0
    %777 = vmatpush1.msra.mxu0 0.0
    %778 = vmatprep.subr.mxu0 0.0
    %779 = vmatpush1.msra.mxu0 0.0
    %780 = vmatprep.mubr.f32.mxu0 0.0
    %781 = vmatmul.mubr.f32.gmra.mrb[0].mxu0 %v636
    %v782 = vpop.f32.mrb[0].mxu0
    %v783 = vadd.f32 0.0, %v782
    %v784 = vpop.f32.mrb[0].mxu0
    %785 = vdwg.mxu0
    %v786 = vadd.f32 %v715, %v783
    %v787 = vxor.u32 %v786, 2147483648
    %v788 = vmul.f32 %v787, 1.442695
    %v789 = vpow.pop %v788
    %v790 = vadd.f32 %v789, 1.0
    %v791 = vrcp.pop %v790
    %v792 = vmul.f32 1.0, %v791
    %v793 = vld [vmem:[#allocation4] sm:$0xff]
    %794 = vmatprep.subr.mxu0 0.0
    %795 = vmatpush1.msra.mxu0 %v625
    %796 = vmatprep.subr.mxu0 0.0
    %797 = vmatpush1.msra.mxu0 %v626
    %798 = vmatprep.subr.mxu0 0.0
    %799 = vmatpush1.msra.mxu0 %v627
    %800 = vmatprep.subr.mxu0 0.0
    %801 = vmatpush1.msra.mxu0 %v628
    %802 = vmatprep.subr.mxu0 0.0
    %803 = vmatpush1.msra.mxu0 0.0
    %804 = vmatprep.subr.mxu0 0.0
    %805 = vmatpush1.msra.mxu0 0.0
    %806 = vmatprep.subr.mxu0 0.0
    %807 = vmatpush1.msra.mxu0 0.0
    %808 = vmatprep.subr.mxu0 0.0
    %809 = vmatpush1.msra.mxu0 0.0
    %810 = vmatprep.subr.mxu0 0.0
    %811 = vmatpush1.msra.mxu0 0.0
    %812 = vmatprep.subr.mxu0 0.0
    %813 = vmatpush1.msra.mxu0 0.0
    %814 = vmatprep.subr.mxu0 0.0
    %815 = vmatpush1.msra.mxu0 0.0
    %816 = vmatprep.subr.mxu0 0.0
    %817 = vmatpush1.msra.mxu0 0.0
    %818 = vmatprep.subr.mxu0 0.0
    %819 = vmatpush1.msra.mxu0 0.0
    %820 = vmatprep.subr.mxu0 0.0
    %821 = vmatpush1.msra.mxu0 0.0
    %822 = vmatprep.subr.mxu0 0.0
    %823 = vmatpush1.msra.mxu0 0.0
    %824 = vmatprep.subr.mxu0 0.0
    %825 = vmatpush1.msra.mxu0 0.0
    %826 = vmatprep.subr.mxu0 0.0
    %827 = vmatpush1.msra.mxu0 0.0
    %828 = vmatprep.subr.mxu0 0.0
    %829 = vmatpush1.msra.mxu0 0.0
    %830 = vmatprep.subr.mxu0 0.0
    %831 = vmatpush1.msra.mxu0 0.0
    %832 = vmatprep.subr.mxu0 0.0
    %833 = vmatpush1.msra.mxu0 0.0
    %834 = vmatprep.subr.mxu0 0.0
    %835 = vmatpush1.msra.mxu0 0.0
    %836 = vmatprep.subr.mxu0 0.0
    %837 = vmatpush1.msra.mxu0 0.0
    %838 = vmatprep.subr.mxu0 0.0
    %839 = vmatpush1.msra.mxu0 0.0
    %840 = vmatprep.subr.mxu0 0.0
    %841 = vmatpush1.msra.mxu0 0.0
    %842 = vmatprep.subr.mxu0 0.0
    %843 = vmatpush1.msra.mxu0 0.0
    %844 = vmatprep.subr.mxu0 0.0
    %845 = vmatpush1.msra.mxu0 0.0
    %846 = vmatprep.subr.mxu0 0.0
    %847 = vmatpush1.msra.mxu0 0.0
    %848 = vmatprep.subr.mxu0 0.0
    %849 = vmatpush1.msra.mxu0 0.0
    %850 = vmatprep.subr.mxu0 0.0
    %851 = vmatpush1.msra.mxu0 0.0
    %852 = vmatprep.subr.mxu0 0.0
    %853 = vmatpush1.msra.mxu0 0.0
    %854 = vmatprep.subr.mxu0 0.0
    %855 = vmatpush1.msra.mxu0 0.0
    %856 = vmatprep.subr.mxu0 0.0
    %857 = vmatpush1.msra.mxu0 0.0
    %858 = vmatprep.mubr.f32.mxu0 0.0
    %859 = vmatmul.mubr.f32.gmra.mrb[0].mxu0 %v636
    %v860 = vpop.f32.mrb[0].mxu0
    %v861 = vadd.f32 0.0, %v860
    %v862 = vpop.f32.mrb[0].mxu0
    %863 = vdwg.mxu0
    %v864 = vadd.f32 %v793, %v861
    %v865 = vtanh.pop %v864
    %v866 = vld [vmem:[#allocation5] sm:$0xff]
    %867 = vmatprep.subr.mxu0 0.0
    %868 = vmatpush1.msra.mxu0 %v630
    %869 = vmatprep.subr.mxu0 0.0
    %870 = vmatpush1.msra.mxu0 %v631
    %871 = vmatprep.subr.mxu0 0.0
    %872 = vmatpush1.msra.mxu0 %v632
    %873 = vmatprep.subr.mxu0 0.0
    %874 = vmatpush1.msra.mxu0 %v633
    %875 = vmatprep.subr.mxu0 0.0
    %876 = vmatpush1.msra.mxu0 0.0
    %877 = vmatprep.subr.mxu0 0.0
    %878 = vmatpush1.msra.mxu0 0.0
    %879 = vmatprep.subr.mxu0 0.0
    %880 = vmatpush1.msra.mxu0 0.0
    %881 = vmatprep.subr.mxu0 0.0
    %882 = vmatpush1.msra.mxu0 0.0
    %883 = vmatprep.subr.mxu0 0.0
    %884 = vmatpush1.msra.mxu0 0.0
    %885 = vmatprep.subr.mxu0 0.0
    %886 = vmatpush1.msra.mxu0 0.0
    %887 = vmatprep.subr.mxu0 0.0
    %888 = vmatpush1.msra.mxu0 0.0
    %889 = vmatprep.subr.mxu0 0.0
    %890 = vmatpush1.msra.mxu0 0.0
    %891 = vmatprep.subr.mxu0 0.0
    %892 = vmatpush1.msra.mxu0 0.0
    %893 = vmatprep.subr.mxu0 0.0
    %894 = vmatpush1.msra.mxu0 0.0
    %895 = vmatprep.subr.mxu0 0.0
    %896 = vmatpush1.msra.mxu0 0.0
    %897 = vmatprep.subr.mxu0 0.0
    %898 = vmatpush1.msra.mxu0 0.0
    %899 = vmatprep.subr.mxu0 0.0
    %900 = vmatpush1.msra.mxu0 0.0
    %901 = vmatprep.subr.mxu0 0.0
    %902 = vmatpush1.msra.mxu0 0.0
    %903 = vmatprep.subr.mxu0 0.0
    %904 = vmatpush1.msra.mxu0 0.0
    %905 = vmatprep.subr.mxu0 0.0
    %906 = vmatpush1.msra.mxu0 0.0
    %907 = vmatprep.subr.mxu0 0.0
    %908 = vmatpush1.msra.mxu0 0.0
    %909 = vmatprep.subr.mxu0 0.0
    %910 = vmatpush1.msra.mxu0 0.0
    %911 = vmatprep.subr.mxu0 0.0
    %912 = vmatpush1.msra.mxu0 0.0
    %913 = vmatprep.subr.mxu0 0.0
    %914 = vmatpush1.msra.mxu0 0.0
    %915 = vmatprep.subr.mxu0 0.0
    %916 = vmatpush1.msra.mxu0 0.0
    %917 = vmatprep.subr.mxu0 0.0
    %918 = vmatpush1.msra.mxu0 0.0
    %919 = vmatprep.subr.mxu0 0.0
    %920 = vmatpush1.msra.mxu0 0.0
    %921 = vmatprep.subr.mxu0 0.0
    %922 = vmatpush1.msra.mxu0 0.0
    %923 = vmatprep.subr.mxu0 0.0
    %924 = vmatpush1.msra.mxu0 0.0
    %925 = vmatprep.subr.mxu0 0.0
    %926 = vmatpush1.msra.mxu0 0.0
    %927 = vmatprep.subr.mxu0 0.0
    %928 = vmatpush1.msra.mxu0 0.0
    %929 = vmatprep.subr.mxu0 0.0
    %930 = vmatpush1.msra.mxu0 0.0
    %931 = vmatprep.mubr.f32.mxu0 0.0
    %932 = vmatmul.mubr.f32.gmra.mrb[0].mxu0 %v636
    %v933 = vpop.f32.mrb[0].mxu0
    %v934 = vadd.f32 0.0, %v933
    %v935 = vpop.f32.mrb[0].mxu0
    %936 = vdwg.mxu0
    %v937 = vadd.f32 %v866, %v934
    %v938 = vxor.u32 %v937, 2147483648
    %v939 = vmul.f32 %v938, 1.442695
    %v940 = vpow.pop %v939
    %v941 = vadd.f32 %v940, 1.0
    %v942 = vrcp.pop %v941
    %v943 = vmul.f32 1.0, %v942
    %v944 = vmul.f32 %v792, 0.0
    %v945 = vmul.f32 %v714, %v865
    %v946 = vadd.f32 %v944, %v945
    %v947 = vtanh.pop %v946
    %v948 = vmul.f32 %v943, %v947
    %949 = vst.msk [vmem:[#allocation6] sm:$0xff] %vm234, %v948
    %v950 = vld [vmem:[#allocation2 + $0x8] sm:$0xff]
    %v952 = vsel %vm234, %v948, 0
    %954 = vmatprep.subr.mxu0 0.0
    %955 = vmatpush1.msra.mxu0 %v615
    %956 = vmatprep.subr.mxu0 0.0
    %957 = vmatpush1.msra.mxu0 %v616
    %958 = vmatprep.subr.mxu0 0.0
    %959 = vmatpush1.msra.mxu0 %v617
    %960 = vmatprep.subr.mxu0 0.0
    %961 = vmatpush1.msra.mxu0 %v618
    %962 = vmatprep.subr.mxu0 0.0
    %963 = vmatpush1.msra.mxu0 0.0
    %964 = vmatprep.subr.mxu0 0.0
    %965 = vmatpush1.msra.mxu0 0.0
    %966 = vmatprep.subr.mxu0 0.0
    %967 = vmatpush1.msra.mxu0 0.0
    %968 = vmatprep.subr.mxu0 0.0
    %969 = vmatpush1.msra.mxu0 0.0
    %970 = vmatprep.subr.mxu0 0.0
    %971 = vmatpush1.msra.mxu0 0.0
    %972 = vmatprep.subr.mxu0 0.0
    %973 = vmatpush1.msra.mxu0 0.0
    %974 = vmatprep.subr.mxu0 0.0
    %975 = vmatpush1.msra.mxu0 0.0
    %976 = vmatprep.subr.mxu0 0.0
    %977 = vmatpush1.msra.mxu0 0.0
    %978 = vmatprep.subr.mxu0 0.0
    %979 = vmatpush1.msra.mxu0 0.0
    %980 = vmatprep.subr.mxu0 0.0
    %981 = vmatpush1.msra.mxu0 0.0
    %982 = vmatprep.subr.mxu0 0.0
    %983 = vmatpush1.msra.mxu0 0.0
    %984 = vmatprep.subr.mxu0 0.0
    %985 = vmatpush1.msra.mxu0 0.0
    %986 = vmatprep.subr.mxu0 0.0
    %987 = vmatpush1.msra.mxu0 0.0
    %988 = vmatprep.subr.mxu0 0.0
    %989 = vmatpush1.msra.mxu0 0.0
    %990 = vmatprep.subr.mxu0 0.0
    %991 = vmatpush1.msra.mxu0 0.0
    %992 = vmatprep.subr.mxu0 0.0
    %993 = vmatpush1.msra.mxu0 0.0
    %994 = vmatprep.subr.mxu0 0.0
    %995 = vmatpush1.msra.mxu0 0.0
    %996 = vmatprep.subr.mxu0 0.0
    %997 = vmatpush1.msra.mxu0 0.0
    %998 = vmatprep.subr.mxu0 0.0
    %999 = vmatpush1.msra.mxu0 0.0
    %1000 = vmatprep.subr.mxu0 0.0
    %1001 = vmatpush1.msra.mxu0 0.0
    %1002 = vmatprep.subr.mxu0 0.0
    %1003 = vmatpush1.msra.mxu0 0.0
    %1004 = vmatprep.subr.mxu0 0.0
    %1005 = vmatpush1.msra.mxu0 0.0
    %1006 = vmatprep.subr.mxu0 0.0
    %1007 = vmatpush1.msra.mxu0 0.0
    %1008 = vmatprep.subr.mxu0 0.0
    %1009 = vmatpush1.msra.mxu0 0.0
    %1010 = vmatprep.subr.mxu0 0.0
    %1011 = vmatpush1.msra.mxu0 0.0
    %1012 = vmatprep.subr.mxu0 0.0
    %1013 = vmatpush1.msra.mxu0 0.0
    %1014 = vmatprep.subr.mxu0 0.0
    %1015 = vmatpush1.msra.mxu0 0.0
    %1016 = vmatprep.subr.mxu0 0.0
    %1017 = vmatpush1.msra.mxu0 0.0
    %1018 = vmatprep.mubr.f32.mxu0 0.0
    %1019 = vmatmul.mubr.f32.gmra.mrb[0].mxu0 %v952
    %v1020 = vpop.f32.mrb[0].mxu0
    %v1021 = vadd.f32 0.0, %v1020
    %v1022 = vpop.f32.mrb[0].mxu0
    %1023 = vdwg.mxu0
    %v1024 = vadd.f32 %v950, %v1021
    %v1025 = vxor.u32 %v1024, 2147483648
    %v1026 = vmul.f32 %v1025, 1.442695
    %v1027 = vpow.pop %v1026
    %v1028 = vadd.f32 %v1027, 1.0
    %v1029 = vrcp.pop %v1028
    %v1030 = vmul.f32 1.0, %v1029
    %v1031 = vld [vmem:[#allocation3 + $0x8] sm:$0xff]
    %1032 = vmatprep.subr.mxu0 0.0
    %1033 = vmatpush1.msra.mxu0 %v620
    %1034 = vmatprep.subr.mxu0 0.0
    %1035 = vmatpush1.msra.mxu0 %v621
    %1036 = vmatprep.subr.mxu0 0.0
    %1037 = vmatpush1.msra.mxu0 %v622
    %1038 = vmatprep.subr.mxu0 0.0
    %1039 = vmatpush1.msra.mxu0 %v623
    %1040 = vmatprep.subr.mxu0 0.0
    %1041 = vmatpush1.msra.mxu0 0.0
    %1042 = vmatprep.subr.mxu0 0.0
    %1043 = vmatpush1.msra.mxu0 0.0
    %1044 = vmatprep.subr.mxu0 0.0
    %1045 = vmatpush1.msra.mxu0 0.0
    %1046 = vmatprep.subr.mxu0 0.0
    %1047 = vmatpush1.msra.mxu0 0.0
    %1048 = vmatprep.subr.mxu0 0.0
    %1049 = vmatpush1.msra.mxu0 0.0
    %1050 = vmatprep.subr.mxu0 0.0
    %1051 = vmatpush1.msra.mxu0 0.0
    %1052 = vmatprep.subr.mxu0 0.0
    %1053 = vmatpush1.msra.mxu0 0.0
    %1054 = vmatprep.subr.mxu0 0.0
    %1055 = vmatpush1.msra.mxu0 0.0
    %1056 = vmatprep.subr.mxu0 0.0
    %1057 = vmatpush1.msra.mxu0 0.0
    %1058 = vmatprep.subr.mxu0 0.0
    %1059 = vmatpush1.msra.mxu0 0.0
    %1060 = vmatprep.subr.mxu0 0.0
    %1061 = vmatpush1.msra.mxu0 0.0
    %1062 = vmatprep.subr.mxu0 0.0
    %1063 = vmatpush1.msra.mxu0 0.0
    %1064 = vmatprep.subr.mxu0 0.0
    %1065 = vmatpush1.msra.mxu0 0.0
    %1066 = vmatprep.subr.mxu0 0.0
    %1067 = vmatpush1.msra.mxu0 0.0
    %1068 = vmatprep.subr.mxu0 0.0
    %1069 = vmatpush1.msra.mxu0 0.0
    %1070 = vmatprep.subr.mxu0 0.0
    %1071 = vmatpush1.msra.mxu0 0.0
    %1072 = vmatprep.subr.mxu0 0.0
    %1073 = vmatpush1.msra.mxu0 0.0
    %1074 = vmatprep.subr.mxu0 0.0
    %1075 = vmatpush1.msra.mxu0 0.0
    %1076 = vmatprep.subr.mxu0 0.0
    %1077 = vmatpush1.msra.mxu0 0.0
    %1078 = vmatprep.subr.mxu0 0.0
    %1079 = vmatpush1.msra.mxu0 0.0
    %1080 = vmatprep.subr.mxu0 0.0
    %1081 = vmatpush1.msra.mxu0 0.0
    %1082 = vmatprep.subr.mxu0 0.0
    %1083 = vmatpush1.msra.mxu0 0.0
    %1084 = vmatprep.subr.mxu0 0.0
    %1085 = vmatpush1.msra.mxu0 0.0
    %1086 = vmatprep.subr.mxu0 0.0
    %1087 = vmatpush1.msra.mxu0 0.0
    %1088 = vmatprep.subr.mxu0 0.0
    %1089 = vmatpush1.msra.mxu0 0.0
    %1090 = vmatprep.subr.mxu0 0.0
    %1091 = vmatpush1.msra.mxu0 0.0
    %1092 = vmatprep.subr.mxu0 0.0
    %1093 = vmatpush1.msra.mxu0 0.0
    %1094 = vmatprep.subr.mxu0 0.0
    %1095 = vmatpush1.msra.mxu0 0.0
    %1096 = vmatprep.mubr.f32.mxu0 0.0
    %1097 = vmatmul.mubr.f32.gmra.mrb[0].mxu0 %v952
    %v1098 = vpop.f32.mrb[0].mxu0
    %v1099 = vadd.f32 0.0, %v1098
    %v1100 = vpop.f32.mrb[0].mxu0
    %1101 = vdwg.mxu0
    %v1102 = vadd.f32 %v1031, %v1099
    %v1103 = vxor.u32 %v1102, 2147483648
    %v1104 = vmul.f32 %v1103, 1.442695
    %v1105 = vpow.pop %v1104
    %v1106 = vadd.f32 %v1105, 1.0
    %v1107 = vrcp.pop %v1106
    %v1108 = vmul.f32 1.0, %v1107
    %v1109 = vld [vmem:[#allocation4 + $0x8] sm:$0xff]
    %1110 = vmatprep.subr.mxu0 0.0
    %1111 = vmatpush1.msra.mxu0 %v625
    %1112 = vmatprep.subr.mxu0 0.0
    %1113 = vmatpush1.msra.mxu0 %v626
    %1114 = vmatprep.subr.mxu0 0.0
    %1115 = vmatpush1.msra.mxu0 %v627
    %1116 = vmatprep.subr.mxu0 0.0
    %1117 = vmatpush1.msra.mxu0 %v628
    %1118 = vmatprep.subr.mxu0 0.0
    %1119 = vmatpush1.msra.mxu0 0.0
    %1120 = vmatprep.subr.mxu0 0.0
    %1121 = vmatpush1.msra.mxu0 0.0
    %1122 = vmatprep.subr.mxu0 0.0
    %1123 = vmatpush1.msra.mxu0 0.0
    %1124 = vmatprep.subr.mxu0 0.0
    %1125 = vmatpush1.msra.mxu0 0.0
    %1126 = vmatprep.subr.mxu0 0.0
    %1127 = vmatpush1.msra.mxu0 0.0
    %1128 = vmatprep.subr.mxu0 0.0
    %1129 = vmatpush1.msra.mxu0 0.0
    %1130 = vmatprep.subr.mxu0 0.0
    %1131 = vmatpush1.msra.mxu0 0.0
    %1132 = vmatprep.subr.mxu0 0.0
    %1133 = vmatpush1.msra.mxu0 0.0
    %1134 = vmatprep.subr.mxu0 0.0
    %1135 = vmatpush1.msra.mxu0 0.0
    %1136 = vmatprep.subr.mxu0 0.0
    %1137 = vmatpush1.msra.mxu0 0.0
    %1138 = vmatprep.subr.mxu0 0.0
    %1139 = vmatpush1.msra.mxu0 0.0
    %1140 = vmatprep.subr.mxu0 0.0
    %1141 = vmatpush1.msra.mxu0 0.0
    %1142 = vmatprep.subr.mxu0 0.0
    %1143 = vmatpush1.msra.mxu0 0.0
    %1144 = vmatprep.subr.mxu0 0.0
    %1145 = vmatpush1.msra.mxu0 0.0
    %1146 = vmatprep.subr.mxu0 0.0
    %1147 = vmatpush1.msra.mxu0 0.0
    %1148 = vmatprep.subr.mxu0 0.0
    %1149 = vmatpush1.msra.mxu0 0.0
    %1150 = vmatprep.subr.mxu0 0.0
    %1151 = vmatpush1.msra.mxu0 0.0
    %1152 = vmatprep.subr.mxu0 0.0
    %1153 = vmatpush1.msra.mxu0 0.0
    %1154 = vmatprep.subr.mxu0 0.0
    %1155 = vmatpush1.msra.mxu0 0.0
    %1156 = vmatprep.subr.mxu0 0.0
    %1157 = vmatpush1.msra.mxu0 0.0
    %1158 = vmatprep.subr.mxu0 0.0
    %1159 = vmatpush1.msra.mxu0 0.0
    %1160 = vmatprep.subr.mxu0 0.0
    %1161 = vmatpush1.msra.mxu0 0.0
    %1162 = vmatprep.subr.mxu0 0.0
    %1163 = vmatpush1.msra.mxu0 0.0
    %1164 = vmatprep.subr.mxu0 0.0
    %1165 = vmatpush1.msra.mxu0 0.0
    %1166 = vmatprep.subr.mxu0 0.0
    %1167 = vmatpush1.msra.mxu0 0.0
    %1168 = vmatprep.subr.mxu0 0.0
    %1169 = vmatpush1.msra.mxu0 0.0
    %1170 = vmatprep.subr.mxu0 0.0
    %1171 = vmatpush1.msra.mxu0 0.0
    %1172 = vmatprep.subr.mxu0 0.0
    %1173 = vmatpush1.msra.mxu0 0.0
    %1174 = vmatprep.mubr.f32.mxu0 0.0
    %1175 = vmatmul.mubr.f32.gmra.mrb[0].mxu0 %v952
    %v1176 = vpop.f32.mrb[0].mxu0
    %v1177 = vadd.f32 0.0, %v1176
    %v1178 = vpop.f32.mrb[0].mxu0
    %1179 = vdwg.mxu0
    %v1180 = vadd.f32 %v1109, %v1177
    %v1181 = vtanh.pop %v1180
    %v1182 = vld [vmem:[#allocation5 + $0x8] sm:$0xff]
    %1183 = vmatprep.subr.mxu0 0.0
    %1184 = vmatpush1.msra.mxu0 %v630
    %1185 = vmatprep.subr.mxu0 0.0
    %1186 = vmatpush1.msra.mxu0 %v631
    %1187 = vmatprep.subr.mxu0 0.0
    %1188 = vmatpush1.msra.mxu0 %v632
    %1189 = vmatprep.subr.mxu0 0.0
    %1190 = vmatpush1.msra.mxu0 %v633
    %1191 = vmatprep.subr.mxu0 0.0
    %1192 = vmatpush1.msra.mxu0 0.0
    %1193 = vmatprep.subr.mxu0 0.0
    %1194 = vmatpush1.msra.mxu0 0.0
    %1195 = vmatprep.subr.mxu0 0.0
    %1196 = vmatpush1.msra.mxu0 0.0
    %1197 = vmatprep.subr.mxu0 0.0
    %1198 = vmatpush1.msra.mxu0 0.0
    %1199 = vmatprep.subr.mxu0 0.0
    %1200 = vmatpush1.msra.mxu0 0.0
    %1201 = vmatprep.subr.mxu0 0.0
    %1202 = vmatpush1.msra.mxu0 0.0
    %1203 = vmatprep.subr.mxu0 0.0
    %1204 = vmatpush1.msra.mxu0 0.0
    %1205 = vmatprep.subr.mxu0 0.0
    %1206 = vmatpush1.msra.mxu0 0.0
    %1207 = vmatprep.subr.mxu0 0.0
    %1208 = vmatpush1.msra.mxu0 0.0
    %1209 = vmatprep.subr.mxu0 0.0
    %1210 = vmatpush1.msra.mxu0 0.0
    %1211 = vmatprep.subr.mxu0 0.0
    %1212 = vmatpush1.msra.mxu0 0.0
    %1213 = vmatprep.subr.mxu0 0.0
    %1214 = vmatpush1.msra.mxu0 0.0
    %1215 = vmatprep.subr.mxu0 0.0
    %1216 = vmatpush1.msra.mxu0 0.0
    %1217 = vmatprep.subr.mxu0 0.0
    %1218 = vmatpush1.msra.mxu0 0.0
    %1219 = vmatprep.subr.mxu0 0.0
    %1220 = vmatpush1.msra.mxu0 0.0
    %1221 = vmatprep.subr.mxu0 0.0
    %1222 = vmatpush1.msra.mxu0 0.0
    %1223 = vmatprep.subr.mxu0 0.0
    %1224 = vmatpush1.msra.mxu0 0.0
    %1225 = vmatprep.subr.mxu0 0.0
    %1226 = vmatpush1.msra.mxu0 0.0
    %1227 = vmatprep.subr.mxu0 0.0
    %1228 = vmatpush1.msra.mxu0 0.0
    %1229 = vmatprep.subr.mxu0 0.0
    %1230 = vmatpush1.msra.mxu0 0.0
    %1231 = vmatprep.subr.mxu0 0.0
    %1232 = vmatpush1.msra.mxu0 0.0
    %1233 = vmatprep.subr.mxu0 0.0
    %1234 = vmatpush1.msra.mxu0 0.0
    %1235 = vmatprep.subr.mxu0 0.0
    %1236 = vmatpush1.msra.mxu0 0.0
    %1237 = vmatprep.subr.mxu0 0.0
    %1238 = vmatpush1.msra.mxu0 0.0
    %1239 = vmatprep.subr.mxu0 0.0
    %1240 = vmatpush1.msra.mxu0 0.0
    %1241 = vmatprep.subr.mxu0 0.0
    %1242 = vmatpush1.msra.mxu0 0.0
    %1243 = vmatprep.subr.mxu0 0.0
    %1244 = vmatpush1.msra.mxu0 0.0
    %1245 = vmatprep.subr.mxu0 0.0
    %1246 = vmatpush1.msra.mxu0 0.0
    %1247 = vmatprep.mubr.f32.mxu0 0.0
    %1248 = vmatmul.mubr.f32.gmra.mrb[0].mxu0 %v952
    %v1249 = vpop.f32.mrb[0].mxu0
    %v1250 = vadd.f32 0.0, %v1249
    %v1251 = vpop.f32.mrb[0].mxu0
    %1252 = vdwg.mxu0
    %v1253 = vadd.f32 %v1182, %v1250
    %v1254 = vxor.u32 %v1253, 2147483648
    %v1255 = vmul.f32 %v1254, 1.442695
    %v1256 = vpow.pop %v1255
    %v1257 = vadd.f32 %v1256, 1.0
    %v1258 = vrcp.pop %v1257
    %v1259 = vmul.f32 1.0, %v1258
    %v1260 = vmul.f32 %v1108, %v946
    %v1261 = vmul.f32 %v1030, %v1181
    %v1262 = vadd.f32 %v1260, %v1261
    %v1263 = vtanh.pop %v1262
    %v1264 = vmul.f32 %v1259, %v1263
    %1265 = vst.msk [vmem:[#allocation6 + $0x8] sm:$0xff] %vm234, %v1264
    %v1266 = vld [vmem:[#allocation2 + $0x10] sm:$0xff]
    %v1268 = vsel %vm234, %v1264, 0
    %1270 = vmatprep.subr.mxu0 0.0
    %1271 = vmatpush1.msra.mxu0 %v615
    %1272 = vmatprep.subr.mxu0 0.0
    %1273 = vmatpush1.msra.mxu0 %v616
    %1274 = vmatprep.subr.mxu0 0.0
    %1275 = vmatpush1.msra.mxu0 %v617
    %1276 = vmatprep.subr.mxu0 0.0
    %1277 = vmatpush1.msra.mxu0 %v618
    %1278 = vmatprep.subr.mxu0 0.0
    %1279 = vmatpush1.msra.mxu0 0.0
    %1280 = vmatprep.subr.mxu0 0.0
    %1281 = vmatpush1.msra.mxu0 0.0
    %1282 = vmatprep.subr.mxu0 0.0
    %1283 = vmatpush1.msra.mxu0 0.0
    %1284 = vmatprep.subr.mxu0 0.0
    %1285 = vmatpush1.msra.mxu0 0.0
    %1286 = vmatprep.subr.mxu0 0.0
    %1287 = vmatpush1.msra.mxu0 0.0
    %1288 = vmatprep.subr.mxu0 0.0
    %1289 = vmatpush1.msra.mxu0 0.0
    %1290 = vmatprep.subr.mxu0 0.0
    %1291 = vmatpush1.msra.mxu0 0.0
    %1292 = vmatprep.subr.mxu0 0.0
    %1293 = vmatpush1.msra.mxu0 0.0
    %1294 = vmatprep.subr.mxu0 0.0
    %1295 = vmatpush1.msra.mxu0 0.0
    %1296 = vmatprep.subr.mxu0 0.0
    %1297 = vmatpush1.msra.mxu0 0.0
    %1298 = vmatprep.subr.mxu0 0.0
    %1299 = vmatpush1.msra.mxu0 0.0
    %1300 = vmatprep.subr.mxu0 0.0
    %1301 = vmatpush1.msra.mxu0 0.0
    %1302 = vmatprep.subr.mxu0 0.0
    %1303 = vmatpush1.msra.mxu0 0.0
    %1304 = vmatprep.subr.mxu0 0.0
    %1305 = vmatpush1.msra.mxu0 0.0
    %1306 = vmatprep.subr.mxu0 0.0
    %1307 = vmatpush1.msra.mxu0 0.0
    %1308 = vmatprep.subr.mxu0 0.0
    %1309 = vmatpush1.msra.mxu0 0.0
    %1310 = vmatprep.subr.mxu0 0.0
    %1311 = vmatpush1.msra.mxu0 0.0
    %1312 = vmatprep.subr.mxu0 0.0
    %1313 = vmatpush1.msra.mxu0 0.0
    %1314 = vmatprep.subr.mxu0 0.0
    %1315 = vmatpush1.msra.mxu0 0.0
    %1316 = vmatprep.subr.mxu0 0.0
    %1317 = vmatpush1.msra.mxu0 0.0
    %1318 = vmatprep.subr.mxu0 0.0
    %1319 = vmatpush1.msra.mxu0 0.0
    %1320 = vmatprep.subr.mxu0 0.0
    %1321 = vmatpush1.msra.mxu0 0.0
    %1322 = vmatprep.subr.mxu0 0.0
    %1323 = vmatpush1.msra.mxu0 0.0
    %1324 = vmatprep.subr.mxu0 0.0
    %1325 = vmatpush1.msra.mxu0 0.0
    %1326 = vmatprep.subr.mxu0 0.0
    %1327 = vmatpush1.msra.mxu0 0.0
    %1328 = vmatprep.subr.mxu0 0.0
    %1329 = vmatpush1.msra.mxu0 0.0
    %1330 = vmatprep.subr.mxu0 0.0
    %1331 = vmatpush1.msra.mxu0 0.0
    %1332 = vmatprep.subr.mxu0 0.0
    %1333 = vmatpush1.msra.mxu0 0.0
    %1334 = vmatprep.mubr.f32.mxu0 0.0
    %1335 = vmatmul.mubr.f32.gmra.mrb[0].mxu0 %v1268
    %v1336 = vpop.f32.mrb[0].mxu0
    %v1337 = vadd.f32 0.0, %v1336
    %v1338 = vpop.f32.mrb[0].mxu0
    %1339 = vdwg.mxu0
    %v1340 = vadd.f32 %v1266, %v1337
    %v1341 = vxor.u32 %v1340, 2147483648
    %v1342 = vmul.f32 %v1341, 1.442695
    %v1343 = vpow.pop %v1342
    %v1344 = vadd.f32 %v1343, 1.0
    %v1345 = vrcp.pop %v1344
    %v1346 = vmul.f32 1.0, %v1345
    %v1347 = vld [vmem:[#allocation3 + $0x10] sm:$0xff]
    %1348 = vmatprep.subr.mxu0 0.0
    %1349 = vmatpush1.msra.mxu0 %v620
    %1350 = vmatprep.subr.mxu0 0.0
    %1351 = vmatpush1.msra.mxu0 %v621
    %1352 = vmatprep.subr.mxu0 0.0
    %1353 = vmatpush1.msra.mxu0 %v622
    %1354 = vmatprep.subr.mxu0 0.0
    %1355 = vmatpush1.msra.mxu0 %v623
    %1356 = vmatprep.subr.mxu0 0.0
    %1357 = vmatpush1.msra.mxu0 0.0
    %1358 = vmatprep.subr.mxu0 0.0
    %1359 = vmatpush1.msra.mxu0 0.0
    %1360 = vmatprep.subr.mxu0 0.0
    %1361 = vmatpush1.msra.mxu0 0.0
    %1362 = vmatprep.subr.mxu0 0.0
    %1363 = vmatpush1.msra.mxu0 0.0
    %1364 = vmatprep.subr.mxu0 0.0
    %1365 = vmatpush1.msra.mxu0 0.0
    %1366 = vmatprep.subr.mxu0 0.0
    %1367 = vmatpush1.msra.mxu0 0.0
    %1368 = vmatprep.subr.mxu0 0.0
    %1369 = vmatpush1.msra.mxu0 0.0
    %1370 = vmatprep.subr.mxu0 0.0
    %1371 = vmatpush1.msra.mxu0 0.0
    %1372 = vmatprep.subr.mxu0 0.0
    %1373 = vmatpush1.msra.mxu0 0.0
    %1374 = vmatprep.subr.mxu0 0.0
    %1375 = vmatpush1.msra.mxu0 0.0
    %1376 = vmatprep.subr.mxu0 0.0
    %1377 = vmatpush1.msra.mxu0 0.0
    %1378 = vmatprep.subr.mxu0 0.0
    %1379 = vmatpush1.msra.mxu0 0.0
    %1380 = vmatprep.subr.mxu0 0.0
    %1381 = vmatpush1.msra.mxu0 0.0
    %1382 = vmatprep.subr.mxu0 0.0
    %1383 = vmatpush1.msra.mxu0 0.0
    %1384 = vmatprep.subr.mxu0 0.0
    %1385 = vmatpush1.msra.mxu0 0.0
    %1386 = vmatprep.subr.mxu0 0.0
    %1387 = vmatpush1.msra.mxu0 0.0
    %1388 = vmatprep.subr.mxu0 0.0
    %1389 = vmatpush1.msra.mxu0 0.0
    %1390 = vmatprep.subr.mxu0 0.0
    %1391 = vmatpush1.msra.mxu0 0.0
    %1392 = vmatprep.subr.mxu0 0.0
    %1393 = vmatpush1.msra.mxu0 0.0
    %1394 = vmatprep.subr.mxu0 0.0
    %1395 = vmatpush1.msra.mxu0 0.0
    %1396 = vmatprep.subr.mxu0 0.0
    %1397 = vmatpush1.msra.mxu0 0.0
    %1398 = vmatprep.subr.mxu0 0.0
    %1399 = vmatpush1.msra.mxu0 0.0
    %1400 = vmatprep.subr.mxu0 0.0
    %1401 = vmatpush1.msra.mxu0 0.0
    %1402 = vmatprep.subr.mxu0 0.0
    %1403 = vmatpush1.msra.mxu0 0.0
    %1404 = vmatprep.subr.mxu0 0.0
    %1405 = vmatpush1.msra.mxu0 0.0
    %1406 = vmatprep.subr.mxu0 0.0
    %1407 = vmatpush1.msra.mxu0 0.0
    %1408 = vmatprep.subr.mxu0 0.0
    %1409 = vmatpush1.msra.mxu0 0.0
    %1410 = vmatprep.subr.mxu0 0.0
    %1411 = vmatpush1.msra.mxu0 0.0
    %1412 = vmatprep.mubr.f32.mxu0 0.0
    %1413 = vmatmul.mubr.f32.gmra.mrb[0].mxu0 %v1268
    %v1414 = vpop.f32.mrb[0].mxu0
    %v1415 = vadd.f32 0.0, %v1414
    %v1416 = vpop.f32.mrb[0].mxu0
    %1417 = vdwg.mxu0
    %v1418 = vadd.f32 %v1347, %v1415
    %v1419 = vxor.u32 %v1418, 2147483648
    %v1420 = vmul.f32 %v1419, 1.442695
    %v1421 = vpow.pop %v1420
    %v1422 = vadd.f32 %v1421, 1.0
    %v1423 = vrcp.pop %v1422
    %v1424 = vmul.f32 1.0, %v1423
    %v1425 = vld [vmem:[#allocation4 + $0x10] sm:$0xff]
    %1426 = vmatprep.subr.mxu0 0.0
    %1427 = vmatpush1.msra.mxu0 %v625
    %1428 = vmatprep.subr.mxu0 0.0
    %1429 = vmatpush1.msra.mxu0 %v626
    %1430 = vmatprep.subr.mxu0 0.0
    %1431 = vmatpush1.msra.mxu0 %v627
    %1432 = vmatprep.subr.mxu0 0.0
    %1433 = vmatpush1.msra.mxu0 %v628
    %1434 = vmatprep.subr.mxu0 0.0
    %1435 = vmatpush1.msra.mxu0 0.0
    %1436 = vmatprep.subr.mxu0 0.0
    %1437 = vmatpush1.msra.mxu0 0.0
    %1438 = vmatprep.subr.mxu0 0.0
    %1439 = vmatpush1.msra.mxu0 0.0
    %1440 = vmatprep.subr.mxu0 0.0
    %1441 = vmatpush1.msra.mxu0 0.0
    %1442 = vmatprep.subr.mxu0 0.0
    %1443 = vmatpush1.msra.mxu0 0.0
    %1444 = vmatprep.subr.mxu0 0.0
    %1445 = vmatpush1.msra.mxu0 0.0
    %1446 = vmatprep.subr.mxu0 0.0
    %1447 = vmatpush1.msra.mxu0 0.0
    %1448 = vmatprep.subr.mxu0 0.0
    %1449 = vmatpush1.msra.mxu0 0.0
    %1450 = vmatprep.subr.mxu0 0.0
    %1451 = vmatpush1.msra.mxu0 0.0
    %1452 = vmatprep.subr.mxu0 0.0
    %1453 = vmatpush1.msra.mxu0 0.0
    %1454 = vmatprep.subr.mxu0 0.0
    %1455 = vmatpush1.msra.mxu0 0.0
    %1456 = vmatprep.subr.mxu0 0.0
    %1457 = vmatpush1.msra.mxu0 0.0
    %1458 = vmatprep.subr.mxu0 0.0
    %1459 = vmatpush1.msra.mxu0 0.0
    %1460 = vmatprep.subr.mxu0 0.0
    %1461 = vmatpush1.msra.mxu0 0.0
    %1462 = vmatprep.subr.mxu0 0.0
    %1463 = vmatpush1.msra.mxu0 0.0
    %1464 = vmatprep.subr.mxu0 0.0
    %1465 = vmatpush1.msra.mxu0 0.0
    %1466 = vmatprep.subr.mxu0 0.0
    %1467 = vmatpush1.msra.mxu0 0.0
    %1468 = vmatprep.subr.mxu0 0.0
    %1469 = vmatpush1.msra.mxu0 0.0
    %1470 = vmatprep.subr.mxu0 0.0
    %1471 = vmatpush1.msra.mxu0 0.0
    %1472 = vmatprep.subr.mxu0 0.0
    %1473 = vmatpush1.msra.mxu0 0.0
    %1474 = vmatprep.subr.mxu0 0.0
    %1475 = vmatpush1.msra.mxu0 0.0
    %1476 = vmatprep.subr.mxu0 0.0
    %1477 = vmatpush1.msra.mxu0 0.0
    %1478 = vmatprep.subr.mxu0 0.0
    %1479 = vmatpush1.msra.mxu0 0.0
    %1480 = vmatprep.subr.mxu0 0.0
    %1481 = vmatpush1.msra.mxu0 0.0
    %1482 = vmatprep.subr.mxu0 0.0
    %1483 = vmatpush1.msra.mxu0 0.0
    %1484 = vmatprep.subr.mxu0 0.0
    %1485 = vmatpush1.msra.mxu0 0.0
    %1486 = vmatprep.subr.mxu0 0.0
    %1487 = vmatpush1.msra.mxu0 0.0
    %1488 = vmatprep.subr.mxu0 0.0
    %1489 = vmatpush1.msra.mxu0 0.0
    %1490 = vmatprep.mubr.f32.mxu0 0.0
    %1491 = vmatmul.mubr.f32.gmra.mrb[0].mxu0 %v1268
    %v1492 = vpop.f32.mrb[0].mxu0
    %v1493 = vadd.f32 0.0, %v1492
    %v1494 = vpop.f32.mrb[0].mxu0
    %1495 = vdwg.mxu0
    %v1496 = vadd.f32 %v1425, %v1493
    %v1497 = vtanh.pop %v1496
    %v1498 = vld [vmem:[#allocation5 + $0x10] sm:$0xff]
    %1499 = vmatprep.subr.mxu0 0.0
    %1500 = vmatpush1.msra.mxu0 %v630
    %1501 = vmatprep.subr.mxu0 0.0
    %1502 = vmatpush1.msra.mxu0 %v631
    %1503 = vmatprep.subr.mxu0 0.0
    %1504 = vmatpush1.msra.mxu0 %v632
    %1505 = vmatprep.subr.mxu0 0.0
    %1506 = vmatpush1.msra.mxu0 %v633
    %1507 = vmatprep.subr.mxu0 0.0
    %1508 = vmatpush1.msra.mxu0 0.0
    %1509 = vmatprep.subr.mxu0 0.0
    %1510 = vmatpush1.msra.mxu0 0.0
    %1511 = vmatprep.subr.mxu0 0.0
    %1512 = vmatpush1.msra.mxu0 0.0
    %1513 = vmatprep.subr.mxu0 0.0
    %1514 = vmatpush1.msra.mxu0 0.0
    %1515 = vmatprep.subr.mxu0 0.0
    %1516 = vmatpush1.msra.mxu0 0.0
    %1517 = vmatprep.subr.mxu0 0.0
    %1518 = vmatpush1.msra.mxu0 0.0
    %1519 = vmatprep.subr.mxu0 0.0
    %1520 = vmatpush1.msra.mxu0 0.0
    %1521 = vmatprep.subr.mxu0 0.0
    %1522 = vmatpush1.msra.mxu0 0.0
    %1523 = vmatprep.subr.mxu0 0.0
    %1524 = vmatpush1.msra.mxu0 0.0
    %1525 = vmatprep.subr.mxu0 0.0
    %1526 = vmatpush1.msra.mxu0 0.0
    %1527 = vmatprep.subr.mxu0 0.0
    %1528 = vmatpush1.msra.mxu0 0.0
    %1529 = vmatprep.subr.mxu0 0.0
    %1530 = vmatpush1.msra.mxu0 0.0
    %1531 = vmatprep.subr.mxu0 0.0
    %1532 = vmatpush1.msra.mxu0 0.0
    %1533 = vmatprep.subr.mxu0 0.0
    %1534 = vmatpush1.msra.mxu0 0.0
    %1535 = vmatprep.subr.mxu0 0.0
    %1536 = vmatpush1.msra.mxu0 0.0
    %1537 = vmatprep.subr.mxu0 0.0
    %1538 = vmatpush1.msra.mxu0 0.0
    %1539 = vmatprep.subr.mxu0 0.0
    %1540 = vmatpush1.msra.mxu0 0.0
    %1541 = vmatprep.subr.mxu0 0.0
    %1542 = vmatpush1.msra.mxu0 0.0
    %1543 = vmatprep.subr.mxu0 0.0
    %1544 = vmatpush1.msra.mxu0 0.0
    %1545 = vmatprep.subr.mxu0 0.0
    %1546 = vmatpush1.msra.mxu0 0.0
    %1547 = vmatprep.subr.mxu0 0.0
    %1548 = vmatpush1.msra.mxu0 0.0
    %1549 = vmatprep.subr.mxu0 0.0
    %1550 = vmatpush1.msra.mxu0 0.0
    %1551 = vmatprep.subr.mxu0 0.0
    %1552 = vmatpush1.msra.mxu0 0.0
    %1553 = vmatprep.subr.mxu0 0.0
    %1554 = vmatpush1.msra.mxu0 0.0
    %1555 = vmatprep.subr.mxu0 0.0
    %1556 = vmatpush1.msra.mxu0 0.0
    %1557 = vmatprep.subr.mxu0 0.0
    %1558 = vmatpush1.msra.mxu0 0.0
    %1559 = vmatprep.subr.mxu0 0.0
    %1560 = vmatpush1.msra.mxu0 0.0
    %1561 = vmatprep.subr.mxu0 0.0
    %1562 = vmatpush1.msra.mxu0 0.0
    %1563 = vmatprep.mubr.f32.mxu0 0.0
    %1564 = vmatmul.mubr.f32.gmra.mrb[0].mxu0 %v1268
    %v1565 = vpop.f32.mrb[0].mxu0
    %v1566 = vadd.f32 0.0, %v1565
    %v1567 = vpop.f32.mrb[0].mxu0
    %1568 = vdwg.mxu0
    %v1569 = vadd.f32 %v1498, %v1566
    %v1570 = vxor.u32 %v1569, 2147483648
    %v1571 = vmul.f32 %v1570, 1.442695
    %v1572 = vpow.pop %v1571
    %v1573 = vadd.f32 %v1572, 1.0
    %v1574 = vrcp.pop %v1573
    %v1575 = vmul.f32 1.0, %v1574
    %v1576 = vmul.f32 %v1424, %v1262
    %v1577 = vmul.f32 %v1346, %v1497
    %v1578 = vadd.f32 %v1576, %v1577
    %v1579 = vtanh.pop %v1578
    %v1580 = vmul.f32 %v1575, %v1579
    %1581 = vst.msk [vmem:[#allocation6 + $0x10] sm:$0xff] %vm234, %v1580
    %v1582 = vld [vmem:[#allocation2 + $0x18] sm:$0xff]
    %v1584 = vsel %vm234, %v1580, 0
    %1586 = vmatprep.subr.mxu0 0.0
    %1587 = vmatpush1.msra.mxu0 %v615
    %1588 = vmatprep.subr.mxu0 0.0
    %1589 = vmatpush1.msra.mxu0 %v616
    %1590 = vmatprep.subr.mxu0 0.0
    %1591 = vmatpush1.msra.mxu0 %v617
    %1592 = vmatprep.subr.mxu0 0.0
    %1593 = vmatpush1.msra.mxu0 %v618
    %1594 = vmatprep.subr.mxu0 0.0
    %1595 = vmatpush1.msra.mxu0 0.0
    %1596 = vmatprep.subr.mxu0 0.0
    %1597 = vmatpush1.msra.mxu0 0.0
    %1598 = vmatprep.subr.mxu0 0.0
    %1599 = vmatpush1.msra.mxu0 0.0
    %1600 = vmatprep.subr.mxu0 0.0
    %1601 = vmatpush1.msra.mxu0 0.0
    %1602 = vmatprep.subr.mxu0 0.0
    %1603 = vmatpush1.msra.mxu0 0.0
    %1604 = vmatprep.subr.mxu0 0.0
    %1605 = vmatpush1.msra.mxu0 0.0
    %1606 = vmatprep.subr.mxu0 0.0
    %1607 = vmatpush1.msra.mxu0 0.0
    %1608 = vmatprep.subr.mxu0 0.0
    %1609 = vmatpush1.msra.mxu0 0.0
    %1610 = vmatprep.subr.mxu0 0.0
    %1611 = vmatpush1.msra.mxu0 0.0
    %1612 = vmatprep.subr.mxu0 0.0
    %1613 = vmatpush1.msra.mxu0 0.0
    %1614 = vmatprep.subr.mxu0 0.0
    %1615 = vmatpush1.msra.mxu0 0.0
    %1616 = vmatprep.subr.mxu0 0.0
    %1617 = vmatpush1.msra.mxu0 0.0
    %1618 = vmatprep.subr.mxu0 0.0
    %1619 = vmatpush1.msra.mxu0 0.0
    %1620 = vmatprep.subr.mxu0 0.0
    %1621 = vmatpush1.msra.mxu0 0.0
    %1622 = vmatprep.subr.mxu0 0.0
    %1623 = vmatpush1.msra.mxu0 0.0
    %1624 = vmatprep.subr.mxu0 0.0
    %1625 = vmatpush1.msra.mxu0 0.0
    %1626 = vmatprep.subr.mxu0 0.0
    %1627 = vmatpush1.msra.mxu0 0.0
    %1628 = vmatprep.subr.mxu0 0.0
    %1629 = vmatpush1.msra.mxu0 0.0
    %1630 = vmatprep.subr.mxu0 0.0
    %1631 = vmatpush1.msra.mxu0 0.0
    %1632 = vmatprep.subr.mxu0 0.0
    %1633 = vmatpush1.msra.mxu0 0.0
    %1634 = vmatprep.subr.mxu0 0.0
    %1635 = vmatpush1.msra.mxu0 0.0
    %1636 = vmatprep.subr.mxu0 0.0
    %1637 = vmatpush1.msra.mxu0 0.0
    %1638 = vmatprep.subr.mxu0 0.0
    %1639 = vmatpush1.msra.mxu0 0.0
    %1640 = vmatprep.subr.mxu0 0.0
    %1641 = vmatpush1.msra.mxu0 0.0
    %1642 = vmatprep.subr.mxu0 0.0
    %1643 = vmatpush1.msra.mxu0 0.0
    %1644 = vmatprep.subr.mxu0 0.0
    %1645 = vmatpush1.msra.mxu0 0.0
    %1646 = vmatprep.subr.mxu0 0.0
    %1647 = vmatpush1.msra.mxu0 0.0
    %1648 = vmatprep.subr.mxu0 0.0
    %1649 = vmatpush1.msra.mxu0 0.0
    %1650 = vmatprep.mubr.f32.mxu0 0.0
    %1651 = vmatmul.mubr.f32.gmra.mrb[0].mxu0 %v1584
    %v1652 = vpop.f32.mrb[0].mxu0
    %v1653 = vadd.f32 0.0, %v1652
    %v1654 = vpop.f32.mrb[0].mxu0
    %1655 = vdwg.mxu0
    %v1656 = vadd.f32 %v1582, %v1653
    %v1657 = vxor.u32 %v1656, 2147483648
    %v1658 = vmul.f32 %v1657, 1.442695
    %v1659 = vpow.pop %v1658
    %v1660 = vadd.f32 %v1659, 1.0
    %v1661 = vrcp.pop %v1660
    %v1662 = vmul.f32 1.0, %v1661
    %v1663 = vld [vmem:[#allocation3 + $0x18] sm:$0xff]
    %1664 = vmatprep.subr.mxu0 0.0
    %1665 = vmatpush1.msra.mxu0 %v620
    %1666 = vmatprep.subr.mxu0 0.0
    %1667 = vmatpush1.msra.mxu0 %v621
    %1668 = vmatprep.subr.mxu0 0.0
    %1669 = vmatpush1.msra.mxu0 %v622
    %1670 = vmatprep.subr.mxu0 0.0
    %1671 = vmatpush1.msra.mxu0 %v623
    %1672 = vmatprep.subr.mxu0 0.0
    %1673 = vmatpush1.msra.mxu0 0.0
    %1674 = vmatprep.subr.mxu0 0.0
    %1675 = vmatpush1.msra.mxu0 0.0
    %1676 = vmatprep.subr.mxu0 0.0
    %1677 = vmatpush1.msra.mxu0 0.0
    %1678 = vmatprep.subr.mxu0 0.0
    %1679 = vmatpush1.msra.mxu0 0.0
    %1680 = vmatprep.subr.mxu0 0.0
    %1681 = vmatpush1.msra.mxu0 0.0
    %1682 = vmatprep.subr.mxu0 0.0
    %1683 = vmatpush1.msra.mxu0 0.0
    %1684 = vmatprep.subr.mxu0 0.0
    %1685 = vmatpush1.msra.mxu0 0.0
    %1686 = vmatprep.subr.mxu0 0.0
    %1687 = vmatpush1.msra.mxu0 0.0
    %1688 = vmatprep.subr.mxu0 0.0
    %1689 = vmatpush1.msra.mxu0 0.0
    %1690 = vmatprep.subr.mxu0 0.0
    %1691 = vmatpush1.msra.mxu0 0.0
    %1692 = vmatprep.subr.mxu0 0.0
    %1693 = vmatpush1.msra.mxu0 0.0
    %1694 = vmatprep.subr.mxu0 0.0
    %1695 = vmatpush1.msra.mxu0 0.0
    %1696 = vmatprep.subr.mxu0 0.0
    %1697 = vmatpush1.msra.mxu0 0.0
    %1698 = vmatprep.subr.mxu0 0.0
    %1699 = vmatpush1.msra.mxu0 0.0
    %1700 = vmatprep.subr.mxu0 0.0
    %1701 = vmatpush1.msra.mxu0 0.0
    %1702 = vmatprep.subr.mxu0 0.0
    %1703 = vmatpush1.msra.mxu0 0.0
    %1704 = vmatprep.subr.mxu0 0.0
    %1705 = vmatpush1.msra.mxu0 0.0
    %1706 = vmatprep.subr.mxu0 0.0
    %1707 = vmatpush1.msra.mxu0 0.0
    %1708 = vmatprep.subr.mxu0 0.0
    %1709 = vmatpush1.msra.mxu0 0.0
    %1710 = vmatprep.subr.mxu0 0.0
    %1711 = vmatpush1.msra.mxu0 0.0
    %1712 = vmatprep.subr.mxu0 0.0
    %1713 = vmatpush1.msra.mxu0 0.0
    %1714 = vmatprep.subr.mxu0 0.0
    %1715 = vmatpush1.msra.mxu0 0.0
    %1716 = vmatprep.subr.mxu0 0.0
    %1717 = vmatpush1.msra.mxu0 0.0
    %1718 = vmatprep.subr.mxu0 0.0
    %1719 = vmatpush1.msra.mxu0 0.0
    %1720 = vmatprep.subr.mxu0 0.0
    %1721 = vmatpush1.msra.mxu0 0.0
    %1722 = vmatprep.subr.mxu0 0.0
    %1723 = vmatpush1.msra.mxu0 0.0
    %1724 = vmatprep.subr.mxu0 0.0
    %1725 = vmatpush1.msra.mxu0 0.0
    %1726 = vmatprep.subr.mxu0 0.0
    %1727 = vmatpush1.msra.mxu0 0.0
    %1728 = vmatprep.mubr.f32.mxu0 0.0
    %1729 = vmatmul.mubr.f32.gmra.mrb[0].mxu0 %v1584
    %v1730 = vpop.f32.mrb[0].mxu0
    %v1731 = vadd.f32 0.0, %v1730
    %v1732 = vpop.f32.mrb[0].mxu0
    %1733 = vdwg.mxu0
    %v1734 = vadd.f32 %v1663, %v1731
    %v1735 = vxor.u32 %v1734, 2147483648
    %v1736 = vmul.f32 %v1735, 1.442695
    %v1737 = vpow.pop %v1736
    %v1738 = vadd.f32 %v1737, 1.0
    %v1739 = vrcp.pop %v1738
    %v1740 = vmul.f32 1.0, %v1739
    %v1741 = vld [vmem:[#allocation4 + $0x18] sm:$0xff]
    %1742 = vmatprep.subr.mxu0 0.0
    %1743 = vmatpush1.msra.mxu0 %v625
    %1744 = vmatprep.subr.mxu0 0.0
    %1745 = vmatpush1.msra.mxu0 %v626
    %1746 = vmatprep.subr.mxu0 0.0
    %1747 = vmatpush1.msra.mxu0 %v627
    %1748 = vmatprep.subr.mxu0 0.0
    %1749 = vmatpush1.msra.mxu0 %v628
    %1750 = vmatprep.subr.mxu0 0.0
    %1751 = vmatpush1.msra.mxu0 0.0
    %1752 = vmatprep.subr.mxu0 0.0
    %1753 = vmatpush1.msra.mxu0 0.0
    %1754 = vmatprep.subr.mxu0 0.0
    %1755 = vmatpush1.msra.mxu0 0.0
    %1756 = vmatprep.subr.mxu0 0.0
    %1757 = vmatpush1.msra.mxu0 0.0
    %1758 = vmatprep.subr.mxu0 0.0
    %1759 = vmatpush1.msra.mxu0 0.0
    %1760 = vmatprep.subr.mxu0 0.0
    %1761 = vmatpush1.msra.mxu0 0.0
    %1762 = vmatprep.subr.mxu0 0.0
    %1763 = vmatpush1.msra.mxu0 0.0
    %1764 = vmatprep.subr.mxu0 0.0
    %1765 = vmatpush1.msra.mxu0 0.0
    %1766 = vmatprep.subr.mxu0 0.0
    %1767 = vmatpush1.msra.mxu0 0.0
    %1768 = vmatprep.subr.mxu0 0.0
    %1769 = vmatpush1.msra.mxu0 0.0
    %1770 = vmatprep.subr.mxu0 0.0
    %1771 = vmatpush1.msra.mxu0 0.0
    %1772 = vmatprep.subr.mxu0 0.0
    %1773 = vmatpush1.msra.mxu0 0.0
    %1774 = vmatprep.subr.mxu0 0.0
    %1775 = vmatpush1.msra.mxu0 0.0
    %1776 = vmatprep.subr.mxu0 0.0
    %1777 = vmatpush1.msra.mxu0 0.0
    %1778 = vmatprep.subr.mxu0 0.0
    %1779 = vmatpush1.msra.mxu0 0.0
    %1780 = vmatprep.subr.mxu0 0.0
    %1781 = vmatpush1.msra.mxu0 0.0
    %1782 = vmatprep.subr.mxu0 0.0
    %1783 = vmatpush1.msra.mxu0 0.0
    %1784 = vmatprep.subr.mxu0 0.0
    %1785 = vmatpush1.msra.mxu0 0.0
    %1786 = vmatprep.subr.mxu0 0.0
    %1787 = vmatpush1.msra.mxu0 0.0
    %1788 = vmatprep.subr.mxu0 0.0
    %1789 = vmatpush1.msra.mxu0 0.0
    %1790 = vmatprep.subr.mxu0 0.0
    %1791 = vmatpush1.msra.mxu0 0.0
    %1792 = vmatprep.subr.mxu0 0.0
    %1793 = vmatpush1.msra.mxu0 0.0
    %1794 = vmatprep.subr.mxu0 0.0
    %1795 = vmatpush1.msra.mxu0 0.0
    %1796 = vmatprep.subr.mxu0 0.0
    %1797 = vmatpush1.msra.mxu0 0.0
    %1798 = vmatprep.subr.mxu0 0.0
    %1799 = vmatpush1.msra.mxu0 0.0
    %1800 = vmatprep.subr.mxu0 0.0
    %1801 = vmatpush1.msra.mxu0 0.0
    %1802 = vmatprep.subr.mxu0 0.0
    %1803 = vmatpush1.msra.mxu0 0.0
    %1804 = vmatprep.subr.mxu0 0.0
    %1805 = vmatpush1.msra.mxu0 0.0
    %1806 = vmatprep.mubr.f32.mxu0 0.0
    %1807 = vmatmul.mubr.f32.gmra.mrb[0].mxu0 %v1584
    %v1808 = vpop.f32.mrb[0].mxu0
    %v1809 = vadd.f32 0.0, %v1808
    %v1810 = vpop.f32.mrb[0].mxu0
    %1811 = vdwg.mxu0
    %v1812 = vadd.f32 %v1741, %v1809
    %v1813 = vtanh.pop %v1812
    %v1814 = vld [vmem:[#allocation5 + $0x18] sm:$0xff]
    %1815 = vmatprep.subr.mxu0 0.0
    %1816 = vmatpush1.msra.mxu0 %v630
    %1817 = vmatprep.subr.mxu0 0.0
    %1818 = vmatpush1.msra.mxu0 %v631
    %1819 = vmatprep.subr.mxu0 0.0
    %1820 = vmatpush1.msra.mxu0 %v632
    %1821 = vmatprep.subr.mxu0 0.0
    %1822 = vmatpush1.msra.mxu0 %v633
    %1823 = vmatprep.subr.mxu0 0.0
    %1824 = vmatpush1.msra.mxu0 0.0
    %1825 = vmatprep.subr.mxu0 0.0
    %1826 = vmatpush1.msra.mxu0 0.0
    %1827 = vmatprep.subr.mxu0 0.0
    %1828 = vmatpush1.msra.mxu0 0.0
    %1829 = vmatprep.subr.mxu0 0.0
    %1830 = vmatpush1.msra.mxu0 0.0
    %1831 = vmatprep.subr.mxu0 0.0
    %1832 = vmatpush1.msra.mxu0 0.0
    %1833 = vmatprep.subr.mxu0 0.0
    %1834 = vmatpush1.msra.mxu0 0.0
    %1835 = vmatprep.subr.mxu0 0.0
    %1836 = vmatpush1.msra.mxu0 0.0
    %1837 = vmatprep.subr.mxu0 0.0
    %1838 = vmatpush1.msra.mxu0 0.0
    %1839 = vmatprep.subr.mxu0 0.0
    %1840 = vmatpush1.msra.mxu0 0.0
    %1841 = vmatprep.subr.mxu0 0.0
    %1842 = vmatpush1.msra.mxu0 0.0
    %1843 = vmatprep.subr.mxu0 0.0
    %1844 = vmatpush1.msra.mxu0 0.0
    %1845 = vmatprep.subr.mxu0 0.0
    %1846 = vmatpush1.msra.mxu0 0.0
    %1847 = vmatprep.subr.mxu0 0.0
    %1848 = vmatpush1.msra.mxu0 0.0
    %1849 = vmatprep.subr.mxu0 0.0
    %1850 = vmatpush1.msra.mxu0 0.0
    %1851 = vmatprep.subr.mxu0 0.0
    %1852 = vmatpush1.msra.mxu0 0.0
    %1853 = vmatprep.subr.mxu0 0.0
    %1854 = vmatpush1.msra.mxu0 0.0
    %1855 = vmatprep.subr.mxu0 0.0
    %1856 = vmatpush1.msra.mxu0 0.0
    %1857 = vmatprep.subr.mxu0 0.0
    %1858 = vmatpush1.msra.mxu0 0.0
    %1859 = vmatprep.subr.mxu0 0.0
    %1860 = vmatpush1.msra.mxu0 0.0
    %1861 = vmatprep.subr.mxu0 0.0
    %1862 = vmatpush1.msra.mxu0 0.0
    %1863 = vmatprep.subr.mxu0 0.0
    %1864 = vmatpush1.msra.mxu0 0.0
    %1865 = vmatprep.subr.mxu0 0.0
    %1866 = vmatpush1.msra.mxu0 0.0
    %1867 = vmatprep.subr.mxu0 0.0
    %1868 = vmatpush1.msra.mxu0 0.0
    %1869 = vmatprep.subr.mxu0 0.0
    %1870 = vmatpush1.msra.mxu0 0.0
    %1871 = vmatprep.subr.mxu0 0.0
    %1872 = vmatpush1.msra.mxu0 0.0
    %1873 = vmatprep.subr.mxu0 0.0
    %1874 = vmatpush1.msra.mxu0 0.0
    %1875 = vmatprep.subr.mxu0 0.0
    %1876 = vmatpush1.msra.mxu0 0.0
    %1877 = vmatprep.subr.mxu0 0.0
    %1878 = vmatpush1.msra.mxu0 0.0
    %1879 = vmatprep.mubr.f32.mxu0 0.0
    %1880 = vmatmul.mubr.f32.gmra.mrb[0].mxu0 %v1584
    %v1881 = vpop.f32.mrb[0].mxu0
    %v1882 = vadd.f32 0.0, %v1881
    %v1883 = vpop.f32.mrb[0].mxu0
    %1884 = vdwg.mxu0
    %v1885 = vadd.f32 %v1814, %v1882
    %v1886 = vxor.u32 %v1885, 2147483648
    %v1887 = vmul.f32 %v1886, 1.442695
    %v1888 = vpow.pop %v1887
    %v1889 = vadd.f32 %v1888, 1.0
    %v1890 = vrcp.pop %v1889
    %v1891 = vmul.f32 1.0, %v1890
    %v1892 = vmul.f32 %v1740, %v1578
    %v1893 = vmul.f32 %v1662, %v1813
    %v1894 = vadd.f32 %v1892, %v1893
    %v1895 = vtanh.pop %v1894
    %v1896 = vmul.f32 %v1891, %v1895
    %1897 = vst.msk [vmem:[#allocation6 + $0x18] sm:$0xff] %vm234, %v1896
    %v1898 = vld [vmem:[#allocation2 + $0x20] sm:$0xff]
    %v1900 = vsel %vm234, %v1896, 0
    %1902 = vmatprep.subr.mxu0 0.0
    %1903 = vmatpush1.msra.mxu0 %v615
    %1904 = vmatprep.subr.mxu0 0.0
    %1905 = vmatpush1.msra.mxu0 %v616
    %1906 = vmatprep.subr.mxu0 0.0
    %1907 = vmatpush1.msra.mxu0 %v617
    %1908 = vmatprep.subr.mxu0 0.0
    %1909 = vmatpush1.msra.mxu0 %v618
    %1910 = vmatprep.subr.mxu0 0.0
    %1911 = vmatpush1.msra.mxu0 0.0
    %1912 = vmatprep.subr.mxu0 0.0
    %1913 = vmatpush1.msra.mxu0 0.0
    %1914 = vmatprep.subr.mxu0 0.0
    %1915 = vmatpush1.msra.mxu0 0.0
    %1916 = vmatprep.subr.mxu0 0.0
    %1917 = vmatpush1.msra.mxu0 0.0
    %1918 = vmatprep.subr.mxu0 0.0
    %1919 = vmatpush1.msra.mxu0 0.0
    %1920 = vmatprep.subr.mxu0 0.0
    %1921 = vmatpush1.msra.mxu0 0.0
    %1922 = vmatprep.subr.mxu0 0.0
    %1923 = vmatpush1.msra.mxu0 0.0
    %1924 = vmatprep.subr.mxu0 0.0
    %1925 = vmatpush1.msra.mxu0 0.0
    %1926 = vmatprep.subr.mxu0 0.0
    %1927 = vmatpush1.msra.mxu0 0.0
    %1928 = vmatprep.subr.mxu0 0.0
    %1929 = vmatpush1.msra.mxu0 0.0
    %1930 = vmatprep.subr.mxu0 0.0
    %1931 = vmatpush1.msra.mxu0 0.0
    %1932 = vmatprep.subr.mxu0 0.0
    %1933 = vmatpush1.msra.mxu0 0.0
    %1934 = vmatprep.subr.mxu0 0.0
    %1935 = vmatpush1.msra.mxu0 0.0
    %1936 = vmatprep.subr.mxu0 0.0
    %1937 = vmatpush1.msra.mxu0 0.0
    %1938 = vmatprep.subr.mxu0 0.0
    %1939 = vmatpush1.msra.mxu0 0.0
    %1940 = vmatprep.subr.mxu0 0.0
    %1941 = vmatpush1.msra.mxu0 0.0
    %1942 = vmatprep.subr.mxu0 0.0
    %1943 = vmatpush1.msra.mxu0 0.0
    %1944 = vmatprep.subr.mxu0 0.0
    %1945 = vmatpush1.msra.mxu0 0.0
    %1946 = vmatprep.subr.mxu0 0.0
    %1947 = vmatpush1.msra.mxu0 0.0
    %1948 = vmatprep.subr.mxu0 0.0
    %1949 = vmatpush1.msra.mxu0 0.0
    %1950 = vmatprep.subr.mxu0 0.0
    %1951 = vmatpush1.msra.mxu0 0.0
    %1952 = vmatprep.subr.mxu0 0.0
    %1953 = vmatpush1.msra.mxu0 0.0
    %1954 = vmatprep.subr.mxu0 0.0
    %1955 = vmatpush1.msra.mxu0 0.0
    %1956 = vmatprep.subr.mxu0 0.0
    %1957 = vmatpush1.msra.mxu0 0.0
    %1958 = vmatprep.subr.mxu0 0.0
    %1959 = vmatpush1.msra.mxu0 0.0
    %1960 = vmatprep.subr.mxu0 0.0
    %1961 = vmatpush1.msra.mxu0 0.0
    %1962 = vmatprep.subr.mxu0 0.0
    %1963 = vmatpush1.msra.mxu0 0.0
    %1964 = vmatprep.subr.mxu0 0.0
    %1965 = vmatpush1.msra.mxu0 0.0
    %1966 = vmatprep.mubr.f32.mxu0 0.0
    %1967 = vmatmul.mubr.f32.gmra.mrb[0].mxu0 %v1900
    %v1968 = vpop.f32.mrb[0].mxu0
    %v1969 = vadd.f32 0.0, %v1968
    %v1970 = vpop.f32.mrb[0].mxu0
    %1971 = vdwg.mxu0
    %v1972 = vadd.f32 %v1898, %v1969
    %v1973 = vxor.u32 %v1972, 2147483648
    %v1974 = vmul.f32 %v1973, 1.442695
    %v1975 = vpow.pop %v1974
    %v1976 = vadd.f32 %v1975, 1.0
    %v1977 = vrcp.pop %v1976
    %v1978 = vmul.f32 1.0, %v1977
    %v1979 = vld [vmem:[#allocation3 + $0x20] sm:$0xff]
    %1980 = vmatprep.subr.mxu0 0.0
    %1981 = vmatpush1.msra.mxu0 %v620
    %1982 = vmatprep.subr.mxu0 0.0
    %1983 = vmatpush1.msra.mxu0 %v621
    %1984 = vmatprep.subr.mxu0 0.0
    %1985 = vmatpush1.msra.mxu0 %v622
    %1986 = vmatprep.subr.mxu0 0.0
    %1987 = vmatpush1.msra.mxu0 %v623
    %1988 = vmatprep.subr.mxu0 0.0
    %1989 = vmatpush1.msra.mxu0 0.0
    %1990 = vmatprep.subr.mxu0 0.0
    %1991 = vmatpush1.msra.mxu0 0.0
    %1992 = vmatprep.subr.mxu0 0.0
    %1993 = vmatpush1.msra.mxu0 0.0
    %1994 = vmatprep.subr.mxu0 0.0
    %1995 = vmatpush1.msra.mxu0 0.0
    %1996 = vmatprep.subr.mxu0 0.0
    %1997 = vmatpush1.msra.mxu0 0.0
    %1998 = vmatprep.subr.mxu0 0.0
    %1999 = vmatpush1.msra.mxu0 0.0
    %2000 = vmatprep.subr.mxu0 0.0
    %2001 = vmatpush1.msra.mxu0 0.0
    %2002 = vmatprep.subr.mxu0 0.0
    %2003 = vmatpush1.msra.mxu0 0.0
    %2004 = vmatprep.subr.mxu0 0.0
    %2005 = vmatpush1.msra.mxu0 0.0
    %2006 = vmatprep.subr.mxu0 0.0
    %2007 = vmatpush1.msra.mxu0 0.0
    %2008 = vmatprep.subr.mxu0 0.0
    %2009 = vmatpush1.msra.mxu0 0.0
    %2010 = vmatprep.subr.mxu0 0.0
    %2011 = vmatpush1.msra.mxu0 0.0
    %2012 = vmatprep.subr.mxu0 0.0
    %2013 = vmatpush1.msra.mxu0 0.0
    %2014 = vmatprep.subr.mxu0 0.0
    %2015 = vmatpush1.msra.mxu0 0.0
    %2016 = vmatprep.subr.mxu0 0.0
    %2017 = vmatpush1.msra.mxu0 0.0
    %2018 = vmatprep.subr.mxu0 0.0
    %2019 = vmatpush1.msra.mxu0 0.0
    %2020 = vmatprep.subr.mxu0 0.0
    %2021 = vmatpush1.msra.mxu0 0.0
    %2022 = vmatprep.subr.mxu0 0.0
    %2023 = vmatpush1.msra.mxu0 0.0
    %2024 = vmatprep.subr.mxu0 0.0
    %2025 = vmatpush1.msra.mxu0 0.0
    %2026 = vmatprep.subr.mxu0 0.0
    %2027 = vmatpush1.msra.mxu0 0.0
    %2028 = vmatprep.subr.mxu0 0.0
    %2029 = vmatpush1.msra.mxu0 0.0
    %2030 = vmatprep.subr.mxu0 0.0
    %2031 = vmatpush1.msra.mxu0 0.0
    %2032 = vmatprep.subr.mxu0 0.0
    %2033 = vmatpush1.msra.mxu0 0.0
    %2034 = vmatprep.subr.mxu0 0.0
    %2035 = vmatpush1.msra.mxu0 0.0
    %2036 = vmatprep.subr.mxu0 0.0
    %2037 = vmatpush1.msra.mxu0 0.0
    %2038 = vmatprep.subr.mxu0 0.0
    %2039 = vmatpush1.msra.mxu0 0.0
    %2040 = vmatprep.subr.mxu0 0.0
    %2041 = vmatpush1.msra.mxu0 0.0
    %2042 = vmatprep.subr.mxu0 0.0
    %2043 = vmatpush1.msra.mxu0 0.0
    %2044 = vmatprep.mubr.f32.mxu0 0.0
    %2045 = vmatmul.mubr.f32.gmra.mrb[0].mxu0 %v1900
    %v2046 = vpop.f32.mrb[0].mxu0
    %v2047 = vadd.f32 0.0, %v2046
    %v2048 = vpop.f32.mrb[0].mxu0
    %2049 = vdwg.mxu0
    %v2050 = vadd.f32 %v1979, %v2047
    %v2051 = vxor.u32 %v2050, 2147483648
    %v2052 = vmul.f32 %v2051, 1.442695
    %v2053 = vpow.pop %v2052
    %v2054 = vadd.f32 %v2053, 1.0
    %v2055 = vrcp.pop %v2054
    %v2056 = vmul.f32 1.0, %v2055
    %v2057 = vld [vmem:[#allocation4 + $0x20] sm:$0xff]
    %2058 = vmatprep.subr.mxu0 0.0
    %2059 = vmatpush1.msra.mxu0 %v625
    %2060 = vmatprep.subr.mxu0 0.0
    %2061 = vmatpush1.msra.mxu0 %v626
    %2062 = vmatprep.subr.mxu0 0.0
    %2063 = vmatpush1.msra.mxu0 %v627
    %2064 = vmatprep.subr.mxu0 0.0
    %2065 = vmatpush1.msra.mxu0 %v628
    %2066 = vmatprep.subr.mxu0 0.0
    %2067 = vmatpush1.msra.mxu0 0.0
    %2068 = vmatprep.subr.mxu0 0.0
    %2069 = vmatpush1.msra.mxu0 0.0
    %2070 = vmatprep.subr.mxu0 0.0
    %2071 = vmatpush1.msra.mxu0 0.0
    %2072 = vmatprep.subr.mxu0 0.0
    %2073 = vmatpush1.msra.mxu0 0.0
    %2074 = vmatprep.subr.mxu0 0.0
    %2075 = vmatpush1.msra.mxu0 0.0
    %2076 = vmatprep.subr.mxu0 0.0
    %2077 = vmatpush1.msra.mxu0 0.0
    %2078 = vmatprep.subr.mxu0 0.0
    %2079 = vmatpush1.msra.mxu0 0.0
    %2080 = vmatprep.subr.mxu0 0.0
    %2081 = vmatpush1.msra.mxu0 0.0
    %2082 = vmatprep.subr.mxu0 0.0
    %2083 = vmatpush1.msra.mxu0 0.0
    %2084 = vmatprep.subr.mxu0 0.0
    %2085 = vmatpush1.msra.mxu0 0.0
    %2086 = vmatprep.subr.mxu0 0.0
    %2087 = vmatpush1.msra.mxu0 0.0
    %2088 = vmatprep.subr.mxu0 0.0
    %2089 = vmatpush1.msra.mxu0 0.0
    %2090 = vmatprep.subr.mxu0 0.0
    %2091 = vmatpush1.msra.mxu0 0.0
    %2092 = vmatprep.subr.mxu0 0.0
    %2093 = vmatpush1.msra.mxu0 0.0
    %2094 = vmatprep.subr.mxu0 0.0
    %2095 = vmatpush1.msra.mxu0 0.0
    %2096 = vmatprep.subr.mxu0 0.0
    %2097 = vmatpush1.msra.mxu0 0.0
    %2098 = vmatprep.subr.mxu0 0.0
    %2099 = vmatpush1.msra.mxu0 0.0
    %2100 = vmatprep.subr.mxu0 0.0
    %2101 = vmatpush1.msra.mxu0 0.0
    %2102 = vmatprep.subr.mxu0 0.0
    %2103 = vmatpush1.msra.mxu0 0.0
    %2104 = vmatprep.subr.mxu0 0.0
    %2105 = vmatpush1.msra.mxu0 0.0
    %2106 = vmatprep.subr.mxu0 0.0
    %2107 = vmatpush1.msra.mxu0 0.0
    %2108 = vmatprep.subr.mxu0 0.0
    %2109 = vmatpush1.msra.mxu0 0.0
    %2110 = vmatprep.subr.mxu0 0.0
    %2111 = vmatpush1.msra.mxu0 0.0
    %2112 = vmatprep.subr.mxu0 0.0
    %2113 = vmatpush1.msra.mxu0 0.0
    %2114 = vmatprep.subr.mxu0 0.0
    %2115 = vmatpush1.msra.mxu0 0.0
    %2116 = vmatprep.subr.mxu0 0.0
    %2117 = vmatpush1.msra.mxu0 0.0
    %2118 = vmatprep.subr.mxu0 0.0
    %2119 = vmatpush1.msra.mxu0 0.0
    %2120 = vmatprep.subr.mxu0 0.0
    %2121 = vmatpush1.msra.mxu0 0.0
    %2122 = vmatprep.mubr.f32.mxu0 0.0
    %2123 = vmatmul.mubr.f32.gmra.mrb[0].mxu0 %v1900
    %v2124 = vpop.f32.mrb[0].mxu0
    %v2125 = vadd.f32 0.0, %v2124
    %v2126 = vpop.f32.mrb[0].mxu0
    %2127 = vdwg.mxu0
    %v2128 = vadd.f32 %v2057, %v2125
    %v2129 = vtanh.pop %v2128
    %v2130 = vld [vmem:[#allocation5 + $0x20] sm:$0xff]
    %2131 = vmatprep.subr.mxu0 0.0
    %2132 = vmatpush1.msra.mxu0 %v630
    %2133 = vmatprep.subr.mxu0 0.0
    %2134 = vmatpush1.msra.mxu0 %v631
    %2135 = vmatprep.subr.mxu0 0.0
    %2136 = vmatpush1.msra.mxu0 %v632
    %2137 = vmatprep.subr.mxu0 0.0
    %2138 = vmatpush1.msra.mxu0 %v633
    %2139 = vmatprep.subr.mxu0 0.0
    %2140 = vmatpush1.msra.mxu0 0.0
    %2141 = vmatprep.subr.mxu0 0.0
    %2142 = vmatpush1.msra.mxu0 0.0
    %2143 = vmatprep.subr.mxu0 0.0
    %2144 = vmatpush1.msra.mxu0 0.0
    %2145 = vmatprep.subr.mxu0 0.0
    %2146 = vmatpush1.msra.mxu0 0.0
    %2147 = vmatprep.subr.mxu0 0.0
    %2148 = vmatpush1.msra.mxu0 0.0
    %2149 = vmatprep.subr.mxu0 0.0
    %2150 = vmatpush1.msra.mxu0 0.0
    %2151 = vmatprep.subr.mxu0 0.0
    %2152 = vmatpush1.msra.mxu0 0.0
    %2153 = vmatprep.subr.mxu0 0.0
    %2154 = vmatpush1.msra.mxu0 0.0
    %2155 = vmatprep.subr.mxu0 0.0
    %2156 = vmatpush1.msra.mxu0 0.0
    %2157 = vmatprep.subr.mxu0 0.0
    %2158 = vmatpush1.msra.mxu0 0.0
    %2159 = vmatprep.subr.mxu0 0.0
    %2160 = vmatpush1.msra.mxu0 0.0
    %2161 = vmatprep.subr.mxu0 0.0
    %2162 = vmatpush1.msra.mxu0 0.0
    %2163 = vmatprep.subr.mxu0 0.0
    %2164 = vmatpush1.msra.mxu0 0.0
    %2165 = vmatprep.subr.mxu0 0.0
    %2166 = vmatpush1.msra.mxu0 0.0
    %2167 = vmatprep.subr.mxu0 0.0
    %2168 = vmatpush1.msra.mxu0 0.0
    %2169 = vmatprep.subr.mxu0 0.0
    %2170 = vmatpush1.msra.mxu0 0.0
    %2171 = vmatprep.subr.mxu0 0.0
    %2172 = vmatpush1.msra.mxu0 0.0
    %2173 = vmatprep.subr.mxu0 0.0
    %2174 = vmatpush1.msra.mxu0 0.0
    %2175 = vmatprep.subr.mxu0 0.0
    %2176 = vmatpush1.msra.mxu0 0.0
    %2177 = vmatprep.subr.mxu0 0.0
    %2178 = vmatpush1.msra.mxu0 0.0
    %2179 = vmatprep.subr.mxu0 0.0
    %2180 = vmatpush1.msra.mxu0 0.0
    %2181 = vmatprep.subr.mxu0 0.0
    %2182 = vmatpush1.msra.mxu0 0.0
    %2183 = vmatprep.subr.mxu0 0.0
    %2184 = vmatpush1.msra.mxu0 0.0
    %2185 = vmatprep.subr.mxu0 0.0
    %2186 = vmatpush1.msra.mxu0 0.0
    %2187 = vmatprep.subr.mxu0 0.0
    %2188 = vmatpush1.msra.mxu0 0.0
    %2189 = vmatprep.subr.mxu0 0.0
    %2190 = vmatpush1.msra.mxu0 0.0
    %2191 = vmatprep.subr.mxu0 0.0
    %2192 = vmatpush1.msra.mxu0 0.0
    %2193 = vmatprep.subr.mxu0 0.0
    %2194 = vmatpush1.msra.mxu0 0.0
    %2195 = vmatprep.mubr.f32.mxu0 0.0
    %2196 = vmatmul.mubr.f32.gmra.mrb[0].mxu0 %v1900
    %v2197 = vpop.f32.mrb[0].mxu0
    %v2198 = vadd.f32 0.0, %v2197
    %v2199 = vpop.f32.mrb[0].mxu0
    %2200 = vdwg.mxu0
    %v2201 = vadd.f32 %v2130, %v2198
    %v2202 = vxor.u32 %v2201, 2147483648
    %v2203 = vmul.f32 %v2202, 1.442695
    %v2204 = vpow.pop %v2203
    %v2205 = vadd.f32 %v2204, 1.0
    %v2206 = vrcp.pop %v2205
    %v2207 = vmul.f32 1.0, %v2206
    %v2208 = vmul.f32 %v2056, %v1894
    %v2209 = vmul.f32 %v1978, %v2129
    %v2210 = vadd.f32 %v2208, %v2209
    %v2211 = vtanh.pop %v2210
    %v2212 = vmul.f32 %v2207, %v2211
    %2213 = vst.msk [vmem:[#allocation6 + $0x20] sm:$0xff] %vm234, %v2212
    %v2214 = vld [vmem:[#allocation2 + $0x28] sm:$0xff]
    %v2216 = vsel %vm234, %v2212, 0
    %2218 = vmatprep.subr.mxu0 0.0
    %2219 = vmatpush1.msra.mxu0 %v615
    %2220 = vmatprep.subr.mxu0 0.0
    %2221 = vmatpush1.msra.mxu0 %v616
    %2222 = vmatprep.subr.mxu0 0.0
    %2223 = vmatpush1.msra.mxu0 %v617
    %2224 = vmatprep.subr.mxu0 0.0
    %2225 = vmatpush1.msra.mxu0 %v618
    %2226 = vmatprep.subr.mxu0 0.0
    %2227 = vmatpush1.msra.mxu0 0.0
    %2228 = vmatprep.subr.mxu0 0.0
    %2229 = vmatpush1.msra.mxu0 0.0
    %2230 = vmatprep.subr.mxu0 0.0
    %2231 = vmatpush1.msra.mxu0 0.0
    %2232 = vmatprep.subr.mxu0 0.0
    %2233 = vmatpush1.msra.mxu0 0.0
    %2234 = vmatprep.subr.mxu0 0.0
    %2235 = vmatpush1.msra.mxu0 0.0
    %2236 = vmatprep.subr.mxu0 0.0
    %2237 = vmatpush1.msra.mxu0 0.0
    %2238 = vmatprep.subr.mxu0 0.0
    %2239 = vmatpush1.msra.mxu0 0.0
    %2240 = vmatprep.subr.mxu0 0.0
    %2241 = vmatpush1.msra.mxu0 0.0
    %2242 = vmatprep.subr.mxu0 0.0
    %2243 = vmatpush1.msra.mxu0 0.0
    %2244 = vmatprep.subr.mxu0 0.0
    %2245 = vmatpush1.msra.mxu0 0.0
    %2246 = vmatprep.subr.mxu0 0.0
    %2247 = vmatpush1.msra.mxu0 0.0
    %2248 = vmatprep.subr.mxu0 0.0
    %2249 = vmatpush1.msra.mxu0 0.0
    %2250 = vmatprep.subr.mxu0 0.0
    %2251 = vmatpush1.msra.mxu0 0.0
    %2252 = vmatprep.subr.mxu0 0.0
    %2253 = vmatpush1.msra.mxu0 0.0
    %2254 = vmatprep.subr.mxu0 0.0
    %2255 = vmatpush1.msra.mxu0 0.0
    %2256 = vmatprep.subr.mxu0 0.0
    %2257 = vmatpush1.msra.mxu0 0.0
    %2258 = vmatprep.subr.mxu0 0.0
    %2259 = vmatpush1.msra.mxu0 0.0
    %2260 = vmatprep.subr.mxu0 0.0
    %2261 = vmatpush1.msra.mxu0 0.0
    %2262 = vmatprep.subr.mxu0 0.0
    %2263 = vmatpush1.msra.mxu0 0.0
    %2264 = vmatprep.subr.mxu0 0.0
    %2265 = vmatpush1.msra.mxu0 0.0
    %2266 = vmatprep.subr.mxu0 0.0
    %2267 = vmatpush1.msra.mxu0 0.0
    %2268 = vmatprep.subr.mxu0 0.0
    %2269 = vmatpush1.msra.mxu0 0.0
    %2270 = vmatprep.subr.mxu0 0.0
    %2271 = vmatpush1.msra.mxu0 0.0
    %2272 = vmatprep.subr.mxu0 0.0
    %2273 = vmatpush1.msra.mxu0 0.0
    %2274 = vmatprep.subr.mxu0 0.0
    %2275 = vmatpush1.msra.mxu0 0.0
    %2276 = vmatprep.subr.mxu0 0.0
    %2277 = vmatpush1.msra.mxu0 0.0
    %2278 = vmatprep.subr.mxu0 0.0
    %2279 = vmatpush1.msra.mxu0 0.0
    %2280 = vmatprep.subr.mxu0 0.0
    %2281 = vmatpush1.msra.mxu0 0.0
    %2282 = vmatprep.mubr.f32.mxu0 0.0
    %2283 = vmatmul.mubr.f32.gmra.mrb[0].mxu0 %v2216
    %v2284 = vpop.f32.mrb[0].mxu0
    %v2285 = vadd.f32 0.0, %v2284
    %v2286 = vpop.f32.mrb[0].mxu0
    %2287 = vdwg.mxu0
    %v2288 = vadd.f32 %v2214, %v2285
    %v2289 = vxor.u32 %v2288, 2147483648
    %v2290 = vmul.f32 %v2289, 1.442695
    %v2291 = vpow.pop %v2290
    %v2292 = vadd.f32 %v2291, 1.0
    %v2293 = vrcp.pop %v2292
    %v2294 = vmul.f32 1.0, %v2293
    %v2295 = vld [vmem:[#allocation3 + $0x28] sm:$0xff]
    %2296 = vmatprep.subr.mxu0 0.0
    %2297 = vmatpush1.msra.mxu0 %v620
    %2298 = vmatprep.subr.mxu0 0.0
    %2299 = vmatpush1.msra.mxu0 %v621
    %2300 = vmatprep.subr.mxu0 0.0
    %2301 = vmatpush1.msra.mxu0 %v622
    %2302 = vmatprep.subr.mxu0 0.0
    %2303 = vmatpush1.msra.mxu0 %v623
    %2304 = vmatprep.subr.mxu0 0.0
    %2305 = vmatpush1.msra.mxu0 0.0
    %2306 = vmatprep.subr.mxu0 0.0
    %2307 = vmatpush1.msra.mxu0 0.0
    %2308 = vmatprep.subr.mxu0 0.0
    %2309 = vmatpush1.msra.mxu0 0.0
    %2310 = vmatprep.subr.mxu0 0.0
    %2311 = vmatpush1.msra.mxu0 0.0
    %2312 = vmatprep.subr.mxu0 0.0
    %2313 = vmatpush1.msra.mxu0 0.0
    %2314 = vmatprep.subr.mxu0 0.0
    %2315 = vmatpush1.msra.mxu0 0.0
    %2316 = vmatprep.subr.mxu0 0.0
    %2317 = vmatpush1.msra.mxu0 0.0
    %2318 = vmatprep.subr.mxu0 0.0
    %2319 = vmatpush1.msra.mxu0 0.0
    %2320 = vmatprep.subr.mxu0 0.0
    %2321 = vmatpush1.msra.mxu0 0.0
    %2322 = vmatprep.subr.mxu0 0.0
    %2323 = vmatpush1.msra.mxu0 0.0
    %2324 = vmatprep.subr.mxu0 0.0
    %2325 = vmatpush1.msra.mxu0 0.0
    %2326 = vmatprep.subr.mxu0 0.0
    %2327 = vmatpush1.msra.mxu0 0.0
    %2328 = vmatprep.subr.mxu0 0.0
    %2329 = vmatpush1.msra.mxu0 0.0
    %2330 = vmatprep.subr.mxu0 0.0
    %2331 = vmatpush1.msra.mxu0 0.0
    %2332 = vmatprep.subr.mxu0 0.0
    %2333 = vmatpush1.msra.mxu0 0.0
    %2334 = vmatprep.subr.mxu0 0.0
    %2335 = vmatpush1.msra.mxu0 0.0
    %2336 = vmatprep.subr.mxu0 0.0
    %2337 = vmatpush1.msra.mxu0 0.0
    %2338 = vmatprep.subr.mxu0 0.0
    %2339 = vmatpush1.msra.mxu0 0.0
    %2340 = vmatprep.subr.mxu0 0.0
    %2341 = vmatpush1.msra.mxu0 0.0
    %2342 = vmatprep.subr.mxu0 0.0
    %2343 = vmatpush1.msra.mxu0 0.0
    %2344 = vmatprep.subr.mxu0 0.0
    %2345 = vmatpush1.msra.mxu0 0.0
    %2346 = vmatprep.subr.mxu0 0.0
    %2347 = vmatpush1.msra.mxu0 0.0
    %2348 = vmatprep.subr.mxu0 0.0
    %2349 = vmatpush1.msra.mxu0 0.0
    %2350 = vmatprep.subr.mxu0 0.0
    %2351 = vmatpush1.msra.mxu0 0.0
    %2352 = vmatprep.subr.mxu0 0.0
    %2353 = vmatpush1.msra.mxu0 0.0
    %2354 = vmatprep.subr.mxu0 0.0
    %2355 = vmatpush1.msra.mxu0 0.0
    %2356 = vmatprep.subr.mxu0 0.0
    %2357 = vmatpush1.msra.mxu0 0.0
    %2358 = vmatprep.subr.mxu0 0.0
    %2359 = vmatpush1.msra.mxu0 0.0
    %2360 = vmatprep.mubr.f32.mxu0 0.0
    %2361 = vmatmul.mubr.f32.gmra.mrb[0].mxu0 %v2216
    %v2362 = vpop.f32.mrb[0].mxu0
    %v2363 = vadd.f32 0.0, %v2362
    %v2364 = vpop.f32.mrb[0].mxu0
    %2365 = vdwg.mxu0
    %v2366 = vadd.f32 %v2295, %v2363
    %v2367 = vxor.u32 %v2366, 2147483648
    %v2368 = vmul.f32 %v2367, 1.442695
    %v2369 = vpow.pop %v2368
    %v2370 = vadd.f32 %v2369, 1.0
    %v2371 = vrcp.pop %v2370
    %v2372 = vmul.f32 1.0, %v2371
    %v2373 = vld [vmem:[#allocation4 + $0x28] sm:$0xff]
    %2374 = vmatprep.subr.mxu0 0.0
    %2375 = vmatpush1.msra.mxu0 %v625
    %2376 = vmatprep.subr.mxu0 0.0
    %2377 = vmatpush1.msra.mxu0 %v626
    %2378 = vmatprep.subr.mxu0 0.0
    %2379 = vmatpush1.msra.mxu0 %v627
    %2380 = vmatprep.subr.mxu0 0.0
    %2381 = vmatpush1.msra.mxu0 %v628
    %2382 = vmatprep.subr.mxu0 0.0
    %2383 = vmatpush1.msra.mxu0 0.0
    %2384 = vmatprep.subr.mxu0 0.0
    %2385 = vmatpush1.msra.mxu0 0.0
    %2386 = vmatprep.subr.mxu0 0.0
    %2387 = vmatpush1.msra.mxu0 0.0
    %2388 = vmatprep.subr.mxu0 0.0
    %2389 = vmatpush1.msra.mxu0 0.0
    %2390 = vmatprep.subr.mxu0 0.0
    %2391 = vmatpush1.msra.mxu0 0.0
    %2392 = vmatprep.subr.mxu0 0.0
    %2393 = vmatpush1.msra.mxu0 0.0
    %2394 = vmatprep.subr.mxu0 0.0
    %2395 = vmatpush1.msra.mxu0 0.0
    %2396 = vmatprep.subr.mxu0 0.0
    %2397 = vmatpush1.msra.mxu0 0.0
    %2398 = vmatprep.subr.mxu0 0.0
    %2399 = vmatpush1.msra.mxu0 0.0
    %2400 = vmatprep.subr.mxu0 0.0
    %2401 = vmatpush1.msra.mxu0 0.0
    %2402 = vmatprep.subr.mxu0 0.0
    %2403 = vmatpush1.msra.mxu0 0.0
    %2404 = vmatprep.subr.mxu0 0.0
    %2405 = vmatpush1.msra.mxu0 0.0
    %2406 = vmatprep.subr.mxu0 0.0
    %2407 = vmatpush1.msra.mxu0 0.0
    %2408 = vmatprep.subr.mxu0 0.0
    %2409 = vmatpush1.msra.mxu0 0.0
    %2410 = vmatprep.subr.mxu0 0.0
    %2411 = vmatpush1.msra.mxu0 0.0
    %2412 = vmatprep.subr.mxu0 0.0
    %2413 = vmatpush1.msra.mxu0 0.0
    %2414 = vmatprep.subr.mxu0 0.0
    %2415 = vmatpush1.msra.mxu0 0.0
    %2416 = vmatprep.subr.mxu0 0.0
    %2417 = vmatpush1.msra.mxu0 0.0
    %2418 = vmatprep.subr.mxu0 0.0
    %2419 = vmatpush1.msra.mxu0 0.0
    %2420 = vmatprep.subr.mxu0 0.0
    %2421 = vmatpush1.msra.mxu0 0.0
    %2422 = vmatprep.subr.mxu0 0.0
    %2423 = vmatpush1.msra.mxu0 0.0
    %2424 = vmatprep.subr.mxu0 0.0
    %2425 = vmatpush1.msra.mxu0 0.0
    %2426 = vmatprep.subr.mxu0 0.0
    %2427 = vmatpush1.msra.mxu0 0.0
    %2428 = vmatprep.subr.mxu0 0.0
    %2429 = vmatpush1.msra.mxu0 0.0
    %2430 = vmatprep.subr.mxu0 0.0
    %2431 = vmatpush1.msra.mxu0 0.0
    %2432 = vmatprep.subr.mxu0 0.0
    %2433 = vmatpush1.msra.mxu0 0.0
    %2434 = vmatprep.subr.mxu0 0.0
    %2435 = vmatpush1.msra.mxu0 0.0
    %2436 = vmatprep.subr.mxu0 0.0
    %2437 = vmatpush1.msra.mxu0 0.0
    %2438 = vmatprep.mubr.f32.mxu0 0.0
    %2439 = vmatmul.mubr.f32.gmra.mrb[0].mxu0 %v2216
    %v2440 = vpop.f32.mrb[0].mxu0
    %v2441 = vadd.f32 0.0, %v2440
    %v2442 = vpop.f32.mrb[0].mxu0
    %2443 = vdwg.mxu0
    %v2444 = vadd.f32 %v2373, %v2441
    %v2445 = vtanh.pop %v2444
    %v2446 = vld [vmem:[#allocation5 + $0x28] sm:$0xff]
    %2447 = vmatprep.subr.mxu0 0.0
    %2448 = vmatpush1.msra.mxu0 %v630
    %2449 = vmatprep.subr.mxu0 0.0
    %2450 = vmatpush1.msra.mxu0 %v631
    %2451 = vmatprep.subr.mxu0 0.0
    %2452 = vmatpush1.msra.mxu0 %v632
    %2453 = vmatprep.subr.mxu0 0.0
    %2454 = vmatpush1.msra.mxu0 %v633
    %2455 = vmatprep.subr.mxu0 0.0
    %2456 = vmatpush1.msra.mxu0 0.0
    %2457 = vmatprep.subr.mxu0 0.0
    %2458 = vmatpush1.msra.mxu0 0.0
    %2459 = vmatprep.subr.mxu0 0.0
    %2460 = vmatpush1.msra.mxu0 0.0
    %2461 = vmatprep.subr.mxu0 0.0
    %2462 = vmatpush1.msra.mxu0 0.0
    %2463 = vmatprep.subr.mxu0 0.0
    %2464 = vmatpush1.msra.mxu0 0.0
    %2465 = vmatprep.subr.mxu0 0.0
    %2466 = vmatpush1.msra.mxu0 0.0
    %2467 = vmatprep.subr.mxu0 0.0
    %2468 = vmatpush1.msra.mxu0 0.0
    %2469 = vmatprep.subr.mxu0 0.0
    %2470 = vmatpush1.msra.mxu0 0.0
    %2471 = vmatprep.subr.mxu0 0.0
    %2472 = vmatpush1.msra.mxu0 0.0
    %2473 = vmatprep.subr.mxu0 0.0
    %2474 = vmatpush1.msra.mxu0 0.0
    %2475 = vmatprep.subr.mxu0 0.0
    %2476 = vmatpush1.msra.mxu0 0.0
    %2477 = vmatprep.subr.mxu0 0.0
    %2478 = vmatpush1.msra.mxu0 0.0
    %2479 = vmatprep.subr.mxu0 0.0
    %2480 = vmatpush1.msra.mxu0 0.0
    %2481 = vmatprep.subr.mxu0 0.0
    %2482 = vmatpush1.msra.mxu0 0.0
    %2483 = vmatprep.subr.mxu0 0.0
    %2484 = vmatpush1.msra.mxu0 0.0
    %2485 = vmatprep.subr.mxu0 0.0
    %2486 = vmatpush1.msra.mxu0 0.0
    %2487 = vmatprep.subr.mxu0 0.0
    %2488 = vmatpush1.msra.mxu0 0.0
    %2489 = vmatprep.subr.mxu0 0.0
    %2490 = vmatpush1.msra.mxu0 0.0
    %2491 = vmatprep.subr.mxu0 0.0
    %2492 = vmatpush1.msra.mxu0 0.0
    %2493 = vmatprep.subr.mxu0 0.0
    %2494 = vmatpush1.msra.mxu0 0.0
    %2495 = vmatprep.subr.mxu0 0.0
    %2496 = vmatpush1.msra.mxu0 0.0
    %2497 = vmatprep.subr.mxu0 0.0
    %2498 = vmatpush1.msra.mxu0 0.0
    %2499 = vmatprep.subr.mxu0 0.0
    %2500 = vmatpush1.msra.mxu0 0.0
    %2501 = vmatprep.subr.mxu0 0.0
    %2502 = vmatpush1.msra.mxu0 0.0
    %2503 = vmatprep.subr.mxu0 0.0
    %2504 = vmatpush1.msra.mxu0 0.0
    %2505 = vmatprep.subr.mxu0 0.0
    %2506 = vmatpush1.msra.mxu0 0.0
    %2507 = vmatprep.subr.mxu0 0.0
    %2508 = vmatpush1.msra.mxu0 0.0
    %2509 = vmatprep.subr.mxu0 0.0
    %2510 = vmatpush1.msra.mxu0 0.0
    %2511 = vmatprep.mubr.f32.mxu0 0.0
    %2512 = vmatmul.mubr.f32.gmra.mrb[0].mxu0 %v2216
    %v2513 = vpop.f32.mrb[0].mxu0
    %v2514 = vadd.f32 0.0, %v2513
    %v2515 = vpop.f32.mrb[0].mxu0
    %2516 = vdwg.mxu0
    %v2517 = vadd.f32 %v2446, %v2514
    %v2518 = vxor.u32 %v2517, 2147483648
    %v2519 = vmul.f32 %v2518, 1.442695
    %v2520 = vpow.pop %v2519
    %v2521 = vadd.f32 %v2520, 1.0
    %v2522 = vrcp.pop %v2521
    %v2523 = vmul.f32 1.0, %v2522
    %v2524 = vmul.f32 %v2372, %v2210
    %v2525 = vmul.f32 %v2294, %v2445
    %v2526 = vadd.f32 %v2524, %v2525
    %v2527 = vtanh.pop %v2526
    %v2528 = vmul.f32 %v2523, %v2527
    %2529 = vst.msk [vmem:[#allocation6 + $0x28] sm:$0xff] %vm234, %v2528
    %v2530 = vld [vmem:[#allocation2 + $0x30] sm:$0xff]
    %v2532 = vsel %vm234, %v2528, 0
    %2534 = vmatprep.subr.mxu0 0.0
    %2535 = vmatpush1.msra.mxu0 %v615
    %2536 = vmatprep.subr.mxu0 0.0
    %2537 = vmatpush1.msra.mxu0 %v616
    %2538 = vmatprep.subr.mxu0 0.0
    %2539 = vmatpush1.msra.mxu0 %v617
    %2540 = vmatprep.subr.mxu0 0.0
    %2541 = vmatpush1.msra.mxu0 %v618
    %2542 = vmatprep.subr.mxu0 0.0
    %2543 = vmatpush1.msra.mxu0 0.0
    %2544 = vmatprep.subr.mxu0 0.0
    %2545 = vmatpush1.msra.mxu0 0.0
    %2546 = vmatprep.subr.mxu0 0.0
    %2547 = vmatpush1.msra.mxu0 0.0
    %2548 = vmatprep.subr.mxu0 0.0
    %2549 = vmatpush1.msra.mxu0 0.0
    %2550 = vmatprep.subr.mxu0 0.0
    %2551 = vmatpush1.msra.mxu0 0.0
    %2552 = vmatprep.subr.mxu0 0.0
    %2553 = vmatpush1.msra.mxu0 0.0
    %2554 = vmatprep.subr.mxu0 0.0
    %2555 = vmatpush1.msra.mxu0 0.0
    %2556 = vmatprep.subr.mxu0 0.0
    %2557 = vmatpush1.msra.mxu0 0.0
    %2558 = vmatprep.subr.mxu0 0.0
    %2559 = vmatpush1.msra.mxu0 0.0
    %2560 = vmatprep.subr.mxu0 0.0
    %2561 = vmatpush1.msra.mxu0 0.0
    %2562 = vmatprep.subr.mxu0 0.0
    %2563 = vmatpush1.msra.mxu0 0.0
    %2564 = vmatprep.subr.mxu0 0.0
    %2565 = vmatpush1.msra.mxu0 0.0
    %2566 = vmatprep.subr.mxu0 0.0
    %2567 = vmatpush1.msra.mxu0 0.0
    %2568 = vmatprep.subr.mxu0 0.0
    %2569 = vmatpush1.msra.mxu0 0.0
    %2570 = vmatprep.subr.mxu0 0.0
    %2571 = vmatpush1.msra.mxu0 0.0
    %2572 = vmatprep.subr.mxu0 0.0
    %2573 = vmatpush1.msra.mxu0 0.0
    %2574 = vmatprep.subr.mxu0 0.0
    %2575 = vmatpush1.msra.mxu0 0.0
    %2576 = vmatprep.subr.mxu0 0.0
    %2577 = vmatpush1.msra.mxu0 0.0
    %2578 = vmatprep.subr.mxu0 0.0
    %2579 = vmatpush1.msra.mxu0 0.0
    %2580 = vmatprep.subr.mxu0 0.0
    %2581 = vmatpush1.msra.mxu0 0.0
    %2582 = vmatprep.subr.mxu0 0.0
    %2583 = vmatpush1.msra.mxu0 0.0
    %2584 = vmatprep.subr.mxu0 0.0
    %2585 = vmatpush1.msra.mxu0 0.0
    %2586 = vmatprep.subr.mxu0 0.0
    %2587 = vmatpush1.msra.mxu0 0.0
    %2588 = vmatprep.subr.mxu0 0.0
    %2589 = vmatpush1.msra.mxu0 0.0
    %2590 = vmatprep.subr.mxu0 0.0
    %2591 = vmatpush1.msra.mxu0 0.0
    %2592 = vmatprep.subr.mxu0 0.0
    %2593 = vmatpush1.msra.mxu0 0.0
    %2594 = vmatprep.subr.mxu0 0.0
    %2595 = vmatpush1.msra.mxu0 0.0
    %2596 = vmatprep.subr.mxu0 0.0
    %2597 = vmatpush1.msra.mxu0 0.0
    %2598 = vmatprep.mubr.f32.mxu0 0.0
    %2599 = vmatmul.mubr.f32.gmra.mrb[0].mxu0 %v2532
    %v2600 = vpop.f32.mrb[0].mxu0
    %v2601 = vadd.f32 0.0, %v2600
    %v2602 = vpop.f32.mrb[0].mxu0
    %2603 = vdwg.mxu0
    %v2604 = vadd.f32 %v2530, %v2601
    %v2605 = vxor.u32 %v2604, 2147483648
    %v2606 = vmul.f32 %v2605, 1.442695
    %v2607 = vpow.pop %v2606
    %v2608 = vadd.f32 %v2607, 1.0
    %v2609 = vrcp.pop %v2608
    %v2610 = vmul.f32 1.0, %v2609
    %v2611 = vld [vmem:[#allocation3 + $0x30] sm:$0xff]
    %2612 = vmatprep.subr.mxu0 0.0
    %2613 = vmatpush1.msra.mxu0 %v620
    %2614 = vmatprep.subr.mxu0 0.0
    %2615 = vmatpush1.msra.mxu0 %v621
    %2616 = vmatprep.subr.mxu0 0.0
    %2617 = vmatpush1.msra.mxu0 %v622
    %2618 = vmatprep.subr.mxu0 0.0
    %2619 = vmatpush1.msra.mxu0 %v623
    %2620 = vmatprep.subr.mxu0 0.0
    %2621 = vmatpush1.msra.mxu0 0.0
    %2622 = vmatprep.subr.mxu0 0.0
    %2623 = vmatpush1.msra.mxu0 0.0
    %2624 = vmatprep.subr.mxu0 0.0
    %2625 = vmatpush1.msra.mxu0 0.0
    %2626 = vmatprep.subr.mxu0 0.0
    %2627 = vmatpush1.msra.mxu0 0.0
    %2628 = vmatprep.subr.mxu0 0.0
    %2629 = vmatpush1.msra.mxu0 0.0
    %2630 = vmatprep.subr.mxu0 0.0
    %2631 = vmatpush1.msra.mxu0 0.0
    %2632 = vmatprep.subr.mxu0 0.0
    %2633 = vmatpush1.msra.mxu0 0.0
    %2634 = vmatprep.subr.mxu0 0.0
    %2635 = vmatpush1.msra.mxu0 0.0
    %2636 = vmatprep.subr.mxu0 0.0
    %2637 = vmatpush1.msra.mxu0 0.0
    %2638 = vmatprep.subr.mxu0 0.0
    %2639 = vmatpush1.msra.mxu0 0.0
    %2640 = vmatprep.subr.mxu0 0.0
    %2641 = vmatpush1.msra.mxu0 0.0
    %2642 = vmatprep.subr.mxu0 0.0
    %2643 = vmatpush1.msra.mxu0 0.0
    %2644 = vmatprep.subr.mxu0 0.0
    %2645 = vmatpush1.msra.mxu0 0.0
    %2646 = vmatprep.subr.mxu0 0.0
    %2647 = vmatpush1.msra.mxu0 0.0
    %2648 = vmatprep.subr.mxu0 0.0
    %2649 = vmatpush1.msra.mxu0 0.0
    %2650 = vmatprep.subr.mxu0 0.0
    %2651 = vmatpush1.msra.mxu0 0.0
    %2652 = vmatprep.subr.mxu0 0.0
    %2653 = vmatpush1.msra.mxu0 0.0
    %2654 = vmatprep.subr.mxu0 0.0
    %2655 = vmatpush1.msra.mxu0 0.0
    %2656 = vmatprep.subr.mxu0 0.0
    %2657 = vmatpush1.msra.mxu0 0.0
    %2658 = vmatprep.subr.mxu0 0.0
    %2659 = vmatpush1.msra.mxu0 0.0
    %2660 = vmatprep.subr.mxu0 0.0
    %2661 = vmatpush1.msra.mxu0 0.0
    %2662 = vmatprep.subr.mxu0 0.0
    %2663 = vmatpush1.msra.mxu0 0.0
    %2664 = vmatprep.subr.mxu0 0.0
    %2665 = vmatpush1.msra.mxu0 0.0
    %2666 = vmatprep.subr.mxu0 0.0
    %2667 = vmatpush1.msra.mxu0 0.0
    %2668 = vmatprep.subr.mxu0 0.0
    %2669 = vmatpush1.msra.mxu0 0.0
    %2670 = vmatprep.subr.mxu0 0.0
    %2671 = vmatpush1.msra.mxu0 0.0
    %2672 = vmatprep.subr.mxu0 0.0
    %2673 = vmatpush1.msra.mxu0 0.0
    %2674 = vmatprep.subr.mxu0 0.0
    %2675 = vmatpush1.msra.mxu0 0.0
    %2676 = vmatprep.mubr.f32.mxu0 0.0
    %2677 = vmatmul.mubr.f32.gmra.mrb[0].mxu0 %v2532
    %v2678 = vpop.f32.mrb[0].mxu0
    %v2679 = vadd.f32 0.0, %v2678
    %v2680 = vpop.f32.mrb[0].mxu0
    %2681 = vdwg.mxu0
    %v2682 = vadd.f32 %v2611, %v2679
    %v2683 = vxor.u32 %v2682, 2147483648
    %v2684 = vmul.f32 %v2683, 1.442695
    %v2685 = vpow.pop %v2684
    %v2686 = vadd.f32 %v2685, 1.0
    %v2687 = vrcp.pop %v2686
    %v2688 = vmul.f32 1.0, %v2687
    %v2689 = vld [vmem:[#allocation4 + $0x30] sm:$0xff]
    %2690 = vmatprep.subr.mxu0 0.0
    %2691 = vmatpush1.msra.mxu0 %v625
    %2692 = vmatprep.subr.mxu0 0.0
    %2693 = vmatpush1.msra.mxu0 %v626
    %2694 = vmatprep.subr.mxu0 0.0
    %2695 = vmatpush1.msra.mxu0 %v627
    %2696 = vmatprep.subr.mxu0 0.0
    %2697 = vmatpush1.msra.mxu0 %v628
    %2698 = vmatprep.subr.mxu0 0.0
    %2699 = vmatpush1.msra.mxu0 0.0
    %2700 = vmatprep.subr.mxu0 0.0
    %2701 = vmatpush1.msra.mxu0 0.0
    %2702 = vmatprep.subr.mxu0 0.0
    %2703 = vmatpush1.msra.mxu0 0.0
    %2704 = vmatprep.subr.mxu0 0.0
    %2705 = vmatpush1.msra.mxu0 0.0
    %2706 = vmatprep.subr.mxu0 0.0
    %2707 = vmatpush1.msra.mxu0 0.0
    %2708 = vmatprep.subr.mxu0 0.0
    %2709 = vmatpush1.msra.mxu0 0.0
    %2710 = vmatprep.subr.mxu0 0.0
    %2711 = vmatpush1.msra.mxu0 0.0
    %2712 = vmatprep.subr.mxu0 0.0
    %2713 = vmatpush1.msra.mxu0 0.0
    %2714 = vmatprep.subr.mxu0 0.0
    %2715 = vmatpush1.msra.mxu0 0.0
    %2716 = vmatprep.subr.mxu0 0.0
    %2717 = vmatpush1.msra.mxu0 0.0
    %2718 = vmatprep.subr.mxu0 0.0
    %2719 = vmatpush1.msra.mxu0 0.0
    %2720 = vmatprep.subr.mxu0 0.0
    %2721 = vmatpush1.msra.mxu0 0.0
    %2722 = vmatprep.subr.mxu0 0.0
    %2723 = vmatpush1.msra.mxu0 0.0
    %2724 = vmatprep.subr.mxu0 0.0
    %2725 = vmatpush1.msra.mxu0 0.0
    %2726 = vmatprep.subr.mxu0 0.0
    %2727 = vmatpush1.msra.mxu0 0.0
    %2728 = vmatprep.subr.mxu0 0.0
    %2729 = vmatpush1.msra.mxu0 0.0
    %2730 = vmatprep.subr.mxu0 0.0
    %2731 = vmatpush1.msra.mxu0 0.0
    %2732 = vmatprep.subr.mxu0 0.0
    %2733 = vmatpush1.msra.mxu0 0.0
    %2734 = vmatprep.subr.mxu0 0.0
    %2735 = vmatpush1.msra.mxu0 0.0
    %2736 = vmatprep.subr.mxu0 0.0
    %2737 = vmatpush1.msra.mxu0 0.0
    %2738 = vmatprep.subr.mxu0 0.0
    %2739 = vmatpush1.msra.mxu0 0.0
    %2740 = vmatprep.subr.mxu0 0.0
    %2741 = vmatpush1.msra.mxu0 0.0
    %2742 = vmatprep.subr.mxu0 0.0
    %2743 = vmatpush1.msra.mxu0 0.0
    %2744 = vmatprep.subr.mxu0 0.0
    %2745 = vmatpush1.msra.mxu0 0.0
    %2746 = vmatprep.subr.mxu0 0.0
    %2747 = vmatpush1.msra.mxu0 0.0
    %2748 = vmatprep.subr.mxu0 0.0
    %2749 = vmatpush1.msra.mxu0 0.0
    %2750 = vmatprep.subr.mxu0 0.0
    %2751 = vmatpush1.msra.mxu0 0.0
    %2752 = vmatprep.subr.mxu0 0.0
    %2753 = vmatpush1.msra.mxu0 0.0
    %2754 = vmatprep.mubr.f32.mxu0 0.0
    %2755 = vmatmul.mubr.f32.gmra.mrb[0].mxu0 %v2532
    %v2756 = vpop.f32.mrb[0].mxu0
    %v2757 = vadd.f32 0.0, %v2756
    %v2758 = vpop.f32.mrb[0].mxu0
    %2759 = vdwg.mxu0
    %v2760 = vadd.f32 %v2689, %v2757
    %v2761 = vtanh.pop %v2760
    %v2762 = vld [vmem:[#allocation5 + $0x30] sm:$0xff]
    %2763 = vmatprep.subr.mxu0 0.0
    %2764 = vmatpush1.msra.mxu0 %v630
    %2765 = vmatprep.subr.mxu0 0.0
    %2766 = vmatpush1.msra.mxu0 %v631
    %2767 = vmatprep.subr.mxu0 0.0
    %2768 = vmatpush1.msra.mxu0 %v632
    %2769 = vmatprep.subr.mxu0 0.0
    %2770 = vmatpush1.msra.mxu0 %v633
    %2771 = vmatprep.subr.mxu0 0.0
    %2772 = vmatpush1.msra.mxu0 0.0
    %2773 = vmatprep.subr.mxu0 0.0
    %2774 = vmatpush1.msra.mxu0 0.0
    %2775 = vmatprep.subr.mxu0 0.0
    %2776 = vmatpush1.msra.mxu0 0.0
    %2777 = vmatprep.subr.mxu0 0.0
    %2778 = vmatpush1.msra.mxu0 0.0
    %2779 = vmatprep.subr.mxu0 0.0
    %2780 = vmatpush1.msra.mxu0 0.0
    %2781 = vmatprep.subr.mxu0 0.0
    %2782 = vmatpush1.msra.mxu0 0.0
    %2783 = vmatprep.subr.mxu0 0.0
    %2784 = vmatpush1.msra.mxu0 0.0
    %2785 = vmatprep.subr.mxu0 0.0
    %2786 = vmatpush1.msra.mxu0 0.0
    %2787 = vmatprep.subr.mxu0 0.0
    %2788 = vmatpush1.msra.mxu0 0.0
    %2789 = vmatprep.subr.mxu0 0.0
    %2790 = vmatpush1.msra.mxu0 0.0
    %2791 = vmatprep.subr.mxu0 0.0
    %2792 = vmatpush1.msra.mxu0 0.0
    %2793 = vmatprep.subr.mxu0 0.0
    %2794 = vmatpush1.msra.mxu0 0.0
    %2795 = vmatprep.subr.mxu0 0.0
    %2796 = vmatpush1.msra.mxu0 0.0
    %2797 = vmatprep.subr.mxu0 0.0
    %2798 = vmatpush1.msra.mxu0 0.0
    %2799 = vmatprep.subr.mxu0 0.0
    %2800 = vmatpush1.msra.mxu0 0.0
    %2801 = vmatprep.subr.mxu0 0.0
    %2802 = vmatpush1.msra.mxu0 0.0
    %2803 = vmatprep.subr.mxu0 0.0
    %2804 = vmatpush1.msra.mxu0 0.0
    %2805 = vmatprep.subr.mxu0 0.0
    %2806 = vmatpush1.msra.mxu0 0.0
    %2807 = vmatprep.subr.mxu0 0.0
    %2808 = vmatpush1.msra.mxu0 0.0
    %2809 = vmatprep.subr.mxu0 0.0
    %2810 = vmatpush1.msra.mxu0 0.0
    %2811 = vmatprep.subr.mxu0 0.0
    %2812 = vmatpush1.msra.mxu0 0.0
    %2813 = vmatprep.subr.mxu0 0.0
    %2814 = vmatpush1.msra.mxu0 0.0
    %2815 = vmatprep.subr.mxu0 0.0
    %2816 = vmatpush1.msra.mxu0 0.0
    %2817 = vmatprep.subr.mxu0 0.0
    %2818 = vmatpush1.msra.mxu0 0.0
    %2819 = vmatprep.subr.mxu0 0.0
    %2820 = vmatpush1.msra.mxu0 0.0
    %2821 = vmatprep.subr.mxu0 0.0
    %2822 = vmatpush1.msra.mxu0 0.0
    %2823 = vmatprep.subr.mxu0 0.0
    %2824 = vmatpush1.msra.mxu0 0.0
    %2825 = vmatprep.subr.mxu0 0.0
    %2826 = vmatpush1.msra.mxu0 0.0
    %2827 = vmatprep.mubr.f32.mxu0 0.0
    %2828 = vmatmul.mubr.f32.gmra.mrb[0].mxu0 %v2532
    %v2829 = vpop.f32.mrb[0].mxu0
    %v2830 = vadd.f32 0.0, %v2829
    %v2831 = vpop.f32.mrb[0].mxu0
    %2832 = vdwg.mxu0
    %v2833 = vadd.f32 %v2762, %v2830
    %v2834 = vxor.u32 %v2833, 2147483648
    %v2835 = vmul.f32 %v2834, 1.442695
    %v2836 = vpow.pop %v2835
    %v2837 = vadd.f32 %v2836, 1.0
    %v2838 = vrcp.pop %v2837
    %v2839 = vmul.f32 1.0, %v2838
    %v2840 = vmul.f32 %v2688, %v2526
    %v2841 = vmul.f32 %v2610, %v2761
    %v2842 = vadd.f32 %v2840, %v2841
    %v2843 = vtanh.pop %v2842
    %v2844 = vmul.f32 %v2839, %v2843
    %2845 = vst.msk [vmem:[#allocation6 + $0x30] sm:$0xff] %vm234, %v2844
    %v2846 = vld [vmem:[#allocation2 + $0x38] sm:$0xff]
    %v2848 = vsel %vm234, %v2844, 0
    %2850 = vmatprep.subr.mxu0 0.0
    %2851 = vmatpush1.msra.mxu0 %v615
    %2852 = vmatprep.subr.mxu0 0.0
    %2853 = vmatpush1.msra.mxu0 %v616
    %2854 = vmatprep.subr.mxu0 0.0
    %2855 = vmatpush1.msra.mxu0 %v617
    %2856 = vmatprep.subr.mxu0 0.0
    %2857 = vmatpush1.msra.mxu0 %v618
    %2858 = vmatprep.subr.mxu0 0.0
    %2859 = vmatpush1.msra.mxu0 0.0
    %2860 = vmatprep.subr.mxu0 0.0
    %2861 = vmatpush1.msra.mxu0 0.0
    %2862 = vmatprep.subr.mxu0 0.0
    %2863 = vmatpush1.msra.mxu0 0.0
    %2864 = vmatprep.subr.mxu0 0.0
    %2865 = vmatpush1.msra.mxu0 0.0
    %2866 = vmatprep.subr.mxu0 0.0
    %2867 = vmatpush1.msra.mxu0 0.0
    %2868 = vmatprep.subr.mxu0 0.0
    %2869 = vmatpush1.msra.mxu0 0.0
    %2870 = vmatprep.subr.mxu0 0.0
    %2871 = vmatpush1.msra.mxu0 0.0
    %2872 = vmatprep.subr.mxu0 0.0
    %2873 = vmatpush1.msra.mxu0 0.0
    %2874 = vmatprep.subr.mxu0 0.0
    %2875 = vmatpush1.msra.mxu0 0.0
    %2876 = vmatprep.subr.mxu0 0.0
    %2877 = vmatpush1.msra.mxu0 0.0
    %2878 = vmatprep.subr.mxu0 0.0
    %2879 = vmatpush1.msra.mxu0 0.0
    %2880 = vmatprep.subr.mxu0 0.0
    %2881 = vmatpush1.msra.mxu0 0.0
    %2882 = vmatprep.subr.mxu0 0.0
    %2883 = vmatpush1.msra.mxu0 0.0
    %2884 = vmatprep.subr.mxu0 0.0
    %2885 = vmatpush1.msra.mxu0 0.0
    %2886 = vmatprep.subr.mxu0 0.0
    %2887 = vmatpush1.msra.mxu0 0.0
    %2888 = vmatprep.subr.mxu0 0.0
    %2889 = vmatpush1.msra.mxu0 0.0
    %2890 = vmatprep.subr.mxu0 0.0
    %2891 = vmatpush1.msra.mxu0 0.0
    %2892 = vmatprep.subr.mxu0 0.0
    %2893 = vmatpush1.msra.mxu0 0.0
    %2894 = vmatprep.subr.mxu0 0.0
    %2895 = vmatpush1.msra.mxu0 0.0
    %2896 = vmatprep.subr.mxu0 0.0
    %2897 = vmatpush1.msra.mxu0 0.0
    %2898 = vmatprep.subr.mxu0 0.0
    %2899 = vmatpush1.msra.mxu0 0.0
    %2900 = vmatprep.subr.mxu0 0.0
    %2901 = vmatpush1.msra.mxu0 0.0
    %2902 = vmatprep.subr.mxu0 0.0
    %2903 = vmatpush1.msra.mxu0 0.0
    %2904 = vmatprep.subr.mxu0 0.0
    %2905 = vmatpush1.msra.mxu0 0.0
    %2906 = vmatprep.subr.mxu0 0.0
    %2907 = vmatpush1.msra.mxu0 0.0
    %2908 = vmatprep.subr.mxu0 0.0
    %2909 = vmatpush1.msra.mxu0 0.0
    %2910 = vmatprep.subr.mxu0 0.0
    %2911 = vmatpush1.msra.mxu0 0.0
    %2912 = vmatprep.subr.mxu0 0.0
    %2913 = vmatpush1.msra.mxu0 0.0
    %2914 = vmatprep.mubr.f32.mxu0 0.0
    %2915 = vmatmul.mubr.f32.gmra.mrb[0].mxu0 %v2848
    %v2916 = vpop.f32.mrb[0].mxu0
    %v2917 = vadd.f32 0.0, %v2916
    %v2918 = vpop.f32.mrb[0].mxu0
    %2919 = vdwg.mxu0
    %v2920 = vadd.f32 %v2846, %v2917
    %v2921 = vxor.u32 %v2920, 2147483648
    %v2922 = vmul.f32 %v2921, 1.442695
    %v2923 = vpow.pop %v2922
    %v2924 = vadd.f32 %v2923, 1.0
    %v2925 = vrcp.pop %v2924
    %v2926 = vmul.f32 1.0, %v2925
    %v2927 = vld [vmem:[#allocation3 + $0x38] sm:$0xff]
    %2928 = vmatprep.subr.mxu0 0.0
    %2929 = vmatpush1.msra.mxu0 %v620
    %2930 = vmatprep.subr.mxu0 0.0
    %2931 = vmatpush1.msra.mxu0 %v621
    %2932 = vmatprep.subr.mxu0 0.0
    %2933 = vmatpush1.msra.mxu0 %v622
    %2934 = vmatprep.subr.mxu0 0.0
    %2935 = vmatpush1.msra.mxu0 %v623
    %2936 = vmatprep.subr.mxu0 0.0
    %2937 = vmatpush1.msra.mxu0 0.0
    %2938 = vmatprep.subr.mxu0 0.0
    %2939 = vmatpush1.msra.mxu0 0.0
    %2940 = vmatprep.subr.mxu0 0.0
    %2941 = vmatpush1.msra.mxu0 0.0
    %2942 = vmatprep.subr.mxu0 0.0
    %2943 = vmatpush1.msra.mxu0 0.0
    %2944 = vmatprep.subr.mxu0 0.0
    %2945 = vmatpush1.msra.mxu0 0.0
    %2946 = vmatprep.subr.mxu0 0.0
    %2947 = vmatpush1.msra.mxu0 0.0
    %2948 = vmatprep.subr.mxu0 0.0
    %2949 = vmatpush1.msra.mxu0 0.0
    %2950 = vmatprep.subr.mxu0 0.0
    %2951 = vmatpush1.msra.mxu0 0.0
    %2952 = vmatprep.subr.mxu0 0.0
    %2953 = vmatpush1.msra.mxu0 0.0
    %2954 = vmatprep.subr.mxu0 0.0
    %2955 = vmatpush1.msra.mxu0 0.0
    %2956 = vmatprep.subr.mxu0 0.0
    %2957 = vmatpush1.msra.mxu0 0.0
    %2958 = vmatprep.subr.mxu0 0.0
    %2959 = vmatpush1.msra.mxu0 0.0
    %2960 = vmatprep.subr.mxu0 0.0
    %2961 = vmatpush1.msra.mxu0 0.0
    %2962 = vmatprep.subr.mxu0 0.0
    %2963 = vmatpush1.msra.mxu0 0.0
    %2964 = vmatprep.subr.mxu0 0.0
    %2965 = vmatpush1.msra.mxu0 0.0
    %2966 = vmatprep.subr.mxu0 0.0
    %2967 = vmatpush1.msra.mxu0 0.0
    %2968 = vmatprep.subr.mxu0 0.0
    %2969 = vmatpush1.msra.mxu0 0.0
    %2970 = vmatprep.subr.mxu0 0.0
    %2971 = vmatpush1.msra.mxu0 0.0
    %2972 = vmatprep.subr.mxu0 0.0
    %2973 = vmatpush1.msra.mxu0 0.0
    %2974 = vmatprep.subr.mxu0 0.0
    %2975 = vmatpush1.msra.mxu0 0.0
    %2976 = vmatprep.subr.mxu0 0.0
    %2977 = vmatpush1.msra.mxu0 0.0
    %2978 = vmatprep.subr.mxu0 0.0
    %2979 = vmatpush1.msra.mxu0 0.0
    %2980 = vmatprep.subr.mxu0 0.0
    %2981 = vmatpush1.msra.mxu0 0.0
    %2982 = vmatprep.subr.mxu0 0.0
    %2983 = vmatpush1.msra.mxu0 0.0
    %2984 = vmatprep.subr.mxu0 0.0
    %2985 = vmatpush1.msra.mxu0 0.0
    %2986 = vmatprep.subr.mxu0 0.0
    %2987 = vmatpush1.msra.mxu0 0.0
    %2988 = vmatprep.subr.mxu0 0.0
    %2989 = vmatpush1.msra.mxu0 0.0
    %2990 = vmatprep.subr.mxu0 0.0
    %2991 = vmatpush1.msra.mxu0 0.0
    %2992 = vmatprep.mubr.f32.mxu0 0.0
    %2993 = vmatmul.mubr.f32.gmra.mrb[0].mxu0 %v2848
    %v2994 = vpop.f32.mrb[0].mxu0
    %v2995 = vadd.f32 0.0, %v2994
    %v2996 = vpop.f32.mrb[0].mxu0
    %2997 = vdwg.mxu0
    %v2998 = vadd.f32 %v2927, %v2995
    %v2999 = vxor.u32 %v2998, 2147483648
    %v3000 = vmul.f32 %v2999, 1.442695
    %v3001 = vpow.pop %v3000
    %v3002 = vadd.f32 %v3001, 1.0
    %v3003 = vrcp.pop %v3002
    %v3004 = vmul.f32 1.0, %v3003
    %v3005 = vld [vmem:[#allocation4 + $0x38] sm:$0xff]
    %3006 = vmatprep.subr.mxu0 0.0
    %3007 = vmatpush1.msra.mxu0 %v625
    %3008 = vmatprep.subr.mxu0 0.0
    %3009 = vmatpush1.msra.mxu0 %v626
    %3010 = vmatprep.subr.mxu0 0.0
    %3011 = vmatpush1.msra.mxu0 %v627
    %3012 = vmatprep.subr.mxu0 0.0
    %3013 = vmatpush1.msra.mxu0 %v628
    %3014 = vmatprep.subr.mxu0 0.0
    %3015 = vmatpush1.msra.mxu0 0.0
    %3016 = vmatprep.subr.mxu0 0.0
    %3017 = vmatpush1.msra.mxu0 0.0
    %3018 = vmatprep.subr.mxu0 0.0
    %3019 = vmatpush1.msra.mxu0 0.0
    %3020 = vmatprep.subr.mxu0 0.0
    %3021 = vmatpush1.msra.mxu0 0.0
    %3022 = vmatprep.subr.mxu0 0.0
    %3023 = vmatpush1.msra.mxu0 0.0
    %3024 = vmatprep.subr.mxu0 0.0
    %3025 = vmatpush1.msra.mxu0 0.0
    %3026 = vmatprep.subr.mxu0 0.0
    %3027 = vmatpush1.msra.mxu0 0.0
    %3028 = vmatprep.subr.mxu0 0.0
    %3029 = vmatpush1.msra.mxu0 0.0
    %3030 = vmatprep.subr.mxu0 0.0
    %3031 = vmatpush1.msra.mxu0 0.0
    %3032 = vmatprep.subr.mxu0 0.0
    %3033 = vmatpush1.msra.mxu0 0.0
    %3034 = vmatprep.subr.mxu0 0.0
    %3035 = vmatpush1.msra.mxu0 0.0
    %3036 = vmatprep.subr.mxu0 0.0
    %3037 = vmatpush1.msra.mxu0 0.0
    %3038 = vmatprep.subr.mxu0 0.0
    %3039 = vmatpush1.msra.mxu0 0.0
    %3040 = vmatprep.subr.mxu0 0.0
    %3041 = vmatpush1.msra.mxu0 0.0
    %3042 = vmatprep.subr.mxu0 0.0
    %3043 = vmatpush1.msra.mxu0 0.0
    %3044 = vmatprep.subr.mxu0 0.0
    %3045 = vmatpush1.msra.mxu0 0.0
    %3046 = vmatprep.subr.mxu0 0.0
    %3047 = vmatpush1.msra.mxu0 0.0
    %3048 = vmatprep.subr.mxu0 0.0
    %3049 = vmatpush1.msra.mxu0 0.0
    %3050 = vmatprep.subr.mxu0 0.0
    %3051 = vmatpush1.msra.mxu0 0.0
    %3052 = vmatprep.subr.mxu0 0.0
    %3053 = vmatpush1.msra.mxu0 0.0
    %3054 = vmatprep.subr.mxu0 0.0
    %3055 = vmatpush1.msra.mxu0 0.0
    %3056 = vmatprep.subr.mxu0 0.0
    %3057 = vmatpush1.msra.mxu0 0.0
    %3058 = vmatprep.subr.mxu0 0.0
    %3059 = vmatpush1.msra.mxu0 0.0
    %3060 = vmatprep.subr.mxu0 0.0
    %3061 = vmatpush1.msra.mxu0 0.0
    %3062 = vmatprep.subr.mxu0 0.0
    %3063 = vmatpush1.msra.mxu0 0.0
    %3064 = vmatprep.subr.mxu0 0.0
    %3065 = vmatpush1.msra.mxu0 0.0
    %3066 = vmatprep.subr.mxu0 0.0
    %3067 = vmatpush1.msra.mxu0 0.0
    %3068 = vmatprep.subr.mxu0 0.0
    %3069 = vmatpush1.msra.mxu0 0.0
    %3070 = vmatprep.mubr.f32.mxu0 0.0
    %3071 = vmatmul.mubr.f32.gmra.mrb[0].mxu0 %v2848
    %v3072 = vpop.f32.mrb[0].mxu0
    %v3073 = vadd.f32 0.0, %v3072
    %v3074 = vpop.f32.mrb[0].mxu0
    %3075 = vdwg.mxu0
    %v3076 = vadd.f32 %v3005, %v3073
    %v3077 = vtanh.pop %v3076
    %v3078 = vld [vmem:[#allocation5 + $0x38] sm:$0xff]
    %3079 = vmatprep.subr.mxu0 0.0
    %3080 = vmatpush1.msra.mxu0 %v630
    %3081 = vmatprep.subr.mxu0 0.0
    %3082 = vmatpush1.msra.mxu0 %v631
    %3083 = vmatprep.subr.mxu0 0.0
    %3084 = vmatpush1.msra.mxu0 %v632
    %3085 = vmatprep.subr.mxu0 0.0
    %3086 = vmatpush1.msra.mxu0 %v633
    %3087 = vmatprep.subr.mxu0 0.0
    %3088 = vmatpush1.msra.mxu0 0.0
    %3089 = vmatprep.subr.mxu0 0.0
    %3090 = vmatpush1.msra.mxu0 0.0
    %3091 = vmatprep.subr.mxu0 0.0
    %3092 = vmatpush1.msra.mxu0 0.0
    %3093 = vmatprep.subr.mxu0 0.0
    %3094 = vmatpush1.msra.mxu0 0.0
    %3095 = vmatprep.subr.mxu0 0.0
    %3096 = vmatpush1.msra.mxu0 0.0
    %3097 = vmatprep.subr.mxu0 0.0
    %3098 = vmatpush1.msra.mxu0 0.0
    %3099 = vmatprep.subr.mxu0 0.0
    %3100 = vmatpush1.msra.mxu0 0.0
    %3101 = vmatprep.subr.mxu0 0.0
    %3102 = vmatpush1.msra.mxu0 0.0
    %3103 = vmatprep.subr.mxu0 0.0
    %3104 = vmatpush1.msra.mxu0 0.0
    %3105 = vmatprep.subr.mxu0 0.0
    %3106 = vmatpush1.msra.mxu0 0.0
    %3107 = vmatprep.subr.mxu0 0.0
    %3108 = vmatpush1.msra.mxu0 0.0
    %3109 = vmatprep.subr.mxu0 0.0
    %3110 = vmatpush1.msra.mxu0 0.0
    %3111 = vmatprep.subr.mxu0 0.0
    %3112 = vmatpush1.msra.mxu0 0.0
    %3113 = vmatprep.subr.mxu0 0.0
    %3114 = vmatpush1.msra.mxu0 0.0
    %3115 = vmatprep.subr.mxu0 0.0
    %3116 = vmatpush1.msra.mxu0 0.0
    %3117 = vmatprep.subr.mxu0 0.0
    %3118 = vmatpush1.msra.mxu0 0.0
    %3119 = vmatprep.subr.mxu0 0.0
    %3120 = vmatpush1.msra.mxu0 0.0
    %3121 = vmatprep.subr.mxu0 0.0
    %3122 = vmatpush1.msra.mxu0 0.0
    %3123 = vmatprep.subr.mxu0 0.0
    %3124 = vmatpush1.msra.mxu0 0.0
    %3125 = vmatprep.subr.mxu0 0.0
    %3126 = vmatpush1.msra.mxu0 0.0
    %3127 = vmatprep.subr.mxu0 0.0
    %3128 = vmatpush1.msra.mxu0 0.0
    %3129 = vmatprep.subr.mxu0 0.0
    %3130 = vmatpush1.msra.mxu0 0.0
    %3131 = vmatprep.subr.mxu0 0.0
    %3132 = vmatpush1.msra.mxu0 0.0
    %3133 = vmatprep.subr.mxu0 0.0
    %3134 = vmatpush1.msra.mxu0 0.0
    %3135 = vmatprep.subr.mxu0 0.0
    %3136 = vmatpush1.msra.mxu0 0.0
    %3137 = vmatprep.subr.mxu0 0.0
    %3138 = vmatpush1.msra.mxu0 0.0
    %3139 = vmatprep.subr.mxu0 0.0
    %3140 = vmatpush1.msra.mxu0 0.0
    %3141 = vmatprep.subr.mxu0 0.0
    %3142 = vmatpush1.msra.mxu0 0.0
    %3143 = vmatprep.mubr.f32.mxu0 0.0
    %3144 = vmatmul.mubr.f32.gmra.mrb[0].mxu0 %v2848
    %v3145 = vpop.f32.mrb[0].mxu0
    %v3146 = vadd.f32 0.0, %v3145
    %v3147 = vpop.f32.mrb[0].mxu0
    %3148 = vdwg.mxu0
    %v3149 = vadd.f32 %v3078, %v3146
    %v3150 = vxor.u32 %v3149, 2147483648
    %v3151 = vmul.f32 %v3150, 1.442695
    %v3152 = vpow.pop %v3151
    %v3153 = vadd.f32 %v3152, 1.0
    %v3154 = vrcp.pop %v3153
    %v3155 = vmul.f32 1.0, %v3154
    %v3156 = vmul.f32 %v3004, %v2842
    %v3157 = vmul.f32 %v2926, %v3077
    %v3158 = vadd.f32 %v3156, %v3157
    %v3159 = vtanh.pop %v3158
    %v3160 = vmul.f32 %v3155, %v3159
    %3161 = vst.msk [vmem:[#allocation6 + $0x38] sm:$0xff] %vm234, %v3160
    %v3162 = vld [vmem:[#allocation6] sm:$0xff]
    %v3163 = vld [vmem:[#allocation6 + $0x8] sm:$0xff]
    %v3164 = vld [vmem:[#allocation6 + $0x10] sm:$0xff]
    %v3165 = vld [vmem:[#allocation6 + $0x18] sm:$0xff]
    %v3166 = vld [vmem:[#allocation6 + $0x20] sm:$0xff]
    %v3167 = vld [vmem:[#allocation6 + $0x28] sm:$0xff]
    %v3168 = vld [vmem:[#allocation6 + $0x30] sm:$0xff]
    %v3169 = vld [vmem:[#allocation6 + $0x38] sm:$0xff]
    %v3170 = vld [vmem:[%s4] sm:$0xff]
    %v3171 = vld [vmem:[%s4 + $0x8] sm:$0xff]
    %v3172 = vld [vmem:[%s4 + $0x10] sm:$0xff]
    %v3173 = vld [vmem:[%s4 + $0x18] sm:$0xff]
    %v3174 = vld [vmem:[%s6] sm:$0x1]
    %v3176 = vlaneseq
    %v3177 = vshrl.u32 %v3176, 7
    %v3178 = vsub.s32 0, %v3177
    %v3179 = vrot.slane %v3174, %v3178
    %v3182 = vsel %vm234, %v3162, 0
    %v3185 = vsel %vm234, %v3163, 0
    %v3188 = vsel %vm234, %v3164, 0
    %v3191 = vsel %vm234, %v3165, 0
    %v3194 = vsel %vm234, %v3166, 0
    %v3197 = vsel %vm234, %v3167, 0
    %v3200 = vsel %vm234, %v3168, 0
    %v3203 = vsel %vm234, %v3169, 0
    %3205 = vmatprep.subr.mxu0 0.0
    %3206 = vmatpush1.msra.mxu0 %v3170
    %3207 = vmatprep.subr.mxu0 0.0
    %3208 = vmatpush1.msra.mxu0 %v3171
    %3209 = vmatprep.subr.mxu0 0.0
    %3210 = vmatpush1.msra.mxu0 %v3172
    %3211 = vmatprep.subr.mxu0 0.0
    %3212 = vmatpush1.msra.mxu0 %v3173
    %3213 = vmatprep.subr.mxu0 0.0
    %3214 = vmatpush1.msra.mxu0 0.0
    %3215 = vmatprep.subr.mxu0 0.0
    %3216 = vmatpush1.msra.mxu0 0.0
    %3217 = vmatprep.subr.mxu0 0.0
    %3218 = vmatpush1.msra.mxu0 0.0
    %3219 = vmatprep.subr.mxu0 0.0
    %3220 = vmatpush1.msra.mxu0 0.0
    %3221 = vmatprep.subr.mxu0 0.0
    %3222 = vmatpush1.msra.mxu0 0.0
    %3223 = vmatprep.subr.mxu0 0.0
    %3224 = vmatpush1.msra.mxu0 0.0
    %3225 = vmatprep.subr.mxu0 0.0
    %3226 = vmatpush1.msra.mxu0 0.0
    %3227 = vmatprep.subr.mxu0 0.0
    %3228 = vmatpush1.msra.mxu0 0.0
    %3229 = vmatprep.subr.mxu0 0.0
    %3230 = vmatpush1.msra.mxu0 0.0
    %3231 = vmatprep.subr.mxu0 0.0
    %3232 = vmatpush1.msra.mxu0 0.0
    %3233 = vmatprep.subr.mxu0 0.0
    %3234 = vmatpush1.msra.mxu0 0.0
    %3235 = vmatprep.subr.mxu0 0.0
    %3236 = vmatpush1.msra.mxu0 0.0
    %3237 = vmatprep.subr.mxu0 0.0
    %3238 = vmatpush1.msra.mxu0 0.0
    %3239 = vmatprep.subr.mxu0 0.0
    %3240 = vmatpush1.msra.mxu0 0.0
    %3241 = vmatprep.subr.mxu0 0.0
    %3242 = vmatpush1.msra.mxu0 0.0
    %3243 = vmatprep.subr.mxu0 0.0
    %3244 = vmatpush1.msra.mxu0 0.0
    %3245 = vmatprep.subr.mxu0 0.0
    %3246 = vmatpush1.msra.mxu0 0.0
    %3247 = vmatprep.subr.mxu0 0.0
    %3248 = vmatpush1.msra.mxu0 0.0
    %3249 = vmatprep.subr.mxu0 0.0
    %3250 = vmatpush1.msra.mxu0 0.0
    %3251 = vmatprep.subr.mxu0 0.0
    %3252 = vmatpush1.msra.mxu0 0.0
    %3253 = vmatprep.subr.mxu0 0.0
    %3254 = vmatpush1.msra.mxu0 0.0
    %3255 = vmatprep.subr.mxu0 0.0
    %3256 = vmatpush1.msra.mxu0 0.0
    %3257 = vmatprep.subr.mxu0 0.0
    %3258 = vmatpush1.msra.mxu0 0.0
    %3259 = vmatprep.subr.mxu0 0.0
    %3260 = vmatpush1.msra.mxu0 0.0
    %3261 = vmatprep.subr.mxu0 0.0
    %3262 = vmatpush1.msra.mxu0 0.0
    %3263 = vmatprep.subr.mxu0 0.0
    %3264 = vmatpush1.msra.mxu0 0.0
    %3265 = vmatprep.subr.mxu0 0.0
    %3266 = vmatpush1.msra.mxu0 0.0
    %3267 = vmatprep.subr.mxu0 0.0
    %3268 = vmatpush1.msra.mxu0 0.0
    %3269 = vmatprep.mubr.f32.mxu0 0.0
    %3270 = vmatmul.mubr.f32.gmra.mrb[0].mxu0 %v3182
    %v3271 = vpop.f32.mrb[0].mxu0
    %v3272 = vadd.f32 %v3179, %v3271
    %v3273 = vpop.f32.mrb[0].mxu0
    %3274 = vmatprep.mubr.f32.mxu0 0.0
    %3275 = vmatmul.mubr.f32.gmra.mrb[0].mxu0 %v3185
    %v3276 = vpop.f32.mrb[0].mxu0
    %v3277 = vadd.f32 %v3179, %v3276
    %v3278 = vpop.f32.mrb[0].mxu0
    %3279 = vmatprep.mubr.f32.mxu0 0.0
    %3280 = vmatmul.mubr.f32.gmra.mrb[0].mxu0 %v3188
    %v3281 = vpop.f32.mrb[0].mxu0
    %v3282 = vadd.f32 %v3179, %v3281
    %v3283 = vpop.f32.mrb[0].mxu0
    %3284 = vmatprep.mubr.f32.mxu0 0.0
    %3285 = vmatmul.mubr.f32.gmra.mrb[0].mxu0 %v3191
    %v3286 = vpop.f32.mrb[0].mxu0
    %v3287 = vadd.f32 %v3179, %v3286
    %v3288 = vpop.f32.mrb[0].mxu0
    %3289 = vmatprep.mubr.f32.mxu0 0.0
    %3290 = vmatmul.mubr.f32.gmra.mrb[0].mxu0 %v3194
    %v3291 = vpop.f32.mrb[0].mxu0
    %v3292 = vadd.f32 %v3179, %v3291
    %v3293 = vpop.f32.mrb[0].mxu0
    %3294 = vmatprep.mubr.f32.mxu0 0.0
    %3295 = vmatmul.mubr.f32.gmra.mrb[0].mxu0 %v3197
    %v3296 = vpop.f32.mrb[0].mxu0
    %v3297 = vadd.f32 %v3179, %v3296
    %v3298 = vpop.f32.mrb[0].mxu0
    %3299 = vmatprep.mubr.f32.mxu0 0.0
    %3300 = vmatmul.mubr.f32.gmra.mrb[0].mxu0 %v3200
    %v3301 = vpop.f32.mrb[0].mxu0
    %v3302 = vadd.f32 %v3179, %v3301
    %v3303 = vpop.f32.mrb[0].mxu0
    %3304 = vmatprep.mubr.f32.mxu0 0.0
    %3305 = vmatmul.mubr.f32.gmra.mrb[0].mxu0 %v3203
    %v3306 = vpop.f32.mrb[0].mxu0
    %v3307 = vadd.f32 %v3179, %v3306
    %v3308 = vpop.f32.mrb[0].mxu0
    %3309 = vdwg.mxu0
    %3310 = vst.msk [vmem:[#allocation2] sm:$0xff] %vm234, %v3272
    %3311 = vst.msk [vmem:[#allocation2 + $0x8] sm:$0xff] %vm234, %v3277
    %3312 = vst.msk [vmem:[#allocation2 + $0x10] sm:$0xff] %vm234, %v3282
    %3313 = vst.msk [vmem:[#allocation2 + $0x18] sm:$0xff] %vm234, %v3287
    %3314 = vst.msk [vmem:[#allocation2 + $0x20] sm:$0xff] %vm234, %v3292
    %3315 = vst.msk [vmem:[#allocation2 + $0x28] sm:$0xff] %vm234, %v3297
    %3316 = vst.msk [vmem:[#allocation2 + $0x30] sm:$0xff] %vm234, %v3302
    %3317 = vst.msk [vmem:[#allocation2 + $0x38] sm:$0xff] %vm234, %v3307
    %s3318 = scalar_lea.vmem %s4, 32
    %v3319 = vld [vmem:[%s3318] sm:$0xff]
    %v3320 = vld [vmem:[%s3318 + $0x8] sm:$0xff]
    %v3321 = vld [vmem:[%s3318 + $0x10] sm:$0xff]
    %v3322 = vld [vmem:[%s3318 + $0x18] sm:$0xff]
    %s3323 = scalar_lea.vmem %s6, 1
    %v3324 = vld [vmem:[%s3323] sm:$0x1]
    %v3326 = vlaneseq
    %v3327 = vshrl.u32 %v3326, 7
    %v3328 = vsub.s32 0, %v3327
    %v3329 = vrot.slane %v3324, %v3328
    %3331 = vmatprep.subr.mxu0 0.0
    %3332 = vmatpush1.msra.mxu0 %v3319
    %3333 = vmatprep.subr.mxu0 0.0
    %3334 = vmatpush1.msra.mxu0 %v3320
    %3335 = vmatprep.subr.mxu0 0.0
    %3336 = vmatpush1.msra.mxu0 %v3321
    %3337 = vmatprep.subr.mxu0 0.0
    %3338 = vmatpush1.msra.mxu0 %v3322
    %3339 = vmatprep.subr.mxu0 0.0
    %3340 = vmatpush1.msra.mxu0 0.0
    %3341 = vmatprep.subr.mxu0 0.0
    %3342 = vmatpush1.msra.mxu0 0.0
    %3343 = vmatprep.subr.mxu0 0.0
    %3344 = vmatpush1.msra.mxu0 0.0
    %3345 = vmatprep.subr.mxu0 0.0
    %3346 = vmatpush1.msra.mxu0 0.0
    %3347 = vmatprep.subr.mxu0 0.0
    %3348 = vmatpush1.msra.mxu0 0.0
    %3349 = vmatprep.subr.mxu0 0.0
    %3350 = vmatpush1.msra.mxu0 0.0
    %3351 = vmatprep.subr.mxu0 0.0
    %3352 = vmatpush1.msra.mxu0 0.0
    %3353 = vmatprep.subr.mxu0 0.0
    %3354 = vmatpush1.msra.mxu0 0.0
    %3355 = vmatprep.subr.mxu0 0.0
    %3356 = vmatpush1.msra.mxu0 0.0
    %3357 = vmatprep.subr.mxu0 0.0
    %3358 = vmatpush1.msra.mxu0 0.0
    %3359 = vmatprep.subr.mxu0 0.0
    %3360 = vmatpush1.msra.mxu0 0.0
    %3361 = vmatprep.subr.mxu0 0.0
    %3362 = vmatpush1.msra.mxu0 0.0
    %3363 = vmatprep.subr.mxu0 0.0
    %3364 = vmatpush1.msra.mxu0 0.0
    %3365 = vmatprep.subr.mxu0 0.0
    %3366 = vmatpush1.msra.mxu0 0.0
    %3367 = vmatprep.subr.mxu0 0.0
    %3368 = vmatpush1.msra.mxu0 0.0
    %3369 = vmatprep.subr.mxu0 0.0
    %3370 = vmatpush1.msra.mxu0 0.0
    %3371 = vmatprep.subr.mxu0 0.0
    %3372 = vmatpush1.msra.mxu0 0.0
    %3373 = vmatprep.subr.mxu0 0.0
    %3374 = vmatpush1.msra.mxu0 0.0
    %3375 = vmatprep.subr.mxu0 0.0
    %3376 = vmatpush1.msra.mxu0 0.0
    %3377 = vmatprep.subr.mxu0 0.0
    %3378 = vmatpush1.msra.mxu0 0.0
    %3379 = vmatprep.subr.mxu0 0.0
    %3380 = vmatpush1.msra.mxu0 0.0
    %3381 = vmatprep.subr.mxu0 0.0
    %3382 = vmatpush1.msra.mxu0 0.0
    %3383 = vmatprep.subr.mxu0 0.0
    %3384 = vmatpush1.msra.mxu0 0.0
    %3385 = vmatprep.subr.mxu0 0.0
    %3386 = vmatpush1.msra.mxu0 0.0
    %3387 = vmatprep.subr.mxu0 0.0
    %3388 = vmatpush1.msra.mxu0 0.0
    %3389 = vmatprep.subr.mxu0 0.0
    %3390 = vmatpush1.msra.mxu0 0.0
    %3391 = vmatprep.subr.mxu0 0.0
    %3392 = vmatpush1.msra.mxu0 0.0
    %3393 = vmatprep.subr.mxu0 0.0
    %3394 = vmatpush1.msra.mxu0 0.0
    %3395 = vmatprep.mubr.f32.mxu0 0.0
    %3396 = vmatmul.mubr.f32.gmra.mrb[0].mxu0 %v3182
    %v3397 = vpop.f32.mrb[0].mxu0
    %v3398 = vadd.f32 %v3329, %v3397
    %v3399 = vpop.f32.mrb[0].mxu0
    %3400 = vmatprep.mubr.f32.mxu0 0.0
    %3401 = vmatmul.mubr.f32.gmra.mrb[0].mxu0 %v3185
    %v3402 = vpop.f32.mrb[0].mxu0
    %v3403 = vadd.f32 %v3329, %v3402
    %v3404 = vpop.f32.mrb[0].mxu0
    %3405 = vmatprep.mubr.f32.mxu0 0.0
    %3406 = vmatmul.mubr.f32.gmra.mrb[0].mxu0 %v3188
    %v3407 = vpop.f32.mrb[0].mxu0
    %v3408 = vadd.f32 %v3329, %v3407
    %v3409 = vpop.f32.mrb[0].mxu0
    %3410 = vmatprep.mubr.f32.mxu0 0.0
    %3411 = vmatmul.mubr.f32.gmra.mrb[0].mxu0 %v3191
    %v3412 = vpop.f32.mrb[0].mxu0
    %v3413 = vadd.f32 %v3329, %v3412
    %v3414 = vpop.f32.mrb[0].mxu0
    %3415 = vmatprep.mubr.f32.mxu0 0.0
    %3416 = vmatmul.mubr.f32.gmra.mrb[0].mxu0 %v3194
    %v3417 = vpop.f32.mrb[0].mxu0
    %v3418 = vadd.f32 %v3329, %v3417
    %v3419 = vpop.f32.mrb[0].mxu0
    %3420 = vmatprep.mubr.f32.mxu0 0.0
    %3421 = vmatmul.mubr.f32.gmra.mrb[0].mxu0 %v3197
    %v3422 = vpop.f32.mrb[0].mxu0
    %v3423 = vadd.f32 %v3329, %v3422
    %v3424 = vpop.f32.mrb[0].mxu0
    %3425 = vmatprep.mubr.f32.mxu0 0.0
    %3426 = vmatmul.mubr.f32.gmra.mrb[0].mxu0 %v3200
    %v3427 = vpop.f32.mrb[0].mxu0
    %v3428 = vadd.f32 %v3329, %v3427
    %v3429 = vpop.f32.mrb[0].mxu0
    %3430 = vmatprep.mubr.f32.mxu0 0.0
    %3431 = vmatmul.mubr.f32.gmra.mrb[0].mxu0 %v3203
    %v3432 = vpop.f32.mrb[0].mxu0
    %v3433 = vadd.f32 %v3329, %v3432
    %v3434 = vpop.f32.mrb[0].mxu0
    %3435 = vdwg.mxu0
    %3436 = vst.msk [vmem:[#allocation3] sm:$0xff] %vm234, %v3398
    %3437 = vst.msk [vmem:[#allocation3 + $0x8] sm:$0xff] %vm234, %v3403
    %3438 = vst.msk [vmem:[#allocation3 + $0x10] sm:$0xff] %vm234, %v3408
    %3439 = vst.msk [vmem:[#allocation3 + $0x18] sm:$0xff] %vm234, %v3413
    %3440 = vst.msk [vmem:[#allocation3 + $0x20] sm:$0xff] %vm234, %v3418
    %3441 = vst.msk [vmem:[#allocation3 + $0x28] sm:$0xff] %vm234, %v3423
    %3442 = vst.msk [vmem:[#allocation3 + $0x30] sm:$0xff] %vm234, %v3428
    %3443 = vst.msk [vmem:[#allocation3 + $0x38] sm:$0xff] %vm234, %v3433
    %s3444 = scalar_lea.vmem %s4, 64
    %v3445 = vld [vmem:[%s3444] sm:$0xff]
    %v3446 = vld [vmem:[%s3444 + $0x8] sm:$0xff]
    %v3447 = vld [vmem:[%s3444 + $0x10] sm:$0xff]
    %v3448 = vld [vmem:[%s3444 + $0x18] sm:$0xff]
    %s3449 = scalar_lea.vmem %s6, 2
    %v3450 = vld [vmem:[%s3449] sm:$0x1]
    %v3452 = vlaneseq
    %v3453 = vshrl.u32 %v3452, 7
    %v3454 = vsub.s32 0, %v3453
    %v3455 = vrot.slane %v3450, %v3454
    %3457 = vmatprep.subr.mxu0 0.0
    %3458 = vmatpush1.msra.mxu0 %v3445
    %3459 = vmatprep.subr.mxu0 0.0
    %3460 = vmatpush1.msra.mxu0 %v3446
    %3461 = vmatprep.subr.mxu0 0.0
    %3462 = vmatpush1.msra.mxu0 %v3447
    %3463 = vmatprep.subr.mxu0 0.0
    %3464 = vmatpush1.msra.mxu0 %v3448
    %3465 = vmatprep.subr.mxu0 0.0
    %3466 = vmatpush1.msra.mxu0 0.0
    %3467 = vmatprep.subr.mxu0 0.0
    %3468 = vmatpush1.msra.mxu0 0.0
    %3469 = vmatprep.subr.mxu0 0.0
    %3470 = vmatpush1.msra.mxu0 0.0
    %3471 = vmatprep.subr.mxu0 0.0
    %3472 = vmatpush1.msra.mxu0 0.0
    %3473 = vmatprep.subr.mxu0 0.0
    %3474 = vmatpush1.msra.mxu0 0.0
    %3475 = vmatprep.subr.mxu0 0.0
    %3476 = vmatpush1.msra.mxu0 0.0
    %3477 = vmatprep.subr.mxu0 0.0
    %3478 = vmatpush1.msra.mxu0 0.0
    %3479 = vmatprep.subr.mxu0 0.0
    %3480 = vmatpush1.msra.mxu0 0.0
    %3481 = vmatprep.subr.mxu0 0.0
    %3482 = vmatpush1.msra.mxu0 0.0
    %3483 = vmatprep.subr.mxu0 0.0
    %3484 = vmatpush1.msra.mxu0 0.0
    %3485 = vmatprep.subr.mxu0 0.0
    %3486 = vmatpush1.msra.mxu0 0.0
    %3487 = vmatprep.subr.mxu0 0.0
    %3488 = vmatpush1.msra.mxu0 0.0
    %3489 = vmatprep.subr.mxu0 0.0
    %3490 = vmatpush1.msra.mxu0 0.0
    %3491 = vmatprep.subr.mxu0 0.0
    %3492 = vmatpush1.msra.mxu0 0.0
    %3493 = vmatprep.subr.mxu0 0.0
    %3494 = vmatpush1.msra.mxu0 0.0
    %3495 = vmatprep.subr.mxu0 0.0
    %3496 = vmatpush1.msra.mxu0 0.0
    %3497 = vmatprep.subr.mxu0 0.0
    %3498 = vmatpush1.msra.mxu0 0.0
    %3499 = vmatprep.subr.mxu0 0.0
    %3500 = vmatpush1.msra.mxu0 0.0
    %3501 = vmatprep.subr.mxu0 0.0
    %3502 = vmatpush1.msra.mxu0 0.0
    %3503 = vmatprep.subr.mxu0 0.0
    %3504 = vmatpush1.msra.mxu0 0.0
    %3505 = vmatprep.subr.mxu0 0.0
    %3506 = vmatpush1.msra.mxu0 0.0
    %3507 = vmatprep.subr.mxu0 0.0
    %3508 = vmatpush1.msra.mxu0 0.0
    %3509 = vmatprep.subr.mxu0 0.0
    %3510 = vmatpush1.msra.mxu0 0.0
    %3511 = vmatprep.subr.mxu0 0.0
    %3512 = vmatpush1.msra.mxu0 0.0
    %3513 = vmatprep.subr.mxu0 0.0
    %3514 = vmatpush1.msra.mxu0 0.0
    %3515 = vmatprep.subr.mxu0 0.0
    %3516 = vmatpush1.msra.mxu0 0.0
    %3517 = vmatprep.subr.mxu0 0.0
    %3518 = vmatpush1.msra.mxu0 0.0
    %3519 = vmatprep.subr.mxu0 0.0
    %3520 = vmatpush1.msra.mxu0 0.0
    %3521 = vmatprep.mubr.f32.mxu0 0.0
    %3522 = vmatmul.mubr.f32.gmra.mrb[0].mxu0 %v3182
    %v3523 = vpop.f32.mrb[0].mxu0
    %v3524 = vadd.f32 %v3455, %v3523
    %v3525 = vpop.f32.mrb[0].mxu0
    %3526 = vmatprep.mubr.f32.mxu0 0.0
    %3527 = vmatmul.mubr.f32.gmra.mrb[0].mxu0 %v3185
    %v3528 = vpop.f32.mrb[0].mxu0
    %v3529 = vadd.f32 %v3455, %v3528
    %v3530 = vpop.f32.mrb[0].mxu0
    %3531 = vmatprep.mubr.f32.mxu0 0.0
    %3532 = vmatmul.mubr.f32.gmra.mrb[0].mxu0 %v3188
    %v3533 = vpop.f32.mrb[0].mxu0
    %v3534 = vadd.f32 %v3455, %v3533
    %v3535 = vpop.f32.mrb[0].mxu0
    %3536 = vmatprep.mubr.f32.mxu0 0.0
    %3537 = vmatmul.mubr.f32.gmra.mrb[0].mxu0 %v3191
    %v3538 = vpop.f32.mrb[0].mxu0
    %v3539 = vadd.f32 %v3455, %v3538
    %v3540 = vpop.f32.mrb[0].mxu0
    %3541 = vmatprep.mubr.f32.mxu0 0.0
    %3542 = vmatmul.mubr.f32.gmra.mrb[0].mxu0 %v3194
    %v3543 = vpop.f32.mrb[0].mxu0
    %v3544 = vadd.f32 %v3455, %v3543
    %v3545 = vpop.f32.mrb[0].mxu0
    %3546 = vmatprep.mubr.f32.mxu0 0.0
    %3547 = vmatmul.mubr.f32.gmra.mrb[0].mxu0 %v3197
    %v3548 = vpop.f32.mrb[0].mxu0
    %v3549 = vadd.f32 %v3455, %v3548
    %v3550 = vpop.f32.mrb[0].mxu0
    %3551 = vmatprep.mubr.f32.mxu0 0.0
    %3552 = vmatmul.mubr.f32.gmra.mrb[0].mxu0 %v3200
    %v3553 = vpop.f32.mrb[0].mxu0
    %v3554 = vadd.f32 %v3455, %v3553
    %v3555 = vpop.f32.mrb[0].mxu0
    %3556 = vmatprep.mubr.f32.mxu0 0.0
    %3557 = vmatmul.mubr.f32.gmra.mrb[0].mxu0 %v3203
    %v3558 = vpop.f32.mrb[0].mxu0
    %v3559 = vadd.f32 %v3455, %v3558
    %v3560 = vpop.f32.mrb[0].mxu0
    %3561 = vdwg.mxu0
    %3562 = vst.msk [vmem:[#allocation4] sm:$0xff] %vm234, %v3524
    %3563 = vst.msk [vmem:[#allocation4 + $0x8] sm:$0xff] %vm234, %v3529
    %3564 = vst.msk [vmem:[#allocation4 + $0x10] sm:$0xff] %vm234, %v3534
    %3565 = vst.msk [vmem:[#allocation4 + $0x18] sm:$0xff] %vm234, %v3539
    %3566 = vst.msk [vmem:[#allocation4 + $0x20] sm:$0xff] %vm234, %v3544
    %3567 = vst.msk [vmem:[#allocation4 + $0x28] sm:$0xff] %vm234, %v3549
    %3568 = vst.msk [vmem:[#allocation4 + $0x30] sm:$0xff] %vm234, %v3554
    %3569 = vst.msk [vmem:[#allocation4 + $0x38] sm:$0xff] %vm234, %v3559
    %s3570 = scalar_lea.vmem %s4, 96
    %v3571 = vld [vmem:[%s3570] sm:$0xff]
    %v3572 = vld [vmem:[%s3570 + $0x8] sm:$0xff]
    %v3573 = vld [vmem:[%s3570 + $0x10] sm:$0xff]
    %v3574 = vld [vmem:[%s3570 + $0x18] sm:$0xff]
    %s3575 = scalar_lea.vmem %s6, 3
    %v3576 = vld [vmem:[%s3575] sm:$0x1]
    %v3578 = vlaneseq
    %v3579 = vshrl.u32 %v3578, 7
    %v3580 = vsub.s32 0, %v3579
    %v3581 = vrot.slane %v3576, %v3580
    %3583 = vmatprep.subr.mxu0 0.0
    %3584 = vmatpush1.msra.mxu0 %v3571
    %3585 = vmatprep.subr.mxu0 0.0
    %3586 = vmatpush1.msra.mxu0 %v3572
    %3587 = vmatprep.subr.mxu0 0.0
    %3588 = vmatpush1.msra.mxu0 %v3573
    %3589 = vmatprep.subr.mxu0 0.0
    %3590 = vmatpush1.msra.mxu0 %v3574
    %3591 = vmatprep.subr.mxu0 0.0
    %3592 = vmatpush1.msra.mxu0 0.0
    %3593 = vmatprep.subr.mxu0 0.0
    %3594 = vmatpush1.msra.mxu0 0.0
    %3595 = vmatprep.subr.mxu0 0.0
    %3596 = vmatpush1.msra.mxu0 0.0
    %3597 = vmatprep.subr.mxu0 0.0
    %3598 = vmatpush1.msra.mxu0 0.0
    %3599 = vmatprep.subr.mxu0 0.0
    %3600 = vmatpush1.msra.mxu0 0.0
    %3601 = vmatprep.subr.mxu0 0.0
    %3602 = vmatpush1.msra.mxu0 0.0
    %3603 = vmatprep.subr.mxu0 0.0
    %3604 = vmatpush1.msra.mxu0 0.0
    %3605 = vmatprep.subr.mxu0 0.0
    %3606 = vmatpush1.msra.mxu0 0.0
    %3607 = vmatprep.subr.mxu0 0.0
    %3608 = vmatpush1.msra.mxu0 0.0
    %3609 = vmatprep.subr.mxu0 0.0
    %3610 = vmatpush1.msra.mxu0 0.0
    %3611 = vmatprep.subr.mxu0 0.0
    %3612 = vmatpush1.msra.mxu0 0.0
    %3613 = vmatprep.subr.mxu0 0.0
    %3614 = vmatpush1.msra.mxu0 0.0
    %3615 = vmatprep.subr.mxu0 0.0
    %3616 = vmatpush1.msra.mxu0 0.0
    %3617 = vmatprep.subr.mxu0 0.0
    %3618 = vmatpush1.msra.mxu0 0.0
    %3619 = vmatprep.subr.mxu0 0.0
    %3620 = vmatpush1.msra.mxu0 0.0
    %3621 = vmatprep.subr.mxu0 0.0
    %3622 = vmatpush1.msra.mxu0 0.0
    %3623 = vmatprep.subr.mxu0 0.0
    %3624 = vmatpush1.msra.mxu0 0.0
    %3625 = vmatprep.subr.mxu0 0.0
    %3626 = vmatpush1.msra.mxu0 0.0
    %3627 = vmatprep.subr.mxu0 0.0
    %3628 = vmatpush1.msra.mxu0 0.0
    %3629 = vmatprep.subr.mxu0 0.0
    %3630 = vmatpush1.msra.mxu0 0.0
    %3631 = vmatprep.subr.mxu0 0.0
    %3632 = vmatpush1.msra.mxu0 0.0
    %3633 = vmatprep.subr.mxu0 0.0
    %3634 = vmatpush1.msra.mxu0 0.0
    %3635 = vmatprep.subr.mxu0 0.0
    %3636 = vmatpush1.msra.mxu0 0.0
    %3637 = vmatprep.subr.mxu0 0.0
    %3638 = vmatpush1.msra.mxu0 0.0
    %3639 = vmatprep.subr.mxu0 0.0
    %3640 = vmatpush1.msra.mxu0 0.0
    %3641 = vmatprep.subr.mxu0 0.0
    %3642 = vmatpush1.msra.mxu0 0.0
    %3643 = vmatprep.subr.mxu0 0.0
    %3644 = vmatpush1.msra.mxu0 0.0
    %3645 = vmatprep.subr.mxu0 0.0
    %3646 = vmatpush1.msra.mxu0 0.0
    %3647 = vmatprep.mubr.f32.mxu0 0.0
    %3648 = vmatmul.mubr.f32.gmra.mrb[0].mxu0 %v3182
    %v3649 = vpop.f32.mrb[0].mxu0
    %v3650 = vadd.f32 %v3581, %v3649
    %v3651 = vpop.f32.mrb[0].mxu0
    %3652 = vmatprep.mubr.f32.mxu0 0.0
    %3653 = vmatmul.mubr.f32.gmra.mrb[0].mxu0 %v3185
    %v3654 = vpop.f32.mrb[0].mxu0
    %v3655 = vadd.f32 %v3581, %v3654
    %v3656 = vpop.f32.mrb[0].mxu0
    %3657 = vmatprep.mubr.f32.mxu0 0.0
    %3658 = vmatmul.mubr.f32.gmra.mrb[0].mxu0 %v3188
    %v3659 = vpop.f32.mrb[0].mxu0
    %v3660 = vadd.f32 %v3581, %v3659
    %v3661 = vpop.f32.mrb[0].mxu0
    %3662 = vmatprep.mubr.f32.mxu0 0.0
    %3663 = vmatmul.mubr.f32.gmra.mrb[0].mxu0 %v3191
    %v3664 = vpop.f32.mrb[0].mxu0
    %v3665 = vadd.f32 %v3581, %v3664
    %v3666 = vpop.f32.mrb[0].mxu0
    %3667 = vmatprep.mubr.f32.mxu0 0.0
    %3668 = vmatmul.mubr.f32.gmra.mrb[0].mxu0 %v3194
    %v3669 = vpop.f32.mrb[0].mxu0
    %v3670 = vadd.f32 %v3581, %v3669
    %v3671 = vpop.f32.mrb[0].mxu0
    %3672 = vmatprep.mubr.f32.mxu0 0.0
    %3673 = vmatmul.mubr.f32.gmra.mrb[0].mxu0 %v3197
    %v3674 = vpop.f32.mrb[0].mxu0
    %v3675 = vadd.f32 %v3581, %v3674
    %v3676 = vpop.f32.mrb[0].mxu0
    %3677 = vmatprep.mubr.f32.mxu0 0.0
    %3678 = vmatmul.mubr.f32.gmra.mrb[0].mxu0 %v3200
    %v3679 = vpop.f32.mrb[0].mxu0
    %v3680 = vadd.f32 %v3581, %v3679
    %v3681 = vpop.f32.mrb[0].mxu0
    %3682 = vmatprep.mubr.f32.mxu0 0.0
    %3683 = vmatmul.mubr.f32.gmra.mrb[0].mxu0 %v3203
    %v3684 = vpop.f32.mrb[0].mxu0
    %v3685 = vadd.f32 %v3581, %v3684
    %v3686 = vpop.f32.mrb[0].mxu0
    %3687 = vdwg.mxu0
    %3688 = vst.msk [vmem:[#allocation5] sm:$0xff] %vm234, %v3650
    %3689 = vst.msk [vmem:[#allocation5 + $0x8] sm:$0xff] %vm234, %v3655
    %3690 = vst.msk [vmem:[#allocation5 + $0x10] sm:$0xff] %vm234, %v3660
    %3691 = vst.msk [vmem:[#allocation5 + $0x18] sm:$0xff] %vm234, %v3665
    %3692 = vst.msk [vmem:[#allocation5 + $0x20] sm:$0xff] %vm234, %v3670
    %3693 = vst.msk [vmem:[#allocation5 + $0x28] sm:$0xff] %vm234, %v3675
    %3694 = vst.msk [vmem:[#allocation5 + $0x30] sm:$0xff] %vm234, %v3680
    %3695 = vst.msk [vmem:[#allocation5 + $0x38] sm:$0xff] %vm234, %v3685
    %v3696 = vld [vmem:[#allocation11] sm:$0xff]
    %v3697 = vld [vmem:[#allocation11 + $0x8] sm:$0xff]
    %v3698 = vld [vmem:[#allocation11 + $0x10] sm:$0xff]
    %v3699 = vld [vmem:[#allocation11 + $0x18] sm:$0xff]
    %s3700 = scalar_lea.vmem [#allocation11], 32
    %v3701 = vld [vmem:[%s3700] sm:$0xff]
    %v3702 = vld [vmem:[%s3700 + $0x8] sm:$0xff]
    %v3703 = vld [vmem:[%s3700 + $0x10] sm:$0xff]
    %v3704 = vld [vmem:[%s3700 + $0x18] sm:$0xff]
    %s3705 = scalar_lea.vmem [#allocation11], 64
    %v3706 = vld [vmem:[%s3705] sm:$0xff]
    %v3707 = vld [vmem:[%s3705 + $0x8] sm:$0xff]
    %v3708 = vld [vmem:[%s3705 + $0x10] sm:$0xff]
    %v3709 = vld [vmem:[%s3705 + $0x18] sm:$0xff]
    %s3710 = scalar_lea.vmem [#allocation11], 96
    %v3711 = vld [vmem:[%s3710] sm:$0xff]
    %v3712 = vld [vmem:[%s3710 + $0x8] sm:$0xff]
    %v3713 = vld [vmem:[%s3710 + $0x10] sm:$0xff]
    %v3714 = vld [vmem:[%s3710 + $0x18] sm:$0xff]
    %v3715 = vld [vmem:[#allocation2] sm:$0xff]
    %3716 = vmatprep.subr.mxu0 0.0
    %3717 = vmatpush1.msra.mxu0 %v3696
    %3718 = vmatprep.subr.mxu0 0.0
    %3719 = vmatpush1.msra.mxu0 %v3697
    %3720 = vmatprep.subr.mxu0 0.0
    %3721 = vmatpush1.msra.mxu0 %v3698
    %3722 = vmatprep.subr.mxu0 0.0
    %3723 = vmatpush1.msra.mxu0 %v3699
    %3724 = vmatprep.subr.mxu0 0.0
    %3725 = vmatpush1.msra.mxu0 0.0
    %3726 = vmatprep.subr.mxu0 0.0
    %3727 = vmatpush1.msra.mxu0 0.0
    %3728 = vmatprep.subr.mxu0 0.0
    %3729 = vmatpush1.msra.mxu0 0.0
    %3730 = vmatprep.subr.mxu0 0.0
    %3731 = vmatpush1.msra.mxu0 0.0
    %3732 = vmatprep.subr.mxu0 0.0
    %3733 = vmatpush1.msra.mxu0 0.0
    %3734 = vmatprep.subr.mxu0 0.0
    %3735 = vmatpush1.msra.mxu0 0.0
    %3736 = vmatprep.subr.mxu0 0.0
    %3737 = vmatpush1.msra.mxu0 0.0
    %3738 = vmatprep.subr.mxu0 0.0
    %3739 = vmatpush1.msra.mxu0 0.0
    %3740 = vmatprep.subr.mxu0 0.0
    %3741 = vmatpush1.msra.mxu0 0.0
    %3742 = vmatprep.subr.mxu0 0.0
    %3743 = vmatpush1.msra.mxu0 0.0
    %3744 = vmatprep.subr.mxu0 0.0
    %3745 = vmatpush1.msra.mxu0 0.0
    %3746 = vmatprep.subr.mxu0 0.0
    %3747 = vmatpush1.msra.mxu0 0.0
    %3748 = vmatprep.subr.mxu0 0.0
    %3749 = vmatpush1.msra.mxu0 0.0
    %3750 = vmatprep.subr.mxu0 0.0
    %3751 = vmatpush1.msra.mxu0 0.0
    %3752 = vmatprep.subr.mxu0 0.0
    %3753 = vmatpush1.msra.mxu0 0.0
    %3754 = vmatprep.subr.mxu0 0.0
    %3755 = vmatpush1.msra.mxu0 0.0
    %3756 = vmatprep.subr.mxu0 0.0
    %3757 = vmatpush1.msra.mxu0 0.0
    %3758 = vmatprep.subr.mxu0 0.0
    %3759 = vmatpush1.msra.mxu0 0.0
    %3760 = vmatprep.subr.mxu0 0.0
    %3761 = vmatpush1.msra.mxu0 0.0
    %3762 = vmatprep.subr.mxu0 0.0
    %3763 = vmatpush1.msra.mxu0 0.0
    %3764 = vmatprep.subr.mxu0 0.0
    %3765 = vmatpush1.msra.mxu0 0.0
    %3766 = vmatprep.subr.mxu0 0.0
    %3767 = vmatpush1.msra.mxu0 0.0
    %3768 = vmatprep.subr.mxu0 0.0
    %3769 = vmatpush1.msra.mxu0 0.0
    %3770 = vmatprep.subr.mxu0 0.0
    %3771 = vmatpush1.msra.mxu0 0.0
    %3772 = vmatprep.subr.mxu0 0.0
    %3773 = vmatpush1.msra.mxu0 0.0
    %3774 = vmatprep.subr.mxu0 0.0
    %3775 = vmatpush1.msra.mxu0 0.0
    %3776 = vmatprep.subr.mxu0 0.0
    %3777 = vmatpush1.msra.mxu0 0.0
    %3778 = vmatprep.subr.mxu0 0.0
    %3779 = vmatpush1.msra.mxu0 0.0
    %3780 = vmatprep.mubr.f32.mxu0 0.0
    %3781 = vmatmul.mubr.f32.gmra.mrb[0].mxu0 %v636
    %v3782 = vpop.f32.mrb[0].mxu0
    %v3783 = vadd.f32 0.0, %v3782
    %v3784 = vpop.f32.mrb[0].mxu0
    %3785 = vdwg.mxu0
    %v3786 = vadd.f32 %v3715, %v3783
    %v3787 = vxor.u32 %v3786, 2147483648
    %v3788 = vmul.f32 %v3787, 1.442695
    %v3789 = vpow.pop %v3788
    %v3790 = vadd.f32 %v3789, 1.0
    %v3791 = vrcp.pop %v3790
    %v3792 = vmul.f32 1.0, %v3791
    %v3793 = vld [vmem:[#allocation3] sm:$0xff]
    %3794 = vmatprep.subr.mxu0 0.0
    %3795 = vmatpush1.msra.mxu0 %v3701
    %3796 = vmatprep.subr.mxu0 0.0
    %3797 = vmatpush1.msra.mxu0 %v3702
    %3798 = vmatprep.subr.mxu0 0.0
    %3799 = vmatpush1.msra.mxu0 %v3703
    %3800 = vmatprep.subr.mxu0 0.0
    %3801 = vmatpush1.msra.mxu0 %v3704
    %3802 = vmatprep.subr.mxu0 0.0
    %3803 = vmatpush1.msra.mxu0 0.0
    %3804 = vmatprep.subr.mxu0 0.0
    %3805 = vmatpush1.msra.mxu0 0.0
    %3806 = vmatprep.subr.mxu0 0.0
    %3807 = vmatpush1.msra.mxu0 0.0
    %3808 = vmatprep.subr.mxu0 0.0
    %3809 = vmatpush1.msra.mxu0 0.0
    %3810 = vmatprep.subr.mxu0 0.0
    %3811 = vmatpush1.msra.mxu0 0.0
    %3812 = vmatprep.subr.mxu0 0.0
    %3813 = vmatpush1.msra.mxu0 0.0
    %3814 = vmatprep.subr.mxu0 0.0
    %3815 = vmatpush1.msra.mxu0 0.0
    %3816 = vmatprep.subr.mxu0 0.0
    %3817 = vmatpush1.msra.mxu0 0.0
    %3818 = vmatprep.subr.mxu0 0.0
    %3819 = vmatpush1.msra.mxu0 0.0
    %3820 = vmatprep.subr.mxu0 0.0
    %3821 = vmatpush1.msra.mxu0 0.0
    %3822 = vmatprep.subr.mxu0 0.0
    %3823 = vmatpush1.msra.mxu0 0.0
    %3824 = vmatprep.subr.mxu0 0.0
    %3825 = vmatpush1.msra.mxu0 0.0
    %3826 = vmatprep.subr.mxu0 0.0
    %3827 = vmatpush1.msra.mxu0 0.0
    %3828 = vmatprep.subr.mxu0 0.0
    %3829 = vmatpush1.msra.mxu0 0.0
    %3830 = vmatprep.subr.mxu0 0.0
    %3831 = vmatpush1.msra.mxu0 0.0
    %3832 = vmatprep.subr.mxu0 0.0
    %3833 = vmatpush1.msra.mxu0 0.0
    %3834 = vmatprep.subr.mxu0 0.0
    %3835 = vmatpush1.msra.mxu0 0.0
    %3836 = vmatprep.subr.mxu0 0.0
    %3837 = vmatpush1.msra.mxu0 0.0
    %3838 = vmatprep.subr.mxu0 0.0
    %3839 = vmatpush1.msra.mxu0 0.0
    %3840 = vmatprep.subr.mxu0 0.0
    %3841 = vmatpush1.msra.mxu0 0.0
    %3842 = vmatprep.subr.mxu0 0.0
    %3843 = vmatpush1.msra.mxu0 0.0
    %3844 = vmatprep.subr.mxu0 0.0
    %3845 = vmatpush1.msra.mxu0 0.0
    %3846 = vmatprep.subr.mxu0 0.0
    %3847 = vmatpush1.msra.mxu0 0.0
    %3848 = vmatprep.subr.mxu0 0.0
    %3849 = vmatpush1.msra.mxu0 0.0
    %3850 = vmatprep.subr.mxu0 0.0
    %3851 = vmatpush1.msra.mxu0 0.0
    %3852 = vmatprep.subr.mxu0 0.0
    %3853 = vmatpush1.msra.mxu0 0.0
    %3854 = vmatprep.subr.mxu0 0.0
    %3855 = vmatpush1.msra.mxu0 0.0
    %3856 = vmatprep.subr.mxu0 0.0
    %3857 = vmatpush1.msra.mxu0 0.0
    %3858 = vmatprep.mubr.f32.mxu0 0.0
    %3859 = vmatmul.mubr.f32.gmra.mrb[0].mxu0 %v636
    %v3860 = vpop.f32.mrb[0].mxu0
    %v3861 = vadd.f32 0.0, %v3860
    %v3862 = vpop.f32.mrb[0].mxu0
    %3863 = vdwg.mxu0
    %v3864 = vadd.f32 %v3793, %v3861
    %v3865 = vxor.u32 %v3864, 2147483648
    %v3866 = vmul.f32 %v3865, 1.442695
    %v3867 = vpow.pop %v3866
    %v3868 = vadd.f32 %v3867, 1.0
    %v3869 = vrcp.pop %v3868
    %v3870 = vmul.f32 1.0, %v3869
    %v3871 = vld [vmem:[#allocation4] sm:$0xff]
    %3872 = vmatprep.subr.mxu0 0.0
    %3873 = vmatpush1.msra.mxu0 %v3706
    %3874 = vmatprep.subr.mxu0 0.0
    %3875 = vmatpush1.msra.mxu0 %v3707
    %3876 = vmatprep.subr.mxu0 0.0
    %3877 = vmatpush1.msra.mxu0 %v3708
    %3878 = vmatprep.subr.mxu0 0.0
    %3879 = vmatpush1.msra.mxu0 %v3709
    %3880 = vmatprep.subr.mxu0 0.0
    %3881 = vmatpush1.msra.mxu0 0.0
    %3882 = vmatprep.subr.mxu0 0.0
    %3883 = vmatpush1.msra.mxu0 0.0
    %3884 = vmatprep.subr.mxu0 0.0
    %3885 = vmatpush1.msra.mxu0 0.0
    %3886 = vmatprep.subr.mxu0 0.0
    %3887 = vmatpush1.msra.mxu0 0.0
    %3888 = vmatprep.subr.mxu0 0.0
    %3889 = vmatpush1.msra.mxu0 0.0
    %3890 = vmatprep.subr.mxu0 0.0
    %3891 = vmatpush1.msra.mxu0 0.0
    %3892 = vmatprep.subr.mxu0 0.0
    %3893 = vmatpush1.msra.mxu0 0.0
    %3894 = vmatprep.subr.mxu0 0.0
    %3895 = vmatpush1.msra.mxu0 0.0
    %3896 = vmatprep.subr.mxu0 0.0
    %3897 = vmatpush1.msra.mxu0 0.0
    %3898 = vmatprep.subr.mxu0 0.0
    %3899 = vmatpush1.msra.mxu0 0.0
    %3900 = vmatprep.subr.mxu0 0.0
    %3901 = vmatpush1.msra.mxu0 0.0
    %3902 = vmatprep.subr.mxu0 0.0
    %3903 = vmatpush1.msra.mxu0 0.0
    %3904 = vmatprep.subr.mxu0 0.0
    %3905 = vmatpush1.msra.mxu0 0.0
    %3906 = vmatprep.subr.mxu0 0.0
    %3907 = vmatpush1.msra.mxu0 0.0
    %3908 = vmatprep.subr.mxu0 0.0
    %3909 = vmatpush1.msra.mxu0 0.0
    %3910 = vmatprep.subr.mxu0 0.0
    %3911 = vmatpush1.msra.mxu0 0.0
    %3912 = vmatprep.subr.mxu0 0.0
    %3913 = vmatpush1.msra.mxu0 0.0
    %3914 = vmatprep.subr.mxu0 0.0
    %3915 = vmatpush1.msra.mxu0 0.0
    %3916 = vmatprep.subr.mxu0 0.0
    %3917 = vmatpush1.msra.mxu0 0.0
    %3918 = vmatprep.subr.mxu0 0.0
    %3919 = vmatpush1.msra.mxu0 0.0
    %3920 = vmatprep.subr.mxu0 0.0
    %3921 = vmatpush1.msra.mxu0 0.0
    %3922 = vmatprep.subr.mxu0 0.0
    %3923 = vmatpush1.msra.mxu0 0.0
    %3924 = vmatprep.subr.mxu0 0.0
    %3925 = vmatpush1.msra.mxu0 0.0
    %3926 = vmatprep.subr.mxu0 0.0
    %3927 = vmatpush1.msra.mxu0 0.0
    %3928 = vmatprep.subr.mxu0 0.0
    %3929 = vmatpush1.msra.mxu0 0.0
    %3930 = vmatprep.subr.mxu0 0.0
    %3931 = vmatpush1.msra.mxu0 0.0
    %3932 = vmatprep.subr.mxu0 0.0
    %3933 = vmatpush1.msra.mxu0 0.0
    %3934 = vmatprep.subr.mxu0 0.0
    %3935 = vmatpush1.msra.mxu0 0.0
    %3936 = vmatprep.mubr.f32.mxu0 0.0
    %3937 = vmatmul.mubr.f32.gmra.mrb[0].mxu0 %v636
    %v3938 = vpop.f32.mrb[0].mxu0
    %v3939 = vadd.f32 0.0, %v3938
    %v3940 = vpop.f32.mrb[0].mxu0
    %3941 = vdwg.mxu0
    %v3942 = vadd.f32 %v3871, %v3939
    %v3943 = vtanh.pop %v3942
    %v3944 = vld [vmem:[#allocation5] sm:$0xff]
    %3945 = vmatprep.subr.mxu0 0.0
    %3946 = vmatpush1.msra.mxu0 %v3711
    %3947 = vmatprep.subr.mxu0 0.0
    %3948 = vmatpush1.msra.mxu0 %v3712
    %3949 = vmatprep.subr.mxu0 0.0
    %3950 = vmatpush1.msra.mxu0 %v3713
    %3951 = vmatprep.subr.mxu0 0.0
    %3952 = vmatpush1.msra.mxu0 %v3714
    %3953 = vmatprep.subr.mxu0 0.0
    %3954 = vmatpush1.msra.mxu0 0.0
    %3955 = vmatprep.subr.mxu0 0.0
    %3956 = vmatpush1.msra.mxu0 0.0
    %3957 = vmatprep.subr.mxu0 0.0
    %3958 = vmatpush1.msra.mxu0 0.0
    %3959 = vmatprep.subr.mxu0 0.0
    %3960 = vmatpush1.msra.mxu0 0.0
    %3961 = vmatprep.subr.mxu0 0.0
    %3962 = vmatpush1.msra.mxu0 0.0
    %3963 = vmatprep.subr.mxu0 0.0
    %3964 = vmatpush1.msra.mxu0 0.0
    %3965 = vmatprep.subr.mxu0 0.0
    %3966 = vmatpush1.msra.mxu0 0.0
    %3967 = vmatprep.subr.mxu0 0.0
    %3968 = vmatpush1.msra.mxu0 0.0
    %3969 = vmatprep.subr.mxu0 0.0
    %3970 = vmatpush1.msra.mxu0 0.0
    %3971 = vmatprep.subr.mxu0 0.0
    %3972 = vmatpush1.msra.mxu0 0.0
    %3973 = vmatprep.subr.mxu0 0.0
    %3974 = vmatpush1.msra.mxu0 0.0
    %3975 = vmatprep.subr.mxu0 0.0
    %3976 = vmatpush1.msra.mxu0 0.0
    %3977 = vmatprep.subr.mxu0 0.0
    %3978 = vmatpush1.msra.mxu0 0.0
    %3979 = vmatprep.subr.mxu0 0.0
    %3980 = vmatpush1.msra.mxu0 0.0
    %3981 = vmatprep.subr.mxu0 0.0
    %3982 = vmatpush1.msra.mxu0 0.0
    %3983 = vmatprep.subr.mxu0 0.0
    %3984 = vmatpush1.msra.mxu0 0.0
    %3985 = vmatprep.subr.mxu0 0.0
    %3986 = vmatpush1.msra.mxu0 0.0
    %3987 = vmatprep.subr.mxu0 0.0
    %3988 = vmatpush1.msra.mxu0 0.0
    %3989 = vmatprep.subr.mxu0 0.0
    %3990 = vmatpush1.msra.mxu0 0.0
    %3991 = vmatprep.subr.mxu0 0.0
    %3992 = vmatpush1.msra.mxu0 0.0
    %3993 = vmatprep.subr.mxu0 0.0
    %3994 = vmatpush1.msra.mxu0 0.0
    %3995 = vmatprep.subr.mxu0 0.0
    %3996 = vmatpush1.msra.mxu0 0.0
    %3997 = vmatprep.subr.mxu0 0.0
    %3998 = vmatpush1.msra.mxu0 0.0
    %3999 = vmatprep.subr.mxu0 0.0
    %4000 = vmatpush1.msra.mxu0 0.0
    %4001 = vmatprep.subr.mxu0 0.0
    %4002 = vmatpush1.msra.mxu0 0.0
    %4003 = vmatprep.subr.mxu0 0.0
    %4004 = vmatpush1.msra.mxu0 0.0
    %4005 = vmatprep.subr.mxu0 0.0
    %4006 = vmatpush1.msra.mxu0 0.0
    %4007 = vmatprep.subr.mxu0 0.0
    %4008 = vmatpush1.msra.mxu0 0.0
    %4009 = vmatprep.mubr.f32.mxu0 0.0
    %4010 = vmatmul.mubr.f32.gmra.mrb[0].mxu0 %v636
    %v4011 = vpop.f32.mrb[0].mxu0
    %v4012 = vadd.f32 0.0, %v4011
    %v4013 = vpop.f32.mrb[0].mxu0
    %4014 = vdwg.mxu0
    %v4015 = vadd.f32 %v3944, %v4012
    %v4016 = vxor.u32 %v4015, 2147483648
    %v4017 = vmul.f32 %v4016, 1.442695
    %v4018 = vpow.pop %v4017
    %v4019 = vadd.f32 %v4018, 1.0
    %v4020 = vrcp.pop %v4019
    %v4021 = vmul.f32 1.0, %v4020
    %v4022 = vmul.f32 %v3870, 0.0
    %v4023 = vmul.f32 %v3792, %v3943
    %v4024 = vadd.f32 %v4022, %v4023
    %v4025 = vtanh.pop %v4024
    %v4026 = vmul.f32 %v4021, %v4025
    %4027 = vst.msk [vmem:[#allocation6] sm:$0xff] %vm234, %v4026
    %v4028 = vld [vmem:[#allocation2 + $0x8] sm:$0xff]
    %v4030 = vsel %vm234, %v4026, 0
    %4032 = vmatprep.subr.mxu0 0.0
    %4033 = vmatpush1.msra.mxu0 %v3696
    %4034 = vmatprep.subr.mxu0 0.0
    %4035 = vmatpush1.msra.mxu0 %v3697
    %4036 = vmatprep.subr.mxu0 0.0
    %4037 = vmatpush1.msra.mxu0 %v3698
    %4038 = vmatprep.subr.mxu0 0.0
    %4039 = vmatpush1.msra.mxu0 %v3699
    %4040 = vmatprep.subr.mxu0 0.0
    %4041 = vmatpush1.msra.mxu0 0.0
    %4042 = vmatprep.subr.mxu0 0.0
    %4043 = vmatpush1.msra.mxu0 0.0
    %4044 = vmatprep.subr.mxu0 0.0
    %4045 = vmatpush1.msra.mxu0 0.0
    %4046 = vmatprep.subr.mxu0 0.0
    %4047 = vmatpush1.msra.mxu0 0.0
    %4048 = vmatprep.subr.mxu0 0.0
    %4049 = vmatpush1.msra.mxu0 0.0
    %4050 = vmatprep.subr.mxu0 0.0
    %4051 = vmatpush1.msra.mxu0 0.0
    %4052 = vmatprep.subr.mxu0 0.0
    %4053 = vmatpush1.msra.mxu0 0.0
    %4054 = vmatprep.subr.mxu0 0.0
    %4055 = vmatpush1.msra.mxu0 0.0
    %4056 = vmatprep.subr.mxu0 0.0
    %4057 = vmatpush1.msra.mxu0 0.0
    %4058 = vmatprep.subr.mxu0 0.0
    %4059 = vmatpush1.msra.mxu0 0.0
    %4060 = vmatprep.subr.mxu0 0.0
    %4061 = vmatpush1.msra.mxu0 0.0
    %4062 = vmatprep.subr.mxu0 0.0
    %4063 = vmatpush1.msra.mxu0 0.0
    %4064 = vmatprep.subr.mxu0 0.0
    %4065 = vmatpush1.msra.mxu0 0.0
    %4066 = vmatprep.subr.mxu0 0.0
    %4067 = vmatpush1.msra.mxu0 0.0
    %4068 = vmatprep.subr.mxu0 0.0
    %4069 = vmatpush1.msra.mxu0 0.0
    %4070 = vmatprep.subr.mxu0 0.0
    %4071 = vmatpush1.msra.mxu0 0.0
    %4072 = vmatprep.subr.mxu0 0.0
    %4073 = vmatpush1.msra.mxu0 0.0
    %4074 = vmatprep.subr.mxu0 0.0
    %4075 = vmatpush1.msra.mxu0 0.0
    %4076 = vmatprep.subr.mxu0 0.0
    %4077 = vmatpush1.msra.mxu0 0.0
    %4078 = vmatprep.subr.mxu0 0.0
    %4079 = vmatpush1.msra.mxu0 0.0
    %4080 = vmatprep.subr.mxu0 0.0
    %4081 = vmatpush1.msra.mxu0 0.0
    %4082 = vmatprep.subr.mxu0 0.0
    %4083 = vmatpush1.msra.mxu0 0.0
    %4084 = vmatprep.subr.mxu0 0.0
    %4085 = vmatpush1.msra.mxu0 0.0
    %4086 = vmatprep.subr.mxu0 0.0
    %4087 = vmatpush1.msra.mxu0 0.0
    %4088 = vmatprep.subr.mxu0 0.0
    %4089 = vmatpush1.msra.mxu0 0.0
    %4090 = vmatprep.subr.mxu0 0.0
    %4091 = vmatpush1.msra.mxu0 0.0
    %4092 = vmatprep.subr.mxu0 0.0
    %4093 = vmatpush1.msra.mxu0 0.0
    %4094 = vmatprep.subr.mxu0 0.0
    %4095 = vmatpush1.msra.mxu0 0.0
    %4096 = vmatprep.mubr.f32.mxu0 0.0
    %4097 = vmatmul.mubr.f32.gmra.mrb[0].mxu0 %v4030
    %v4098 = vpop.f32.mrb[0].mxu0
    %v4099 = vadd.f32 0.0, %v4098
    %v4100 = vpop.f32.mrb[0].mxu0
    %4101 = vdwg.mxu0
    %v4102 = vadd.f32 %v4028, %v4099
    %v4103 = vxor.u32 %v4102, 2147483648
    %v4104 = vmul.f32 %v4103, 1.442695
    %v4105 = vpow.pop %v4104
    %v4106 = vadd.f32 %v4105, 1.0
    %v4107 = vrcp.pop %v4106
    %v4108 = vmul.f32 1.0, %v4107
    %v4109 = vld [vmem:[#allocation3 + $0x8] sm:$0xff]
    %4110 = vmatprep.subr.mxu0 0.0
    %4111 = vmatpush1.msra.mxu0 %v3701
    %4112 = vmatprep.subr.mxu0 0.0
    %4113 = vmatpush1.msra.mxu0 %v3702
    %4114 = vmatprep.subr.mxu0 0.0
    %4115 = vmatpush1.msra.mxu0 %v3703
    %4116 = vmatprep.subr.mxu0 0.0
    %4117 = vmatpush1.msra.mxu0 %v3704
    %4118 = vmatprep.subr.mxu0 0.0
    %4119 = vmatpush1.msra.mxu0 0.0
    %4120 = vmatprep.subr.mxu0 0.0
    %4121 = vmatpush1.msra.mxu0 0.0
    %4122 = vmatprep.subr.mxu0 0.0
    %4123 = vmatpush1.msra.mxu0 0.0
    %4124 = vmatprep.subr.mxu0 0.0
    %4125 = vmatpush1.msra.mxu0 0.0
    %4126 = vmatprep.subr.mxu0 0.0
    %4127 = vmatpush1.msra.mxu0 0.0
    %4128 = vmatprep.subr.mxu0 0.0
    %4129 = vmatpush1.msra.mxu0 0.0
    %4130 = vmatprep.subr.mxu0 0.0
    %4131 = vmatpush1.msra.mxu0 0.0
    %4132 = vmatprep.subr.mxu0 0.0
    %4133 = vmatpush1.msra.mxu0 0.0
    %4134 = vmatprep.subr.mxu0 0.0
    %4135 = vmatpush1.msra.mxu0 0.0
    %4136 = vmatprep.subr.mxu0 0.0
    %4137 = vmatpush1.msra.mxu0 0.0
    %4138 = vmatprep.subr.mxu0 0.0
    %4139 = vmatpush1.msra.mxu0 0.0
    %4140 = vmatprep.subr.mxu0 0.0
    %4141 = vmatpush1.msra.mxu0 0.0
    %4142 = vmatprep.subr.mxu0 0.0
    %4143 = vmatpush1.msra.mxu0 0.0
    %4144 = vmatprep.subr.mxu0 0.0
    %4145 = vmatpush1.msra.mxu0 0.0
    %4146 = vmatprep.subr.mxu0 0.0
    %4147 = vmatpush1.msra.mxu0 0.0
    %4148 = vmatprep.subr.mxu0 0.0
    %4149 = vmatpush1.msra.mxu0 0.0
    %4150 = vmatprep.subr.mxu0 0.0
    %4151 = vmatpush1.msra.mxu0 0.0
    %4152 = vmatprep.subr.mxu0 0.0
    %4153 = vmatpush1.msra.mxu0 0.0
    %4154 = vmatprep.subr.mxu0 0.0
    %4155 = vmatpush1.msra.mxu0 0.0
    %4156 = vmatprep.subr.mxu0 0.0
    %4157 = vmatpush1.msra.mxu0 0.0
    %4158 = vmatprep.subr.mxu0 0.0
    %4159 = vmatpush1.msra.mxu0 0.0
    %4160 = vmatprep.subr.mxu0 0.0
    %4161 = vmatpush1.msra.mxu0 0.0
    %4162 = vmatprep.subr.mxu0 0.0
    %4163 = vmatpush1.msra.mxu0 0.0
    %4164 = vmatprep.subr.mxu0 0.0
    %4165 = vmatpush1.msra.mxu0 0.0
    %4166 = vmatprep.subr.mxu0 0.0
    %4167 = vmatpush1.msra.mxu0 0.0
    %4168 = vmatprep.subr.mxu0 0.0
    %4169 = vmatpush1.msra.mxu0 0.0
    %4170 = vmatprep.subr.mxu0 0.0
    %4171 = vmatpush1.msra.mxu0 0.0
    %4172 = vmatprep.subr.mxu0 0.0
    %4173 = vmatpush1.msra.mxu0 0.0
    %4174 = vmatprep.mubr.f32.mxu0 0.0
    %4175 = vmatmul.mubr.f32.gmra.mrb[0].mxu0 %v4030
    %v4176 = vpop.f32.mrb[0].mxu0
    %v4177 = vadd.f32 0.0, %v4176
    %v4178 = vpop.f32.mrb[0].mxu0
    %4179 = vdwg.mxu0
    %v4180 = vadd.f32 %v4109, %v4177
    %v4181 = vxor.u32 %v4180, 2147483648
    %v4182 = vmul.f32 %v4181, 1.442695
    %v4183 = vpow.pop %v4182
    %v4184 = vadd.f32 %v4183, 1.0
    %v4185 = vrcp.pop %v4184
    %v4186 = vmul.f32 1.0, %v4185
    %v4187 = vld [vmem:[#allocation4 + $0x8] sm:$0xff]
    %4188 = vmatprep.subr.mxu0 0.0
    %4189 = vmatpush1.msra.mxu0 %v3706
    %4190 = vmatprep.subr.mxu0 0.0
    %4191 = vmatpush1.msra.mxu0 %v3707
    %4192 = vmatprep.subr.mxu0 0.0
    %4193 = vmatpush1.msra.mxu0 %v3708
    %4194 = vmatprep.subr.mxu0 0.0
    %4195 = vmatpush1.msra.mxu0 %v3709
    %4196 = vmatprep.subr.mxu0 0.0
    %4197 = vmatpush1.msra.mxu0 0.0
    %4198 = vmatprep.subr.mxu0 0.0
    %4199 = vmatpush1.msra.mxu0 0.0
    %4200 = vmatprep.subr.mxu0 0.0
    %4201 = vmatpush1.msra.mxu0 0.0
    %4202 = vmatprep.subr.mxu0 0.0
    %4203 = vmatpush1.msra.mxu0 0.0
    %4204 = vmatprep.subr.mxu0 0.0
    %4205 = vmatpush1.msra.mxu0 0.0
    %4206 = vmatprep.subr.mxu0 0.0
    %4207 = vmatpush1.msra.mxu0 0.0
    %4208 = vmatprep.subr.mxu0 0.0
    %4209 = vmatpush1.msra.mxu0 0.0
    %4210 = vmatprep.subr.mxu0 0.0
    %4211 = vmatpush1.msra.mxu0 0.0
    %4212 = vmatprep.subr.mxu0 0.0
    %4213 = vmatpush1.msra.mxu0 0.0
    %4214 = vmatprep.subr.mxu0 0.0
    %4215 = vmatpush1.msra.mxu0 0.0
    %4216 = vmatprep.subr.mxu0 0.0
    %4217 = vmatpush1.msra.mxu0 0.0
    %4218 = vmatprep.subr.mxu0 0.0
    %4219 = vmatpush1.msra.mxu0 0.0
    %4220 = vmatprep.subr.mxu0 0.0
    %4221 = vmatpush1.msra.mxu0 0.0
    %4222 = vmatprep.subr.mxu0 0.0
    %4223 = vmatpush1.msra.mxu0 0.0
    %4224 = vmatprep.subr.mxu0 0.0
    %4225 = vmatpush1.msra.mxu0 0.0
    %4226 = vmatprep.subr.mxu0 0.0
    %4227 = vmatpush1.msra.mxu0 0.0
    %4228 = vmatprep.subr.mxu0 0.0
    %4229 = vmatpush1.msra.mxu0 0.0
    %4230 = vmatprep.subr.mxu0 0.0
    %4231 = vmatpush1.msra.mxu0 0.0
    %4232 = vmatprep.subr.mxu0 0.0
    %4233 = vmatpush1.msra.mxu0 0.0
    %4234 = vmatprep.subr.mxu0 0.0
    %4235 = vmatpush1.msra.mxu0 0.0
    %4236 = vmatprep.subr.mxu0 0.0
    %4237 = vmatpush1.msra.mxu0 0.0
    %4238 = vmatprep.subr.mxu0 0.0
    %4239 = vmatpush1.msra.mxu0 0.0
    %4240 = vmatprep.subr.mxu0 0.0
    %4241 = vmatpush1.msra.mxu0 0.0
    %4242 = vmatprep.subr.mxu0 0.0
    %4243 = vmatpush1.msra.mxu0 0.0
    %4244 = vmatprep.subr.mxu0 0.0
    %4245 = vmatpush1.msra.mxu0 0.0
    %4246 = vmatprep.subr.mxu0 0.0
    %4247 = vmatpush1.msra.mxu0 0.0
    %4248 = vmatprep.subr.mxu0 0.0
    %4249 = vmatpush1.msra.mxu0 0.0
    %4250 = vmatprep.subr.mxu0 0.0
    %4251 = vmatpush1.msra.mxu0 0.0
    %4252 = vmatprep.mubr.f32.mxu0 0.0
    %4253 = vmatmul.mubr.f32.gmra.mrb[0].mxu0 %v4030
    %v4254 = vpop.f32.mrb[0].mxu0
    %v4255 = vadd.f32 0.0, %v4254
    %v4256 = vpop.f32.mrb[0].mxu0
    %4257 = vdwg.mxu0
    %v4258 = vadd.f32 %v4187, %v4255
    %v4259 = vtanh.pop %v4258
    %v4260 = vld [vmem:[#allocation5 + $0x8] sm:$0xff]
    %4261 = vmatprep.subr.mxu0 0.0
    %4262 = vmatpush1.msra.mxu0 %v3711
    %4263 = vmatprep.subr.mxu0 0.0
    %4264 = vmatpush1.msra.mxu0 %v3712
    %4265 = vmatprep.subr.mxu0 0.0
    %4266 = vmatpush1.msra.mxu0 %v3713
    %4267 = vmatprep.subr.mxu0 0.0
    %4268 = vmatpush1.msra.mxu0 %v3714
    %4269 = vmatprep.subr.mxu0 0.0
    %4270 = vmatpush1.msra.mxu0 0.0
    %4271 = vmatprep.subr.mxu0 0.0
    %4272 = vmatpush1.msra.mxu0 0.0
    %4273 = vmatprep.subr.mxu0 0.0
    %4274 = vmatpush1.msra.mxu0 0.0
    %4275 = vmatprep.subr.mxu0 0.0
    %4276 = vmatpush1.msra.mxu0 0.0
    %4277 = vmatprep.subr.mxu0 0.0
    %4278 = vmatpush1.msra.mxu0 0.0
    %4279 = vmatprep.subr.mxu0 0.0
    %4280 = vmatpush1.msra.mxu0 0.0
    %4281 = vmatprep.subr.mxu0 0.0
    %4282 = vmatpush1.msra.mxu0 0.0
    %4283 = vmatprep.subr.mxu0 0.0
    %4284 = vmatpush1.msra.mxu0 0.0
    %4285 = vmatprep.subr.mxu0 0.0
    %4286 = vmatpush1.msra.mxu0 0.0
    %4287 = vmatprep.subr.mxu0 0.0
    %4288 = vmatpush1.msra.mxu0 0.0
    %4289 = vmatprep.subr.mxu0 0.0
    %4290 = vmatpush1.msra.mxu0 0.0
    %4291 = vmatprep.subr.mxu0 0.0
    %4292 = vmatpush1.msra.mxu0 0.0
    %4293 = vmatprep.subr.mxu0 0.0
    %4294 = vmatpush1.msra.mxu0 0.0
    %4295 = vmatprep.subr.mxu0 0.0
    %4296 = vmatpush1.msra.mxu0 0.0
    %4297 = vmatprep.subr.mxu0 0.0
    %4298 = vmatpush1.msra.mxu0 0.0
    %4299 = vmatprep.subr.mxu0 0.0
    %4300 = vmatpush1.msra.mxu0 0.0
    %4301 = vmatprep.subr.mxu0 0.0
    %4302 = vmatpush1.msra.mxu0 0.0
    %4303 = vmatprep.subr.mxu0 0.0
    %4304 = vmatpush1.msra.mxu0 0.0
    %4305 = vmatprep.subr.mxu0 0.0
    %4306 = vmatpush1.msra.mxu0 0.0
    %4307 = vmatprep.subr.mxu0 0.0
    %4308 = vmatpush1.msra.mxu0 0.0
    %4309 = vmatprep.subr.mxu0 0.0
    %4310 = vmatpush1.msra.mxu0 0.0
    %4311 = vmatprep.subr.mxu0 0.0
    %4312 = vmatpush1.msra.mxu0 0.0
    %4313 = vmatprep.subr.mxu0 0.0
    %4314 = vmatpush1.msra.mxu0 0.0
    %4315 = vmatprep.subr.mxu0 0.0
    %4316 = vmatpush1.msra.mxu0 0.0
    %4317 = vmatprep.subr.mxu0 0.0
    %4318 = vmatpush1.msra.mxu0 0.0
    %4319 = vmatprep.subr.mxu0 0.0
    %4320 = vmatpush1.msra.mxu0 0.0
    %4321 = vmatprep.subr.mxu0 0.0
    %4322 = vmatpush1.msra.mxu0 0.0
    %4323 = vmatprep.subr.mxu0 0.0
    %4324 = vmatpush1.msra.mxu0 0.0
    %4325 = vmatprep.mubr.f32.mxu0 0.0
    %4326 = vmatmul.mubr.f32.gmra.mrb[0].mxu0 %v4030
    %v4327 = vpop.f32.mrb[0].mxu0
    %v4328 = vadd.f32 0.0, %v4327
    %v4329 = vpop.f32.mrb[0].mxu0
    %4330 = vdwg.mxu0
    %v4331 = vadd.f32 %v4260, %v4328
    %v4332 = vxor.u32 %v4331, 2147483648
    %v4333 = vmul.f32 %v4332, 1.442695
    %v4334 = vpow.pop %v4333
    %v4335 = vadd.f32 %v4334, 1.0
    %v4336 = vrcp.pop %v4335
    %v4337 = vmul.f32 1.0, %v4336
    %v4338 = vmul.f32 %v4186, %v4024
    %v4339 = vmul.f32 %v4108, %v4259
    %v4340 = vadd.f32 %v4338, %v4339
    %v4341 = vtanh.pop %v4340
    %v4342 = vmul.f32 %v4337, %v4341
    %4343 = vst.msk [vmem:[#allocation6 + $0x8] sm:$0xff] %vm234, %v4342
    %v4344 = vld [vmem:[#allocation2 + $0x10] sm:$0xff]
    %v4346 = vsel %vm234, %v4342, 0
    %4348 = vmatprep.subr.mxu0 0.0
    %4349 = vmatpush1.msra.mxu0 %v3696
    %4350 = vmatprep.subr.mxu0 0.0
    %4351 = vmatpush1.msra.mxu0 %v3697
    %4352 = vmatprep.subr.mxu0 0.0
    %4353 = vmatpush1.msra.mxu0 %v3698
    %4354 = vmatprep.subr.mxu0 0.0
    %4355 = vmatpush1.msra.mxu0 %v3699
    %4356 = vmatprep.subr.mxu0 0.0
    %4357 = vmatpush1.msra.mxu0 0.0
    %4358 = vmatprep.subr.mxu0 0.0
    %4359 = vmatpush1.msra.mxu0 0.0
    %4360 = vmatprep.subr.mxu0 0.0
    %4361 = vmatpush1.msra.mxu0 0.0
    %4362 = vmatprep.subr.mxu0 0.0
    %4363 = vmatpush1.msra.mxu0 0.0
    %4364 = vmatprep.subr.mxu0 0.0
    %4365 = vmatpush1.msra.mxu0 0.0
    %4366 = vmatprep.subr.mxu0 0.0
    %4367 = vmatpush1.msra.mxu0 0.0
    %4368 = vmatprep.subr.mxu0 0.0
    %4369 = vmatpush1.msra.mxu0 0.0
    %4370 = vmatprep.subr.mxu0 0.0
    %4371 = vmatpush1.msra.mxu0 0.0
    %4372 = vmatprep.subr.mxu0 0.0
    %4373 = vmatpush1.msra.mxu0 0.0
    %4374 = vmatprep.subr.mxu0 0.0
    %4375 = vmatpush1.msra.mxu0 0.0
    %4376 = vmatprep.subr.mxu0 0.0
    %4377 = vmatpush1.msra.mxu0 0.0
    %4378 = vmatprep.subr.mxu0 0.0
    %4379 = vmatpush1.msra.mxu0 0.0
    %4380 = vmatprep.subr.mxu0 0.0
    %4381 = vmatpush1.msra.mxu0 0.0
    %4382 = vmatprep.subr.mxu0 0.0
    %4383 = vmatpush1.msra.mxu0 0.0
    %4384 = vmatprep.subr.mxu0 0.0
    %4385 = vmatpush1.msra.mxu0 0.0
    %4386 = vmatprep.subr.mxu0 0.0
    %4387 = vmatpush1.msra.mxu0 0.0
    %4388 = vmatprep.subr.mxu0 0.0
    %4389 = vmatpush1.msra.mxu0 0.0
    %4390 = vmatprep.subr.mxu0 0.0
    %4391 = vmatpush1.msra.mxu0 0.0
    %4392 = vmatprep.subr.mxu0 0.0
    %4393 = vmatpush1.msra.mxu0 0.0
    %4394 = vmatprep.subr.mxu0 0.0
    %4395 = vmatpush1.msra.mxu0 0.0
    %4396 = vmatprep.subr.mxu0 0.0
    %4397 = vmatpush1.msra.mxu0 0.0
    %4398 = vmatprep.subr.mxu0 0.0
    %4399 = vmatpush1.msra.mxu0 0.0
    %4400 = vmatprep.subr.mxu0 0.0
    %4401 = vmatpush1.msra.mxu0 0.0
    %4402 = vmatprep.subr.mxu0 0.0
    %4403 = vmatpush1.msra.mxu0 0.0
    %4404 = vmatprep.subr.mxu0 0.0
    %4405 = vmatpush1.msra.mxu0 0.0
    %4406 = vmatprep.subr.mxu0 0.0
    %4407 = vmatpush1.msra.mxu0 0.0
    %4408 = vmatprep.subr.mxu0 0.0
    %4409 = vmatpush1.msra.mxu0 0.0
    %4410 = vmatprep.subr.mxu0 0.0
    %4411 = vmatpush1.msra.mxu0 0.0
    %4412 = vmatprep.mubr.f32.mxu0 0.0
    %4413 = vmatmul.mubr.f32.gmra.mrb[0].mxu0 %v4346
    %v4414 = vpop.f32.mrb[0].mxu0
    %v4415 = vadd.f32 0.0, %v4414
    %v4416 = vpop.f32.mrb[0].mxu0
    %4417 = vdwg.mxu0
    %v4418 = vadd.f32 %v4344, %v4415
    %v4419 = vxor.u32 %v4418, 2147483648
    %v4420 = vmul.f32 %v4419, 1.442695
    %v4421 = vpow.pop %v4420
    %v4422 = vadd.f32 %v4421, 1.0
    %v4423 = vrcp.pop %v4422
    %v4424 = vmul.f32 1.0, %v4423
    %v4425 = vld [vmem:[#allocation3 + $0x10] sm:$0xff]
    %4426 = vmatprep.subr.mxu0 0.0
    %4427 = vmatpush1.msra.mxu0 %v3701
    %4428 = vmatprep.subr.mxu0 0.0
    %4429 = vmatpush1.msra.mxu0 %v3702
    %4430 = vmatprep.subr.mxu0 0.0
    %4431 = vmatpush1.msra.mxu0 %v3703
    %4432 = vmatprep.subr.mxu0 0.0
    %4433 = vmatpush1.msra.mxu0 %v3704
    %4434 = vmatprep.subr.mxu0 0.0
    %4435 = vmatpush1.msra.mxu0 0.0
    %4436 = vmatprep.subr.mxu0 0.0
    %4437 = vmatpush1.msra.mxu0 0.0
    %4438 = vmatprep.subr.mxu0 0.0
    %4439 = vmatpush1.msra.mxu0 0.0
    %4440 = vmatprep.subr.mxu0 0.0
    %4441 = vmatpush1.msra.mxu0 0.0
    %4442 = vmatprep.subr.mxu0 0.0
    %4443 = vmatpush1.msra.mxu0 0.0
    %4444 = vmatprep.subr.mxu0 0.0
    %4445 = vmatpush1.msra.mxu0 0.0
    %4446 = vmatprep.subr.mxu0 0.0
    %4447 = vmatpush1.msra.mxu0 0.0
    %4448 = vmatprep.subr.mxu0 0.0
    %4449 = vmatpush1.msra.mxu0 0.0
    %4450 = vmatprep.subr.mxu0 0.0
    %4451 = vmatpush1.msra.mxu0 0.0
    %4452 = vmatprep.subr.mxu0 0.0
    %4453 = vmatpush1.msra.mxu0 0.0
    %4454 = vmatprep.subr.mxu0 0.0
    %4455 = vmatpush1.msra.mxu0 0.0
    %4456 = vmatprep.subr.mxu0 0.0
    %4457 = vmatpush1.msra.mxu0 0.0
    %4458 = vmatprep.subr.mxu0 0.0
    %4459 = vmatpush1.msra.mxu0 0.0
    %4460 = vmatprep.subr.mxu0 0.0
    %4461 = vmatpush1.msra.mxu0 0.0
    %4462 = vmatprep.subr.mxu0 0.0
    %4463 = vmatpush1.msra.mxu0 0.0
    %4464 = vmatprep.subr.mxu0 0.0
    %4465 = vmatpush1.msra.mxu0 0.0
    %4466 = vmatprep.subr.mxu0 0.0
    %4467 = vmatpush1.msra.mxu0 0.0
    %4468 = vmatprep.subr.mxu0 0.0
    %4469 = vmatpush1.msra.mxu0 0.0
    %4470 = vmatprep.subr.mxu0 0.0
    %4471 = vmatpush1.msra.mxu0 0.0
    %4472 = vmatprep.subr.mxu0 0.0
    %4473 = vmatpush1.msra.mxu0 0.0
    %4474 = vmatprep.subr.mxu0 0.0
    %4475 = vmatpush1.msra.mxu0 0.0
    %4476 = vmatprep.subr.mxu0 0.0
    %4477 = vmatpush1.msra.mxu0 0.0
    %4478 = vmatprep.subr.mxu0 0.0
    %4479 = vmatpush1.msra.mxu0 0.0
    %4480 = vmatprep.subr.mxu0 0.0
    %4481 = vmatpush1.msra.mxu0 0.0
    %4482 = vmatprep.subr.mxu0 0.0
    %4483 = vmatpush1.msra.mxu0 0.0
    %4484 = vmatprep.subr.mxu0 0.0
    %4485 = vmatpush1.msra.mxu0 0.0
    %4486 = vmatprep.subr.mxu0 0.0
    %4487 = vmatpush1.msra.mxu0 0.0
    %4488 = vmatprep.subr.mxu0 0.0
    %4489 = vmatpush1.msra.mxu0 0.0
    %4490 = vmatprep.mubr.f32.mxu0 0.0
    %4491 = vmatmul.mubr.f32.gmra.mrb[0].mxu0 %v4346
    %v4492 = vpop.f32.mrb[0].mxu0
    %v4493 = vadd.f32 0.0, %v4492
    %v4494 = vpop.f32.mrb[0].mxu0
    %4495 = vdwg.mxu0
    %v4496 = vadd.f32 %v4425, %v4493
    %v4497 = vxor.u32 %v4496, 2147483648
    %v4498 = vmul.f32 %v4497, 1.442695
    %v4499 = vpow.pop %v4498
    %v4500 = vadd.f32 %v4499, 1.0
    %v4501 = vrcp.pop %v4500
    %v4502 = vmul.f32 1.0, %v4501
    %v4503 = vld [vmem:[#allocation4 + $0x10] sm:$0xff]
    %4504 = vmatprep.subr.mxu0 0.0
    %4505 = vmatpush1.msra.mxu0 %v3706
    %4506 = vmatprep.subr.mxu0 0.0
    %4507 = vmatpush1.msra.mxu0 %v3707
    %4508 = vmatprep.subr.mxu0 0.0
    %4509 = vmatpush1.msra.mxu0 %v3708
    %4510 = vmatprep.subr.mxu0 0.0
    %4511 = vmatpush1.msra.mxu0 %v3709
    %4512 = vmatprep.subr.mxu0 0.0
    %4513 = vmatpush1.msra.mxu0 0.0
    %4514 = vmatprep.subr.mxu0 0.0
    %4515 = vmatpush1.msra.mxu0 0.0
    %4516 = vmatprep.subr.mxu0 0.0
    %4517 = vmatpush1.msra.mxu0 0.0
    %4518 = vmatprep.subr.mxu0 0.0
    %4519 = vmatpush1.msra.mxu0 0.0
    %4520 = vmatprep.subr.mxu0 0.0
    %4521 = vmatpush1.msra.mxu0 0.0
    %4522 = vmatprep.subr.mxu0 0.0
    %4523 = vmatpush1.msra.mxu0 0.0
    %4524 = vmatprep.subr.mxu0 0.0
    %4525 = vmatpush1.msra.mxu0 0.0
    %4526 = vmatprep.subr.mxu0 0.0
    %4527 = vmatpush1.msra.mxu0 0.0
    %4528 = vmatprep.subr.mxu0 0.0
    %4529 = vmatpush1.msra.mxu0 0.0
    %4530 = vmatprep.subr.mxu0 0.0
    %4531 = vmatpush1.msra.mxu0 0.0
    %4532 = vmatprep.subr.mxu0 0.0
    %4533 = vmatpush1.msra.mxu0 0.0
    %4534 = vmatprep.subr.mxu0 0.0
    %4535 = vmatpush1.msra.mxu0 0.0
    %4536 = vmatprep.subr.mxu0 0.0
    %4537 = vmatpush1.msra.mxu0 0.0
    %4538 = vmatprep.subr.mxu0 0.0
    %4539 = vmatpush1.msra.mxu0 0.0
    %4540 = vmatprep.subr.mxu0 0.0
    %4541 = vmatpush1.msra.mxu0 0.0
    %4542 = vmatprep.subr.mxu0 0.0
    %4543 = vmatpush1.msra.mxu0 0.0
    %4544 = vmatprep.subr.mxu0 0.0
    %4545 = vmatpush1.msra.mxu0 0.0
    %4546 = vmatprep.subr.mxu0 0.0
    %4547 = vmatpush1.msra.mxu0 0.0
    %4548 = vmatprep.subr.mxu0 0.0
    %4549 = vmatpush1.msra.mxu0 0.0
    %4550 = vmatprep.subr.mxu0 0.0
    %4551 = vmatpush1.msra.mxu0 0.0
    %4552 = vmatprep.subr.mxu0 0.0
    %4553 = vmatpush1.msra.mxu0 0.0
    %4554 = vmatprep.subr.mxu0 0.0
    %4555 = vmatpush1.msra.mxu0 0.0
    %4556 = vmatprep.subr.mxu0 0.0
    %4557 = vmatpush1.msra.mxu0 0.0
    %4558 = vmatprep.subr.mxu0 0.0
    %4559 = vmatpush1.msra.mxu0 0.0
    %4560 = vmatprep.subr.mxu0 0.0
    %4561 = vmatpush1.msra.mxu0 0.0
    %4562 = vmatprep.subr.mxu0 0.0
    %4563 = vmatpush1.msra.mxu0 0.0
    %4564 = vmatprep.subr.mxu0 0.0
    %4565 = vmatpush1.msra.mxu0 0.0
    %4566 = vmatprep.subr.mxu0 0.0
    %4567 = vmatpush1.msra.mxu0 0.0
    %4568 = vmatprep.mubr.f32.mxu0 0.0
    %4569 = vmatmul.mubr.f32.gmra.mrb[0].mxu0 %v4346
    %v4570 = vpop.f32.mrb[0].mxu0
    %v4571 = vadd.f32 0.0, %v4570
    %v4572 = vpop.f32.mrb[0].mxu0
    %4573 = vdwg.mxu0
    %v4574 = vadd.f32 %v4503, %v4571
    %v4575 = vtanh.pop %v4574
    %v4576 = vld [vmem:[#allocation5 + $0x10] sm:$0xff]
    %4577 = vmatprep.subr.mxu0 0.0
    %4578 = vmatpush1.msra.mxu0 %v3711
    %4579 = vmatprep.subr.mxu0 0.0
    %4580 = vmatpush1.msra.mxu0 %v3712
    %4581 = vmatprep.subr.mxu0 0.0
    %4582 = vmatpush1.msra.mxu0 %v3713
    %4583 = vmatprep.subr.mxu0 0.0
    %4584 = vmatpush1.msra.mxu0 %v3714
    %4585 = vmatprep.subr.mxu0 0.0
    %4586 = vmatpush1.msra.mxu0 0.0
    %4587 = vmatprep.subr.mxu0 0.0
    %4588 = vmatpush1.msra.mxu0 0.0
    %4589 = vmatprep.subr.mxu0 0.0
    %4590 = vmatpush1.msra.mxu0 0.0
    %4591 = vmatprep.subr.mxu0 0.0
    %4592 = vmatpush1.msra.mxu0 0.0
    %4593 = vmatprep.subr.mxu0 0.0
    %4594 = vmatpush1.msra.mxu0 0.0
    %4595 = vmatprep.subr.mxu0 0.0
    %4596 = vmatpush1.msra.mxu0 0.0
    %4597 = vmatprep.subr.mxu0 0.0
    %4598 = vmatpush1.msra.mxu0 0.0
    %4599 = vmatprep.subr.mxu0 0.0
    %4600 = vmatpush1.msra.mxu0 0.0
    %4601 = vmatprep.subr.mxu0 0.0
    %4602 = vmatpush1.msra.mxu0 0.0
    %4603 = vmatprep.subr.mxu0 0.0
    %4604 = vmatpush1.msra.mxu0 0.0
    %4605 = vmatprep.subr.mxu0 0.0
    %4606 = vmatpush1.msra.mxu0 0.0
    %4607 = vmatprep.subr.mxu0 0.0
    %4608 = vmatpush1.msra.mxu0 0.0
    %4609 = vmatprep.subr.mxu0 0.0
    %4610 = vmatpush1.msra.mxu0 0.0
    %4611 = vmatprep.subr.mxu0 0.0
    %4612 = vmatpush1.msra.mxu0 0.0
    %4613 = vmatprep.subr.mxu0 0.0
    %4614 = vmatpush1.msra.mxu0 0.0
    %4615 = vmatprep.subr.mxu0 0.0
    %4616 = vmatpush1.msra.mxu0 0.0
    %4617 = vmatprep.subr.mxu0 0.0
    %4618 = vmatpush1.msra.mxu0 0.0
    %4619 = vmatprep.subr.mxu0 0.0
    %4620 = vmatpush1.msra.mxu0 0.0
    %4621 = vmatprep.subr.mxu0 0.0
    %4622 = vmatpush1.msra.mxu0 0.0
    %4623 = vmatprep.subr.mxu0 0.0
    %4624 = vmatpush1.msra.mxu0 0.0
    %4625 = vmatprep.subr.mxu0 0.0
    %4626 = vmatpush1.msra.mxu0 0.0
    %4627 = vmatprep.subr.mxu0 0.0
    %4628 = vmatpush1.msra.mxu0 0.0
    %4629 = vmatprep.subr.mxu0 0.0
    %4630 = vmatpush1.msra.mxu0 0.0
    %4631 = vmatprep.subr.mxu0 0.0
    %4632 = vmatpush1.msra.mxu0 0.0
    %4633 = vmatprep.subr.mxu0 0.0
    %4634 = vmatpush1.msra.mxu0 0.0
    %4635 = vmatprep.subr.mxu0 0.0
    %4636 = vmatpush1.msra.mxu0 0.0
    %4637 = vmatprep.subr.mxu0 0.0
    %4638 = vmatpush1.msra.mxu0 0.0
    %4639 = vmatprep.subr.mxu0 0.0
    %4640 = vmatpush1.msra.mxu0 0.0
    %4641 = vmatprep.mubr.f32.mxu0 0.0
    %4642 = vmatmul.mubr.f32.gmra.mrb[0].mxu0 %v4346
    %v4643 = vpop.f32.mrb[0].mxu0
    %v4644 = vadd.f32 0.0, %v4643
    %v4645 = vpop.f32.mrb[0].mxu0
    %4646 = vdwg.mxu0
    %v4647 = vadd.f32 %v4576, %v4644
    %v4648 = vxor.u32 %v4647, 2147483648
    %v4649 = vmul.f32 %v4648, 1.442695
    %v4650 = vpow.pop %v4649
    %v4651 = vadd.f32 %v4650, 1.0
    %v4652 = vrcp.pop %v4651
    %v4653 = vmul.f32 1.0, %v4652
    %v4654 = vmul.f32 %v4502, %v4340
    %v4655 = vmul.f32 %v4424, %v4575
    %v4656 = vadd.f32 %v4654, %v4655
    %v4657 = vtanh.pop %v4656
    %v4658 = vmul.f32 %v4653, %v4657
    %4659 = vst.msk [vmem:[#allocation6 + $0x10] sm:$0xff] %vm234, %v4658
    %v4660 = vld [vmem:[#allocation2 + $0x18] sm:$0xff]
    %v4662 = vsel %vm234, %v4658, 0
    %4664 = vmatprep.subr.mxu0 0.0
    %4665 = vmatpush1.msra.mxu0 %v3696
    %4666 = vmatprep.subr.mxu0 0.0
    %4667 = vmatpush1.msra.mxu0 %v3697
    %4668 = vmatprep.subr.mxu0 0.0
    %4669 = vmatpush1.msra.mxu0 %v3698
    %4670 = vmatprep.subr.mxu0 0.0
    %4671 = vmatpush1.msra.mxu0 %v3699
    %4672 = vmatprep.subr.mxu0 0.0
    %4673 = vmatpush1.msra.mxu0 0.0
    %4674 = vmatprep.subr.mxu0 0.0
    %4675 = vmatpush1.msra.mxu0 0.0
    %4676 = vmatprep.subr.mxu0 0.0
    %4677 = vmatpush1.msra.mxu0 0.0
    %4678 = vmatprep.subr.mxu0 0.0
    %4679 = vmatpush1.msra.mxu0 0.0
    %4680 = vmatprep.subr.mxu0 0.0
    %4681 = vmatpush1.msra.mxu0 0.0
    %4682 = vmatprep.subr.mxu0 0.0
    %4683 = vmatpush1.msra.mxu0 0.0
    %4684 = vmatprep.subr.mxu0 0.0
    %4685 = vmatpush1.msra.mxu0 0.0
    %4686 = vmatprep.subr.mxu0 0.0
    %4687 = vmatpush1.msra.mxu0 0.0
    %4688 = vmatprep.subr.mxu0 0.0
    %4689 = vmatpush1.msra.mxu0 0.0
    %4690 = vmatprep.subr.mxu0 0.0
    %4691 = vmatpush1.msra.mxu0 0.0
    %4692 = vmatprep.subr.mxu0 0.0
    %4693 = vmatpush1.msra.mxu0 0.0
    %4694 = vmatprep.subr.mxu0 0.0
    %4695 = vmatpush1.msra.mxu0 0.0
    %4696 = vmatprep.subr.mxu0 0.0
    %4697 = vmatpush1.msra.mxu0 0.0
    %4698 = vmatprep.subr.mxu0 0.0
    %4699 = vmatpush1.msra.mxu0 0.0
    %4700 = vmatprep.subr.mxu0 0.0
    %4701 = vmatpush1.msra.mxu0 0.0
    %4702 = vmatprep.subr.mxu0 0.0
    %4703 = vmatpush1.msra.mxu0 0.0
    %4704 = vmatprep.subr.mxu0 0.0
    %4705 = vmatpush1.msra.mxu0 0.0
    %4706 = vmatprep.subr.mxu0 0.0
    %4707 = vmatpush1.msra.mxu0 0.0
    %4708 = vmatprep.subr.mxu0 0.0
    %4709 = vmatpush1.msra.mxu0 0.0
    %4710 = vmatprep.subr.mxu0 0.0
    %4711 = vmatpush1.msra.mxu0 0.0
    %4712 = vmatprep.subr.mxu0 0.0
    %4713 = vmatpush1.msra.mxu0 0.0
    %4714 = vmatprep.subr.mxu0 0.0
    %4715 = vmatpush1.msra.mxu0 0.0
    %4716 = vmatprep.subr.mxu0 0.0
    %4717 = vmatpush1.msra.mxu0 0.0
    %4718 = vmatprep.subr.mxu0 0.0
    %4719 = vmatpush1.msra.mxu0 0.0
    %4720 = vmatprep.subr.mxu0 0.0
    %4721 = vmatpush1.msra.mxu0 0.0
    %4722 = vmatprep.subr.mxu0 0.0
    %4723 = vmatpush1.msra.mxu0 0.0
    %4724 = vmatprep.subr.mxu0 0.0
    %4725 = vmatpush1.msra.mxu0 0.0
    %4726 = vmatprep.subr.mxu0 0.0
    %4727 = vmatpush1.msra.mxu0 0.0
    %4728 = vmatprep.mubr.f32.mxu0 0.0
    %4729 = vmatmul.mubr.f32.gmra.mrb[0].mxu0 %v4662
    %v4730 = vpop.f32.mrb[0].mxu0
    %v4731 = vadd.f32 0.0, %v4730
    %v4732 = vpop.f32.mrb[0].mxu0
    %4733 = vdwg.mxu0
    %v4734 = vadd.f32 %v4660, %v4731
    %v4735 = vxor.u32 %v4734, 2147483648
    %v4736 = vmul.f32 %v4735, 1.442695
    %v4737 = vpow.pop %v4736
    %v4738 = vadd.f32 %v4737, 1.0
    %v4739 = vrcp.pop %v4738
    %v4740 = vmul.f32 1.0, %v4739
    %v4741 = vld [vmem:[#allocation3 + $0x18] sm:$0xff]
    %4742 = vmatprep.subr.mxu0 0.0
    %4743 = vmatpush1.msra.mxu0 %v3701
    %4744 = vmatprep.subr.mxu0 0.0
    %4745 = vmatpush1.msra.mxu0 %v3702
    %4746 = vmatprep.subr.mxu0 0.0
    %4747 = vmatpush1.msra.mxu0 %v3703
    %4748 = vmatprep.subr.mxu0 0.0
    %4749 = vmatpush1.msra.mxu0 %v3704
    %4750 = vmatprep.subr.mxu0 0.0
    %4751 = vmatpush1.msra.mxu0 0.0
    %4752 = vmatprep.subr.mxu0 0.0
    %4753 = vmatpush1.msra.mxu0 0.0
    %4754 = vmatprep.subr.mxu0 0.0
    %4755 = vmatpush1.msra.mxu0 0.0
    %4756 = vmatprep.subr.mxu0 0.0
    %4757 = vmatpush1.msra.mxu0 0.0
    %4758 = vmatprep.subr.mxu0 0.0
    %4759 = vmatpush1.msra.mxu0 0.0
    %4760 = vmatprep.subr.mxu0 0.0
    %4761 = vmatpush1.msra.mxu0 0.0
    %4762 = vmatprep.subr.mxu0 0.0
    %4763 = vmatpush1.msra.mxu0 0.0
    %4764 = vmatprep.subr.mxu0 0.0
    %4765 = vmatpush1.msra.mxu0 0.0
    %4766 = vmatprep.subr.mxu0 0.0
    %4767 = vmatpush1.msra.mxu0 0.0
    %4768 = vmatprep.subr.mxu0 0.0
    %4769 = vmatpush1.msra.mxu0 0.0
    %4770 = vmatprep.subr.mxu0 0.0
    %4771 = vmatpush1.msra.mxu0 0.0
    %4772 = vmatprep.subr.mxu0 0.0
    %4773 = vmatpush1.msra.mxu0 0.0
    %4774 = vmatprep.subr.mxu0 0.0
    %4775 = vmatpush1.msra.mxu0 0.0
    %4776 = vmatprep.subr.mxu0 0.0
    %4777 = vmatpush1.msra.mxu0 0.0
    %4778 = vmatprep.subr.mxu0 0.0
    %4779 = vmatpush1.msra.mxu0 0.0
    %4780 = vmatprep.subr.mxu0 0.0
    %4781 = vmatpush1.msra.mxu0 0.0
    %4782 = vmatprep.subr.mxu0 0.0
    %4783 = vmatpush1.msra.mxu0 0.0
    %4784 = vmatprep.subr.mxu0 0.0
    %4785 = vmatpush1.msra.mxu0 0.0
    %4786 = vmatprep.subr.mxu0 0.0
    %4787 = vmatpush1.msra.mxu0 0.0
    %4788 = vmatprep.subr.mxu0 0.0
    %4789 = vmatpush1.msra.mxu0 0.0
    %4790 = vmatprep.subr.mxu0 0.0
    %4791 = vmatpush1.msra.mxu0 0.0
    %4792 = vmatprep.subr.mxu0 0.0
    %4793 = vmatpush1.msra.mxu0 0.0
    %4794 = vmatprep.subr.mxu0 0.0
    %4795 = vmatpush1.msra.mxu0 0.0
    %4796 = vmatprep.subr.mxu0 0.0
    %4797 = vmatpush1.msra.mxu0 0.0
    %4798 = vmatprep.subr.mxu0 0.0
    %4799 = vmatpush1.msra.mxu0 0.0
    %4800 = vmatprep.subr.mxu0 0.0
    %4801 = vmatpush1.msra.mxu0 0.0
    %4802 = vmatprep.subr.mxu0 0.0
    %4803 = vmatpush1.msra.mxu0 0.0
    %4804 = vmatprep.subr.mxu0 0.0
    %4805 = vmatpush1.msra.mxu0 0.0
    %4806 = vmatprep.mubr.f32.mxu0 0.0
    %4807 = vmatmul.mubr.f32.gmra.mrb[0].mxu0 %v4662
    %v4808 = vpop.f32.mrb[0].mxu0
    %v4809 = vadd.f32 0.0, %v4808
    %v4810 = vpop.f32.mrb[0].mxu0
    %4811 = vdwg.mxu0
    %v4812 = vadd.f32 %v4741, %v4809
    %v4813 = vxor.u32 %v4812, 2147483648
    %v4814 = vmul.f32 %v4813, 1.442695
    %v4815 = vpow.pop %v4814
    %v4816 = vadd.f32 %v4815, 1.0
    %v4817 = vrcp.pop %v4816
    %v4818 = vmul.f32 1.0, %v4817
    %v4819 = vld [vmem:[#allocation4 + $0x18] sm:$0xff]
    %4820 = vmatprep.subr.mxu0 0.0
    %4821 = vmatpush1.msra.mxu0 %v3706
    %4822 = vmatprep.subr.mxu0 0.0
    %4823 = vmatpush1.msra.mxu0 %v3707
    %4824 = vmatprep.subr.mxu0 0.0
    %4825 = vmatpush1.msra.mxu0 %v3708
    %4826 = vmatprep.subr.mxu0 0.0
    %4827 = vmatpush1.msra.mxu0 %v3709
    %4828 = vmatprep.subr.mxu0 0.0
    %4829 = vmatpush1.msra.mxu0 0.0
    %4830 = vmatprep.subr.mxu0 0.0
    %4831 = vmatpush1.msra.mxu0 0.0
    %4832 = vmatprep.subr.mxu0 0.0
    %4833 = vmatpush1.msra.mxu0 0.0
    %4834 = vmatprep.subr.mxu0 0.0
    %4835 = vmatpush1.msra.mxu0 0.0
    %4836 = vmatprep.subr.mxu0 0.0
    %4837 = vmatpush1.msra.mxu0 0.0
    %4838 = vmatprep.subr.mxu0 0.0
    %4839 = vmatpush1.msra.mxu0 0.0
    %4840 = vmatprep.subr.mxu0 0.0
    %4841 = vmatpush1.msra.mxu0 0.0
    %4842 = vmatprep.subr.mxu0 0.0
    %4843 = vmatpush1.msra.mxu0 0.0
    %4844 = vmatprep.subr.mxu0 0.0
    %4845 = vmatpush1.msra.mxu0 0.0
    %4846 = vmatprep.subr.mxu0 0.0
    %4847 = vmatpush1.msra.mxu0 0.0
    %4848 = vmatprep.subr.mxu0 0.0
    %4849 = vmatpush1.msra.mxu0 0.0
    %4850 = vmatprep.subr.mxu0 0.0
    %4851 = vmatpush1.msra.mxu0 0.0
    %4852 = vmatprep.subr.mxu0 0.0
    %4853 = vmatpush1.msra.mxu0 0.0
    %4854 = vmatprep.subr.mxu0 0.0
    %4855 = vmatpush1.msra.mxu0 0.0
    %4856 = vmatprep.subr.mxu0 0.0
    %4857 = vmatpush1.msra.mxu0 0.0
    %4858 = vmatprep.subr.mxu0 0.0
    %4859 = vmatpush1.msra.mxu0 0.0
    %4860 = vmatprep.subr.mxu0 0.0
    %4861 = vmatpush1.msra.mxu0 0.0
    %4862 = vmatprep.subr.mxu0 0.0
    %4863 = vmatpush1.msra.mxu0 0.0
    %4864 = vmatprep.subr.mxu0 0.0
    %4865 = vmatpush1.msra.mxu0 0.0
    %4866 = vmatprep.subr.mxu0 0.0
    %4867 = vmatpush1.msra.mxu0 0.0
    %4868 = vmatprep.subr.mxu0 0.0
    %4869 = vmatpush1.msra.mxu0 0.0
    %4870 = vmatprep.subr.mxu0 0.0
    %4871 = vmatpush1.msra.mxu0 0.0
    %4872 = vmatprep.subr.mxu0 0.0
    %4873 = vmatpush1.msra.mxu0 0.0
    %4874 = vmatprep.subr.mxu0 0.0
    %4875 = vmatpush1.msra.mxu0 0.0
    %4876 = vmatprep.subr.mxu0 0.0
    %4877 = vmatpush1.msra.mxu0 0.0
    %4878 = vmatprep.subr.mxu0 0.0
    %4879 = vmatpush1.msra.mxu0 0.0
    %4880 = vmatprep.subr.mxu0 0.0
    %4881 = vmatpush1.msra.mxu0 0.0
    %4882 = vmatprep.subr.mxu0 0.0
    %4883 = vmatpush1.msra.mxu0 0.0
    %4884 = vmatprep.mubr.f32.mxu0 0.0
    %4885 = vmatmul.mubr.f32.gmra.mrb[0].mxu0 %v4662
    %v4886 = vpop.f32.mrb[0].mxu0
    %v4887 = vadd.f32 0.0, %v4886
    %v4888 = vpop.f32.mrb[0].mxu0
    %4889 = vdwg.mxu0
    %v4890 = vadd.f32 %v4819, %v4887
    %v4891 = vtanh.pop %v4890
    %v4892 = vld [vmem:[#allocation5 + $0x18] sm:$0xff]
    %4893 = vmatprep.subr.mxu0 0.0
    %4894 = vmatpush1.msra.mxu0 %v3711
    %4895 = vmatprep.subr.mxu0 0.0
    %4896 = vmatpush1.msra.mxu0 %v3712
    %4897 = vmatprep.subr.mxu0 0.0
    %4898 = vmatpush1.msra.mxu0 %v3713
    %4899 = vmatprep.subr.mxu0 0.0
    %4900 = vmatpush1.msra.mxu0 %v3714
    %4901 = vmatprep.subr.mxu0 0.0
    %4902 = vmatpush1.msra.mxu0 0.0
    %4903 = vmatprep.subr.mxu0 0.0
    %4904 = vmatpush1.msra.mxu0 0.0
    %4905 = vmatprep.subr.mxu0 0.0
    %4906 = vmatpush1.msra.mxu0 0.0
    %4907 = vmatprep.subr.mxu0 0.0
    %4908 = vmatpush1.msra.mxu0 0.0
    %4909 = vmatprep.subr.mxu0 0.0
    %4910 = vmatpush1.msra.mxu0 0.0
    %4911 = vmatprep.subr.mxu0 0.0
    %4912 = vmatpush1.msra.mxu0 0.0
    %4913 = vmatprep.subr.mxu0 0.0
    %4914 = vmatpush1.msra.mxu0 0.0
    %4915 = vmatprep.subr.mxu0 0.0
    %4916 = vmatpush1.msra.mxu0 0.0
    %4917 = vmatprep.subr.mxu0 0.0
    %4918 = vmatpush1.msra.mxu0 0.0
    %4919 = vmatprep.subr.mxu0 0.0
    %4920 = vmatpush1.msra.mxu0 0.0
    %4921 = vmatprep.subr.mxu0 0.0
    %4922 = vmatpush1.msra.mxu0 0.0
    %4923 = vmatprep.subr.mxu0 0.0
    %4924 = vmatpush1.msra.mxu0 0.0
    %4925 = vmatprep.subr.mxu0 0.0
    %4926 = vmatpush1.msra.mxu0 0.0
    %4927 = vmatprep.subr.mxu0 0.0
    %4928 = vmatpush1.msra.mxu0 0.0
    %4929 = vmatprep.subr.mxu0 0.0
    %4930 = vmatpush1.msra.mxu0 0.0
    %4931 = vmatprep.subr.mxu0 0.0
    %4932 = vmatpush1.msra.mxu0 0.0
    %4933 = vmatprep.subr.mxu0 0.0
    %4934 = vmatpush1.msra.mxu0 0.0
    %4935 = vmatprep.subr.mxu0 0.0
    %4936 = vmatpush1.msra.mxu0 0.0
    %4937 = vmatprep.subr.mxu0 0.0
    %4938 = vmatpush1.msra.mxu0 0.0
    %4939 = vmatprep.subr.mxu0 0.0
    %4940 = vmatpush1.msra.mxu0 0.0
    %4941 = vmatprep.subr.mxu0 0.0
    %4942 = vmatpush1.msra.mxu0 0.0
    %4943 = vmatprep.subr.mxu0 0.0
    %4944 = vmatpush1.msra.mxu0 0.0
    %4945 = vmatprep.subr.mxu0 0.0
    %4946 = vmatpush1.msra.mxu0 0.0
    %4947 = vmatprep.subr.mxu0 0.0
    %4948 = vmatpush1.msra.mxu0 0.0
    %4949 = vmatprep.subr.mxu0 0.0
    %4950 = vmatpush1.msra.mxu0 0.0
    %4951 = vmatprep.subr.mxu0 0.0
    %4952 = vmatpush1.msra.mxu0 0.0
    %4953 = vmatprep.subr.mxu0 0.0
    %4954 = vmatpush1.msra.mxu0 0.0
    %4955 = vmatprep.subr.mxu0 0.0
    %4956 = vmatpush1.msra.mxu0 0.0
    %4957 = vmatprep.mubr.f32.mxu0 0.0
    %4958 = vmatmul.mubr.f32.gmra.mrb[0].mxu0 %v4662
    %v4959 = vpop.f32.mrb[0].mxu0
    %v4960 = vadd.f32 0.0, %v4959
    %v4961 = vpop.f32.mrb[0].mxu0
    %4962 = vdwg.mxu0
    %v4963 = vadd.f32 %v4892, %v4960
    %v4964 = vxor.u32 %v4963, 2147483648
    %v4965 = vmul.f32 %v4964, 1.442695
    %v4966 = vpow.pop %v4965
    %v4967 = vadd.f32 %v4966, 1.0
    %v4968 = vrcp.pop %v4967
    %v4969 = vmul.f32 1.0, %v4968
    %v4970 = vmul.f32 %v4818, %v4656
    %v4971 = vmul.f32 %v4740, %v4891
    %v4972 = vadd.f32 %v4970, %v4971
    %v4973 = vtanh.pop %v4972
    %v4974 = vmul.f32 %v4969, %v4973
    %4975 = vst.msk [vmem:[#allocation6 + $0x18] sm:$0xff] %vm234, %v4974
    %v4976 = vld [vmem:[#allocation2 + $0x20] sm:$0xff]
    %v4978 = vsel %vm234, %v4974, 0
    %4980 = vmatprep.subr.mxu0 0.0
    %4981 = vmatpush1.msra.mxu0 %v3696
    %4982 = vmatprep.subr.mxu0 0.0
    %4983 = vmatpush1.msra.mxu0 %v3697
    %4984 = vmatprep.subr.mxu0 0.0
    %4985 = vmatpush1.msra.mxu0 %v3698
    %4986 = vmatprep.subr.mxu0 0.0
    %4987 = vmatpush1.msra.mxu0 %v3699
    %4988 = vmatprep.subr.mxu0 0.0
    %4989 = vmatpush1.msra.mxu0 0.0
    %4990 = vmatprep.subr.mxu0 0.0
    %4991 = vmatpush1.msra.mxu0 0.0
    %4992 = vmatprep.subr.mxu0 0.0
    %4993 = vmatpush1.msra.mxu0 0.0
    %4994 = vmatprep.subr.mxu0 0.0
    %4995 = vmatpush1.msra.mxu0 0.0
    %4996 = vmatprep.subr.mxu0 0.0
    %4997 = vmatpush1.msra.mxu0 0.0
    %4998 = vmatprep.subr.mxu0 0.0
    %4999 = vmatpush1.msra.mxu0 0.0
    %5000 = vmatprep.subr.mxu0 0.0
    %5001 = vmatpush1.msra.mxu0 0.0
    %5002 = vmatprep.subr.mxu0 0.0
    %5003 = vmatpush1.msra.mxu0 0.0
    %5004 = vmatprep.subr.mxu0 0.0
    %5005 = vmatpush1.msra.mxu0 0.0
    %5006 = vmatprep.subr.mxu0 0.0
    %5007 = vmatpush1.msra.mxu0 0.0
    %5008 = vmatprep.subr.mxu0 0.0
    %5009 = vmatpush1.msra.mxu0 0.0
    %5010 = vmatprep.subr.mxu0 0.0
    %5011 = vmatpush1.msra.mxu0 0.0
    %5012 = vmatprep.subr.mxu0 0.0
    %5013 = vmatpush1.msra.mxu0 0.0
    %5014 = vmatprep.subr.mxu0 0.0
    %5015 = vmatpush1.msra.mxu0 0.0
    %5016 = vmatprep.subr.mxu0 0.0
    %5017 = vmatpush1.msra.mxu0 0.0
    %5018 = vmatprep.subr.mxu0 0.0
    %5019 = vmatpush1.msra.mxu0 0.0
    %5020 = vmatprep.subr.mxu0 0.0
    %5021 = vmatpush1.msra.mxu0 0.0
    %5022 = vmatprep.subr.mxu0 0.0
    %5023 = vmatpush1.msra.mxu0 0.0
    %5024 = vmatprep.subr.mxu0 0.0
    %5025 = vmatpush1.msra.mxu0 0.0
    %5026 = vmatprep.subr.mxu0 0.0
    %5027 = vmatpush1.msra.mxu0 0.0
    %5028 = vmatprep.subr.mxu0 0.0
    %5029 = vmatpush1.msra.mxu0 0.0
    %5030 = vmatprep.subr.mxu0 0.0
    %5031 = vmatpush1.msra.mxu0 0.0
    %5032 = vmatprep.subr.mxu0 0.0
    %5033 = vmatpush1.msra.mxu0 0.0
    %5034 = vmatprep.subr.mxu0 0.0
    %5035 = vmatpush1.msra.mxu0 0.0
    %5036 = vmatprep.subr.mxu0 0.0
    %5037 = vmatpush1.msra.mxu0 0.0
    %5038 = vmatprep.subr.mxu0 0.0
    %5039 = vmatpush1.msra.mxu0 0.0
    %5040 = vmatprep.subr.mxu0 0.0
    %5041 = vmatpush1.msra.mxu0 0.0
    %5042 = vmatprep.subr.mxu0 0.0
    %5043 = vmatpush1.msra.mxu0 0.0
    %5044 = vmatprep.mubr.f32.mxu0 0.0
    %5045 = vmatmul.mubr.f32.gmra.mrb[0].mxu0 %v4978
    %v5046 = vpop.f32.mrb[0].mxu0
    %v5047 = vadd.f32 0.0, %v5046
    %v5048 = vpop.f32.mrb[0].mxu0
    %5049 = vdwg.mxu0
    %v5050 = vadd.f32 %v4976, %v5047
    %v5051 = vxor.u32 %v5050, 2147483648
    %v5052 = vmul.f32 %v5051, 1.442695
    %v5053 = vpow.pop %v5052
    %v5054 = vadd.f32 %v5053, 1.0
    %v5055 = vrcp.pop %v5054
    %v5056 = vmul.f32 1.0, %v5055
    %v5057 = vld [vmem:[#allocation3 + $0x20] sm:$0xff]
    %5058 = vmatprep.subr.mxu0 0.0
    %5059 = vmatpush1.msra.mxu0 %v3701
    %5060 = vmatprep.subr.mxu0 0.0
    %5061 = vmatpush1.msra.mxu0 %v3702
    %5062 = vmatprep.subr.mxu0 0.0
    %5063 = vmatpush1.msra.mxu0 %v3703
    %5064 = vmatprep.subr.mxu0 0.0
    %5065 = vmatpush1.msra.mxu0 %v3704
    %5066 = vmatprep.subr.mxu0 0.0
    %5067 = vmatpush1.msra.mxu0 0.0
    %5068 = vmatprep.subr.mxu0 0.0
    %5069 = vmatpush1.msra.mxu0 0.0
    %5070 = vmatprep.subr.mxu0 0.0
    %5071 = vmatpush1.msra.mxu0 0.0
    %5072 = vmatprep.subr.mxu0 0.0
    %5073 = vmatpush1.msra.mxu0 0.0
    %5074 = vmatprep.subr.mxu0 0.0
    %5075 = vmatpush1.msra.mxu0 0.0
    %5076 = vmatprep.subr.mxu0 0.0
    %5077 = vmatpush1.msra.mxu0 0.0
    %5078 = vmatprep.subr.mxu0 0.0
    %5079 = vmatpush1.msra.mxu0 0.0
    %5080 = vmatprep.subr.mxu0 0.0
    %5081 = vmatpush1.msra.mxu0 0.0
    %5082 = vmatprep.subr.mxu0 0.0
    %5083 = vmatpush1.msra.mxu0 0.0
    %5084 = vmatprep.subr.mxu0 0.0
    %5085 = vmatpush1.msra.mxu0 0.0
    %5086 = vmatprep.subr.mxu0 0.0
    %5087 = vmatpush1.msra.mxu0 0.0
    %5088 = vmatprep.subr.mxu0 0.0
    %5089 = vmatpush1.msra.mxu0 0.0
    %5090 = vmatprep.subr.mxu0 0.0
    %5091 = vmatpush1.msra.mxu0 0.0
    %5092 = vmatprep.subr.mxu0 0.0
    %5093 = vmatpush1.msra.mxu0 0.0
    %5094 = vmatprep.subr.mxu0 0.0
    %5095 = vmatpush1.msra.mxu0 0.0
    %5096 = vmatprep.subr.mxu0 0.0
    %5097 = vmatpush1.msra.mxu0 0.0
    %5098 = vmatprep.subr.mxu0 0.0
    %5099 = vmatpush1.msra.mxu0 0.0
    %5100 = vmatprep.subr.mxu0 0.0
    %5101 = vmatpush1.msra.mxu0 0.0
    %5102 = vmatprep.subr.mxu0 0.0
    %5103 = vmatpush1.msra.mxu0 0.0
    %5104 = vmatprep.subr.mxu0 0.0
    %5105 = vmatpush1.msra.mxu0 0.0
    %5106 = vmatprep.subr.mxu0 0.0
    %5107 = vmatpush1.msra.mxu0 0.0
    %5108 = vmatprep.subr.mxu0 0.0
    %5109 = vmatpush1.msra.mxu0 0.0
    %5110 = vmatprep.subr.mxu0 0.0
    %5111 = vmatpush1.msra.mxu0 0.0
    %5112 = vmatprep.subr.mxu0 0.0
    %5113 = vmatpush1.msra.mxu0 0.0
    %5114 = vmatprep.subr.mxu0 0.0
    %5115 = vmatpush1.msra.mxu0 0.0
    %5116 = vmatprep.subr.mxu0 0.0
    %5117 = vmatpush1.msra.mxu0 0.0
    %5118 = vmatprep.subr.mxu0 0.0
    %5119 = vmatpush1.msra.mxu0 0.0
    %5120 = vmatprep.subr.mxu0 0.0
    %5121 = vmatpush1.msra.mxu0 0.0
    %5122 = vmatprep.mubr.f32.mxu0 0.0
    %5123 = vmatmul.mubr.f32.gmra.mrb[0].mxu0 %v4978
    %v5124 = vpop.f32.mrb[0].mxu0
    %v5125 = vadd.f32 0.0, %v5124
    %v5126 = vpop.f32.mrb[0].mxu0
    %5127 = vdwg.mxu0
    %v5128 = vadd.f32 %v5057, %v5125
    %v5129 = vxor.u32 %v5128, 2147483648
    %v5130 = vmul.f32 %v5129, 1.442695
    %v5131 = vpow.pop %v5130
    %v5132 = vadd.f32 %v5131, 1.0
    %v5133 = vrcp.pop %v5132
    %v5134 = vmul.f32 1.0, %v5133
    %v5135 = vld [vmem:[#allocation4 + $0x20] sm:$0xff]
    %5136 = vmatprep.subr.mxu0 0.0
    %5137 = vmatpush1.msra.mxu0 %v3706
    %5138 = vmatprep.subr.mxu0 0.0
    %5139 = vmatpush1.msra.mxu0 %v3707
    %5140 = vmatprep.subr.mxu0 0.0
    %5141 = vmatpush1.msra.mxu0 %v3708
    %5142 = vmatprep.subr.mxu0 0.0
    %5143 = vmatpush1.msra.mxu0 %v3709
    %5144 = vmatprep.subr.mxu0 0.0
    %5145 = vmatpush1.msra.mxu0 0.0
    %5146 = vmatprep.subr.mxu0 0.0
    %5147 = vmatpush1.msra.mxu0 0.0
    %5148 = vmatprep.subr.mxu0 0.0
    %5149 = vmatpush1.msra.mxu0 0.0
    %5150 = vmatprep.subr.mxu0 0.0
    %5151 = vmatpush1.msra.mxu0 0.0
    %5152 = vmatprep.subr.mxu0 0.0
    %5153 = vmatpush1.msra.mxu0 0.0
    %5154 = vmatprep.subr.mxu0 0.0
    %5155 = vmatpush1.msra.mxu0 0.0
    %5156 = vmatprep.subr.mxu0 0.0
    %5157 = vmatpush1.msra.mxu0 0.0
    %5158 = vmatprep.subr.mxu0 0.0
    %5159 = vmatpush1.msra.mxu0 0.0
    %5160 = vmatprep.subr.mxu0 0.0
    %5161 = vmatpush1.msra.mxu0 0.0
    %5162 = vmatprep.subr.mxu0 0.0
    %5163 = vmatpush1.msra.mxu0 0.0
    %5164 = vmatprep.subr.mxu0 0.0
    %5165 = vmatpush1.msra.mxu0 0.0
    %5166 = vmatprep.subr.mxu0 0.0
    %5167 = vmatpush1.msra.mxu0 0.0
    %5168 = vmatprep.subr.mxu0 0.0
    %5169 = vmatpush1.msra.mxu0 0.0
    %5170 = vmatprep.subr.mxu0 0.0
    %5171 = vmatpush1.msra.mxu0 0.0
    %5172 = vmatprep.subr.mxu0 0.0
    %5173 = vmatpush1.msra.mxu0 0.0
    %5174 = vmatprep.subr.mxu0 0.0
    %5175 = vmatpush1.msra.mxu0 0.0
    %5176 = vmatprep.subr.mxu0 0.0
    %5177 = vmatpush1.msra.mxu0 0.0
    %5178 = vmatprep.subr.mxu0 0.0
    %5179 = vmatpush1.msra.mxu0 0.0
    %5180 = vmatprep.subr.mxu0 0.0
    %5181 = vmatpush1.msra.mxu0 0.0
    %5182 = vmatprep.subr.mxu0 0.0
    %5183 = vmatpush1.msra.mxu0 0.0
    %5184 = vmatprep.subr.mxu0 0.0
    %5185 = vmatpush1.msra.mxu0 0.0
    %5186 = vmatprep.subr.mxu0 0.0
    %5187 = vmatpush1.msra.mxu0 0.0
    %5188 = vmatprep.subr.mxu0 0.0
    %5189 = vmatpush1.msra.mxu0 0.0
    %5190 = vmatprep.subr.mxu0 0.0
    %5191 = vmatpush1.msra.mxu0 0.0
    %5192 = vmatprep.subr.mxu0 0.0
    %5193 = vmatpush1.msra.mxu0 0.0
    %5194 = vmatprep.subr.mxu0 0.0
    %5195 = vmatpush1.msra.mxu0 0.0
    %5196 = vmatprep.subr.mxu0 0.0
    %5197 = vmatpush1.msra.mxu0 0.0
    %5198 = vmatprep.subr.mxu0 0.0
    %5199 = vmatpush1.msra.mxu0 0.0
    %5200 = vmatprep.mubr.f32.mxu0 0.0
    %5201 = vmatmul.mubr.f32.gmra.mrb[0].mxu0 %v4978
    %v5202 = vpop.f32.mrb[0].mxu0
    %v5203 = vadd.f32 0.0, %v5202
    %v5204 = vpop.f32.mrb[0].mxu0
    %5205 = vdwg.mxu0
    %v5206 = vadd.f32 %v5135, %v5203
    %v5207 = vtanh.pop %v5206
    %v5208 = vld [vmem:[#allocation5 + $0x20] sm:$0xff]
    %5209 = vmatprep.subr.mxu0 0.0
    %5210 = vmatpush1.msra.mxu0 %v3711
    %5211 = vmatprep.subr.mxu0 0.0
    %5212 = vmatpush1.msra.mxu0 %v3712
    %5213 = vmatprep.subr.mxu0 0.0
    %5214 = vmatpush1.msra.mxu0 %v3713
    %5215 = vmatprep.subr.mxu0 0.0
    %5216 = vmatpush1.msra.mxu0 %v3714
    %5217 = vmatprep.subr.mxu0 0.0
    %5218 = vmatpush1.msra.mxu0 0.0
    %5219 = vmatprep.subr.mxu0 0.0
    %5220 = vmatpush1.msra.mxu0 0.0
    %5221 = vmatprep.subr.mxu0 0.0
    %5222 = vmatpush1.msra.mxu0 0.0
    %5223 = vmatprep.subr.mxu0 0.0
    %5224 = vmatpush1.msra.mxu0 0.0
    %5225 = vmatprep.subr.mxu0 0.0
    %5226 = vmatpush1.msra.mxu0 0.0
    %5227 = vmatprep.subr.mxu0 0.0
    %5228 = vmatpush1.msra.mxu0 0.0
    %5229 = vmatprep.subr.mxu0 0.0
    %5230 = vmatpush1.msra.mxu0 0.0
    %5231 = vmatprep.subr.mxu0 0.0
    %5232 = vmatpush1.msra.mxu0 0.0
    %5233 = vmatprep.subr.mxu0 0.0
    %5234 = vmatpush1.msra.mxu0 0.0
    %5235 = vmatprep.subr.mxu0 0.0
    %5236 = vmatpush1.msra.mxu0 0.0
    %5237 = vmatprep.subr.mxu0 0.0
    %5238 = vmatpush1.msra.mxu0 0.0
    %5239 = vmatprep.subr.mxu0 0.0
    %5240 = vmatpush1.msra.mxu0 0.0
    %5241 = vmatprep.subr.mxu0 0.0
    %5242 = vmatpush1.msra.mxu0 0.0
    %5243 = vmatprep.subr.mxu0 0.0
    %5244 = vmatpush1.msra.mxu0 0.0
    %5245 = vmatprep.subr.mxu0 0.0
    %5246 = vmatpush1.msra.mxu0 0.0
    %5247 = vmatprep.subr.mxu0 0.0
    %5248 = vmatpush1.msra.mxu0 0.0
    %5249 = vmatprep.subr.mxu0 0.0
    %5250 = vmatpush1.msra.mxu0 0.0
    %5251 = vmatprep.subr.mxu0 0.0
    %5252 = vmatpush1.msra.mxu0 0.0
    %5253 = vmatprep.subr.mxu0 0.0
    %5254 = vmatpush1.msra.mxu0 0.0
    %5255 = vmatprep.subr.mxu0 0.0
    %5256 = vmatpush1.msra.mxu0 0.0
    %5257 = vmatprep.subr.mxu0 0.0
    %5258 = vmatpush1.msra.mxu0 0.0
    %5259 = vmatprep.subr.mxu0 0.0
    %5260 = vmatpush1.msra.mxu0 0.0
    %5261 = vmatprep.subr.mxu0 0.0
    %5262 = vmatpush1.msra.mxu0 0.0
    %5263 = vmatprep.subr.mxu0 0.0
    %5264 = vmatpush1.msra.mxu0 0.0
    %5265 = vmatprep.subr.mxu0 0.0
    %5266 = vmatpush1.msra.mxu0 0.0
    %5267 = vmatprep.subr.mxu0 0.0
    %5268 = vmatpush1.msra.mxu0 0.0
    %5269 = vmatprep.subr.mxu0 0.0
    %5270 = vmatpush1.msra.mxu0 0.0
    %5271 = vmatprep.subr.mxu0 0.0
    %5272 = vmatpush1.msra.mxu0 0.0
    %5273 = vmatprep.mubr.f32.mxu0 0.0
    %5274 = vmatmul.mubr.f32.gmra.mrb[0].mxu0 %v4978
    %v5275 = vpop.f32.mrb[0].mxu0
    %v5276 = vadd.f32 0.0, %v5275
    %v5277 = vpop.f32.mrb[0].mxu0
    %5278 = vdwg.mxu0
    %v5279 = vadd.f32 %v5208, %v5276
    %v5280 = vxor.u32 %v5279, 2147483648
    %v5281 = vmul.f32 %v5280, 1.442695
    %v5282 = vpow.pop %v5281
    %v5283 = vadd.f32 %v5282, 1.0
    %v5284 = vrcp.pop %v5283
    %v5285 = vmul.f32 1.0, %v5284
    %v5286 = vmul.f32 %v5134, %v4972
    %v5287 = vmul.f32 %v5056, %v5207
    %v5288 = vadd.f32 %v5286, %v5287
    %v5289 = vtanh.pop %v5288
    %v5290 = vmul.f32 %v5285, %v5289
    %5291 = vst.msk [vmem:[#allocation6 + $0x20] sm:$0xff] %vm234, %v5290
    %v5292 = vld [vmem:[#allocation2 + $0x28] sm:$0xff]
    %v5294 = vsel %vm234, %v5290, 0
    %5296 = vmatprep.subr.mxu0 0.0
    %5297 = vmatpush1.msra.mxu0 %v3696
    %5298 = vmatprep.subr.mxu0 0.0
    %5299 = vmatpush1.msra.mxu0 %v3697
    %5300 = vmatprep.subr.mxu0 0.0
    %5301 = vmatpush1.msra.mxu0 %v3698
    %5302 = vmatprep.subr.mxu0 0.0
    %5303 = vmatpush1.msra.mxu0 %v3699
    %5304 = vmatprep.subr.mxu0 0.0
    %5305 = vmatpush1.msra.mxu0 0.0
    %5306 = vmatprep.subr.mxu0 0.0
    %5307 = vmatpush1.msra.mxu0 0.0
    %5308 = vmatprep.subr.mxu0 0.0
    %5309 = vmatpush1.msra.mxu0 0.0
    %5310 = vmatprep.subr.mxu0 0.0
    %5311 = vmatpush1.msra.mxu0 0.0
    %5312 = vmatprep.subr.mxu0 0.0
    %5313 = vmatpush1.msra.mxu0 0.0
    %5314 = vmatprep.subr.mxu0 0.0
    %5315 = vmatpush1.msra.mxu0 0.0
    %5316 = vmatprep.subr.mxu0 0.0
    %5317 = vmatpush1.msra.mxu0 0.0
    %5318 = vmatprep.subr.mxu0 0.0
    %5319 = vmatpush1.msra.mxu0 0.0
    %5320 = vmatprep.subr.mxu0 0.0
    %5321 = vmatpush1.msra.mxu0 0.0
    %5322 = vmatprep.subr.mxu0 0.0
    %5323 = vmatpush1.msra.mxu0 0.0
    %5324 = vmatprep.subr.mxu0 0.0
    %5325 = vmatpush1.msra.mxu0 0.0
    %5326 = vmatprep.subr.mxu0 0.0
    %5327 = vmatpush1.msra.mxu0 0.0
    %5328 = vmatprep.subr.mxu0 0.0
    %5329 = vmatpush1.msra.mxu0 0.0
    %5330 = vmatprep.subr.mxu0 0.0
    %5331 = vmatpush1.msra.mxu0 0.0
    %5332 = vmatprep.subr.mxu0 0.0
    %5333 = vmatpush1.msra.mxu0 0.0
    %5334 = vmatprep.subr.mxu0 0.0
    %5335 = vmatpush1.msra.mxu0 0.0
    %5336 = vmatprep.subr.mxu0 0.0
    %5337 = vmatpush1.msra.mxu0 0.0
    %5338 = vmatprep.subr.mxu0 0.0
    %5339 = vmatpush1.msra.mxu0 0.0
    %5340 = vmatprep.subr.mxu0 0.0
    %5341 = vmatpush1.msra.mxu0 0.0
    %5342 = vmatprep.subr.mxu0 0.0
    %5343 = vmatpush1.msra.mxu0 0.0
    %5344 = vmatprep.subr.mxu0 0.0
    %5345 = vmatpush1.msra.mxu0 0.0
    %5346 = vmatprep.subr.mxu0 0.0
    %5347 = vmatpush1.msra.mxu0 0.0
    %5348 = vmatprep.subr.mxu0 0.0
    %5349 = vmatpush1.msra.mxu0 0.0
    %5350 = vmatprep.subr.mxu0 0.0
    %5351 = vmatpush1.msra.mxu0 0.0
    %5352 = vmatprep.subr.mxu0 0.0
    %5353 = vmatpush1.msra.mxu0 0.0
    %5354 = vmatprep.subr.mxu0 0.0
    %5355 = vmatpush1.msra.mxu0 0.0
    %5356 = vmatprep.subr.mxu0 0.0
    %5357 = vmatpush1.msra.mxu0 0.0
    %5358 = vmatprep.subr.mxu0 0.0
    %5359 = vmatpush1.msra.mxu0 0.0
    %5360 = vmatprep.mubr.f32.mxu0 0.0
    %5361 = vmatmul.mubr.f32.gmra.mrb[0].mxu0 %v5294
    %v5362 = vpop.f32.mrb[0].mxu0
    %v5363 = vadd.f32 0.0, %v5362
    %v5364 = vpop.f32.mrb[0].mxu0
    %5365 = vdwg.mxu0
    %v5366 = vadd.f32 %v5292, %v5363
    %v5367 = vxor.u32 %v5366, 2147483648
    %v5368 = vmul.f32 %v5367, 1.442695
    %v5369 = vpow.pop %v5368
    %v5370 = vadd.f32 %v5369, 1.0
    %v5371 = vrcp.pop %v5370
    %v5372 = vmul.f32 1.0, %v5371
    %v5373 = vld [vmem:[#allocation3 + $0x28] sm:$0xff]
    %5374 = vmatprep.subr.mxu0 0.0
    %5375 = vmatpush1.msra.mxu0 %v3701
    %5376 = vmatprep.subr.mxu0 0.0
    %5377 = vmatpush1.msra.mxu0 %v3702
    %5378 = vmatprep.subr.mxu0 0.0
    %5379 = vmatpush1.msra.mxu0 %v3703
    %5380 = vmatprep.subr.mxu0 0.0
    %5381 = vmatpush1.msra.mxu0 %v3704
    %5382 = vmatprep.subr.mxu0 0.0
    %5383 = vmatpush1.msra.mxu0 0.0
    %5384 = vmatprep.subr.mxu0 0.0
    %5385 = vmatpush1.msra.mxu0 0.0
    %5386 = vmatprep.subr.mxu0 0.0
    %5387 = vmatpush1.msra.mxu0 0.0
    %5388 = vmatprep.subr.mxu0 0.0
    %5389 = vmatpush1.msra.mxu0 0.0
    %5390 = vmatprep.subr.mxu0 0.0
    %5391 = vmatpush1.msra.mxu0 0.0
    %5392 = vmatprep.subr.mxu0 0.0
    %5393 = vmatpush1.msra.mxu0 0.0
    %5394 = vmatprep.subr.mxu0 0.0
    %5395 = vmatpush1.msra.mxu0 0.0
    %5396 = vmatprep.subr.mxu0 0.0
    %5397 = vmatpush1.msra.mxu0 0.0
    %5398 = vmatprep.subr.mxu0 0.0
    %5399 = vmatpush1.msra.mxu0 0.0
    %5400 = vmatprep.subr.mxu0 0.0
    %5401 = vmatpush1.msra.mxu0 0.0
    %5402 = vmatprep.subr.mxu0 0.0
    %5403 = vmatpush1.msra.mxu0 0.0
    %5404 = vmatprep.subr.mxu0 0.0
    %5405 = vmatpush1.msra.mxu0 0.0
    %5406 = vmatprep.subr.mxu0 0.0
    %5407 = vmatpush1.msra.mxu0 0.0
    %5408 = vmatprep.subr.mxu0 0.0
    %5409 = vmatpush1.msra.mxu0 0.0
    %5410 = vmatprep.subr.mxu0 0.0
    %5411 = vmatpush1.msra.mxu0 0.0
    %5412 = vmatprep.subr.mxu0 0.0
    %5413 = vmatpush1.msra.mxu0 0.0
    %5414 = vmatprep.subr.mxu0 0.0
    %5415 = vmatpush1.msra.mxu0 0.0
    %5416 = vmatprep.subr.mxu0 0.0
    %5417 = vmatpush1.msra.mxu0 0.0
    %5418 = vmatprep.subr.mxu0 0.0
    %5419 = vmatpush1.msra.mxu0 0.0
    %5420 = vmatprep.subr.mxu0 0.0
    %5421 = vmatpush1.msra.mxu0 0.0
    %5422 = vmatprep.subr.mxu0 0.0
    %5423 = vmatpush1.msra.mxu0 0.0
    %5424 = vmatprep.subr.mxu0 0.0
    %5425 = vmatpush1.msra.mxu0 0.0
    %5426 = vmatprep.subr.mxu0 0.0
    %5427 = vmatpush1.msra.mxu0 0.0
    %5428 = vmatprep.subr.mxu0 0.0
    %5429 = vmatpush1.msra.mxu0 0.0
    %5430 = vmatprep.subr.mxu0 0.0
    %5431 = vmatpush1.msra.mxu0 0.0
    %5432 = vmatprep.subr.mxu0 0.0
    %5433 = vmatpush1.msra.mxu0 0.0
    %5434 = vmatprep.subr.mxu0 0.0
    %5435 = vmatpush1.msra.mxu0 0.0
    %5436 = vmatprep.subr.mxu0 0.0
    %5437 = vmatpush1.msra.mxu0 0.0
    %5438 = vmatprep.mubr.f32.mxu0 0.0
    %5439 = vmatmul.mubr.f32.gmra.mrb[0].mxu0 %v5294
    %v5440 = vpop.f32.mrb[0].mxu0
    %v5441 = vadd.f32 0.0, %v5440
    %v5442 = vpop.f32.mrb[0].mxu0
    %5443 = vdwg.mxu0
    %v5444 = vadd.f32 %v5373, %v5441
    %v5445 = vxor.u32 %v5444, 2147483648
    %v5446 = vmul.f32 %v5445, 1.442695
    %v5447 = vpow.pop %v5446
    %v5448 = vadd.f32 %v5447, 1.0
    %v5449 = vrcp.pop %v5448
    %v5450 = vmul.f32 1.0, %v5449
    %v5451 = vld [vmem:[#allocation4 + $0x28] sm:$0xff]
    %5452 = vmatprep.subr.mxu0 0.0
    %5453 = vmatpush1.msra.mxu0 %v3706
    %5454 = vmatprep.subr.mxu0 0.0
    %5455 = vmatpush1.msra.mxu0 %v3707
    %5456 = vmatprep.subr.mxu0 0.0
    %5457 = vmatpush1.msra.mxu0 %v3708
    %5458 = vmatprep.subr.mxu0 0.0
    %5459 = vmatpush1.msra.mxu0 %v3709
    %5460 = vmatprep.subr.mxu0 0.0
    %5461 = vmatpush1.msra.mxu0 0.0
    %5462 = vmatprep.subr.mxu0 0.0
    %5463 = vmatpush1.msra.mxu0 0.0
    %5464 = vmatprep.subr.mxu0 0.0
    %5465 = vmatpush1.msra.mxu0 0.0
    %5466 = vmatprep.subr.mxu0 0.0
    %5467 = vmatpush1.msra.mxu0 0.0
    %5468 = vmatprep.subr.mxu0 0.0
    %5469 = vmatpush1.msra.mxu0 0.0
    %5470 = vmatprep.subr.mxu0 0.0
    %5471 = vmatpush1.msra.mxu0 0.0
    %5472 = vmatprep.subr.mxu0 0.0
    %5473 = vmatpush1.msra.mxu0 0.0
    %5474 = vmatprep.subr.mxu0 0.0
    %5475 = vmatpush1.msra.mxu0 0.0
    %5476 = vmatprep.subr.mxu0 0.0
    %5477 = vmatpush1.msra.mxu0 0.0
    %5478 = vmatprep.subr.mxu0 0.0
    %5479 = vmatpush1.msra.mxu0 0.0
    %5480 = vmatprep.subr.mxu0 0.0
    %5481 = vmatpush1.msra.mxu0 0.0
    %5482 = vmatprep.subr.mxu0 0.0
    %5483 = vmatpush1.msra.mxu0 0.0
    %5484 = vmatprep.subr.mxu0 0.0
    %5485 = vmatpush1.msra.mxu0 0.0
    %5486 = vmatprep.subr.mxu0 0.0
    %5487 = vmatpush1.msra.mxu0 0.0
    %5488 = vmatprep.subr.mxu0 0.0
    %5489 = vmatpush1.msra.mxu0 0.0
    %5490 = vmatprep.subr.mxu0 0.0
    %5491 = vmatpush1.msra.mxu0 0.0
    %5492 = vmatprep.subr.mxu0 0.0
    %5493 = vmatpush1.msra.mxu0 0.0
    %5494 = vmatprep.subr.mxu0 0.0
    %5495 = vmatpush1.msra.mxu0 0.0
    %5496 = vmatprep.subr.mxu0 0.0
    %5497 = vmatpush1.msra.mxu0 0.0
    %5498 = vmatprep.subr.mxu0 0.0
    %5499 = vmatpush1.msra.mxu0 0.0
    %5500 = vmatprep.subr.mxu0 0.0
    %5501 = vmatpush1.msra.mxu0 0.0
    %5502 = vmatprep.subr.mxu0 0.0
    %5503 = vmatpush1.msra.mxu0 0.0
    %5504 = vmatprep.subr.mxu0 0.0
    %5505 = vmatpush1.msra.mxu0 0.0
    %5506 = vmatprep.subr.mxu0 0.0
    %5507 = vmatpush1.msra.mxu0 0.0
    %5508 = vmatprep.subr.mxu0 0.0
    %5509 = vmatpush1.msra.mxu0 0.0
    %5510 = vmatprep.subr.mxu0 0.0
    %5511 = vmatpush1.msra.mxu0 0.0
    %5512 = vmatprep.subr.mxu0 0.0
    %5513 = vmatpush1.msra.mxu0 0.0
    %5514 = vmatprep.subr.mxu0 0.0
    %5515 = vmatpush1.msra.mxu0 0.0
    %5516 = vmatprep.mubr.f32.mxu0 0.0
    %5517 = vmatmul.mubr.f32.gmra.mrb[0].mxu0 %v5294
    %v5518 = vpop.f32.mrb[0].mxu0
    %v5519 = vadd.f32 0.0, %v5518
    %v5520 = vpop.f32.mrb[0].mxu0
    %5521 = vdwg.mxu0
    %v5522 = vadd.f32 %v5451, %v5519
    %v5523 = vtanh.pop %v5522
    %v5524 = vld [vmem:[#allocation5 + $0x28] sm:$0xff]
    %5525 = vmatprep.subr.mxu0 0.0
    %5526 = vmatpush1.msra.mxu0 %v3711
    %5527 = vmatprep.subr.mxu0 0.0
    %5528 = vmatpush1.msra.mxu0 %v3712
    %5529 = vmatprep.subr.mxu0 0.0
    %5530 = vmatpush1.msra.mxu0 %v3713
    %5531 = vmatprep.subr.mxu0 0.0
    %5532 = vmatpush1.msra.mxu0 %v3714
    %5533 = vmatprep.subr.mxu0 0.0
    %5534 = vmatpush1.msra.mxu0 0.0
    %5535 = vmatprep.subr.mxu0 0.0
    %5536 = vmatpush1.msra.mxu0 0.0
    %5537 = vmatprep.subr.mxu0 0.0
    %5538 = vmatpush1.msra.mxu0 0.0
    %5539 = vmatprep.subr.mxu0 0.0
    %5540 = vmatpush1.msra.mxu0 0.0
    %5541 = vmatprep.subr.mxu0 0.0
    %5542 = vmatpush1.msra.mxu0 0.0
    %5543 = vmatprep.subr.mxu0 0.0
    %5544 = vmatpush1.msra.mxu0 0.0
    %5545 = vmatprep.subr.mxu0 0.0
    %5546 = vmatpush1.msra.mxu0 0.0
    %5547 = vmatprep.subr.mxu0 0.0
    %5548 = vmatpush1.msra.mxu0 0.0
    %5549 = vmatprep.subr.mxu0 0.0
    %5550 = vmatpush1.msra.mxu0 0.0
    %5551 = vmatprep.subr.mxu0 0.0
    %5552 = vmatpush1.msra.mxu0 0.0
    %5553 = vmatprep.subr.mxu0 0.0
    %5554 = vmatpush1.msra.mxu0 0.0
    %5555 = vmatprep.subr.mxu0 0.0
    %5556 = vmatpush1.msra.mxu0 0.0
    %5557 = vmatprep.subr.mxu0 0.0
    %5558 = vmatpush1.msra.mxu0 0.0
    %5559 = vmatprep.subr.mxu0 0.0
    %5560 = vmatpush1.msra.mxu0 0.0
    %5561 = vmatprep.subr.mxu0 0.0
    %5562 = vmatpush1.msra.mxu0 0.0
    %5563 = vmatprep.subr.mxu0 0.0
    %5564 = vmatpush1.msra.mxu0 0.0
    %5565 = vmatprep.subr.mxu0 0.0
    %5566 = vmatpush1.msra.mxu0 0.0
    %5567 = vmatprep.subr.mxu0 0.0
    %5568 = vmatpush1.msra.mxu0 0.0
    %5569 = vmatprep.subr.mxu0 0.0
    %5570 = vmatpush1.msra.mxu0 0.0
    %5571 = vmatprep.subr.mxu0 0.0
    %5572 = vmatpush1.msra.mxu0 0.0
    %5573 = vmatprep.subr.mxu0 0.0
    %5574 = vmatpush1.msra.mxu0 0.0
    %5575 = vmatprep.subr.mxu0 0.0
    %5576 = vmatpush1.msra.mxu0 0.0
    %5577 = vmatprep.subr.mxu0 0.0
    %5578 = vmatpush1.msra.mxu0 0.0
    %5579 = vmatprep.subr.mxu0 0.0
    %5580 = vmatpush1.msra.mxu0 0.0
    %5581 = vmatprep.subr.mxu0 0.0
    %5582 = vmatpush1.msra.mxu0 0.0
    %5583 = vmatprep.subr.mxu0 0.0
    %5584 = vmatpush1.msra.mxu0 0.0
    %5585 = vmatprep.subr.mxu0 0.0
    %5586 = vmatpush1.msra.mxu0 0.0
    %5587 = vmatprep.subr.mxu0 0.0
    %5588 = vmatpush1.msra.mxu0 0.0
    %5589 = vmatprep.mubr.f32.mxu0 0.0
    %5590 = vmatmul.mubr.f32.gmra.mrb[0].mxu0 %v5294
    %v5591 = vpop.f32.mrb[0].mxu0
    %v5592 = vadd.f32 0.0, %v5591
    %v5593 = vpop.f32.mrb[0].mxu0
    %5594 = vdwg.mxu0
    %v5595 = vadd.f32 %v5524, %v5592
    %v5596 = vxor.u32 %v5595, 2147483648
    %v5597 = vmul.f32 %v5596, 1.442695
    %v5598 = vpow.pop %v5597
    %v5599 = vadd.f32 %v5598, 1.0
    %v5600 = vrcp.pop %v5599
    %v5601 = vmul.f32 1.0, %v5600
    %v5602 = vmul.f32 %v5450, %v5288
    %v5603 = vmul.f32 %v5372, %v5523
    %v5604 = vadd.f32 %v5602, %v5603
    %v5605 = vtanh.pop %v5604
    %v5606 = vmul.f32 %v5601, %v5605
    %5607 = vst.msk [vmem:[#allocation6 + $0x28] sm:$0xff] %vm234, %v5606
    %v5608 = vld [vmem:[#allocation2 + $0x30] sm:$0xff]
    %v5610 = vsel %vm234, %v5606, 0
    %5612 = vmatprep.subr.mxu0 0.0
    %5613 = vmatpush1.msra.mxu0 %v3696
    %5614 = vmatprep.subr.mxu0 0.0
    %5615 = vmatpush1.msra.mxu0 %v3697
    %5616 = vmatprep.subr.mxu0 0.0
    %5617 = vmatpush1.msra.mxu0 %v3698
    %5618 = vmatprep.subr.mxu0 0.0
    %5619 = vmatpush1.msra.mxu0 %v3699
    %5620 = vmatprep.subr.mxu0 0.0
    %5621 = vmatpush1.msra.mxu0 0.0
    %5622 = vmatprep.subr.mxu0 0.0
    %5623 = vmatpush1.msra.mxu0 0.0
    %5624 = vmatprep.subr.mxu0 0.0
    %5625 = vmatpush1.msra.mxu0 0.0
    %5626 = vmatprep.subr.mxu0 0.0
    %5627 = vmatpush1.msra.mxu0 0.0
    %5628 = vmatprep.subr.mxu0 0.0
    %5629 = vmatpush1.msra.mxu0 0.0
    %5630 = vmatprep.subr.mxu0 0.0
    %5631 = vmatpush1.msra.mxu0 0.0
    %5632 = vmatprep.subr.mxu0 0.0
    %5633 = vmatpush1.msra.mxu0 0.0
    %5634 = vmatprep.subr.mxu0 0.0
    %5635 = vmatpush1.msra.mxu0 0.0
    %5636 = vmatprep.subr.mxu0 0.0
    %5637 = vmatpush1.msra.mxu0 0.0
    %5638 = vmatprep.subr.mxu0 0.0
    %5639 = vmatpush1.msra.mxu0 0.0
    %5640 = vmatprep.subr.mxu0 0.0
    %5641 = vmatpush1.msra.mxu0 0.0
    %5642 = vmatprep.subr.mxu0 0.0
    %5643 = vmatpush1.msra.mxu0 0.0
    %5644 = vmatprep.subr.mxu0 0.0
    %5645 = vmatpush1.msra.mxu0 0.0
    %5646 = vmatprep.subr.mxu0 0.0
    %5647 = vmatpush1.msra.mxu0 0.0
    %5648 = vmatprep.subr.mxu0 0.0
    %5649 = vmatpush1.msra.mxu0 0.0
    %5650 = vmatprep.subr.mxu0 0.0
    %5651 = vmatpush1.msra.mxu0 0.0
    %5652 = vmatprep.subr.mxu0 0.0
    %5653 = vmatpush1.msra.mxu0 0.0
    %5654 = vmatprep.subr.mxu0 0.0
    %5655 = vmatpush1.msra.mxu0 0.0
    %5656 = vmatprep.subr.mxu0 0.0
    %5657 = vmatpush1.msra.mxu0 0.0
    %5658 = vmatprep.subr.mxu0 0.0
    %5659 = vmatpush1.msra.mxu0 0.0
    %5660 = vmatprep.subr.mxu0 0.0
    %5661 = vmatpush1.msra.mxu0 0.0
    %5662 = vmatprep.subr.mxu0 0.0
    %5663 = vmatpush1.msra.mxu0 0.0
    %5664 = vmatprep.subr.mxu0 0.0
    %5665 = vmatpush1.msra.mxu0 0.0
    %5666 = vmatprep.subr.mxu0 0.0
    %5667 = vmatpush1.msra.mxu0 0.0
    %5668 = vmatprep.subr.mxu0 0.0
    %5669 = vmatpush1.msra.mxu0 0.0
    %5670 = vmatprep.subr.mxu0 0.0
    %5671 = vmatpush1.msra.mxu0 0.0
    %5672 = vmatprep.subr.mxu0 0.0
    %5673 = vmatpush1.msra.mxu0 0.0
    %5674 = vmatprep.subr.mxu0 0.0
    %5675 = vmatpush1.msra.mxu0 0.0
    %5676 = vmatprep.mubr.f32.mxu0 0.0
    %5677 = vmatmul.mubr.f32.gmra.mrb[0].mxu0 %v5610
    %v5678 = vpop.f32.mrb[0].mxu0
    %v5679 = vadd.f32 0.0, %v5678
    %v5680 = vpop.f32.mrb[0].mxu0
    %5681 = vdwg.mxu0
    %v5682 = vadd.f32 %v5608, %v5679
    %v5683 = vxor.u32 %v5682, 2147483648
    %v5684 = vmul.f32 %v5683, 1.442695
    %v5685 = vpow.pop %v5684
    %v5686 = vadd.f32 %v5685, 1.0
    %v5687 = vrcp.pop %v5686
    %v5688 = vmul.f32 1.0, %v5687
    %v5689 = vld [vmem:[#allocation3 + $0x30] sm:$0xff]
    %5690 = vmatprep.subr.mxu0 0.0
    %5691 = vmatpush1.msra.mxu0 %v3701
    %5692 = vmatprep.subr.mxu0 0.0
    %5693 = vmatpush1.msra.mxu0 %v3702
    %5694 = vmatprep.subr.mxu0 0.0
    %5695 = vmatpush1.msra.mxu0 %v3703
    %5696 = vmatprep.subr.mxu0 0.0
    %5697 = vmatpush1.msra.mxu0 %v3704
    %5698 = vmatprep.subr.mxu0 0.0
    %5699 = vmatpush1.msra.mxu0 0.0
    %5700 = vmatprep.subr.mxu0 0.0
    %5701 = vmatpush1.msra.mxu0 0.0
    %5702 = vmatprep.subr.mxu0 0.0
    %5703 = vmatpush1.msra.mxu0 0.0
    %5704 = vmatprep.subr.mxu0 0.0
    %5705 = vmatpush1.msra.mxu0 0.0
    %5706 = vmatprep.subr.mxu0 0.0
    %5707 = vmatpush1.msra.mxu0 0.0
    %5708 = vmatprep.subr.mxu0 0.0
    %5709 = vmatpush1.msra.mxu0 0.0
    %5710 = vmatprep.subr.mxu0 0.0
    %5711 = vmatpush1.msra.mxu0 0.0
    %5712 = vmatprep.subr.mxu0 0.0
    %5713 = vmatpush1.msra.mxu0 0.0
    %5714 = vmatprep.subr.mxu0 0.0
    %5715 = vmatpush1.msra.mxu0 0.0
    %5716 = vmatprep.subr.mxu0 0.0
    %5717 = vmatpush1.msra.mxu0 0.0
    %5718 = vmatprep.subr.mxu0 0.0
    %5719 = vmatpush1.msra.mxu0 0.0
    %5720 = vmatprep.subr.mxu0 0.0
    %5721 = vmatpush1.msra.mxu0 0.0
    %5722 = vmatprep.subr.mxu0 0.0
    %5723 = vmatpush1.msra.mxu0 0.0
    %5724 = vmatprep.subr.mxu0 0.0
    %5725 = vmatpush1.msra.mxu0 0.0
    %5726 = vmatprep.subr.mxu0 0.0
    %5727 = vmatpush1.msra.mxu0 0.0
    %5728 = vmatprep.subr.mxu0 0.0
    %5729 = vmatpush1.msra.mxu0 0.0
    %5730 = vmatprep.subr.mxu0 0.0
    %5731 = vmatpush1.msra.mxu0 0.0
    %5732 = vmatprep.subr.mxu0 0.0
    %5733 = vmatpush1.msra.mxu0 0.0
    %5734 = vmatprep.subr.mxu0 0.0
    %5735 = vmatpush1.msra.mxu0 0.0
    %5736 = vmatprep.subr.mxu0 0.0
    %5737 = vmatpush1.msra.mxu0 0.0
    %5738 = vmatprep.subr.mxu0 0.0
    %5739 = vmatpush1.msra.mxu0 0.0
    %5740 = vmatprep.subr.mxu0 0.0
    %5741 = vmatpush1.msra.mxu0 0.0
    %5742 = vmatprep.subr.mxu0 0.0
    %5743 = vmatpush1.msra.mxu0 0.0
    %5744 = vmatprep.subr.mxu0 0.0
    %5745 = vmatpush1.msra.mxu0 0.0
    %5746 = vmatprep.subr.mxu0 0.0
    %5747 = vmatpush1.msra.mxu0 0.0
    %5748 = vmatprep.subr.mxu0 0.0
    %5749 = vmatpush1.msra.mxu0 0.0
    %5750 = vmatprep.subr.mxu0 0.0
    %5751 = vmatpush1.msra.mxu0 0.0
    %5752 = vmatprep.subr.mxu0 0.0
    %5753 = vmatpush1.msra.mxu0 0.0
    %5754 = vmatprep.mubr.f32.mxu0 0.0
    %5755 = vmatmul.mubr.f32.gmra.mrb[0].mxu0 %v5610
    %v5756 = vpop.f32.mrb[0].mxu0
    %v5757 = vadd.f32 0.0, %v5756
    %v5758 = vpop.f32.mrb[0].mxu0
    %5759 = vdwg.mxu0
    %v5760 = vadd.f32 %v5689, %v5757
    %v5761 = vxor.u32 %v5760, 2147483648
    %v5762 = vmul.f32 %v5761, 1.442695
    %v5763 = vpow.pop %v5762
    %v5764 = vadd.f32 %v5763, 1.0
    %v5765 = vrcp.pop %v5764
    %v5766 = vmul.f32 1.0, %v5765
    %v5767 = vld [vmem:[#allocation4 + $0x30] sm:$0xff]
    %5768 = vmatprep.subr.mxu0 0.0
    %5769 = vmatpush1.msra.mxu0 %v3706
    %5770 = vmatprep.subr.mxu0 0.0
    %5771 = vmatpush1.msra.mxu0 %v3707
    %5772 = vmatprep.subr.mxu0 0.0
    %5773 = vmatpush1.msra.mxu0 %v3708
    %5774 = vmatprep.subr.mxu0 0.0
    %5775 = vmatpush1.msra.mxu0 %v3709
    %5776 = vmatprep.subr.mxu0 0.0
    %5777 = vmatpush1.msra.mxu0 0.0
    %5778 = vmatprep.subr.mxu0 0.0
    %5779 = vmatpush1.msra.mxu0 0.0
    %5780 = vmatprep.subr.mxu0 0.0
    %5781 = vmatpush1.msra.mxu0 0.0
    %5782 = vmatprep.subr.mxu0 0.0
    %5783 = vmatpush1.msra.mxu0 0.0
    %5784 = vmatprep.subr.mxu0 0.0
    %5785 = vmatpush1.msra.mxu0 0.0
    %5786 = vmatprep.subr.mxu0 0.0
    %5787 = vmatpush1.msra.mxu0 0.0
    %5788 = vmatprep.subr.mxu0 0.0
    %5789 = vmatpush1.msra.mxu0 0.0
    %5790 = vmatprep.subr.mxu0 0.0
    %5791 = vmatpush1.msra.mxu0 0.0
    %5792 = vmatprep.subr.mxu0 0.0
    %5793 = vmatpush1.msra.mxu0 0.0
    %5794 = vmatprep.subr.mxu0 0.0
    %5795 = vmatpush1.msra.mxu0 0.0
    %5796 = vmatprep.subr.mxu0 0.0
    %5797 = vmatpush1.msra.mxu0 0.0
    %5798 = vmatprep.subr.mxu0 0.0
    %5799 = vmatpush1.msra.mxu0 0.0
    %5800 = vmatprep.subr.mxu0 0.0
    %5801 = vmatpush1.msra.mxu0 0.0
    %5802 = vmatprep.subr.mxu0 0.0
    %5803 = vmatpush1.msra.mxu0 0.0
    %5804 = vmatprep.subr.mxu0 0.0
    %5805 = vmatpush1.msra.mxu0 0.0
    %5806 = vmatprep.subr.mxu0 0.0
    %5807 = vmatpush1.msra.mxu0 0.0
    %5808 = vmatprep.subr.mxu0 0.0
    %5809 = vmatpush1.msra.mxu0 0.0
    %5810 = vmatprep.subr.mxu0 0.0
    %5811 = vmatpush1.msra.mxu0 0.0
    %5812 = vmatprep.subr.mxu0 0.0
    %5813 = vmatpush1.msra.mxu0 0.0
    %5814 = vmatprep.subr.mxu0 0.0
    %5815 = vmatpush1.msra.mxu0 0.0
    %5816 = vmatprep.subr.mxu0 0.0
    %5817 = vmatpush1.msra.mxu0 0.0
    %5818 = vmatprep.subr.mxu0 0.0
    %5819 = vmatpush1.msra.mxu0 0.0
    %5820 = vmatprep.subr.mxu0 0.0
    %5821 = vmatpush1.msra.mxu0 0.0
    %5822 = vmatprep.subr.mxu0 0.0
    %5823 = vmatpush1.msra.mxu0 0.0
    %5824 = vmatprep.subr.mxu0 0.0
    %5825 = vmatpush1.msra.mxu0 0.0
    %5826 = vmatprep.subr.mxu0 0.0
    %5827 = vmatpush1.msra.mxu0 0.0
    %5828 = vmatprep.subr.mxu0 0.0
    %5829 = vmatpush1.msra.mxu0 0.0
    %5830 = vmatprep.subr.mxu0 0.0
    %5831 = vmatpush1.msra.mxu0 0.0
    %5832 = vmatprep.mubr.f32.mxu0 0.0
    %5833 = vmatmul.mubr.f32.gmra.mrb[0].mxu0 %v5610
    %v5834 = vpop.f32.mrb[0].mxu0
    %v5835 = vadd.f32 0.0, %v5834
    %v5836 = vpop.f32.mrb[0].mxu0
    %5837 = vdwg.mxu0
    %v5838 = vadd.f32 %v5767, %v5835
    %v5839 = vtanh.pop %v5838
    %v5840 = vld [vmem:[#allocation5 + $0x30] sm:$0xff]
    %5841 = vmatprep.subr.mxu0 0.0
    %5842 = vmatpush1.msra.mxu0 %v3711
    %5843 = vmatprep.subr.mxu0 0.0
    %5844 = vmatpush1.msra.mxu0 %v3712
    %5845 = vmatprep.subr.mxu0 0.0
    %5846 = vmatpush1.msra.mxu0 %v3713
    %5847 = vmatprep.subr.mxu0 0.0
    %5848 = vmatpush1.msra.mxu0 %v3714
    %5849 = vmatprep.subr.mxu0 0.0
    %5850 = vmatpush1.msra.mxu0 0.0
    %5851 = vmatprep.subr.mxu0 0.0
    %5852 = vmatpush1.msra.mxu0 0.0
    %5853 = vmatprep.subr.mxu0 0.0
    %5854 = vmatpush1.msra.mxu0 0.0
    %5855 = vmatprep.subr.mxu0 0.0
    %5856 = vmatpush1.msra.mxu0 0.0
    %5857 = vmatprep.subr.mxu0 0.0
    %5858 = vmatpush1.msra.mxu0 0.0
    %5859 = vmatprep.subr.mxu0 0.0
    %5860 = vmatpush1.msra.mxu0 0.0
    %5861 = vmatprep.subr.mxu0 0.0
    %5862 = vmatpush1.msra.mxu0 0.0
    %5863 = vmatprep.subr.mxu0 0.0
    %5864 = vmatpush1.msra.mxu0 0.0
    %5865 = vmatprep.subr.mxu0 0.0
    %5866 = vmatpush1.msra.mxu0 0.0
    %5867 = vmatprep.subr.mxu0 0.0
    %5868 = vmatpush1.msra.mxu0 0.0
    %5869 = vmatprep.subr.mxu0 0.0
    %5870 = vmatpush1.msra.mxu0 0.0
    %5871 = vmatprep.subr.mxu0 0.0
    %5872 = vmatpush1.msra.mxu0 0.0
    %5873 = vmatprep.subr.mxu0 0.0
    %5874 = vmatpush1.msra.mxu0 0.0
    %5875 = vmatprep.subr.mxu0 0.0
    %5876 = vmatpush1.msra.mxu0 0.0
    %5877 = vmatprep.subr.mxu0 0.0
    %5878 = vmatpush1.msra.mxu0 0.0
    %5879 = vmatprep.subr.mxu0 0.0
    %5880 = vmatpush1.msra.mxu0 0.0
    %5881 = vmatprep.subr.mxu0 0.0
    %5882 = vmatpush1.msra.mxu0 0.0
    %5883 = vmatprep.subr.mxu0 0.0
    %5884 = vmatpush1.msra.mxu0 0.0
    %5885 = vmatprep.subr.mxu0 0.0
    %5886 = vmatpush1.msra.mxu0 0.0
    %5887 = vmatprep.subr.mxu0 0.0
    %5888 = vmatpush1.msra.mxu0 0.0
    %5889 = vmatprep.subr.mxu0 0.0
    %5890 = vmatpush1.msra.mxu0 0.0
    %5891 = vmatprep.subr.mxu0 0.0
    %5892 = vmatpush1.msra.mxu0 0.0
    %5893 = vmatprep.subr.mxu0 0.0
    %5894 = vmatpush1.msra.mxu0 0.0
    %5895 = vmatprep.subr.mxu0 0.0
    %5896 = vmatpush1.msra.mxu0 0.0
    %5897 = vmatprep.subr.mxu0 0.0
    %5898 = vmatpush1.msra.mxu0 0.0
    %5899 = vmatprep.subr.mxu0 0.0
    %5900 = vmatpush1.msra.mxu0 0.0
    %5901 = vmatprep.subr.mxu0 0.0
    %5902 = vmatpush1.msra.mxu0 0.0
    %5903 = vmatprep.subr.mxu0 0.0
    %5904 = vmatpush1.msra.mxu0 0.0
    %5905 = vmatprep.mubr.f32.mxu0 0.0
    %5906 = vmatmul.mubr.f32.gmra.mrb[0].mxu0 %v5610
    %v5907 = vpop.f32.mrb[0].mxu0
    %v5908 = vadd.f32 0.0, %v5907
    %v5909 = vpop.f32.mrb[0].mxu0
    %5910 = vdwg.mxu0
    %v5911 = vadd.f32 %v5840, %v5908
    %v5912 = vxor.u32 %v5911, 2147483648
    %v5913 = vmul.f32 %v5912, 1.442695
    %v5914 = vpow.pop %v5913
    %v5915 = vadd.f32 %v5914, 1.0
    %v5916 = vrcp.pop %v5915
    %v5917 = vmul.f32 1.0, %v5916
    %v5918 = vmul.f32 %v5766, %v5604
    %v5919 = vmul.f32 %v5688, %v5839
    %v5920 = vadd.f32 %v5918, %v5919
    %v5921 = vtanh.pop %v5920
    %v5922 = vmul.f32 %v5917, %v5921
    %5923 = vst.msk [vmem:[#allocation6 + $0x30] sm:$0xff] %vm234, %v5922
    %v5924 = vld [vmem:[#allocation2 + $0x38] sm:$0xff]
    %v5926 = vsel %vm234, %v5922, 0
    %5928 = vmatprep.subr.mxu0 0.0
    %5929 = vmatpush1.msra.mxu0 %v3696
    %5930 = vmatprep.subr.mxu0 0.0
    %5931 = vmatpush1.msra.mxu0 %v3697
    %5932 = vmatprep.subr.mxu0 0.0
    %5933 = vmatpush1.msra.mxu0 %v3698
    %5934 = vmatprep.subr.mxu0 0.0
    %5935 = vmatpush1.msra.mxu0 %v3699
    %5936 = vmatprep.subr.mxu0 0.0
    %5937 = vmatpush1.msra.mxu0 0.0
    %5938 = vmatprep.subr.mxu0 0.0
    %5939 = vmatpush1.msra.mxu0 0.0
    %5940 = vmatprep.subr.mxu0 0.0
    %5941 = vmatpush1.msra.mxu0 0.0
    %5942 = vmatprep.subr.mxu0 0.0
    %5943 = vmatpush1.msra.mxu0 0.0
    %5944 = vmatprep.subr.mxu0 0.0
    %5945 = vmatpush1.msra.mxu0 0.0
    %5946 = vmatprep.subr.mxu0 0.0
    %5947 = vmatpush1.msra.mxu0 0.0
    %5948 = vmatprep.subr.mxu0 0.0
    %5949 = vmatpush1.msra.mxu0 0.0
    %5950 = vmatprep.subr.mxu0 0.0
    %5951 = vmatpush1.msra.mxu0 0.0
    %5952 = vmatprep.subr.mxu0 0.0
    %5953 = vmatpush1.msra.mxu0 0.0
    %5954 = vmatprep.subr.mxu0 0.0
    %5955 = vmatpush1.msra.mxu0 0.0
    %5956 = vmatprep.subr.mxu0 0.0
    %5957 = vmatpush1.msra.mxu0 0.0
    %5958 = vmatprep.subr.mxu0 0.0
    %5959 = vmatpush1.msra.mxu0 0.0
    %5960 = vmatprep.subr.mxu0 0.0
    %5961 = vmatpush1.msra.mxu0 0.0
    %5962 = vmatprep.subr.mxu0 0.0
    %5963 = vmatpush1.msra.mxu0 0.0
    %5964 = vmatprep.subr.mxu0 0.0
    %5965 = vmatpush1.msra.mxu0 0.0
    %5966 = vmatprep.subr.mxu0 0.0
    %5967 = vmatpush1.msra.mxu0 0.0
    %5968 = vmatprep.subr.mxu0 0.0
    %5969 = vmatpush1.msra.mxu0 0.0
    %5970 = vmatprep.subr.mxu0 0.0
    %5971 = vmatpush1.msra.mxu0 0.0
    %5972 = vmatprep.subr.mxu0 0.0
    %5973 = vmatpush1.msra.mxu0 0.0
    %5974 = vmatprep.subr.mxu0 0.0
    %5975 = vmatpush1.msra.mxu0 0.0
    %5976 = vmatprep.subr.mxu0 0.0
    %5977 = vmatpush1.msra.mxu0 0.0
    %5978 = vmatprep.subr.mxu0 0.0
    %5979 = vmatpush1.msra.mxu0 0.0
    %5980 = vmatprep.subr.mxu0 0.0
    %5981 = vmatpush1.msra.mxu0 0.0
    %5982 = vmatprep.subr.mxu0 0.0
    %5983 = vmatpush1.msra.mxu0 0.0
    %5984 = vmatprep.subr.mxu0 0.0
    %5985 = vmatpush1.msra.mxu0 0.0
    %5986 = vmatprep.subr.mxu0 0.0
    %5987 = vmatpush1.msra.mxu0 0.0
    %5988 = vmatprep.subr.mxu0 0.0
    %5989 = vmatpush1.msra.mxu0 0.0
    %5990 = vmatprep.subr.mxu0 0.0
    %5991 = vmatpush1.msra.mxu0 0.0
    %5992 = vmatprep.mubr.f32.mxu0 0.0
    %5993 = vmatmul.mubr.f32.gmra.mrb[0].mxu0 %v5926
    %v5994 = vpop.f32.mrb[0].mxu0
    %v5995 = vadd.f32 0.0, %v5994
    %v5996 = vpop.f32.mrb[0].mxu0
    %5997 = vdwg.mxu0
    %v5998 = vadd.f32 %v5924, %v5995
    %v5999 = vxor.u32 %v5998, 2147483648
    %v6000 = vmul.f32 %v5999, 1.442695
    %v6001 = vpow.pop %v6000
    %v6002 = vadd.f32 %v6001, 1.0
    %v6003 = vrcp.pop %v6002
    %v6004 = vmul.f32 1.0, %v6003
    %v6005 = vld [vmem:[#allocation3 + $0x38] sm:$0xff]
    %6006 = vmatprep.subr.mxu0 0.0
    %6007 = vmatpush1.msra.mxu0 %v3701
    %6008 = vmatprep.subr.mxu0 0.0
    %6009 = vmatpush1.msra.mxu0 %v3702
    %6010 = vmatprep.subr.mxu0 0.0
    %6011 = vmatpush1.msra.mxu0 %v3703
    %6012 = vmatprep.subr.mxu0 0.0
    %6013 = vmatpush1.msra.mxu0 %v3704
    %6014 = vmatprep.subr.mxu0 0.0
    %6015 = vmatpush1.msra.mxu0 0.0
    %6016 = vmatprep.subr.mxu0 0.0
    %6017 = vmatpush1.msra.mxu0 0.0
    %6018 = vmatprep.subr.mxu0 0.0
    %6019 = vmatpush1.msra.mxu0 0.0
    %6020 = vmatprep.subr.mxu0 0.0
    %6021 = vmatpush1.msra.mxu0 0.0
    %6022 = vmatprep.subr.mxu0 0.0
    %6023 = vmatpush1.msra.mxu0 0.0
    %6024 = vmatprep.subr.mxu0 0.0
    %6025 = vmatpush1.msra.mxu0 0.0
    %6026 = vmatprep.subr.mxu0 0.0
    %6027 = vmatpush1.msra.mxu0 0.0
    %6028 = vmatprep.subr.mxu0 0.0
    %6029 = vmatpush1.msra.mxu0 0.0
    %6030 = vmatprep.subr.mxu0 0.0
    %6031 = vmatpush1.msra.mxu0 0.0
    %6032 = vmatprep.subr.mxu0 0.0
    %6033 = vmatpush1.msra.mxu0 0.0
    %6034 = vmatprep.subr.mxu0 0.0
    %6035 = vmatpush1.msra.mxu0 0.0
    %6036 = vmatprep.subr.mxu0 0.0
    %6037 = vmatpush1.msra.mxu0 0.0
    %6038 = vmatprep.subr.mxu0 0.0
    %6039 = vmatpush1.msra.mxu0 0.0
    %6040 = vmatprep.subr.mxu0 0.0
    %6041 = vmatpush1.msra.mxu0 0.0
    %6042 = vmatprep.subr.mxu0 0.0
    %6043 = vmatpush1.msra.mxu0 0.0
    %6044 = vmatprep.subr.mxu0 0.0
    %6045 = vmatpush1.msra.mxu0 0.0
    %6046 = vmatprep.subr.mxu0 0.0
    %6047 = vmatpush1.msra.mxu0 0.0
    %6048 = vmatprep.subr.mxu0 0.0
    %6049 = vmatpush1.msra.mxu0 0.0
    %6050 = vmatprep.subr.mxu0 0.0
    %6051 = vmatpush1.msra.mxu0 0.0
    %6052 = vmatprep.subr.mxu0 0.0
    %6053 = vmatpush1.msra.mxu0 0.0
    %6054 = vmatprep.subr.mxu0 0.0
    %6055 = vmatpush1.msra.mxu0 0.0
    %6056 = vmatprep.subr.mxu0 0.0
    %6057 = vmatpush1.msra.mxu0 0.0
    %6058 = vmatprep.subr.mxu0 0.0
    %6059 = vmatpush1.msra.mxu0 0.0
    %6060 = vmatprep.subr.mxu0 0.0
    %6061 = vmatpush1.msra.mxu0 0.0
    %6062 = vmatprep.subr.mxu0 0.0
    %6063 = vmatpush1.msra.mxu0 0.0
    %6064 = vmatprep.subr.mxu0 0.0
    %6065 = vmatpush1.msra.mxu0 0.0
    %6066 = vmatprep.subr.mxu0 0.0
    %6067 = vmatpush1.msra.mxu0 0.0
    %6068 = vmatprep.subr.mxu0 0.0
    %6069 = vmatpush1.msra.mxu0 0.0
    %6070 = vmatprep.mubr.f32.mxu0 0.0
    %6071 = vmatmul.mubr.f32.gmra.mrb[0].mxu0 %v5926
    %v6072 = vpop.f32.mrb[0].mxu0
    %v6073 = vadd.f32 0.0, %v6072
    %v6074 = vpop.f32.mrb[0].mxu0
    %6075 = vdwg.mxu0
    %v6076 = vadd.f32 %v6005, %v6073
    %v6077 = vxor.u32 %v6076, 2147483648
    %v6078 = vmul.f32 %v6077, 1.442695
    %v6079 = vpow.pop %v6078
    %v6080 = vadd.f32 %v6079, 1.0
    %v6081 = vrcp.pop %v6080
    %v6082 = vmul.f32 1.0, %v6081
    %v6083 = vld [vmem:[#allocation4 + $0x38] sm:$0xff]
    %6084 = vmatprep.subr.mxu0 0.0
    %6085 = vmatpush1.msra.mxu0 %v3706
    %6086 = vmatprep.subr.mxu0 0.0
    %6087 = vmatpush1.msra.mxu0 %v3707
    %6088 = vmatprep.subr.mxu0 0.0
    %6089 = vmatpush1.msra.mxu0 %v3708
    %6090 = vmatprep.subr.mxu0 0.0
    %6091 = vmatpush1.msra.mxu0 %v3709
    %6092 = vmatprep.subr.mxu0 0.0
    %6093 = vmatpush1.msra.mxu0 0.0
    %6094 = vmatprep.subr.mxu0 0.0
    %6095 = vmatpush1.msra.mxu0 0.0
    %6096 = vmatprep.subr.mxu0 0.0
    %6097 = vmatpush1.msra.mxu0 0.0
    %6098 = vmatprep.subr.mxu0 0.0
    %6099 = vmatpush1.msra.mxu0 0.0
    %6100 = vmatprep.subr.mxu0 0.0
    %6101 = vmatpush1.msra.mxu0 0.0
    %6102 = vmatprep.subr.mxu0 0.0
    %6103 = vmatpush1.msra.mxu0 0.0
    %6104 = vmatprep.subr.mxu0 0.0
    %6105 = vmatpush1.msra.mxu0 0.0
    %6106 = vmatprep.subr.mxu0 0.0
    %6107 = vmatpush1.msra.mxu0 0.0
    %6108 = vmatprep.subr.mxu0 0.0
    %6109 = vmatpush1.msra.mxu0 0.0
    %6110 = vmatprep.subr.mxu0 0.0
    %6111 = vmatpush1.msra.mxu0 0.0
    %6112 = vmatprep.subr.mxu0 0.0
    %6113 = vmatpush1.msra.mxu0 0.0
    %6114 = vmatprep.subr.mxu0 0.0
    %6115 = vmatpush1.msra.mxu0 0.0
    %6116 = vmatprep.subr.mxu0 0.0
    %6117 = vmatpush1.msra.mxu0 0.0
    %6118 = vmatprep.subr.mxu0 0.0
    %6119 = vmatpush1.msra.mxu0 0.0
    %6120 = vmatprep.subr.mxu0 0.0
    %6121 = vmatpush1.msra.mxu0 0.0
    %6122 = vmatprep.subr.mxu0 0.0
    %6123 = vmatpush1.msra.mxu0 0.0
    %6124 = vmatprep.subr.mxu0 0.0
    %6125 = vmatpush1.msra.mxu0 0.0
    %6126 = vmatprep.subr.mxu0 0.0
    %6127 = vmatpush1.msra.mxu0 0.0
    %6128 = vmatprep.subr.mxu0 0.0
    %6129 = vmatpush1.msra.mxu0 0.0
    %6130 = vmatprep.subr.mxu0 0.0
    %6131 = vmatpush1.msra.mxu0 0.0
    %6132 = vmatprep.subr.mxu0 0.0
    %6133 = vmatpush1.msra.mxu0 0.0
    %6134 = vmatprep.subr.mxu0 0.0
    %6135 = vmatpush1.msra.mxu0 0.0
    %6136 = vmatprep.subr.mxu0 0.0
    %6137 = vmatpush1.msra.mxu0 0.0
    %6138 = vmatprep.subr.mxu0 0.0
    %6139 = vmatpush1.msra.mxu0 0.0
    %6140 = vmatprep.subr.mxu0 0.0
    %6141 = vmatpush1.msra.mxu0 0.0
    %6142 = vmatprep.subr.mxu0 0.0
    %6143 = vmatpush1.msra.mxu0 0.0
    %6144 = vmatprep.subr.mxu0 0.0
    %6145 = vmatpush1.msra.mxu0 0.0
    %6146 = vmatprep.subr.mxu0 0.0
    %6147 = vmatpush1.msra.mxu0 0.0
    %6148 = vmatprep.mubr.f32.mxu0 0.0
    %6149 = vmatmul.mubr.f32.gmra.mrb[0].mxu0 %v5926
    %v6150 = vpop.f32.mrb[0].mxu0
    %v6151 = vadd.f32 0.0, %v6150
    %v6152 = vpop.f32.mrb[0].mxu0
    %6153 = vdwg.mxu0
    %v6154 = vadd.f32 %v6083, %v6151
    %v6155 = vtanh.pop %v6154
    %v6156 = vld [vmem:[#allocation5 + $0x38] sm:$0xff]
    %6157 = vmatprep.subr.mxu0 0.0
    %6158 = vmatpush1.msra.mxu0 %v3711
    %6159 = vmatprep.subr.mxu0 0.0
    %6160 = vmatpush1.msra.mxu0 %v3712
    %6161 = vmatprep.subr.mxu0 0.0
    %6162 = vmatpush1.msra.mxu0 %v3713
    %6163 = vmatprep.subr.mxu0 0.0
    %6164 = vmatpush1.msra.mxu0 %v3714
    %6165 = vmatprep.subr.mxu0 0.0
    %6166 = vmatpush1.msra.mxu0 0.0
    %6167 = vmatprep.subr.mxu0 0.0
    %6168 = vmatpush1.msra.mxu0 0.0
    %6169 = vmatprep.subr.mxu0 0.0
    %6170 = vmatpush1.msra.mxu0 0.0
    %6171 = vmatprep.subr.mxu0 0.0
    %6172 = vmatpush1.msra.mxu0 0.0
    %6173 = vmatprep.subr.mxu0 0.0
    %6174 = vmatpush1.msra.mxu0 0.0
    %6175 = vmatprep.subr.mxu0 0.0
    %6176 = vmatpush1.msra.mxu0 0.0
    %6177 = vmatprep.subr.mxu0 0.0
    %6178 = vmatpush1.msra.mxu0 0.0
    %6179 = vmatprep.subr.mxu0 0.0
    %6180 = vmatpush1.msra.mxu0 0.0
    %6181 = vmatprep.subr.mxu0 0.0
    %6182 = vmatpush1.msra.mxu0 0.0
    %6183 = vmatprep.subr.mxu0 0.0
    %6184 = vmatpush1.msra.mxu0 0.0
    %6185 = vmatprep.subr.mxu0 0.0
    %6186 = vmatpush1.msra.mxu0 0.0
    %6187 = vmatprep.subr.mxu0 0.0
    %6188 = vmatpush1.msra.mxu0 0.0
    %6189 = vmatprep.subr.mxu0 0.0
    %6190 = vmatpush1.msra.mxu0 0.0
    %6191 = vmatprep.subr.mxu0 0.0
    %6192 = vmatpush1.msra.mxu0 0.0
    %6193 = vmatprep.subr.mxu0 0.0
    %6194 = vmatpush1.msra.mxu0 0.0
    %6195 = vmatprep.subr.mxu0 0.0
    %6196 = vmatpush1.msra.mxu0 0.0
    %6197 = vmatprep.subr.mxu0 0.0
    %6198 = vmatpush1.msra.mxu0 0.0
    %6199 = vmatprep.subr.mxu0 0.0
    %6200 = vmatpush1.msra.mxu0 0.0
    %6201 = vmatprep.subr.mxu0 0.0
    %6202 = vmatpush1.msra.mxu0 0.0
    %6203 = vmatprep.subr.mxu0 0.0
    %6204 = vmatpush1.msra.mxu0 0.0
    %6205 = vmatprep.subr.mxu0 0.0
    %6206 = vmatpush1.msra.mxu0 0.0
    %6207 = vmatprep.subr.mxu0 0.0
    %6208 = vmatpush1.msra.mxu0 0.0
    %6209 = vmatprep.subr.mxu0 0.0
    %6210 = vmatpush1.msra.mxu0 0.0
    %6211 = vmatprep.subr.mxu0 0.0
    %6212 = vmatpush1.msra.mxu0 0.0
    %6213 = vmatprep.subr.mxu0 0.0
    %6214 = vmatpush1.msra.mxu0 0.0
    %6215 = vmatprep.subr.mxu0 0.0
    %6216 = vmatpush1.msra.mxu0 0.0
    %6217 = vmatprep.subr.mxu0 0.0
    %6218 = vmatpush1.msra.mxu0 0.0
    %6219 = vmatprep.subr.mxu0 0.0
    %6220 = vmatpush1.msra.mxu0 0.0
    %6221 = vmatprep.mubr.f32.mxu0 0.0
    %6222 = vmatmul.mubr.f32.gmra.mrb[0].mxu0 %v5926
    %v6223 = vpop.f32.mrb[0].mxu0
    %v6224 = vadd.f32 0.0, %v6223
    %v6225 = vpop.f32.mrb[0].mxu0
    %6226 = vdwg.mxu0
    %v6227 = vadd.f32 %v6156, %v6224
    %v6228 = vxor.u32 %v6227, 2147483648
    %v6229 = vmul.f32 %v6228, 1.442695
    %v6230 = vpow.pop %v6229
    %v6231 = vadd.f32 %v6230, 1.0
    %v6232 = vrcp.pop %v6231
    %v6233 = vmul.f32 1.0, %v6232
    %v6234 = vmul.f32 %v6082, %v5920
    %v6235 = vmul.f32 %v6004, %v6155
    %v6236 = vadd.f32 %v6234, %v6235
    %v6237 = vtanh.pop %v6236
    %v6238 = vmul.f32 %v6233, %v6237
    %6239 = vst.msk [vmem:[#allocation6 + $0x38] sm:$0xff] %vm234, %v6238
    %v6240 = vld [vmem:[#allocation6] sm:$0xff]
    %v6241 = vld [vmem:[#allocation6 + $0x8] sm:$0xff]
    %v6242 = vld [vmem:[#allocation6 + $0x10] sm:$0xff]
    %v6243 = vld [vmem:[#allocation6 + $0x18] sm:$0xff]
    %v6244 = vld [vmem:[#allocation6 + $0x20] sm:$0xff]
    %v6245 = vld [vmem:[#allocation6 + $0x28] sm:$0xff]
    %v6246 = vld [vmem:[#allocation6 + $0x30] sm:$0xff]
    %v6247 = vld [vmem:[#allocation6 + $0x38] sm:$0xff]
    %v6248 = vld [vmem:[#allocation12] sm:$0xff]
    %v6249 = vld [vmem:[#allocation12 + $0x8] sm:$0xff]
    %v6250 = vld [vmem:[#allocation12 + $0x10] sm:$0xff]
    %v6251 = vld [vmem:[#allocation12 + $0x18] sm:$0xff]
    %v6252 = vld [vmem:[%s8] sm:$0x1]
    %v6254 = vlaneseq
    %v6255 = vshrl.u32 %v6254, 7
    %v6256 = vsub.s32 0, %v6255
    %v6257 = vrot.slane %v6252, %v6256
    %v6260 = vsel %vm234, %v6240, 0
    %v6263 = vsel %vm234, %v6241, 0
    %v6266 = vsel %vm234, %v6242, 0
    %v6269 = vsel %vm234, %v6243, 0
    %v6272 = vsel %vm234, %v6244, 0
    %v6275 = vsel %vm234, %v6245, 0
    %v6278 = vsel %vm234, %v6246, 0
    %v6281 = vsel %vm234, %v6247, 0
    %6283 = vmatprep.subr.mxu0 0.0
    %6284 = vmatpush1.msra.mxu0 %v6248
    %6285 = vmatprep.subr.mxu0 0.0
    %6286 = vmatpush1.msra.mxu0 %v6249
    %6287 = vmatprep.subr.mxu0 0.0
    %6288 = vmatpush1.msra.mxu0 %v6250
    %6289 = vmatprep.subr.mxu0 0.0
    %6290 = vmatpush1.msra.mxu0 %v6251
    %6291 = vmatprep.subr.mxu0 0.0
    %6292 = vmatpush1.msra.mxu0 0.0
    %6293 = vmatprep.subr.mxu0 0.0
    %6294 = vmatpush1.msra.mxu0 0.0
    %6295 = vmatprep.subr.mxu0 0.0
    %6296 = vmatpush1.msra.mxu0 0.0
    %6297 = vmatprep.subr.mxu0 0.0
    %6298 = vmatpush1.msra.mxu0 0.0
    %6299 = vmatprep.subr.mxu0 0.0
    %6300 = vmatpush1.msra.mxu0 0.0
    %6301 = vmatprep.subr.mxu0 0.0
    %6302 = vmatpush1.msra.mxu0 0.0
    %6303 = vmatprep.subr.mxu0 0.0
    %6304 = vmatpush1.msra.mxu0 0.0
    %6305 = vmatprep.subr.mxu0 0.0
    %6306 = vmatpush1.msra.mxu0 0.0
    %6307 = vmatprep.subr.mxu0 0.0
    %6308 = vmatpush1.msra.mxu0 0.0
    %6309 = vmatprep.subr.mxu0 0.0
    %6310 = vmatpush1.msra.mxu0 0.0
    %6311 = vmatprep.subr.mxu0 0.0
    %6312 = vmatpush1.msra.mxu0 0.0
    %6313 = vmatprep.subr.mxu0 0.0
    %6314 = vmatpush1.msra.mxu0 0.0
    %6315 = vmatprep.subr.mxu0 0.0
    %6316 = vmatpush1.msra.mxu0 0.0
    %6317 = vmatprep.subr.mxu0 0.0
    %6318 = vmatpush1.msra.mxu0 0.0
    %6319 = vmatprep.subr.mxu0 0.0
    %6320 = vmatpush1.msra.mxu0 0.0
    %6321 = vmatprep.subr.mxu0 0.0
    %6322 = vmatpush1.msra.mxu0 0.0
    %6323 = vmatprep.subr.mxu0 0.0
    %6324 = vmatpush1.msra.mxu0 0.0
    %6325 = vmatprep.subr.mxu0 0.0
    %6326 = vmatpush1.msra.mxu0 0.0
    %6327 = vmatprep.subr.mxu0 0.0
    %6328 = vmatpush1.msra.mxu0 0.0
    %6329 = vmatprep.subr.mxu0 0.0
    %6330 = vmatpush1.msra.mxu0 0.0
    %6331 = vmatprep.subr.mxu0 0.0
    %6332 = vmatpush1.msra.mxu0 0.0
    %6333 = vmatprep.subr.mxu0 0.0
    %6334 = vmatpush1.msra.mxu0 0.0
    %6335 = vmatprep.subr.mxu0 0.0
    %6336 = vmatpush1.msra.mxu0 0.0
    %6337 = vmatprep.subr.mxu0 0.0
    %6338 = vmatpush1.msra.mxu0 0.0
    %6339 = vmatprep.subr.mxu0 0.0
    %6340 = vmatpush1.msra.mxu0 0.0
    %6341 = vmatprep.subr.mxu0 0.0
    %6342 = vmatpush1.msra.mxu0 0.0
    %6343 = vmatprep.subr.mxu0 0.0
    %6344 = vmatpush1.msra.mxu0 0.0
    %6345 = vmatprep.subr.mxu0 0.0
    %6346 = vmatpush1.msra.mxu0 0.0
    %6347 = vmatprep.mubr.f32.mxu0 0.0
    %6348 = vmatmul.mubr.f32.gmra.mrb[0].mxu0 %v6260
    %v6349 = vpop.f32.mrb[0].mxu0
    %v6350 = vadd.f32 %v6257, %v6349
    %v6351 = vpop.f32.mrb[0].mxu0
    %6352 = vmatprep.mubr.f32.mxu0 0.0
    %6353 = vmatmul.mubr.f32.gmra.mrb[0].mxu0 %v6263
    %v6354 = vpop.f32.mrb[0].mxu0
    %v6355 = vadd.f32 %v6257, %v6354
    %v6356 = vpop.f32.mrb[0].mxu0
    %6357 = vmatprep.mubr.f32.mxu0 0.0
    %6358 = vmatmul.mubr.f32.gmra.mrb[0].mxu0 %v6266
    %v6359 = vpop.f32.mrb[0].mxu0
    %v6360 = vadd.f32 %v6257, %v6359
    %v6361 = vpop.f32.mrb[0].mxu0
    %6362 = vmatprep.mubr.f32.mxu0 0.0
    %6363 = vmatmul.mubr.f32.gmra.mrb[0].mxu0 %v6269
    %v6364 = vpop.f32.mrb[0].mxu0
    %v6365 = vadd.f32 %v6257, %v6364
    %v6366 = vpop.f32.mrb[0].mxu0
    %6367 = vmatprep.mubr.f32.mxu0 0.0
    %6368 = vmatmul.mubr.f32.gmra.mrb[0].mxu0 %v6272
    %v6369 = vpop.f32.mrb[0].mxu0
    %v6370 = vadd.f32 %v6257, %v6369
    %v6371 = vpop.f32.mrb[0].mxu0
    %6372 = vmatprep.mubr.f32.mxu0 0.0
    %6373 = vmatmul.mubr.f32.gmra.mrb[0].mxu0 %v6275
    %v6374 = vpop.f32.mrb[0].mxu0
    %v6375 = vadd.f32 %v6257, %v6374
    %v6376 = vpop.f32.mrb[0].mxu0
    %6377 = vmatprep.mubr.f32.mxu0 0.0
    %6378 = vmatmul.mubr.f32.gmra.mrb[0].mxu0 %v6278
    %v6379 = vpop.f32.mrb[0].mxu0
    %v6380 = vadd.f32 %v6257, %v6379
    %v6381 = vpop.f32.mrb[0].mxu0
    %6382 = vmatprep.mubr.f32.mxu0 0.0
    %6383 = vmatmul.mubr.f32.gmra.mrb[0].mxu0 %v6281
    %v6384 = vpop.f32.mrb[0].mxu0
    %v6385 = vadd.f32 %v6257, %v6384
    %v6386 = vpop.f32.mrb[0].mxu0
    %6387 = vdwg.mxu0
    %6388 = vst [vmem:[%s9] sm:$0xff] %v6350
    %6389 = vst [vmem:[%s9 + $0x8] sm:$0xff] %v6355
    %6390 = vst [vmem:[%s9 + $0x10] sm:$0xff] %v6360
    %6391 = vst [vmem:[%s9 + $0x18] sm:$0xff] %v6365
    %6392 = vst [vmem:[%s9 + $0x20] sm:$0xff] %v6370
    %6393 = vst [vmem:[%s9 + $0x28] sm:$0xff] %v6375
    %6394 = vst [vmem:[%s9 + $0x30] sm:$0xff] %v6380
    %6395 = vst [vmem:[%s9 + $0x38] sm:$0xff] %v6385
    // Predicated region
    $region54: #{lstm_model_forward.1} parent=1 // pred_check
      _
    $region55: #{lstm_model_forward.1} parent=1 // pred_check_branch
      %6397 = sbr.rel (0) target = $region57
    $region56: #{lstm_model_forward.1} parent=1 // pred_region
      _
    $region57: #{lstm_model_forward.1} parent=1 // pred_fallthru
      _
    // Predicated region
    $region58: #{lstm_model_forward.1} parent=1 // pred_check
      _
    $region59: #{lstm_model_forward.1} parent=1 // pred_check_branch
      %6399 = sbr.rel (0) target = $region61
    $region60: #{lstm_model_forward.1} parent=1 // pred_region
      _
    $region61: #{lstm_model_forward.1} parent=1 // pred_fallthru
      _
    %6400 = vsyncpa [#allocation8], 1
    %6401 = vsyncpa [#allocation10], 1
    %6402 = vsyncpa [#allocation13], 1

</llo_original>
